<compile_context>
chip_gen: v7x
topology: tpu7x:2x2x1
jax: 0.10.0
libtpu: 0.0.40
codegen_flags: <defaults>
</compile_context>

<pallas_src>
import functools
import math

import jax
import jax.numpy as jnp
import numpy as np
from jax.experimental import pallas as pl
from jax.experimental.pallas import tpu as pltpu

_HIGHEST = jax.lax.Precision.HIGHEST


# --------------------------------- kernel -----------------------------------

def _rs_kernel(b_ref, x0_ref, *refs, mode, C, HW):
    # mode: "none" -> x[1] is None
    #       "same" -> in_channel == channel (x[1] added directly)
    #       "att"  -> in_channel != channel (att_conv stride-2 on x[1])
    f32 = jnp.float32
    if mode == "none":
        T5_ref, T3u_ref, Te_ref, out0_ref, att_ref = refs
        x1_ref = Ta_ref = None
    elif mode == "same":
        x1_ref, T5_ref, T3u_ref, Te_ref, out0_ref, att_ref = refs
        Ta_ref = None
    else:  # "att"
        x1_ref, T5_ref, T3u_ref, Te_ref, Ta_ref, out0_ref, att_ref = refs

    # ChannelAvgPool: mean over C lane-aligned 256-lane slices (per-slice f32
    # cast; never materializes a full f32 copy of the x0 block).
    acc = x0_ref[:, 0:HW].astype(f32)
    for c in range(1, C):
        acc = acc + x0_ref[:, c * HW:(c + 1) * HW].astype(f32)
    xm = acc * (1.0 / C)

    b5 = b_ref[0]
    b3 = b_ref[1]
    be = b_ref[2]
    ba = b_ref[3]

    # gather: Conv2d(1,1,5,pad=2) + ReLU
    g5 = jnp.maximum(
        jnp.dot(xm, T5_ref[...], preferred_element_type=f32,
                precision=_HIGHEST) + b5, 0.0)
    # gather: Conv2d(1,1,3,stride=2,pad=1) fused with nearest-2x upsample
    # (T3u already replicates the stride-2 output); ReLU commutes with the
    # replication so applying it after the fused matmul matches the reference.
    up = jnp.maximum(
        jnp.dot(g5, T3u_ref[...], preferred_element_type=f32,
                precision=_HIGHEST) + b3, 0.0)
    # excite: Conv2d(1,1,3,pad=1)
    y = jnp.dot(up, Te_ref[...], preferred_element_type=f32,
                precision=_HIGHEST) + be

    if mode == "none":
        all_att = y
    elif mode == "same":
        all_att = y + x1_ref[...].astype(f32)
    else:
        pre = jnp.dot(x1_ref[...].astype(f32), Ta_ref[...],
                      preferred_element_type=f32, precision=_HIGHEST) + ba
        all_att = y + pre

    # exact sigmoid (exp rides the EUP slot; exact divide kept for tolerance)
    sig = 1.0 / (1.0 + jnp.exp(-all_att))

    att_ref[...] = all_att.astype(att_ref.dtype)
    sig_x = sig.astype(x0_ref.dtype)
    for c in range(C):
        sl = slice(c * HW, (c + 1) * HW)
        out0_ref[:, sl] = (x0_ref[:, sl] * sig_x).astype(out0_ref.dtype)


# ------------------------ dense conv operators (wrapper) --------------------

def _conv_operator(w, stride, pad, h_in, w_in, upsample=False):
    """Dense operator T of shape (h_in*w_in, n_out) such that
    flat_in @ T == flatten(conv2d(in, w, stride, pad))  (no bias),
    built by pushing an identity basis through lax.conv (exact PyTorch
    cross-correlation + zero-padding semantics).  If `upsample`, the
    nearest-2x upsample is fused into the operator's columns."""
    n = h_in * w_in
    basis = jnp.eye(n, dtype=jnp.float32).reshape(n, 1, h_in, w_in)
    out = jax.lax.conv_general_dilated(
        basis, w.reshape(1, 1, *w.shape).astype(jnp.float32),
        window_strides=(stride, stride),
        padding=[(pad, pad), (pad, pad)],
        dimension_numbers=("NCHW", "OIHW", "NCHW"),
        precision=_HIGHEST)
    if upsample:
        out = jnp.repeat(jnp.repeat(out, 2, axis=2), 2, axis=3)
    return out.reshape(n, -1)


def _pick_nb(N, target, per_sample, full_block_cap=24 << 20):
    """Largest multiple-of-8 divisor of N <= target (full sublane occupancy);
    tiny batches fall back to one whole-batch step (block == array dim)."""
    target = max(1, min(N, int(target)))
    mult8 = [d for d in range(8, target + 1, 8) if N % d == 0]
    if mult8:
        return max(mult8)
    if N * per_sample <= full_block_cap:
        return N
    return max(d for d in range(1, target + 1) if N % d == 0)


# --------------------------------- wrapper ----------------------------------

def rs_layer_forward(x0, x1, params, *, in_channel, channel):
    """Pallas forward of RSLayer: returns {0: x0 * sigmoid(att), 1: att}."""
    N, C, H, W = x0.shape
    assert C == channel, (C, channel)
    assert H % 2 == 0 and W % 2 == 0, (H, W)
    HW = H * W

    if x1 is None:
        mode, x1_lanes, x1_flat = "none", 0, None
        att_dtype = x0.dtype
    elif in_channel != channel:
        mode, x1_lanes = "att", 4 * HW
        assert x1.shape == (N, 1, 2 * H, 2 * W), x1.shape
        x1_flat = x1.reshape(N, 4 * HW)
        att_dtype = jnp.promote_types(x0.dtype, x1.dtype)
    else:
        mode, x1_lanes = "same", HW
        # TODO(synk): reference allows broadcastable x1 shapes; only (N,1,H,W) here.
        assert x1.shape == (N, 1, H, W), x1.shape
        x1_flat = x1.reshape(N, HW)
        att_dtype = jnp.promote_types(x0.dtype, x1.dtype)

    # Dense conv operators (MXU path), built from the conv weights.
    T5 = _conv_operator(params["w5"], 1, 2, H, W)                  # (HW, HW)
    T3u = _conv_operator(params["w3"], 2, 1, H, W, upsample=True)  # (HW, HW)
    Te = _conv_operator(params["we"], 1, 1, H, W)                  # (HW, HW)
    mats = [T5, T3u, Te]
    mat_specs = [pl.BlockSpec((HW, HW), lambda n: (0, 0)) for _ in range(3)]
    if mode == "att":
        Ta = _conv_operator(params["wa"], 2, 1, 2 * H, 2 * W)      # (4HW, HW)
        mats.append(Ta)
        mat_specs.append(pl.BlockSpec((4 * HW, HW), lambda n: (0, 0)))

    biases = jnp.stack([params["b5"], params["b3"],
                        params["be"], params["ba"]]).astype(jnp.float32)

    # ---- batch-block (nb) and VMEM budget -----------------------------------
    x0_isz = jnp.dtype(x0.dtype).itemsize
    per_sample = 2 * C * HW * x0_isz + HW * jnp.dtype(att_dtype).itemsize
    if x1 is not None:
        per_sample += x1_lanes * jnp.dtype(x1.dtype).itemsize

    try:
        vmem_cap = int(pltpu.get_tpu_info().vmem_capacity_bytes)
    except Exception:  # be conservative (v7x has 64 MiB)
        vmem_cap = 64 << 20
    block_target = (16 << 20) if vmem_cap >= (100 << 20) else (8 << 20)

    nb_target = max(1, block_target // max(per_sample, 1))
    if N >= 16:
        nb_target = min(nb_target, N // 2)   # >= 2 grid steps (2 TCs on v7x)
    nb = _pick_nb(N, nb_target, per_sample)

    mat_bytes = sum(int(np.prod(m.shape)) * 4 for m in mats)
    vmem_need = 4 * nb * per_sample + 2 * mat_bytes + (8 << 20)
    vmem_limit = int(min(max(vmem_need, 32 << 20), (vmem_cap * 3) // 4))

    # ---- pallas_call ---------------------------------------------------------
    kernel = functools.partial(_rs_kernel, mode=mode, C=C, HW=HW)

    in_specs = [
        pl.BlockSpec(memory_space=pltpu.MemorySpace.SMEM),      # biases
        pl.BlockSpec((nb, C * HW), lambda n: (n, 0)),           # x0 (channels on lanes)
    ]
    args = [biases, x0.reshape(N, C * HW)]
    if mode != "none":                                          # no dummy-x1 DMA
        in_specs.append(pl.BlockSpec((nb, x1_lanes), lambda n: (n, 0)))
        args.append(x1_flat)
    in_specs += mat_specs
    args += mats

    out0, att = pl.pallas_call(
        kernel,
        out_shape=(jax.ShapeDtypeStruct((N, C * HW), x0.dtype),
                   jax.ShapeDtypeStruct((N, HW), att_dtype)),
        grid=(N // nb,),
        in_specs=in_specs,
        out_specs=(pl.BlockSpec((nb, C * HW), lambda n: (n, 0)),
                   pl.BlockSpec((nb, HW), lambda n: (n, 0))),
        compiler_params=pltpu.CompilerParams(
            dimension_semantics=("parallel",),
            vmem_limit_bytes=vmem_limit),
    )(*args)

    return {0: out0.reshape(N, C, H, W), 1: att.reshape(N, 1, H, W)}


# ---------------------- deterministic parameter init ------------------------

def init_params(key):
    """Conv2d(1, 1, k) weights/biases, PyTorch-style uniform(-1/sqrt(k*k), .)."""
    def conv_init(k_key, k):
        kw, kb = jax.random.split(k_key)
        bound = 1.0 / math.sqrt(k * k)
        w = jax.random.uniform(kw, (k, k), jnp.float32, -bound, bound)
        b = jax.random.uniform(kb, (), jnp.float32, -bound, bound)
        return w, b
    k1, k2, k3, k4 = jax.random.split(key, 4)
    w5, b5 = conv_init(k1, 5)   # gather conv 5x5
    w3, b3 = conv_init(k2, 3)   # gather conv 3x3 stride 2
    we, be = conv_init(k3, 3)   # excite conv 3x3
    wa, ba = conv_init(k4, 3)   # att_conv 3x3 stride 2
    return dict(w5=w5, b5=b5, w3=w3, b3=b3, we=we, be=be, wa=wa, ba=ba)


# ---------------------------- pure-JAX reference ----------------------------

def rs_layer_reference(x0, x1, params, *, in_channel, channel):
    def conv(x, w, b, stride, pad):
        out = jax.lax.conv_general_dilated(
            x, w.reshape(1, 1, *w.shape), (stride, stride),
            [(pad, pad), (pad, pad)],
            dimension_numbers=("NCHW", "OIHW", "NCHW"),
            precision=_HIGHEST)
        return out + b
    y = jnp.mean(x0, axis=1, keepdims=True)
    y = jax.nn.relu(conv(y, params["w5"], params["b5"], 1, 2))
    y = jax.nn.relu(conv(y, params["w3"], params["b3"], 2, 1))
    y = jnp.repeat(jnp.repeat(y, 2, axis=2), 2, axis=3)   # nearest x2
    y = conv(y, params["we"], params["be"], 1, 1)
    if x1 is None:
        all_att = y
    else:
        pre = (conv(x1, params["wa"], params["ba"], 2, 1)
               if in_channel != channel else x1)
        all_att = y + pre
    sig = jax.nn.sigmoid(all_att)
    return {0: x0 * sig, 1: all_att}


# ----------------------------------- main ------------------------------------

if __name__ == "__main__":
    key = jax.random.PRNGKey(0)
    kp, kx0, kx1a, kx1s = jax.random.split(key, 4)

    N, H, W = 2, 16, 16
    channel = 4
    params = init_params(kp)
    x0 = jax.random.normal(kx0, (N, channel, H, W), jnp.float32)

    def check(out, ref):
        jax.block_until_ready(out[0])
        jax.block_until_ready(out[1])
        np.testing.assert_allclose(np.asarray(out[0]), np.asarray(ref[0]),
                                   rtol=1e-4, atol=1e-4)
        np.testing.assert_allclose(np.asarray(out[1]), np.asarray(ref[1]),
                                   rtol=1e-4, atol=1e-4)

    # mode "att": in_channel != channel -> att_conv on x[1] at 2x resolution
    x1_att = jax.random.normal(kx1a, (N, 1, 2 * H, 2 * W), jnp.float32)
    check(rs_layer_forward(x0, x1_att, params, in_channel=2, channel=channel),
          rs_layer_reference(x0, x1_att, params, in_channel=2, channel=channel))

    # mode "same": in_channel == channel -> pre_att = x[1]
    x1_same = jax.random.normal(kx1s, (N, 1, H, W), jnp.float32)
    check(rs_layer_forward(x0, x1_same, params, in_channel=channel, channel=channel),
          rs_layer_reference(x0, x1_same, params, in_channel=channel, channel=channel))

    # mode "none": x[1] is None (x1 argument is not even passed to the kernel)
    check(rs_layer_forward(x0, None, params, in_channel=channel, channel=channel),
          rs_layer_reference(x0, None, params, in_channel=channel, channel=channel))

    print("KERNEL_OK")
</pallas_src>

<mosaic_0001>
module attributes {stable_mosaic.version = 11 : i64} {
  func.func @_rs_kernel(%arg0: i32, %arg1: memref<4xf32, #tpu.memory_space<smem>>, %arg2: memref<2x1024xf32, #tpu.memory_space<vmem>>, %arg3: memref<2x1024xf32, #tpu.memory_space<vmem>>, %arg4: memref<256x256xf32, #tpu.memory_space<vmem>>, %arg5: memref<256x256xf32, #tpu.memory_space<vmem>>, %arg6: memref<256x256xf32, #tpu.memory_space<vmem>>, %arg7: memref<1024x256xf32, #tpu.memory_space<vmem>>, %arg8: memref<2x1024xf32, #tpu.memory_space<vmem>>, %arg9: memref<2x256xf32, #tpu.memory_space<vmem>>) attributes {dimension_semantics = [#tpu.dimension_semantics<parallel>], iteration_bounds = array<i64: 1>, scalar_prefetch = 0 : i64, scratch_operands = 0 : i64, tpu.core_type = #tpu.core_type<tc>, window_params = [{transform_indices = @transform_0, window_bounds = array<i64: 4>}, {transform_indices = @transform_1, window_bounds = array<i64: 2, 1024>}, {transform_indices = @transform_2, window_bounds = array<i64: 2, 1024>}, {pipeline_mode = #tpu.pipeline_mode<synchronous>, transform_indices = @transform_3, window_bounds = array<i64: 256, 256>}, {pipeline_mode = #tpu.pipeline_mode<synchronous>, transform_indices = @transform_4, window_bounds = array<i64: 256, 256>}, {pipeline_mode = #tpu.pipeline_mode<synchronous>, transform_indices = @transform_5, window_bounds = array<i64: 256, 256>}, {pipeline_mode = #tpu.pipeline_mode<synchronous>, transform_indices = @transform_6, window_bounds = array<i64: 1024, 256>}, {transform_indices = @transform_7, window_bounds = array<i64: 2, 1024>}, {transform_indices = @transform_8, window_bounds = array<i64: 2, 256>}]} {
    %c0 = arith.constant 0 : index
    %c0_0 = arith.constant 0 : index
    %0 = vector.load %arg2[%c0, %c0_0] : memref<2x1024xf32, #tpu.memory_space<vmem>>, vector<2x256xf32>
    %c0_1 = arith.constant 0 : index
    %c256 = arith.constant 256 : index
    %1 = vector.load %arg2[%c0_1, %c256] : memref<2x1024xf32, #tpu.memory_space<vmem>>, vector<2x256xf32>
    %2 = arith.addf %0, %1 : vector<2x256xf32>
    %c0_2 = arith.constant 0 : index
    %c512 = arith.constant 512 : index
    %3 = vector.load %arg2[%c0_2, %c512] : memref<2x1024xf32, #tpu.memory_space<vmem>>, vector<2x256xf32>
    %4 = arith.addf %2, %3 : vector<2x256xf32>
    %c0_3 = arith.constant 0 : index
    %c768 = arith.constant 768 : index
    %5 = vector.load %arg2[%c0_3, %c768] : memref<2x1024xf32, #tpu.memory_space<vmem>>, vector<2x256xf32>
    %6 = arith.addf %4, %5 : vector<2x256xf32>
    %cst = arith.constant 2.500000e-01 : f32
    %7 = vector.broadcast %cst : f32 to vector<2x256xf32>
    %8 = arith.mulf %6, %7 : vector<2x256xf32>
    %c0_4 = arith.constant 0 : index
    %9 = memref.load %arg1[%c0_4] : memref<4xf32, #tpu.memory_space<smem>>
    %c1 = arith.constant 1 : index
    %10 = memref.load %arg1[%c1] : memref<4xf32, #tpu.memory_space<smem>>
    %c2 = arith.constant 2 : index
    %11 = memref.load %arg1[%c2] : memref<4xf32, #tpu.memory_space<smem>>
    %c3 = arith.constant 3 : index
    %12 = memref.load %arg1[%c3] : memref<4xf32, #tpu.memory_space<smem>>
    %c0_5 = arith.constant 0 : index
    %c0_6 = arith.constant 0 : index
    %13 = vector.load %arg4[%c0_5, %c0_6] : memref<256x256xf32, #tpu.memory_space<vmem>>, vector<256x256xf32>
    %cst_7 = arith.constant dense<0.000000e+00> : vector<2x256xf32>
    %14 = tpu.matmul %8, %13, %cst_7 {dimension_numbers = #tpu.dot_dimension_numbers<[1], [0], [0], [1], [0, 0, 1, 1], [], []>, precision = #tpu.contract_precision<fp32>} : vector<2x256xf32>, vector<256x256xf32>, vector<2x256xf32> -> vector<2x256xf32>
    %15 = vector.broadcast %9 : f32 to vector<2x256xf32>
    %16 = arith.addf %14, %15 : vector<2x256xf32>
    %cst_8 = arith.constant 0.000000e+00 : f32
    %17 = vector.broadcast %cst_8 : f32 to vector<2x256xf32>
    %18 = arith.maximumf %16, %17 : vector<2x256xf32>
    %c0_9 = arith.constant 0 : index
    %c0_10 = arith.constant 0 : index
    %19 = vector.load %arg5[%c0_9, %c0_10] : memref<256x256xf32, #tpu.memory_space<vmem>>, vector<256x256xf32>
    %cst_11 = arith.constant dense<0.000000e+00> : vector<2x256xf32>
    %20 = tpu.matmul %18, %19, %cst_11 {dimension_numbers = #tpu.dot_dimension_numbers<[1], [0], [0], [1], [0, 0, 1, 1], [], []>, precision = #tpu.contract_precision<fp32>} : vector<2x256xf32>, vector<256x256xf32>, vector<2x256xf32> -> vector<2x256xf32>
    %21 = vector.broadcast %10 : f32 to vector<2x256xf32>
    %22 = arith.addf %20, %21 : vector<2x256xf32>
    %cst_12 = arith.constant 0.000000e+00 : f32
    %23 = vector.broadcast %cst_12 : f32 to vector<2x256xf32>
    %24 = arith.maximumf %22, %23 : vector<2x256xf32>
    %c0_13 = arith.constant 0 : index
    %c0_14 = arith.constant 0 : index
    %25 = vector.load %arg6[%c0_13, %c0_14] : memref<256x256xf32, #tpu.memory_space<vmem>>, vector<256x256xf32>
    %cst_15 = arith.constant dense<0.000000e+00> : vector<2x256xf32>
    %26 = tpu.matmul %24, %25, %cst_15 {dimension_numbers = #tpu.dot_dimension_numbers<[1], [0], [0], [1], [0, 0, 1, 1], [], []>, precision = #tpu.contract_precision<fp32>} : vector<2x256xf32>, vector<256x256xf32>, vector<2x256xf32> -> vector<2x256xf32>
    %27 = vector.broadcast %11 : f32 to vector<2x256xf32>
    %28 = arith.addf %26, %27 : vector<2x256xf32>
    %c0_16 = arith.constant 0 : index
    %c0_17 = arith.constant 0 : index
    %29 = vector.load %arg3[%c0_16, %c0_17] : memref<2x1024xf32, #tpu.memory_space<vmem>>, vector<2x1024xf32>
    %c0_18 = arith.constant 0 : index
    %c0_19 = arith.constant 0 : index
    %30 = vector.load %arg7[%c0_18, %c0_19] : memref<1024x256xf32, #tpu.memory_space<vmem>>, vector<1024x256xf32>
    %cst_20 = arith.constant dense<0.000000e+00> : vector<2x256xf32>
    %31 = tpu.matmul %29, %30, %cst_20 {dimension_numbers = #tpu.dot_dimension_numbers<[1], [0], [0], [1], [0, 0, 1, 1], [], []>, precision = #tpu.contract_precision<fp32>} : vector<2x1024xf32>, vector<1024x256xf32>, vector<2x256xf32> -> vector<2x256xf32>
    %32 = vector.broadcast %12 : f32 to vector<2x256xf32>
    %33 = arith.addf %31, %32 : vector<2x256xf32>
    %34 = arith.addf %28, %33 : vector<2x256xf32>
    %cst_21 = arith.constant 0.000000e+00 : f32
    %35 = vector.broadcast %cst_21 : f32 to vector<2x256xf32>
    %36 = arith.subf %35, %34 : vector<2x256xf32>
    %37 = math.exp %36 : vector<2x256xf32>
    %cst_22 = arith.constant 1.000000e+00 : f32
    %38 = vector.broadcast %cst_22 : f32 to vector<2x256xf32>
    %39 = arith.addf %38, %37 : vector<2x256xf32>
    %cst_23 = arith.constant 1.000000e+00 : f32
    %40 = vector.broadcast %cst_23 : f32 to vector<2x256xf32>
    %41 = arith.divf %40, %39 : vector<2x256xf32>
    %c0_24 = arith.constant 0 : index
    %c0_25 = arith.constant 0 : index
    %42 = vector.load %arg9[%c0_24, %c0_25] : memref<2x256xf32, #tpu.memory_space<vmem>>, vector<2x256xf32>
    tpu.vector_store %arg9[%c0_24, %c0_25], %34 {strides = array<i32>} : memref<2x256xf32, #tpu.memory_space<vmem>>, vector<2x256xf32>,
    %c0_26 = arith.constant 0 : index
    %c0_27 = arith.constant 0 : index
    %43 = vector.load %arg2[%c0_26, %c0_27] : memref<2x1024xf32, #tpu.memory_space<vmem>>, vector<2x256xf32>
    %44 = arith.mulf %43, %41 : vector<2x256xf32>
    %c0_28 = arith.constant 0 : index
    %c0_29 = arith.constant 0 : index
    %45 = vector.load %arg8[%c0_28, %c0_29] : memref<2x1024xf32, #tpu.memory_space<vmem>>, vector<2x256xf32>
    tpu.vector_store %arg8[%c0_28, %c0_29], %44 {strides = array<i32>} : memref<2x1024xf32, #tpu.memory_space<vmem>>, vector<2x256xf32>,
    %c0_30 = arith.constant 0 : index
    %c256_31 = arith.constant 256 : index
    %46 = vector.load %arg2[%c0_30, %c256_31] : memref<2x1024xf32, #tpu.memory_space<vmem>>, vector<2x256xf32>
    %47 = arith.mulf %46, %41 : vector<2x256xf32>
    %c0_32 = arith.constant 0 : index
    %c256_33 = arith.constant 256 : index
    %48 = vector.load %arg8[%c0_32, %c256_33] : memref<2x1024xf32, #tpu.memory_space<vmem>>, vector<2x256xf32>
    tpu.vector_store %arg8[%c0_32, %c256_33], %47 {strides = array<i32>} : memref<2x1024xf32, #tpu.memory_space<vmem>>, vector<2x256xf32>,
    %c0_34 = arith.constant 0 : index
    %c512_35 = arith.constant 512 : index
    %49 = vector.load %arg2[%c0_34, %c512_35] : memref<2x1024xf32, #tpu.memory_space<vmem>>, vector<2x256xf32>
    %50 = arith.mulf %49, %41 : vector<2x256xf32>
    %c0_36 = arith.constant 0 : index
    %c512_37 = arith.constant 512 : index
    %51 = vector.load %arg8[%c0_36, %c512_37] : memref<2x1024xf32, #tpu.memory_space<vmem>>, vector<2x256xf32>
    tpu.vector_store %arg8[%c0_36, %c512_37], %50 {strides = array<i32>} : memref<2x1024xf32, #tpu.memory_space<vmem>>, vector<2x256xf32>,
    %c0_38 = arith.constant 0 : index
    %c768_39 = arith.constant 768 : index
    %52 = vector.load %arg2[%c0_38, %c768_39] : memref<2x1024xf32, #tpu.memory_space<vmem>>, vector<2x256xf32>
    %53 = arith.mulf %52, %41 : vector<2x256xf32>
    %c0_40 = arith.constant 0 : index
    %c768_41 = arith.constant 768 : index
    %54 = vector.load %arg8[%c0_40, %c768_41] : memref<2x1024xf32, #tpu.memory_space<vmem>>, vector<2x256xf32>
    tpu.vector_store %arg8[%c0_40, %c768_41], %53 {strides = array<i32>} : memref<2x1024xf32, #tpu.memory_space<vmem>>, vector<2x256xf32>,
    return
  }
  func.func @transform_0(%arg0: i32) -> i32 {
    %c0_i32 = arith.constant 0 : i32
    %c0_i32_0 = arith.constant 0 : i32
    return %c0_i32 : i32
  }
  func.func @transform_1(%arg0: i32) -> (i32, i32) {
    %c0_i32 = arith.constant 0 : i32
    %c0_i32_0 = arith.constant 0 : i32
    return %arg0, %c0_i32 : i32, i32
  }
  func.func @transform_2(%arg0: i32) -> (i32, i32) {
    %c0_i32 = arith.constant 0 : i32
    %c0_i32_0 = arith.constant 0 : i32
    return %arg0, %c0_i32 : i32, i32
  }
  func.func @transform_3(%arg0: i32) -> (i32, i32) {
    %c0_i32 = arith.constant 0 : i32
    %c0_i32_0 = arith.constant 0 : i32
    %c0_i32_1 = arith.constant 0 : i32
    return %c0_i32, %c0_i32_0 : i32, i32
  }
  func.func @transform_4(%arg0: i32) -> (i32, i32) {
    %c0_i32 = arith.constant 0 : i32
    %c0_i32_0 = arith.constant 0 : i32
    %c0_i32_1 = arith.constant 0 : i32
    return %c0_i32, %c0_i32_0 : i32, i32
  }
  func.func @transform_5(%arg0: i32) -> (i32, i32) {
    %c0_i32 = arith.constant 0 : i32
    %c0_i32_0 = arith.constant 0 : i32
    %c0_i32_1 = arith.constant 0 : i32
    return %c0_i32, %c0_i32_0 : i32, i32
  }
  func.func @transform_6(%arg0: i32) -> (i32, i32) {
    %c0_i32 = arith.constant 0 : i32
    %c0_i32_0 = arith.constant 0 : i32
    %c0_i32_1 = arith.constant 0 : i32
    return %c0_i32, %c0_i32_0 : i32, i32
  }
  func.func @transform_7(%arg0: i32) -> (i32, i32) {
    %c0_i32 = arith.constant 0 : i32
    %c0_i32_0 = arith.constant 0 : i32
    return %arg0, %c0_i32 : i32, i32
  }
  func.func @transform_8(%arg0: i32) -> (i32, i32) {
    %c0_i32 = arith.constant 0 : i32
    %c0_i32_0 = arith.constant 0 : i32
    return %arg0, %c0_i32 : i32, i32
  }
}

</mosaic_0001>

<llo_original>
// kernel: tpu_custom_call.1
$region0: #{tpu_custom_call.1}
  #allocation0 [shape = 'u32[]', space=smem, size = 0x4, offset = 0x4, fixed_abs, tag = 'smem constant byte address 0x4 - core index']
  #allocation1 [shape = 'u32[144,128]{1,0:T(1,128)}', space=vmem, size = 0x12000, scoped, tag = 'internal scratch']
  %s0 = inlined_call_operand.hbm [shape: f32[4], index: 0, kind: input, shape index: {}]
  %s1 = inlined_call_operand.hbm [shape: f32[2,1024], index: 1, kind: input, shape index: {}]
  %s2 = inlined_call_operand.hbm [shape: f32[2,1024], index: 2, kind: input, shape index: {}]
  %s3 = inlined_call_operand.hbm [shape: f32[256,256], index: 3, kind: input, shape index: {}]
  %s4 = inlined_call_operand.hbm [shape: f32[256,256], index: 4, kind: input, shape index: {}]
  %s5 = inlined_call_operand.hbm [shape: f32[256,256], index: 5, kind: input, shape index: {}]
  %s6 = inlined_call_operand.hbm [shape: f32[1024,256], index: 6, kind: input, shape index: {}]
  %s7 = inlined_call_operand.hbm [shape: f32[2,1024], index: 7, kind: output, shape index: {0}]
  %s8 = inlined_call_operand.hbm [shape: f32[2,256], index: 8, kind: output, shape index: {1}]
  %9 = xla_tuple %s7, %s8
  %s10 = sld [smem:[#allocation0]]
  $region74: #{tpu_custom_call.1} parent=0
    _
  %s12 = ssub.s32 1, %s10
  %s13 = scalar_select 0, %s12, %s10
  $region1: #{tpu_custom_call.1} parent=0
    #allocation2 [shape = 'u8[512]{0}', space=smem, size = 0x200, scoped, tag = 'input window, operand 0, single buffered']
    #allocation3 [shape = 's32[1]{0}', space=sflag, size = 0x4, scoped, tag = 'scoped memory for tpu_custom_call.1']
    #allocation4 [shape = 's32[1]{0}', space=sflag, size = 0x4, scoped, tag = 'scoped memory for tpu_custom_call.1']
    #allocation5 [shape = 's32[1]{0}', space=sflag, size = 0x4, scoped, tag = 'scoped memory for tpu_custom_call.1']
    #allocation6 [shape = 'u8[8192]{0}', space=vmem, size = 0x2000, scoped, tag = 'input window, operand 1, single buffered']
    #allocation7 [shape = 'u8[8192]{0}', space=vmem, size = 0x2000, scoped, tag = 'input window, operand 2, single buffered']
    #allocation8 [shape = 's32[1]{0}', space=sflag, size = 0x4, scoped, tag = 'scoped memory for tpu_custom_call.1']
    #allocation9 [shape = 'u8[262144]{0}', space=vmem, size = 0x40000, scoped, tag = 'input window, operand 3, single buffered']
    #allocation10 [shape = 'u8[262144]{0}', space=vmem, size = 0x40000, scoped, tag = 'input window, operand 4, single buffered']
    #allocation11 [shape = 's32[1]{0}', space=sflag, size = 0x4, scoped, tag = 'scoped memory for tpu_custom_call.1']
    #allocation12 [shape = 'u8[262144]{0}', space=vmem, size = 0x40000, scoped, tag = 'input window, operand 5, single buffered']
    #allocation13 [shape = 'u8[1048576]{0}', space=vmem, size = 0x100000, scoped, tag = 'input window, operand 6, single buffered']
    #allocation14 [shape = 's32[1]{0}', space=sflag, size = 0x4, scoped, tag = 'scoped memory for tpu_custom_call.1']
    #allocation15 [shape = 'u8[8192]{0}', space=vmem, size = 0x2000, scoped, tag = 'output window, operand 0, single buffered']
    #allocation16 [shape = 'u8[2048]{0}', space=vmem, size = 0x800, scoped, tag = 'output window, operand 1, single buffered']
    #allocation17 [shape = 's32[1]{0}', space=sflag, size = 0x4, scoped, tag = 'scoped memory for tpu_custom_call.1']
    %14 = vsyncpa [#allocation5], 0
    %15 = vsyncpa [#allocation3], 0
    %16 = vsyncpa [#allocation8], 0
    %17 = vsyncpa [#allocation11], 0
    %18 = vsyncpa [#allocation14], 0
    %19 = vsyncpa [#allocation4], 0
    %20 = vsyncpa [#allocation17], 0
    // Predicated region
    $region2: #{tpu_custom_call.1} parent=1 // pred_check
      _
    $region3: #{tpu_custom_call.1} parent=1 // pred_check_branch
      %22 = sbr.rel (0) target = $region5
    $region4: #{tpu_custom_call.1} parent=1 // pred_region
      %s24 = ssub.s32 16, 16
      %25 = vsyncadd [#allocation5], %s24
      %28 = dma.hbm_to_smem %s0, 16, [#allocation2], [#allocation5]
    $region5: #{tpu_custom_call.1} parent=1 // pred_fallthru
      _
    // Predicated region
    $region6: #{tpu_custom_call.1} parent=1 // pred_check
      _
    $region7: #{tpu_custom_call.1} parent=1 // pred_check_branch
      %30 = sbr.rel (0) target = $region9
    $region8: #{tpu_custom_call.1} parent=1 // pred_region
      %s32 = ssub.s32 256, 256
      %33 = vsyncadd [#allocation3], %s32
      %s35 = sshll.u32 [#allocation6], 4
      %s36 = int_to_ptr.vmem [resolvable:$true] %s35
      %38 = dma.hbm_to_vmem [thread:$0]  %s1, 256, %s36, [#allocation3]
    $region9: #{tpu_custom_call.1} parent=1 // pred_fallthru
      _
    // Predicated region
    $region10: #{tpu_custom_call.1} parent=1 // pred_check
      _
    $region11: #{tpu_custom_call.1} parent=1 // pred_check_branch
      %40 = sbr.rel (0) target = $region13
    $region12: #{tpu_custom_call.1} parent=1 // pred_region
      %s42 = ssub.s32 256, 256
      %43 = vsyncadd [#allocation8], %s42
      %s45 = sshll.u32 [#allocation7], 4
      %s46 = int_to_ptr.vmem [resolvable:$true] %s45
      %48 = dma.hbm_to_vmem [thread:$0]  %s2, 256, %s46, [#allocation8]
    $region13: #{tpu_custom_call.1} parent=1 // pred_fallthru
      _
    // Predicated region
    $region14: #{tpu_custom_call.1} parent=1 // pred_check
      _
    $region15: #{tpu_custom_call.1} parent=1 // pred_check_branch
      %50 = sbr.rel (0) target = $region17
    $region16: #{tpu_custom_call.1} parent=1 // pred_region
      %s52 = ssub.s32 8192, 8192
      %53 = vsyncadd [#allocation8], %s52
      %s54 = sshll.u32 [#allocation9], 4
      %s55 = int_to_ptr.vmem [resolvable:$true] %s54
      %60 = dma.hbm_to_vmem [thread:$0]  %s3, 8192, %s55, [#allocation8], 256, 256, 16
    $region17: #{tpu_custom_call.1} parent=1 // pred_fallthru
      _
    // Predicated region
    $region18: #{tpu_custom_call.1} parent=1 // pred_check
      _
    $region19: #{tpu_custom_call.1} parent=1 // pred_check_branch
      %62 = sbr.rel (0) target = $region21
    $region20: #{tpu_custom_call.1} parent=1 // pred_region
      %s64 = ssub.s32 8192, 8192
      %65 = vsyncadd [#allocation11], %s64
      %s66 = sshll.u32 [#allocation10], 4
      %s67 = int_to_ptr.vmem [resolvable:$true] %s66
      %72 = dma.hbm_to_vmem [thread:$0]  %s4, 8192, %s67, [#allocation11], 256, 256, 16
    $region21: #{tpu_custom_call.1} parent=1 // pred_fallthru
      _
    // Predicated region
    $region22: #{tpu_custom_call.1} parent=1 // pred_check
      _
    $region23: #{tpu_custom_call.1} parent=1 // pred_check_branch
      %74 = sbr.rel (0) target = $region25
    $region24: #{tpu_custom_call.1} parent=1 // pred_region
      %s76 = ssub.s32 8192, 8192
      %77 = vsyncadd [#allocation11], %s76
      %s78 = sshll.u32 [#allocation12], 4
      %s79 = int_to_ptr.vmem [resolvable:$true] %s78
      %84 = dma.hbm_to_vmem [thread:$0]  %s5, 8192, %s79, [#allocation11], 256, 256, 16
    $region25: #{tpu_custom_call.1} parent=1 // pred_fallthru
      _
    // Predicated region
    $region26: #{tpu_custom_call.1} parent=1 // pred_check
      _
    $region27: #{tpu_custom_call.1} parent=1 // pred_check_branch
      %86 = sbr.rel (0) target = $region29
    $region28: #{tpu_custom_call.1} parent=1 // pred_region
      %s88 = ssub.s32 32768, 32768
      %89 = vsyncadd [#allocation14], %s88
      %s90 = sshll.u32 [#allocation13], 4
      %s91 = int_to_ptr.vmem [resolvable:$true] %s90
      %96 = dma.hbm_to_vmem [thread:$0]  %s6, 32768, %s91, [#allocation14], 256, 256, 16
    $region29: #{tpu_custom_call.1} parent=1 // pred_fallthru
      _
    // Predicated region
    $region30: #{tpu_custom_call.1} parent=1 // pred_check
      _
    $region31: #{tpu_custom_call.1} parent=1 // pred_check_branch
      %98 = sbr.rel (0) target = $region33
    $region32: #{tpu_custom_call.1} parent=1 // pred_region
      %99 = dma.done [#allocation5], 16
    $region33: #{tpu_custom_call.1} parent=1 // pred_fallthru
      _
    // Predicated region
    $region34: #{tpu_custom_call.1} parent=1 // pred_check
      _
    $region35: #{tpu_custom_call.1} parent=1 // pred_check_branch
      %101 = sbr.rel (0) target = $region37
    $region36: #{tpu_custom_call.1} parent=1 // pred_region
      %102 = dma.done [#allocation3], 256
    $region37: #{tpu_custom_call.1} parent=1 // pred_fallthru
      _
    // Predicated region
    $region38: #{tpu_custom_call.1} parent=1 // pred_check
      _
    $region39: #{tpu_custom_call.1} parent=1 // pred_check_branch
      %104 = sbr.rel (0) target = $region41
    $region40: #{tpu_custom_call.1} parent=1 // pred_region
      %105 = dma.done [#allocation8], 256
    $region41: #{tpu_custom_call.1} parent=1 // pred_fallthru
      _
    // Predicated region
    $region42: #{tpu_custom_call.1} parent=1 // pred_check
      _
    $region43: #{tpu_custom_call.1} parent=1 // pred_check_branch
      %107 = sbr.rel (0) target = $region45
    $region44: #{tpu_custom_call.1} parent=1 // pred_region
      %108 = dma.done [#allocation8], 8192
    $region45: #{tpu_custom_call.1} parent=1 // pred_fallthru
      _
    // Predicated region
    $region46: #{tpu_custom_call.1} parent=1 // pred_check
      _
    $region47: #{tpu_custom_call.1} parent=1 // pred_check_branch
      %110 = sbr.rel (0) target = $region49
    $region48: #{tpu_custom_call.1} parent=1 // pred_region
      %111 = dma.done [#allocation11], 8192
    $region49: #{tpu_custom_call.1} parent=1 // pred_fallthru
      _
    // Predicated region
    $region50: #{tpu_custom_call.1} parent=1 // pred_check
      _
    $region51: #{tpu_custom_call.1} parent=1 // pred_check_branch
      %113 = sbr.rel (0) target = $region53
    $region52: #{tpu_custom_call.1} parent=1 // pred_region
      %114 = dma.done [#allocation11], 8192
    $region53: #{tpu_custom_call.1} parent=1 // pred_fallthru
      _
    // Predicated region
    $region54: #{tpu_custom_call.1} parent=1 // pred_check
      _
    $region55: #{tpu_custom_call.1} parent=1 // pred_check_branch
      %116 = sbr.rel (0) target = $region57
    $region56: #{tpu_custom_call.1} parent=1 // pred_region
      %117 = dma.done [#allocation14], 32768
    $region57: #{tpu_custom_call.1} parent=1 // pred_fallthru
      _
    %118 = sfence
    %v119 = vld [vmem:[#allocation6] sm:$0xf]
    %v120 = vld [vmem:[#allocation6 + $0x4] sm:$0xf]
    %v121 = vadd.f32 %v119, %v120
    %v122 = vld [vmem:[#allocation6 + $0x8] sm:$0xf]
    %v123 = vadd.f32 %v121, %v122
    %v124 = vld [vmem:[#allocation6 + $0xc] sm:$0xf]
    %v125 = vadd.f32 %v123, %v124
    %v126 = vmul.f32 %v125, 0.25
    %s127 = sld [smem:[#allocation2]]
    %s128 = sld [smem:[#allocation2 + $0x1]]
    %s129 = sld [smem:[#allocation2 + $0x2]]
    %s130 = sld [smem:[#allocation2 + $0x3]]
    %v131 = vld [vmem:[#allocation9] sm:$0xff]
    %v132 = vld [vmem:[#allocation9 + $0x8] sm:$0xff]
    %v133 = vld [vmem:[#allocation9 + $0x10] sm:$0xff]
    %v134 = vld [vmem:[#allocation9 + $0x18] sm:$0xff]
    %v135 = vld [vmem:[#allocation9 + $0x20] sm:$0xff]
    %v136 = vld [vmem:[#allocation9 + $0x28] sm:$0xff]
    %v137 = vld [vmem:[#allocation9 + $0x30] sm:$0xff]
    %v138 = vld [vmem:[#allocation9 + $0x38] sm:$0xff]
    %v139 = vld [vmem:[#allocation9 + $0x40] sm:$0xff]
    %v140 = vld [vmem:[#allocation9 + $0x48] sm:$0xff]
    %v141 = vld [vmem:[#allocation9 + $0x50] sm:$0xff]
    %v142 = vld [vmem:[#allocation9 + $0x58] sm:$0xff]
    %v143 = vld [vmem:[#allocation9 + $0x60] sm:$0xff]
    %v144 = vld [vmem:[#allocation9 + $0x68] sm:$0xff]
    %v145 = vld [vmem:[#allocation9 + $0x70] sm:$0xff]
    %v146 = vld [vmem:[#allocation9 + $0x78] sm:$0xff]
    %v147 = vld [vmem:[#allocation9 + $0x80] sm:$0xff]
    %v148 = vld [vmem:[#allocation9 + $0x88] sm:$0xff]
    %v149 = vld [vmem:[#allocation9 + $0x90] sm:$0xff]
    %v150 = vld [vmem:[#allocation9 + $0x98] sm:$0xff]
    %v151 = vld [vmem:[#allocation9 + $0xa0] sm:$0xff]
    %v152 = vld [vmem:[#allocation9 + $0xa8] sm:$0xff]
    %v153 = vld [vmem:[#allocation9 + $0xb0] sm:$0xff]
    %v154 = vld [vmem:[#allocation9 + $0xb8] sm:$0xff]
    %v155 = vld [vmem:[#allocation9 + $0xc0] sm:$0xff]
    %v156 = vld [vmem:[#allocation9 + $0xc8] sm:$0xff]
    %v157 = vld [vmem:[#allocation9 + $0xd0] sm:$0xff]
    %v158 = vld [vmem:[#allocation9 + $0xd8] sm:$0xff]
    %v159 = vld [vmem:[#allocation9 + $0xe0] sm:$0xff]
    %v160 = vld [vmem:[#allocation9 + $0xe8] sm:$0xff]
    %v161 = vld [vmem:[#allocation9 + $0xf0] sm:$0xff]
    %v162 = vld [vmem:[#allocation9 + $0xf8] sm:$0xff]
    %v163 = vld [vmem:[#allocation9 + $0x100] sm:$0xff]
    %v164 = vld [vmem:[#allocation9 + $0x108] sm:$0xff]
    %v165 = vld [vmem:[#allocation9 + $0x110] sm:$0xff]
    %v166 = vld [vmem:[#allocation9 + $0x118] sm:$0xff]
    %v167 = vld [vmem:[#allocation9 + $0x120] sm:$0xff]
    %v168 = vld [vmem:[#allocation9 + $0x128] sm:$0xff]
    %v169 = vld [vmem:[#allocation9 + $0x130] sm:$0xff]
    %v170 = vld [vmem:[#allocation9 + $0x138] sm:$0xff]
    %v171 = vld [vmem:[#allocation9 + $0x140] sm:$0xff]
    %v172 = vld [vmem:[#allocation9 + $0x148] sm:$0xff]
    %v173 = vld [vmem:[#allocation9 + $0x150] sm:$0xff]
    %v174 = vld [vmem:[#allocation9 + $0x158] sm:$0xff]
    %v175 = vld [vmem:[#allocation9 + $0x160] sm:$0xff]
    %v176 = vld [vmem:[#allocation9 + $0x168] sm:$0xff]
    %v177 = vld [vmem:[#allocation9 + $0x170] sm:$0xff]
    %v178 = vld [vmem:[#allocation9 + $0x178] sm:$0xff]
    %v179 = vld [vmem:[#allocation9 + $0x180] sm:$0xff]
    %v180 = vld [vmem:[#allocation9 + $0x188] sm:$0xff]
    %v181 = vld [vmem:[#allocation9 + $0x190] sm:$0xff]
    %v182 = vld [vmem:[#allocation9 + $0x198] sm:$0xff]
    %v183 = vld [vmem:[#allocation9 + $0x1a0] sm:$0xff]
    %v184 = vld [vmem:[#allocation9 + $0x1a8] sm:$0xff]
    %v185 = vld [vmem:[#allocation9 + $0x1b0] sm:$0xff]
    %v186 = vld [vmem:[#allocation9 + $0x1b8] sm:$0xff]
    %v187 = vld [vmem:[#allocation9 + $0x1c0] sm:$0xff]
    %v188 = vld [vmem:[#allocation9 + $0x1c8] sm:$0xff]
    %v189 = vld [vmem:[#allocation9 + $0x1d0] sm:$0xff]
    %v190 = vld [vmem:[#allocation9 + $0x1d8] sm:$0xff]
    %v191 = vld [vmem:[#allocation9 + $0x1e0] sm:$0xff]
    %v192 = vld [vmem:[#allocation9 + $0x1e8] sm:$0xff]
    %v193 = vld [vmem:[#allocation9 + $0x1f0] sm:$0xff]
    %v194 = vld [vmem:[#allocation9 + $0x1f8] sm:$0xff]
    %v195 = vstv %s127
    %v198 = vunpack.c.l.s4 1983009808
    %v199 = vunpack.c.0.s8 %v198
    %v200 = vlaneseq
    %v201 = vshrl.u32 %v200, 7
    %v202 = vsub.s32 %v199, %v201
    %v203 = vrot.slane %v126, %v202
    %v204 = vcombine.high %v203, %v203
    %v207 = vand.u32 %v132, 4294901760
    %208 = vmatprep.subr.mxu0 %v207
    %v209 = vand.u32 %v131, 4294901760
    %210 = vmatpush1.msra.mxu0 %v209
    %v211 = vand.u32 %v134, 4294901760
    %212 = vmatprep.subr.mxu0 %v211
    %v213 = vand.u32 %v133, 4294901760
    %214 = vmatpush1.msra.mxu0 %v213
    %v215 = vand.u32 %v136, 4294901760
    %216 = vmatprep.subr.mxu0 %v215
    %v217 = vand.u32 %v135, 4294901760
    %218 = vmatpush1.msra.mxu0 %v217
    %v219 = vand.u32 %v138, 4294901760
    %220 = vmatprep.subr.mxu0 %v219
    %v221 = vand.u32 %v137, 4294901760
    %222 = vmatpush1.msra.mxu0 %v221
    %v223 = vand.u32 %v140, 4294901760
    %224 = vmatprep.subr.mxu0 %v223
    %v225 = vand.u32 %v139, 4294901760
    %226 = vmatpush1.msra.mxu0 %v225
    %v227 = vand.u32 %v142, 4294901760
    %228 = vmatprep.subr.mxu0 %v227
    %v229 = vand.u32 %v141, 4294901760
    %230 = vmatpush1.msra.mxu0 %v229
    %v231 = vand.u32 %v144, 4294901760
    %232 = vmatprep.subr.mxu0 %v231
    %v233 = vand.u32 %v143, 4294901760
    %234 = vmatpush1.msra.mxu0 %v233
    %v235 = vand.u32 %v146, 4294901760
    %236 = vmatprep.subr.mxu0 %v235
    %v237 = vand.u32 %v145, 4294901760
    %238 = vmatpush1.msra.mxu0 %v237
    %v239 = vand.u32 %v148, 4294901760
    %240 = vmatprep.subr.mxu0 %v239
    %v241 = vand.u32 %v147, 4294901760
    %242 = vmatpush1.msra.mxu0 %v241
    %v243 = vand.u32 %v150, 4294901760
    %244 = vmatprep.subr.mxu0 %v243
    %v245 = vand.u32 %v149, 4294901760
    %246 = vmatpush1.msra.mxu0 %v245
    %v247 = vand.u32 %v152, 4294901760
    %248 = vmatprep.subr.mxu0 %v247
    %v249 = vand.u32 %v151, 4294901760
    %250 = vmatpush1.msra.mxu0 %v249
    %v251 = vand.u32 %v154, 4294901760
    %252 = vmatprep.subr.mxu0 %v251
    %v253 = vand.u32 %v153, 4294901760
    %254 = vmatpush1.msra.mxu0 %v253
    %v255 = vand.u32 %v156, 4294901760
    %256 = vmatprep.subr.mxu0 %v255
    %v257 = vand.u32 %v155, 4294901760
    %258 = vmatpush1.msra.mxu0 %v257
    %v259 = vand.u32 %v158, 4294901760
    %260 = vmatprep.subr.mxu0 %v259
    %v261 = vand.u32 %v157, 4294901760
    %262 = vmatpush1.msra.mxu0 %v261
    %v263 = vand.u32 %v160, 4294901760
    %264 = vmatprep.subr.mxu0 %v263
    %v265 = vand.u32 %v159, 4294901760
    %266 = vmatpush1.msra.mxu0 %v265
    %v267 = vand.u32 %v162, 4294901760
    %268 = vmatprep.subr.mxu0 %v267
    %v269 = vand.u32 %v161, 4294901760
    %270 = vmatpush1.msra.mxu0 %v269
    %v271 = vand.u32 %v164, 4294901760
    %272 = vmatprep.subr.mxu0 %v271
    %v273 = vand.u32 %v163, 4294901760
    %274 = vmatpush1.msra.mxu0 %v273
    %v275 = vand.u32 %v166, 4294901760
    %276 = vmatprep.subr.mxu0 %v275
    %v277 = vand.u32 %v165, 4294901760
    %278 = vmatpush1.msra.mxu0 %v277
    %v279 = vand.u32 %v168, 4294901760
    %280 = vmatprep.subr.mxu0 %v279
    %v281 = vand.u32 %v167, 4294901760
    %282 = vmatpush1.msra.mxu0 %v281
    %v283 = vand.u32 %v170, 4294901760
    %284 = vmatprep.subr.mxu0 %v283
    %v285 = vand.u32 %v169, 4294901760
    %286 = vmatpush1.msra.mxu0 %v285
    %v287 = vand.u32 %v172, 4294901760
    %288 = vmatprep.subr.mxu0 %v287
    %v289 = vand.u32 %v171, 4294901760
    %290 = vmatpush1.msra.mxu0 %v289
    %v291 = vand.u32 %v174, 4294901760
    %292 = vmatprep.subr.mxu0 %v291
    %v293 = vand.u32 %v173, 4294901760
    %294 = vmatpush1.msra.mxu0 %v293
    %v295 = vand.u32 %v176, 4294901760
    %296 = vmatprep.subr.mxu0 %v295
    %v297 = vand.u32 %v175, 4294901760
    %298 = vmatpush1.msra.mxu0 %v297
    %v299 = vand.u32 %v178, 4294901760
    %300 = vmatprep.subr.mxu0 %v299
    %v301 = vand.u32 %v177, 4294901760
    %302 = vmatpush1.msra.mxu0 %v301
    %v303 = vand.u32 %v180, 4294901760
    %304 = vmatprep.subr.mxu0 %v303
    %v305 = vand.u32 %v179, 4294901760
    %306 = vmatpush1.msra.mxu0 %v305
    %v307 = vand.u32 %v182, 4294901760
    %308 = vmatprep.subr.mxu0 %v307
    %v309 = vand.u32 %v181, 4294901760
    %310 = vmatpush1.msra.mxu0 %v309
    %v311 = vand.u32 %v184, 4294901760
    %312 = vmatprep.subr.mxu0 %v311
    %v313 = vand.u32 %v183, 4294901760
    %314 = vmatpush1.msra.mxu0 %v313
    %v315 = vand.u32 %v186, 4294901760
    %316 = vmatprep.subr.mxu0 %v315
    %v317 = vand.u32 %v185, 4294901760
    %318 = vmatpush1.msra.mxu0 %v317
    %v319 = vand.u32 %v188, 4294901760
    %320 = vmatprep.subr.mxu0 %v319
    %v321 = vand.u32 %v187, 4294901760
    %322 = vmatpush1.msra.mxu0 %v321
    %v323 = vand.u32 %v190, 4294901760
    %324 = vmatprep.subr.mxu0 %v323
    %v325 = vand.u32 %v189, 4294901760
    %326 = vmatpush1.msra.mxu0 %v325
    %v327 = vand.u32 %v192, 4294901760
    %328 = vmatprep.subr.mxu0 %v327
    %v329 = vand.u32 %v191, 4294901760
    %330 = vmatpush1.msra.mxu0 %v329
    %v331 = vand.u32 %v194, 4294901760
    %332 = vmatprep.subr.mxu0 %v331
    %v333 = vand.u32 %v193, 4294901760
    %334 = vmatpush1.msra.mxu0 %v333
    %v335 = vand.u32 %v204, 4294901760
    %v336 = vsub.f32 %v204, %v335
    %v337 = vand.u32 %v336, 4294901760
    %v338 = vsub.f32 %v336, %v337
    %v339 = vand.u32 %v338, 4294901760
    %340 = vmatprep.mubr.f32.mxu0 %v339
    %v341 = vand.u32 %v203, 4294901760
    %v342 = vsub.f32 %v203, %v341
    %v343 = vand.u32 %v342, 4294901760
    %v344 = vsub.f32 %v342, %v343
    %v345 = vand.u32 %v344, 4294901760
    %346 = vmatmul.mubr.f32.gmra.mrb[0].mxu0 %v345
    %v347 = vpop.f32.mrb[0].mxu0
    %v348 = vadd.f32 %v195, %v347
    %v349 = vpop.f32.mrb[0].mxu0
    %v350 = vadd.f32 %v195, %v349
    %351 = vdwg.mxu0
    %v352 = vand.u32 %v132, 4294901760
    %v353 = vsub.f32 %v132, %v352
    %v354 = vand.u32 %v353, 4294901760
    %v355 = vsub.f32 %v353, %v354
    %v356 = vand.u32 %v355, 4294901760
    %357 = vmatprep.subr.mxu0 %v356
    %v358 = vand.u32 %v131, 4294901760
    %v359 = vsub.f32 %v131, %v358
    %v360 = vand.u32 %v359, 4294901760
    %v361 = vsub.f32 %v359, %v360
    %v362 = vand.u32 %v361, 4294901760
    %363 = vmatpush1.msra.mxu0 %v362
    %v364 = vand.u32 %v134, 4294901760
    %v365 = vsub.f32 %v134, %v364
    %v366 = vand.u32 %v365, 4294901760
    %v367 = vsub.f32 %v365, %v366
    %v368 = vand.u32 %v367, 4294901760
    %369 = vmatprep.subr.mxu0 %v368
    %v370 = vand.u32 %v133, 4294901760
    %v371 = vsub.f32 %v133, %v370
    %v372 = vand.u32 %v371, 4294901760
    %v373 = vsub.f32 %v371, %v372
    %v374 = vand.u32 %v373, 4294901760
    %375 = vmatpush1.msra.mxu0 %v374
    %v376 = vand.u32 %v136, 4294901760
    %v377 = vsub.f32 %v136, %v376
    %v378 = vand.u32 %v377, 4294901760
    %v379 = vsub.f32 %v377, %v378
    %v380 = vand.u32 %v379, 4294901760
    %381 = vmatprep.subr.mxu0 %v380
    %v382 = vand.u32 %v135, 4294901760
    %v383 = vsub.f32 %v135, %v382
    %v384 = vand.u32 %v383, 4294901760
    %v385 = vsub.f32 %v383, %v384
    %v386 = vand.u32 %v385, 4294901760
    %387 = vmatpush1.msra.mxu0 %v386
    %v388 = vand.u32 %v138, 4294901760
    %v389 = vsub.f32 %v138, %v388
    %v390 = vand.u32 %v389, 4294901760
    %v391 = vsub.f32 %v389, %v390
    %v392 = vand.u32 %v391, 4294901760
    %393 = vmatprep.subr.mxu0 %v392
    %v394 = vand.u32 %v137, 4294901760
    %v395 = vsub.f32 %v137, %v394
    %v396 = vand.u32 %v395, 4294901760
    %v397 = vsub.f32 %v395, %v396
    %v398 = vand.u32 %v397, 4294901760
    %399 = vmatpush1.msra.mxu0 %v398
    %v400 = vand.u32 %v140, 4294901760
    %v401 = vsub.f32 %v140, %v400
    %v402 = vand.u32 %v401, 4294901760
    %v403 = vsub.f32 %v401, %v402
    %v404 = vand.u32 %v403, 4294901760
    %405 = vmatprep.subr.mxu0 %v404
    %v406 = vand.u32 %v139, 4294901760
    %v407 = vsub.f32 %v139, %v406
    %v408 = vand.u32 %v407, 4294901760
    %v409 = vsub.f32 %v407, %v408
    %v410 = vand.u32 %v409, 4294901760
    %411 = vmatpush1.msra.mxu0 %v410
    %v412 = vand.u32 %v142, 4294901760
    %v413 = vsub.f32 %v142, %v412
    %v414 = vand.u32 %v413, 4294901760
    %v415 = vsub.f32 %v413, %v414
    %v416 = vand.u32 %v415, 4294901760
    %417 = vmatprep.subr.mxu0 %v416
    %v418 = vand.u32 %v141, 4294901760
    %v419 = vsub.f32 %v141, %v418
    %v420 = vand.u32 %v419, 4294901760
    %v421 = vsub.f32 %v419, %v420
    %v422 = vand.u32 %v421, 4294901760
    %423 = vmatpush1.msra.mxu0 %v422
    %v424 = vand.u32 %v144, 4294901760
    %v425 = vsub.f32 %v144, %v424
    %v426 = vand.u32 %v425, 4294901760
    %v427 = vsub.f32 %v425, %v426
    %v428 = vand.u32 %v427, 4294901760
    %429 = vmatprep.subr.mxu0 %v428
    %v430 = vand.u32 %v143, 4294901760
    %v431 = vsub.f32 %v143, %v430
    %v432 = vand.u32 %v431, 4294901760
    %v433 = vsub.f32 %v431, %v432
    %v434 = vand.u32 %v433, 4294901760
    %435 = vmatpush1.msra.mxu0 %v434
    %v436 = vand.u32 %v146, 4294901760
    %v437 = vsub.f32 %v146, %v436
    %v438 = vand.u32 %v437, 4294901760
    %v439 = vsub.f32 %v437, %v438
    %v440 = vand.u32 %v439, 4294901760
    %441 = vmatprep.subr.mxu0 %v440
    %v442 = vand.u32 %v145, 4294901760
    %v443 = vsub.f32 %v145, %v442
    %v444 = vand.u32 %v443, 4294901760
    %v445 = vsub.f32 %v443, %v444
    %v446 = vand.u32 %v445, 4294901760
    %447 = vmatpush1.msra.mxu0 %v446
    %v448 = vand.u32 %v148, 4294901760
    %v449 = vsub.f32 %v148, %v448
    %v450 = vand.u32 %v449, 4294901760
    %v451 = vsub.f32 %v449, %v450
    %v452 = vand.u32 %v451, 4294901760
    %453 = vmatprep.subr.mxu0 %v452
    %v454 = vand.u32 %v147, 4294901760
    %v455 = vsub.f32 %v147, %v454
    %v456 = vand.u32 %v455, 4294901760
    %v457 = vsub.f32 %v455, %v456
    %v458 = vand.u32 %v457, 4294901760
    %459 = vmatpush1.msra.mxu0 %v458
    %v460 = vand.u32 %v150, 4294901760
    %v461 = vsub.f32 %v150, %v460
    %v462 = vand.u32 %v461, 4294901760
    %v463 = vsub.f32 %v461, %v462
    %v464 = vand.u32 %v463, 4294901760
    %465 = vmatprep.subr.mxu0 %v464
    %v466 = vand.u32 %v149, 4294901760
    %v467 = vsub.f32 %v149, %v466
    %v468 = vand.u32 %v467, 4294901760
    %v469 = vsub.f32 %v467, %v468
    %v470 = vand.u32 %v469, 4294901760
    %471 = vmatpush1.msra.mxu0 %v470
    %v472 = vand.u32 %v152, 4294901760
    %v473 = vsub.f32 %v152, %v472
    %v474 = vand.u32 %v473, 4294901760
    %v475 = vsub.f32 %v473, %v474
    %v476 = vand.u32 %v475, 4294901760
    %477 = vmatprep.subr.mxu0 %v476
    %v478 = vand.u32 %v151, 4294901760
    %v479 = vsub.f32 %v151, %v478
    %v480 = vand.u32 %v479, 4294901760
    %v481 = vsub.f32 %v479, %v480
    %v482 = vand.u32 %v481, 4294901760
    %483 = vmatpush1.msra.mxu0 %v482
    %v484 = vand.u32 %v154, 4294901760
    %v485 = vsub.f32 %v154, %v484
    %v486 = vand.u32 %v485, 4294901760
    %v487 = vsub.f32 %v485, %v486
    %v488 = vand.u32 %v487, 4294901760
    %489 = vmatprep.subr.mxu0 %v488
    %v490 = vand.u32 %v153, 4294901760
    %v491 = vsub.f32 %v153, %v490
    %v492 = vand.u32 %v491, 4294901760
    %v493 = vsub.f32 %v491, %v492
    %v494 = vand.u32 %v493, 4294901760
    %495 = vmatpush1.msra.mxu0 %v494
    %v496 = vand.u32 %v156, 4294901760
    %v497 = vsub.f32 %v156, %v496
    %v498 = vand.u32 %v497, 4294901760
    %v499 = vsub.f32 %v497, %v498
    %v500 = vand.u32 %v499, 4294901760
    %501 = vmatprep.subr.mxu0 %v500
    %v502 = vand.u32 %v155, 4294901760
    %v503 = vsub.f32 %v155, %v502
    %v504 = vand.u32 %v503, 4294901760
    %v505 = vsub.f32 %v503, %v504
    %v506 = vand.u32 %v505, 4294901760
    %507 = vmatpush1.msra.mxu0 %v506
    %v508 = vand.u32 %v158, 4294901760
    %v509 = vsub.f32 %v158, %v508
    %v510 = vand.u32 %v509, 4294901760
    %v511 = vsub.f32 %v509, %v510
    %v512 = vand.u32 %v511, 4294901760
    %513 = vmatprep.subr.mxu0 %v512
    %v514 = vand.u32 %v157, 4294901760
    %v515 = vsub.f32 %v157, %v514
    %v516 = vand.u32 %v515, 4294901760
    %v517 = vsub.f32 %v515, %v516
    %v518 = vand.u32 %v517, 4294901760
    %519 = vmatpush1.msra.mxu0 %v518
    %v520 = vand.u32 %v160, 4294901760
    %v521 = vsub.f32 %v160, %v520
    %v522 = vand.u32 %v521, 4294901760
    %v523 = vsub.f32 %v521, %v522
    %v524 = vand.u32 %v523, 4294901760
    %525 = vmatprep.subr.mxu0 %v524
    %v526 = vand.u32 %v159, 4294901760
    %v527 = vsub.f32 %v159, %v526
    %v528 = vand.u32 %v527, 4294901760
    %v529 = vsub.f32 %v527, %v528
    %v530 = vand.u32 %v529, 4294901760
    %531 = vmatpush1.msra.mxu0 %v530
    %v532 = vand.u32 %v162, 4294901760
    %v533 = vsub.f32 %v162, %v532
    %v534 = vand.u32 %v533, 4294901760
    %v535 = vsub.f32 %v533, %v534
    %v536 = vand.u32 %v535, 4294901760
    %537 = vmatprep.subr.mxu0 %v536
    %v538 = vand.u32 %v161, 4294901760
    %v539 = vsub.f32 %v161, %v538
    %v540 = vand.u32 %v539, 4294901760
    %v541 = vsub.f32 %v539, %v540
    %v542 = vand.u32 %v541, 4294901760
    %543 = vmatpush1.msra.mxu0 %v542
    %v544 = vand.u32 %v164, 4294901760
    %v545 = vsub.f32 %v164, %v544
    %v546 = vand.u32 %v545, 4294901760
    %v547 = vsub.f32 %v545, %v546
    %v548 = vand.u32 %v547, 4294901760
    %549 = vmatprep.subr.mxu0 %v548
    %v550 = vand.u32 %v163, 4294901760
    %v551 = vsub.f32 %v163, %v550
    %v552 = vand.u32 %v551, 4294901760
    %v553 = vsub.f32 %v551, %v552
    %v554 = vand.u32 %v553, 4294901760
    %555 = vmatpush1.msra.mxu0 %v554
    %v556 = vand.u32 %v166, 4294901760
    %v557 = vsub.f32 %v166, %v556
    %v558 = vand.u32 %v557, 4294901760
    %v559 = vsub.f32 %v557, %v558
    %v560 = vand.u32 %v559, 4294901760
    %561 = vmatprep.subr.mxu0 %v560
    %v562 = vand.u32 %v165, 4294901760
    %v563 = vsub.f32 %v165, %v562
    %v564 = vand.u32 %v563, 4294901760
    %v565 = vsub.f32 %v563, %v564
    %v566 = vand.u32 %v565, 4294901760
    %567 = vmatpush1.msra.mxu0 %v566
    %v568 = vand.u32 %v168, 4294901760
    %v569 = vsub.f32 %v168, %v568
    %v570 = vand.u32 %v569, 4294901760
    %v571 = vsub.f32 %v569, %v570
    %v572 = vand.u32 %v571, 4294901760
    %573 = vmatprep.subr.mxu0 %v572
    %v574 = vand.u32 %v167, 4294901760
    %v575 = vsub.f32 %v167, %v574
    %v576 = vand.u32 %v575, 4294901760
    %v577 = vsub.f32 %v575, %v576
    %v578 = vand.u32 %v577, 4294901760
    %579 = vmatpush1.msra.mxu0 %v578
    %v580 = vand.u32 %v170, 4294901760
    %v581 = vsub.f32 %v170, %v580
    %v582 = vand.u32 %v581, 4294901760
    %v583 = vsub.f32 %v581, %v582
    %v584 = vand.u32 %v583, 4294901760
    %585 = vmatprep.subr.mxu0 %v584
    %v586 = vand.u32 %v169, 4294901760
    %v587 = vsub.f32 %v169, %v586
    %v588 = vand.u32 %v587, 4294901760
    %v589 = vsub.f32 %v587, %v588
    %v590 = vand.u32 %v589, 4294901760
    %591 = vmatpush1.msra.mxu0 %v590
    %v592 = vand.u32 %v172, 4294901760
    %v593 = vsub.f32 %v172, %v592
    %v594 = vand.u32 %v593, 4294901760
    %v595 = vsub.f32 %v593, %v594
    %v596 = vand.u32 %v595, 4294901760
    %597 = vmatprep.subr.mxu0 %v596
    %v598 = vand.u32 %v171, 4294901760
    %v599 = vsub.f32 %v171, %v598
    %v600 = vand.u32 %v599, 4294901760
    %v601 = vsub.f32 %v599, %v600
    %v602 = vand.u32 %v601, 4294901760
    %603 = vmatpush1.msra.mxu0 %v602
    %v604 = vand.u32 %v174, 4294901760
    %v605 = vsub.f32 %v174, %v604
    %v606 = vand.u32 %v605, 4294901760
    %v607 = vsub.f32 %v605, %v606
    %v608 = vand.u32 %v607, 4294901760
    %609 = vmatprep.subr.mxu0 %v608
    %v610 = vand.u32 %v173, 4294901760
    %v611 = vsub.f32 %v173, %v610
    %v612 = vand.u32 %v611, 4294901760
    %v613 = vsub.f32 %v611, %v612
    %v614 = vand.u32 %v613, 4294901760
    %615 = vmatpush1.msra.mxu0 %v614
    %v616 = vand.u32 %v176, 4294901760
    %v617 = vsub.f32 %v176, %v616
    %v618 = vand.u32 %v617, 4294901760
    %v619 = vsub.f32 %v617, %v618
    %v620 = vand.u32 %v619, 4294901760
    %621 = vmatprep.subr.mxu0 %v620
    %v622 = vand.u32 %v175, 4294901760
    %v623 = vsub.f32 %v175, %v622
    %v624 = vand.u32 %v623, 4294901760
    %v625 = vsub.f32 %v623, %v624
    %v626 = vand.u32 %v625, 4294901760
    %627 = vmatpush1.msra.mxu0 %v626
    %v628 = vand.u32 %v178, 4294901760
    %v629 = vsub.f32 %v178, %v628
    %v630 = vand.u32 %v629, 4294901760
    %v631 = vsub.f32 %v629, %v630
    %v632 = vand.u32 %v631, 4294901760
    %633 = vmatprep.subr.mxu0 %v632
    %v634 = vand.u32 %v177, 4294901760
    %v635 = vsub.f32 %v177, %v634
    %v636 = vand.u32 %v635, 4294901760
    %v637 = vsub.f32 %v635, %v636
    %v638 = vand.u32 %v637, 4294901760
    %639 = vmatpush1.msra.mxu0 %v638
    %v640 = vand.u32 %v180, 4294901760
    %v641 = vsub.f32 %v180, %v640
    %v642 = vand.u32 %v641, 4294901760
    %v643 = vsub.f32 %v641, %v642
    %v644 = vand.u32 %v643, 4294901760
    %645 = vmatprep.subr.mxu0 %v644
    %v646 = vand.u32 %v179, 4294901760
    %v647 = vsub.f32 %v179, %v646
    %v648 = vand.u32 %v647, 4294901760
    %v649 = vsub.f32 %v647, %v648
    %v650 = vand.u32 %v649, 4294901760
    %651 = vmatpush1.msra.mxu0 %v650
    %v652 = vand.u32 %v182, 4294901760
    %v653 = vsub.f32 %v182, %v652
    %v654 = vand.u32 %v653, 4294901760
    %v655 = vsub.f32 %v653, %v654
    %v656 = vand.u32 %v655, 4294901760
    %657 = vmatprep.subr.mxu0 %v656
    %v658 = vand.u32 %v181, 4294901760
    %v659 = vsub.f32 %v181, %v658
    %v660 = vand.u32 %v659, 4294901760
    %v661 = vsub.f32 %v659, %v660
    %v662 = vand.u32 %v661, 4294901760
    %663 = vmatpush1.msra.mxu0 %v662
    %v664 = vand.u32 %v184, 4294901760
    %v665 = vsub.f32 %v184, %v664
    %v666 = vand.u32 %v665, 4294901760
    %v667 = vsub.f32 %v665, %v666
    %v668 = vand.u32 %v667, 4294901760
    %669 = vmatprep.subr.mxu0 %v668
    %v670 = vand.u32 %v183, 4294901760
    %v671 = vsub.f32 %v183, %v670
    %v672 = vand.u32 %v671, 4294901760
    %v673 = vsub.f32 %v671, %v672
    %v674 = vand.u32 %v673, 4294901760
    %675 = vmatpush1.msra.mxu0 %v674
    %v676 = vand.u32 %v186, 4294901760
    %v677 = vsub.f32 %v186, %v676
    %v678 = vand.u32 %v677, 4294901760
    %v679 = vsub.f32 %v677, %v678
    %v680 = vand.u32 %v679, 4294901760
    %681 = vmatprep.subr.mxu0 %v680
    %v682 = vand.u32 %v185, 4294901760
    %v683 = vsub.f32 %v185, %v682
    %v684 = vand.u32 %v683, 4294901760
    %v685 = vsub.f32 %v683, %v684
    %v686 = vand.u32 %v685, 4294901760
    %687 = vmatpush1.msra.mxu0 %v686
    %v688 = vand.u32 %v188, 4294901760
    %v689 = vsub.f32 %v188, %v688
    %v690 = vand.u32 %v689, 4294901760
    %v691 = vsub.f32 %v689, %v690
    %v692 = vand.u32 %v691, 4294901760
    %693 = vmatprep.subr.mxu0 %v692
    %v694 = vand.u32 %v187, 4294901760
    %v695 = vsub.f32 %v187, %v694
    %v696 = vand.u32 %v695, 4294901760
    %v697 = vsub.f32 %v695, %v696
    %v698 = vand.u32 %v697, 4294901760
    %699 = vmatpush1.msra.mxu0 %v698
    %v700 = vand.u32 %v190, 4294901760
    %v701 = vsub.f32 %v190, %v700
    %v702 = vand.u32 %v701, 4294901760
    %v703 = vsub.f32 %v701, %v702
    %v704 = vand.u32 %v703, 4294901760
    %705 = vmatprep.subr.mxu0 %v704
    %v706 = vand.u32 %v189, 4294901760
    %v707 = vsub.f32 %v189, %v706
    %v708 = vand.u32 %v707, 4294901760
    %v709 = vsub.f32 %v707, %v708
    %v710 = vand.u32 %v709, 4294901760
    %711 = vmatpush1.msra.mxu0 %v710
    %v712 = vand.u32 %v192, 4294901760
    %v713 = vsub.f32 %v192, %v712
    %v714 = vand.u32 %v713, 4294901760
    %v715 = vsub.f32 %v713, %v714
    %v716 = vand.u32 %v715, 4294901760
    %717 = vmatprep.subr.mxu0 %v716
    %v718 = vand.u32 %v191, 4294901760
    %v719 = vsub.f32 %v191, %v718
    %v720 = vand.u32 %v719, 4294901760
    %v721 = vsub.f32 %v719, %v720
    %v722 = vand.u32 %v721, 4294901760
    %723 = vmatpush1.msra.mxu0 %v722
    %v724 = vand.u32 %v194, 4294901760
    %v725 = vsub.f32 %v194, %v724
    %v726 = vand.u32 %v725, 4294901760
    %v727 = vsub.f32 %v725, %v726
    %v728 = vand.u32 %v727, 4294901760
    %729 = vmatprep.subr.mxu0 %v728
    %v730 = vand.u32 %v193, 4294901760
    %v731 = vsub.f32 %v193, %v730
    %v732 = vand.u32 %v731, 4294901760
    %v733 = vsub.f32 %v731, %v732
    %v734 = vand.u32 %v733, 4294901760
    %735 = vmatpush1.msra.mxu0 %v734
    %v736 = vand.u32 %v204, 4294901760
    %737 = vmatprep.mubr.f32.mxu0 %v736
    %v738 = vand.u32 %v203, 4294901760
    %739 = vmatmul.mubr.f32.gmra.mrb[0].mxu0 %v738
    %v740 = vpop.f32.mrb[0].mxu0
    %v741 = vadd.f32 %v348, %v740
    %v742 = vpop.f32.mrb[0].mxu0
    %v743 = vadd.f32 %v350, %v742
    %744 = vdwg.mxu0
    %v745 = vand.u32 %v132, 4294901760
    %v746 = vsub.f32 %v132, %v745
    %747 = vmatprep.subr.mxu0 %v746
    %v748 = vand.u32 %v131, 4294901760
    %v749 = vsub.f32 %v131, %v748
    %750 = vmatpush1.msra.mxu0 %v749
    %v751 = vand.u32 %v134, 4294901760
    %v752 = vsub.f32 %v134, %v751
    %753 = vmatprep.subr.mxu0 %v752
    %v754 = vand.u32 %v133, 4294901760
    %v755 = vsub.f32 %v133, %v754
    %756 = vmatpush1.msra.mxu0 %v755
    %v757 = vand.u32 %v136, 4294901760
    %v758 = vsub.f32 %v136, %v757
    %759 = vmatprep.subr.mxu0 %v758
    %v760 = vand.u32 %v135, 4294901760
    %v761 = vsub.f32 %v135, %v760
    %762 = vmatpush1.msra.mxu0 %v761
    %v763 = vand.u32 %v138, 4294901760
    %v764 = vsub.f32 %v138, %v763
    %765 = vmatprep.subr.mxu0 %v764
    %v766 = vand.u32 %v137, 4294901760
    %v767 = vsub.f32 %v137, %v766
    %768 = vmatpush1.msra.mxu0 %v767
    %v769 = vand.u32 %v140, 4294901760
    %v770 = vsub.f32 %v140, %v769
    %771 = vmatprep.subr.mxu0 %v770
    %v772 = vand.u32 %v139, 4294901760
    %v773 = vsub.f32 %v139, %v772
    %774 = vmatpush1.msra.mxu0 %v773
    %v775 = vand.u32 %v142, 4294901760
    %v776 = vsub.f32 %v142, %v775
    %777 = vmatprep.subr.mxu0 %v776
    %v778 = vand.u32 %v141, 4294901760
    %v779 = vsub.f32 %v141, %v778
    %780 = vmatpush1.msra.mxu0 %v779
    %v781 = vand.u32 %v144, 4294901760
    %v782 = vsub.f32 %v144, %v781
    %783 = vmatprep.subr.mxu0 %v782
    %v784 = vand.u32 %v143, 4294901760
    %v785 = vsub.f32 %v143, %v784
    %786 = vmatpush1.msra.mxu0 %v785
    %v787 = vand.u32 %v146, 4294901760
    %v788 = vsub.f32 %v146, %v787
    %789 = vmatprep.subr.mxu0 %v788
    %v790 = vand.u32 %v145, 4294901760
    %v791 = vsub.f32 %v145, %v790
    %792 = vmatpush1.msra.mxu0 %v791
    %v793 = vand.u32 %v148, 4294901760
    %v794 = vsub.f32 %v148, %v793
    %795 = vmatprep.subr.mxu0 %v794
    %v796 = vand.u32 %v147, 4294901760
    %v797 = vsub.f32 %v147, %v796
    %798 = vmatpush1.msra.mxu0 %v797
    %v799 = vand.u32 %v150, 4294901760
    %v800 = vsub.f32 %v150, %v799
    %801 = vmatprep.subr.mxu0 %v800
    %v802 = vand.u32 %v149, 4294901760
    %v803 = vsub.f32 %v149, %v802
    %804 = vmatpush1.msra.mxu0 %v803
    %v805 = vand.u32 %v152, 4294901760
    %v806 = vsub.f32 %v152, %v805
    %807 = vmatprep.subr.mxu0 %v806
    %v808 = vand.u32 %v151, 4294901760
    %v809 = vsub.f32 %v151, %v808
    %810 = vmatpush1.msra.mxu0 %v809
    %v811 = vand.u32 %v154, 4294901760
    %v812 = vsub.f32 %v154, %v811
    %813 = vmatprep.subr.mxu0 %v812
    %v814 = vand.u32 %v153, 4294901760
    %v815 = vsub.f32 %v153, %v814
    %816 = vmatpush1.msra.mxu0 %v815
    %v817 = vand.u32 %v156, 4294901760
    %v818 = vsub.f32 %v156, %v817
    %819 = vmatprep.subr.mxu0 %v818
    %v820 = vand.u32 %v155, 4294901760
    %v821 = vsub.f32 %v155, %v820
    %822 = vmatpush1.msra.mxu0 %v821
    %v823 = vand.u32 %v158, 4294901760
    %v824 = vsub.f32 %v158, %v823
    %825 = vmatprep.subr.mxu0 %v824
    %v826 = vand.u32 %v157, 4294901760
    %v827 = vsub.f32 %v157, %v826
    %828 = vmatpush1.msra.mxu0 %v827
    %v829 = vand.u32 %v160, 4294901760
    %v830 = vsub.f32 %v160, %v829
    %831 = vmatprep.subr.mxu0 %v830
    %v832 = vand.u32 %v159, 4294901760
    %v833 = vsub.f32 %v159, %v832
    %834 = vmatpush1.msra.mxu0 %v833
    %v835 = vand.u32 %v162, 4294901760
    %v836 = vsub.f32 %v162, %v835
    %837 = vmatprep.subr.mxu0 %v836
    %v838 = vand.u32 %v161, 4294901760
    %v839 = vsub.f32 %v161, %v838
    %840 = vmatpush1.msra.mxu0 %v839
    %v841 = vand.u32 %v164, 4294901760
    %v842 = vsub.f32 %v164, %v841
    %843 = vmatprep.subr.mxu0 %v842
    %v844 = vand.u32 %v163, 4294901760
    %v845 = vsub.f32 %v163, %v844
    %846 = vmatpush1.msra.mxu0 %v845
    %v847 = vand.u32 %v166, 4294901760
    %v848 = vsub.f32 %v166, %v847
    %849 = vmatprep.subr.mxu0 %v848
    %v850 = vand.u32 %v165, 4294901760
    %v851 = vsub.f32 %v165, %v850
    %852 = vmatpush1.msra.mxu0 %v851
    %v853 = vand.u32 %v168, 4294901760
    %v854 = vsub.f32 %v168, %v853
    %855 = vmatprep.subr.mxu0 %v854
    %v856 = vand.u32 %v167, 4294901760
    %v857 = vsub.f32 %v167, %v856
    %858 = vmatpush1.msra.mxu0 %v857
    %v859 = vand.u32 %v170, 4294901760
    %v860 = vsub.f32 %v170, %v859
    %861 = vmatprep.subr.mxu0 %v860
    %v862 = vand.u32 %v169, 4294901760
    %v863 = vsub.f32 %v169, %v862
    %864 = vmatpush1.msra.mxu0 %v863
    %v865 = vand.u32 %v172, 4294901760
    %v866 = vsub.f32 %v172, %v865
    %867 = vmatprep.subr.mxu0 %v866
    %v868 = vand.u32 %v171, 4294901760
    %v869 = vsub.f32 %v171, %v868
    %870 = vmatpush1.msra.mxu0 %v869
    %v871 = vand.u32 %v174, 4294901760
    %v872 = vsub.f32 %v174, %v871
    %873 = vmatprep.subr.mxu0 %v872
    %v874 = vand.u32 %v173, 4294901760
    %v875 = vsub.f32 %v173, %v874
    %876 = vmatpush1.msra.mxu0 %v875
    %v877 = vand.u32 %v176, 4294901760
    %v878 = vsub.f32 %v176, %v877
    %879 = vmatprep.subr.mxu0 %v878
    %v880 = vand.u32 %v175, 4294901760
    %v881 = vsub.f32 %v175, %v880
    %882 = vmatpush1.msra.mxu0 %v881
    %v883 = vand.u32 %v178, 4294901760
    %v884 = vsub.f32 %v178, %v883
    %885 = vmatprep.subr.mxu0 %v884
    %v886 = vand.u32 %v177, 4294901760
    %v887 = vsub.f32 %v177, %v886
    %888 = vmatpush1.msra.mxu0 %v887
    %v889 = vand.u32 %v180, 4294901760
    %v890 = vsub.f32 %v180, %v889
    %891 = vmatprep.subr.mxu0 %v890
    %v892 = vand.u32 %v179, 4294901760
    %v893 = vsub.f32 %v179, %v892
    %894 = vmatpush1.msra.mxu0 %v893
    %v895 = vand.u32 %v182, 4294901760
    %v896 = vsub.f32 %v182, %v895
    %897 = vmatprep.subr.mxu0 %v896
    %v898 = vand.u32 %v181, 4294901760
    %v899 = vsub.f32 %v181, %v898
    %900 = vmatpush1.msra.mxu0 %v899
    %v901 = vand.u32 %v184, 4294901760
    %v902 = vsub.f32 %v184, %v901
    %903 = vmatprep.subr.mxu0 %v902
    %v904 = vand.u32 %v183, 4294901760
    %v905 = vsub.f32 %v183, %v904
    %906 = vmatpush1.msra.mxu0 %v905
    %v907 = vand.u32 %v186, 4294901760
    %v908 = vsub.f32 %v186, %v907
    %909 = vmatprep.subr.mxu0 %v908
    %v910 = vand.u32 %v185, 4294901760
    %v911 = vsub.f32 %v185, %v910
    %912 = vmatpush1.msra.mxu0 %v911
    %v913 = vand.u32 %v188, 4294901760
    %v914 = vsub.f32 %v188, %v913
    %915 = vmatprep.subr.mxu0 %v914
    %v916 = vand.u32 %v187, 4294901760
    %v917 = vsub.f32 %v187, %v916
    %918 = vmatpush1.msra.mxu0 %v917
    %v919 = vand.u32 %v190, 4294901760
    %v920 = vsub.f32 %v190, %v919
    %921 = vmatprep.subr.mxu0 %v920
    %v922 = vand.u32 %v189, 4294901760
    %v923 = vsub.f32 %v189, %v922
    %924 = vmatpush1.msra.mxu0 %v923
    %v925 = vand.u32 %v192, 4294901760
    %v926 = vsub.f32 %v192, %v925
    %927 = vmatprep.subr.mxu0 %v926
    %v928 = vand.u32 %v191, 4294901760
    %v929 = vsub.f32 %v191, %v928
    %930 = vmatpush1.msra.mxu0 %v929
    %v931 = vand.u32 %v194, 4294901760
    %v932 = vsub.f32 %v194, %v931
    %933 = vmatprep.subr.mxu0 %v932
    %v934 = vand.u32 %v193, 4294901760
    %v935 = vsub.f32 %v193, %v934
    %936 = vmatpush1.msra.mxu0 %v935
    %v937 = vand.u32 %v204, 4294901760
    %v938 = vsub.f32 %v204, %v937
    %939 = vmatprep.mubr.f32.mxu0 %v938
    %v940 = vand.u32 %v203, 4294901760
    %v941 = vsub.f32 %v203, %v940
    %942 = vmatmul.mubr.f32.gmra.mrb[0].mxu0 %v941
    %v943 = vpop.f32.mrb[0].mxu0
    %v944 = vadd.f32 %v741, %v943
    %v945 = vpop.f32.mrb[0].mxu0
    %v946 = vadd.f32 %v743, %v945
    %947 = vdwg.mxu0
    %v948 = vand.u32 %v132, 4294901760
    %949 = vmatprep.subr.mxu0 %v948
    %v950 = vand.u32 %v131, 4294901760
    %951 = vmatpush1.msra.mxu0 %v950
    %v952 = vand.u32 %v134, 4294901760
    %953 = vmatprep.subr.mxu0 %v952
    %v954 = vand.u32 %v133, 4294901760
    %955 = vmatpush1.msra.mxu0 %v954
    %v956 = vand.u32 %v136, 4294901760
    %957 = vmatprep.subr.mxu0 %v956
    %v958 = vand.u32 %v135, 4294901760
    %959 = vmatpush1.msra.mxu0 %v958
    %v960 = vand.u32 %v138, 4294901760
    %961 = vmatprep.subr.mxu0 %v960
    %v962 = vand.u32 %v137, 4294901760
    %963 = vmatpush1.msra.mxu0 %v962
    %v964 = vand.u32 %v140, 4294901760
    %965 = vmatprep.subr.mxu0 %v964
    %v966 = vand.u32 %v139, 4294901760
    %967 = vmatpush1.msra.mxu0 %v966
    %v968 = vand.u32 %v142, 4294901760
    %969 = vmatprep.subr.mxu0 %v968
    %v970 = vand.u32 %v141, 4294901760
    %971 = vmatpush1.msra.mxu0 %v970
    %v972 = vand.u32 %v144, 4294901760
    %973 = vmatprep.subr.mxu0 %v972
    %v974 = vand.u32 %v143, 4294901760
    %975 = vmatpush1.msra.mxu0 %v974
    %v976 = vand.u32 %v146, 4294901760
    %977 = vmatprep.subr.mxu0 %v976
    %v978 = vand.u32 %v145, 4294901760
    %979 = vmatpush1.msra.mxu0 %v978
    %v980 = vand.u32 %v148, 4294901760
    %981 = vmatprep.subr.mxu0 %v980
    %v982 = vand.u32 %v147, 4294901760
    %983 = vmatpush1.msra.mxu0 %v982
    %v984 = vand.u32 %v150, 4294901760
    %985 = vmatprep.subr.mxu0 %v984
    %v986 = vand.u32 %v149, 4294901760
    %987 = vmatpush1.msra.mxu0 %v986
    %v988 = vand.u32 %v152, 4294901760
    %989 = vmatprep.subr.mxu0 %v988
    %v990 = vand.u32 %v151, 4294901760
    %991 = vmatpush1.msra.mxu0 %v990
    %v992 = vand.u32 %v154, 4294901760
    %993 = vmatprep.subr.mxu0 %v992
    %v994 = vand.u32 %v153, 4294901760
    %995 = vmatpush1.msra.mxu0 %v994
    %v996 = vand.u32 %v156, 4294901760
    %997 = vmatprep.subr.mxu0 %v996
    %v998 = vand.u32 %v155, 4294901760
    %999 = vmatpush1.msra.mxu0 %v998
    %v1000 = vand.u32 %v158, 4294901760
    %1001 = vmatprep.subr.mxu0 %v1000
    %v1002 = vand.u32 %v157, 4294901760
    %1003 = vmatpush1.msra.mxu0 %v1002
    %v1004 = vand.u32 %v160, 4294901760
    %1005 = vmatprep.subr.mxu0 %v1004
    %v1006 = vand.u32 %v159, 4294901760
    %1007 = vmatpush1.msra.mxu0 %v1006
    %v1008 = vand.u32 %v162, 4294901760
    %1009 = vmatprep.subr.mxu0 %v1008
    %v1010 = vand.u32 %v161, 4294901760
    %1011 = vmatpush1.msra.mxu0 %v1010
    %v1012 = vand.u32 %v164, 4294901760
    %1013 = vmatprep.subr.mxu0 %v1012
    %v1014 = vand.u32 %v163, 4294901760
    %1015 = vmatpush1.msra.mxu0 %v1014
    %v1016 = vand.u32 %v166, 4294901760
    %1017 = vmatprep.subr.mxu0 %v1016
    %v1018 = vand.u32 %v165, 4294901760
    %1019 = vmatpush1.msra.mxu0 %v1018
    %v1020 = vand.u32 %v168, 4294901760
    %1021 = vmatprep.subr.mxu0 %v1020
    %v1022 = vand.u32 %v167, 4294901760
    %1023 = vmatpush1.msra.mxu0 %v1022
    %v1024 = vand.u32 %v170, 4294901760
    %1025 = vmatprep.subr.mxu0 %v1024
    %v1026 = vand.u32 %v169, 4294901760
    %1027 = vmatpush1.msra.mxu0 %v1026
    %v1028 = vand.u32 %v172, 4294901760
    %1029 = vmatprep.subr.mxu0 %v1028
    %v1030 = vand.u32 %v171, 4294901760
    %1031 = vmatpush1.msra.mxu0 %v1030
    %v1032 = vand.u32 %v174, 4294901760
    %1033 = vmatprep.subr.mxu0 %v1032
    %v1034 = vand.u32 %v173, 4294901760
    %1035 = vmatpush1.msra.mxu0 %v1034
    %v1036 = vand.u32 %v176, 4294901760
    %1037 = vmatprep.subr.mxu0 %v1036
    %v1038 = vand.u32 %v175, 4294901760
    %1039 = vmatpush1.msra.mxu0 %v1038
    %v1040 = vand.u32 %v178, 4294901760
    %1041 = vmatprep.subr.mxu0 %v1040
    %v1042 = vand.u32 %v177, 4294901760
    %1043 = vmatpush1.msra.mxu0 %v1042
    %v1044 = vand.u32 %v180, 4294901760
    %1045 = vmatprep.subr.mxu0 %v1044
    %v1046 = vand.u32 %v179, 4294901760
    %1047 = vmatpush1.msra.mxu0 %v1046
    %v1048 = vand.u32 %v182, 4294901760
    %1049 = vmatprep.subr.mxu0 %v1048
    %v1050 = vand.u32 %v181, 4294901760
    %1051 = vmatpush1.msra.mxu0 %v1050
    %v1052 = vand.u32 %v184, 4294901760
    %1053 = vmatprep.subr.mxu0 %v1052
    %v1054 = vand.u32 %v183, 4294901760
    %1055 = vmatpush1.msra.mxu0 %v1054
    %v1056 = vand.u32 %v186, 4294901760
    %1057 = vmatprep.subr.mxu0 %v1056
    %v1058 = vand.u32 %v185, 4294901760
    %1059 = vmatpush1.msra.mxu0 %v1058
    %v1060 = vand.u32 %v188, 4294901760
    %1061 = vmatprep.subr.mxu0 %v1060
    %v1062 = vand.u32 %v187, 4294901760
    %1063 = vmatpush1.msra.mxu0 %v1062
    %v1064 = vand.u32 %v190, 4294901760
    %1065 = vmatprep.subr.mxu0 %v1064
    %v1066 = vand.u32 %v189, 4294901760
    %1067 = vmatpush1.msra.mxu0 %v1066
    %v1068 = vand.u32 %v192, 4294901760
    %1069 = vmatprep.subr.mxu0 %v1068
    %v1070 = vand.u32 %v191, 4294901760
    %1071 = vmatpush1.msra.mxu0 %v1070
    %v1072 = vand.u32 %v194, 4294901760
    %1073 = vmatprep.subr.mxu0 %v1072
    %v1074 = vand.u32 %v193, 4294901760
    %1075 = vmatpush1.msra.mxu0 %v1074
    %v1076 = vand.u32 %v204, 4294901760
    %v1077 = vsub.f32 %v204, %v1076
    %v1078 = vand.u32 %v1077, 4294901760
    %1079 = vmatprep.mubr.f32.mxu0 %v1078
    %v1080 = vand.u32 %v203, 4294901760
    %v1081 = vsub.f32 %v203, %v1080
    %v1082 = vand.u32 %v1081, 4294901760
    %1083 = vmatmul.mubr.f32.gmra.mrb[0].mxu0 %v1082
    %v1084 = vpop.f32.mrb[0].mxu0
    %v1085 = vadd.f32 %v944, %v1084
    %v1086 = vpop.f32.mrb[0].mxu0
    %v1087 = vadd.f32 %v946, %v1086
    %1088 = vdwg.mxu0
    %v1089 = vand.u32 %v132, 4294901760
    %v1090 = vsub.f32 %v132, %v1089
    %v1091 = vand.u32 %v1090, 4294901760
    %1092 = vmatprep.subr.mxu0 %v1091
    %v1093 = vand.u32 %v131, 4294901760
    %v1094 = vsub.f32 %v131, %v1093
    %v1095 = vand.u32 %v1094, 4294901760
    %1096 = vmatpush1.msra.mxu0 %v1095
    %v1097 = vand.u32 %v134, 4294901760
    %v1098 = vsub.f32 %v134, %v1097
    %v1099 = vand.u32 %v1098, 4294901760
    %1100 = vmatprep.subr.mxu0 %v1099
    %v1101 = vand.u32 %v133, 4294901760
    %v1102 = vsub.f32 %v133, %v1101
    %v1103 = vand.u32 %v1102, 4294901760
    %1104 = vmatpush1.msra.mxu0 %v1103
    %v1105 = vand.u32 %v136, 4294901760
    %v1106 = vsub.f32 %v136, %v1105
    %v1107 = vand.u32 %v1106, 4294901760
    %1108 = vmatprep.subr.mxu0 %v1107
    %v1109 = vand.u32 %v135, 4294901760
    %v1110 = vsub.f32 %v135, %v1109
    %v1111 = vand.u32 %v1110, 4294901760
    %1112 = vmatpush1.msra.mxu0 %v1111
    %v1113 = vand.u32 %v138, 4294901760
    %v1114 = vsub.f32 %v138, %v1113
    %v1115 = vand.u32 %v1114, 4294901760
    %1116 = vmatprep.subr.mxu0 %v1115
    %v1117 = vand.u32 %v137, 4294901760
    %v1118 = vsub.f32 %v137, %v1117
    %v1119 = vand.u32 %v1118, 4294901760
    %1120 = vmatpush1.msra.mxu0 %v1119
    %v1121 = vand.u32 %v140, 4294901760
    %v1122 = vsub.f32 %v140, %v1121
    %v1123 = vand.u32 %v1122, 4294901760
    %1124 = vmatprep.subr.mxu0 %v1123
    %v1125 = vand.u32 %v139, 4294901760
    %v1126 = vsub.f32 %v139, %v1125
    %v1127 = vand.u32 %v1126, 4294901760
    %1128 = vmatpush1.msra.mxu0 %v1127
    %v1129 = vand.u32 %v142, 4294901760
    %v1130 = vsub.f32 %v142, %v1129
    %v1131 = vand.u32 %v1130, 4294901760
    %1132 = vmatprep.subr.mxu0 %v1131
    %v1133 = vand.u32 %v141, 4294901760
    %v1134 = vsub.f32 %v141, %v1133
    %v1135 = vand.u32 %v1134, 4294901760
    %1136 = vmatpush1.msra.mxu0 %v1135
    %v1137 = vand.u32 %v144, 4294901760
    %v1138 = vsub.f32 %v144, %v1137
    %v1139 = vand.u32 %v1138, 4294901760
    %1140 = vmatprep.subr.mxu0 %v1139
    %v1141 = vand.u32 %v143, 4294901760
    %v1142 = vsub.f32 %v143, %v1141
    %v1143 = vand.u32 %v1142, 4294901760
    %1144 = vmatpush1.msra.mxu0 %v1143
    %v1145 = vand.u32 %v146, 4294901760
    %v1146 = vsub.f32 %v146, %v1145
    %v1147 = vand.u32 %v1146, 4294901760
    %1148 = vmatprep.subr.mxu0 %v1147
    %v1149 = vand.u32 %v145, 4294901760
    %v1150 = vsub.f32 %v145, %v1149
    %v1151 = vand.u32 %v1150, 4294901760
    %1152 = vmatpush1.msra.mxu0 %v1151
    %v1153 = vand.u32 %v148, 4294901760
    %v1154 = vsub.f32 %v148, %v1153
    %v1155 = vand.u32 %v1154, 4294901760
    %1156 = vmatprep.subr.mxu0 %v1155
    %v1157 = vand.u32 %v147, 4294901760
    %v1158 = vsub.f32 %v147, %v1157
    %v1159 = vand.u32 %v1158, 4294901760
    %1160 = vmatpush1.msra.mxu0 %v1159
    %v1161 = vand.u32 %v150, 4294901760
    %v1162 = vsub.f32 %v150, %v1161
    %v1163 = vand.u32 %v1162, 4294901760
    %1164 = vmatprep.subr.mxu0 %v1163
    %v1165 = vand.u32 %v149, 4294901760
    %v1166 = vsub.f32 %v149, %v1165
    %v1167 = vand.u32 %v1166, 4294901760
    %1168 = vmatpush1.msra.mxu0 %v1167
    %v1169 = vand.u32 %v152, 4294901760
    %v1170 = vsub.f32 %v152, %v1169
    %v1171 = vand.u32 %v1170, 4294901760
    %1172 = vmatprep.subr.mxu0 %v1171
    %v1173 = vand.u32 %v151, 4294901760
    %v1174 = vsub.f32 %v151, %v1173
    %v1175 = vand.u32 %v1174, 4294901760
    %1176 = vmatpush1.msra.mxu0 %v1175
    %v1177 = vand.u32 %v154, 4294901760
    %v1178 = vsub.f32 %v154, %v1177
    %v1179 = vand.u32 %v1178, 4294901760
    %1180 = vmatprep.subr.mxu0 %v1179
    %v1181 = vand.u32 %v153, 4294901760
    %v1182 = vsub.f32 %v153, %v1181
    %v1183 = vand.u32 %v1182, 4294901760
    %1184 = vmatpush1.msra.mxu0 %v1183
    %v1185 = vand.u32 %v156, 4294901760
    %v1186 = vsub.f32 %v156, %v1185
    %v1187 = vand.u32 %v1186, 4294901760
    %1188 = vmatprep.subr.mxu0 %v1187
    %v1189 = vand.u32 %v155, 4294901760
    %v1190 = vsub.f32 %v155, %v1189
    %v1191 = vand.u32 %v1190, 4294901760
    %1192 = vmatpush1.msra.mxu0 %v1191
    %v1193 = vand.u32 %v158, 4294901760
    %v1194 = vsub.f32 %v158, %v1193
    %v1195 = vand.u32 %v1194, 4294901760
    %1196 = vmatprep.subr.mxu0 %v1195
    %v1197 = vand.u32 %v157, 4294901760
    %v1198 = vsub.f32 %v157, %v1197
    %v1199 = vand.u32 %v1198, 4294901760
    %1200 = vmatpush1.msra.mxu0 %v1199
    %v1201 = vand.u32 %v160, 4294901760
    %v1202 = vsub.f32 %v160, %v1201
    %v1203 = vand.u32 %v1202, 4294901760
    %1204 = vmatprep.subr.mxu0 %v1203
    %v1205 = vand.u32 %v159, 4294901760
    %v1206 = vsub.f32 %v159, %v1205
    %v1207 = vand.u32 %v1206, 4294901760
    %1208 = vmatpush1.msra.mxu0 %v1207
    %v1209 = vand.u32 %v162, 4294901760
    %v1210 = vsub.f32 %v162, %v1209
    %v1211 = vand.u32 %v1210, 4294901760
    %1212 = vmatprep.subr.mxu0 %v1211
    %v1213 = vand.u32 %v161, 4294901760
    %v1214 = vsub.f32 %v161, %v1213
    %v1215 = vand.u32 %v1214, 4294901760
    %1216 = vmatpush1.msra.mxu0 %v1215
    %v1217 = vand.u32 %v164, 4294901760
    %v1218 = vsub.f32 %v164, %v1217
    %v1219 = vand.u32 %v1218, 4294901760
    %1220 = vmatprep.subr.mxu0 %v1219
    %v1221 = vand.u32 %v163, 4294901760
    %v1222 = vsub.f32 %v163, %v1221
    %v1223 = vand.u32 %v1222, 4294901760
    %1224 = vmatpush1.msra.mxu0 %v1223
    %v1225 = vand.u32 %v166, 4294901760
    %v1226 = vsub.f32 %v166, %v1225
    %v1227 = vand.u32 %v1226, 4294901760
    %1228 = vmatprep.subr.mxu0 %v1227
    %v1229 = vand.u32 %v165, 4294901760
    %v1230 = vsub.f32 %v165, %v1229
    %v1231 = vand.u32 %v1230, 4294901760
    %1232 = vmatpush1.msra.mxu0 %v1231
    %v1233 = vand.u32 %v168, 4294901760
    %v1234 = vsub.f32 %v168, %v1233
    %v1235 = vand.u32 %v1234, 4294901760
    %1236 = vmatprep.subr.mxu0 %v1235
    %v1237 = vand.u32 %v167, 4294901760
    %v1238 = vsub.f32 %v167, %v1237
    %v1239 = vand.u32 %v1238, 4294901760
    %1240 = vmatpush1.msra.mxu0 %v1239
    %v1241 = vand.u32 %v170, 4294901760
    %v1242 = vsub.f32 %v170, %v1241
    %v1243 = vand.u32 %v1242, 4294901760
    %1244 = vmatprep.subr.mxu0 %v1243
    %v1245 = vand.u32 %v169, 4294901760
    %v1246 = vsub.f32 %v169, %v1245
    %v1247 = vand.u32 %v1246, 4294901760
    %1248 = vmatpush1.msra.mxu0 %v1247
    %v1249 = vand.u32 %v172, 4294901760
    %v1250 = vsub.f32 %v172, %v1249
    %v1251 = vand.u32 %v1250, 4294901760
    %1252 = vmatprep.subr.mxu0 %v1251
    %v1253 = vand.u32 %v171, 4294901760
    %v1254 = vsub.f32 %v171, %v1253
    %v1255 = vand.u32 %v1254, 4294901760
    %1256 = vmatpush1.msra.mxu0 %v1255
    %v1257 = vand.u32 %v174, 4294901760
    %v1258 = vsub.f32 %v174, %v1257
    %v1259 = vand.u32 %v1258, 4294901760
    %1260 = vmatprep.subr.mxu0 %v1259
    %v1261 = vand.u32 %v173, 4294901760
    %v1262 = vsub.f32 %v173, %v1261
    %v1263 = vand.u32 %v1262, 4294901760
    %1264 = vmatpush1.msra.mxu0 %v1263
    %v1265 = vand.u32 %v176, 4294901760
    %v1266 = vsub.f32 %v176, %v1265
    %v1267 = vand.u32 %v1266, 4294901760
    %1268 = vmatprep.subr.mxu0 %v1267
    %v1269 = vand.u32 %v175, 4294901760
    %v1270 = vsub.f32 %v175, %v1269
    %v1271 = vand.u32 %v1270, 4294901760
    %1272 = vmatpush1.msra.mxu0 %v1271
    %v1273 = vand.u32 %v178, 4294901760
    %v1274 = vsub.f32 %v178, %v1273
    %v1275 = vand.u32 %v1274, 4294901760
    %1276 = vmatprep.subr.mxu0 %v1275
    %v1277 = vand.u32 %v177, 4294901760
    %v1278 = vsub.f32 %v177, %v1277
    %v1279 = vand.u32 %v1278, 4294901760
    %1280 = vmatpush1.msra.mxu0 %v1279
    %v1281 = vand.u32 %v180, 4294901760
    %v1282 = vsub.f32 %v180, %v1281
    %v1283 = vand.u32 %v1282, 4294901760
    %1284 = vmatprep.subr.mxu0 %v1283
    %v1285 = vand.u32 %v179, 4294901760
    %v1286 = vsub.f32 %v179, %v1285
    %v1287 = vand.u32 %v1286, 4294901760
    %1288 = vmatpush1.msra.mxu0 %v1287
    %v1289 = vand.u32 %v182, 4294901760
    %v1290 = vsub.f32 %v182, %v1289
    %v1291 = vand.u32 %v1290, 4294901760
    %1292 = vmatprep.subr.mxu0 %v1291
    %v1293 = vand.u32 %v181, 4294901760
    %v1294 = vsub.f32 %v181, %v1293
    %v1295 = vand.u32 %v1294, 4294901760
    %1296 = vmatpush1.msra.mxu0 %v1295
    %v1297 = vand.u32 %v184, 4294901760
    %v1298 = vsub.f32 %v184, %v1297
    %v1299 = vand.u32 %v1298, 4294901760
    %1300 = vmatprep.subr.mxu0 %v1299
    %v1301 = vand.u32 %v183, 4294901760
    %v1302 = vsub.f32 %v183, %v1301
    %v1303 = vand.u32 %v1302, 4294901760
    %1304 = vmatpush1.msra.mxu0 %v1303
    %v1305 = vand.u32 %v186, 4294901760
    %v1306 = vsub.f32 %v186, %v1305
    %v1307 = vand.u32 %v1306, 4294901760
    %1308 = vmatprep.subr.mxu0 %v1307
    %v1309 = vand.u32 %v185, 4294901760
    %v1310 = vsub.f32 %v185, %v1309
    %v1311 = vand.u32 %v1310, 4294901760
    %1312 = vmatpush1.msra.mxu0 %v1311
    %v1313 = vand.u32 %v188, 4294901760
    %v1314 = vsub.f32 %v188, %v1313
    %v1315 = vand.u32 %v1314, 4294901760
    %1316 = vmatprep.subr.mxu0 %v1315
    %v1317 = vand.u32 %v187, 4294901760
    %v1318 = vsub.f32 %v187, %v1317
    %v1319 = vand.u32 %v1318, 4294901760
    %1320 = vmatpush1.msra.mxu0 %v1319
    %v1321 = vand.u32 %v190, 4294901760
    %v1322 = vsub.f32 %v190, %v1321
    %v1323 = vand.u32 %v1322, 4294901760
    %1324 = vmatprep.subr.mxu0 %v1323
    %v1325 = vand.u32 %v189, 4294901760
    %v1326 = vsub.f32 %v189, %v1325
    %v1327 = vand.u32 %v1326, 4294901760
    %1328 = vmatpush1.msra.mxu0 %v1327
    %v1329 = vand.u32 %v192, 4294901760
    %v1330 = vsub.f32 %v192, %v1329
    %v1331 = vand.u32 %v1330, 4294901760
    %1332 = vmatprep.subr.mxu0 %v1331
    %v1333 = vand.u32 %v191, 4294901760
    %v1334 = vsub.f32 %v191, %v1333
    %v1335 = vand.u32 %v1334, 4294901760
    %1336 = vmatpush1.msra.mxu0 %v1335
    %v1337 = vand.u32 %v194, 4294901760
    %v1338 = vsub.f32 %v194, %v1337
    %v1339 = vand.u32 %v1338, 4294901760
    %1340 = vmatprep.subr.mxu0 %v1339
    %v1341 = vand.u32 %v193, 4294901760
    %v1342 = vsub.f32 %v193, %v1341
    %v1343 = vand.u32 %v1342, 4294901760
    %1344 = vmatpush1.msra.mxu0 %v1343
    %v1345 = vand.u32 %v204, 4294901760
    %1346 = vmatprep.mubr.f32.mxu0 %v1345
    %v1347 = vand.u32 %v203, 4294901760
    %1348 = vmatmul.mubr.f32.gmra.mrb[0].mxu0 %v1347
    %v1349 = vpop.f32.mrb[0].mxu0
    %v1350 = vadd.f32 %v1085, %v1349
    %v1351 = vpop.f32.mrb[0].mxu0
    %v1352 = vadd.f32 %v1087, %v1351
    %1353 = vdwg.mxu0
    %v1354 = vand.u32 %v132, 4294901760
    %1355 = vmatprep.subr.mxu0 %v1354
    %v1356 = vand.u32 %v131, 4294901760
    %1357 = vmatpush1.msra.mxu0 %v1356
    %v1358 = vand.u32 %v134, 4294901760
    %1359 = vmatprep.subr.mxu0 %v1358
    %v1360 = vand.u32 %v133, 4294901760
    %1361 = vmatpush1.msra.mxu0 %v1360
    %v1362 = vand.u32 %v136, 4294901760
    %1363 = vmatprep.subr.mxu0 %v1362
    %v1364 = vand.u32 %v135, 4294901760
    %1365 = vmatpush1.msra.mxu0 %v1364
    %v1366 = vand.u32 %v138, 4294901760
    %1367 = vmatprep.subr.mxu0 %v1366
    %v1368 = vand.u32 %v137, 4294901760
    %1369 = vmatpush1.msra.mxu0 %v1368
    %v1370 = vand.u32 %v140, 4294901760
    %1371 = vmatprep.subr.mxu0 %v1370
    %v1372 = vand.u32 %v139, 4294901760
    %1373 = vmatpush1.msra.mxu0 %v1372
    %v1374 = vand.u32 %v142, 4294901760
    %1375 = vmatprep.subr.mxu0 %v1374
    %v1376 = vand.u32 %v141, 4294901760
    %1377 = vmatpush1.msra.mxu0 %v1376
    %v1378 = vand.u32 %v144, 4294901760
    %1379 = vmatprep.subr.mxu0 %v1378
    %v1380 = vand.u32 %v143, 4294901760
    %1381 = vmatpush1.msra.mxu0 %v1380
    %v1382 = vand.u32 %v146, 4294901760
    %1383 = vmatprep.subr.mxu0 %v1382
    %v1384 = vand.u32 %v145, 4294901760
    %1385 = vmatpush1.msra.mxu0 %v1384
    %v1386 = vand.u32 %v148, 4294901760
    %1387 = vmatprep.subr.mxu0 %v1386
    %v1388 = vand.u32 %v147, 4294901760
    %1389 = vmatpush1.msra.mxu0 %v1388
    %v1390 = vand.u32 %v150, 4294901760
    %1391 = vmatprep.subr.mxu0 %v1390
    %v1392 = vand.u32 %v149, 4294901760
    %1393 = vmatpush1.msra.mxu0 %v1392
    %v1394 = vand.u32 %v152, 4294901760
    %1395 = vmatprep.subr.mxu0 %v1394
    %v1396 = vand.u32 %v151, 4294901760
    %1397 = vmatpush1.msra.mxu0 %v1396
    %v1398 = vand.u32 %v154, 4294901760
    %1399 = vmatprep.subr.mxu0 %v1398
    %v1400 = vand.u32 %v153, 4294901760
    %1401 = vmatpush1.msra.mxu0 %v1400
    %v1402 = vand.u32 %v156, 4294901760
    %1403 = vmatprep.subr.mxu0 %v1402
    %v1404 = vand.u32 %v155, 4294901760
    %1405 = vmatpush1.msra.mxu0 %v1404
    %v1406 = vand.u32 %v158, 4294901760
    %1407 = vmatprep.subr.mxu0 %v1406
    %v1408 = vand.u32 %v157, 4294901760
    %1409 = vmatpush1.msra.mxu0 %v1408
    %v1410 = vand.u32 %v160, 4294901760
    %1411 = vmatprep.subr.mxu0 %v1410
    %v1412 = vand.u32 %v159, 4294901760
    %1413 = vmatpush1.msra.mxu0 %v1412
    %v1414 = vand.u32 %v162, 4294901760
    %1415 = vmatprep.subr.mxu0 %v1414
    %v1416 = vand.u32 %v161, 4294901760
    %1417 = vmatpush1.msra.mxu0 %v1416
    %v1418 = vand.u32 %v164, 4294901760
    %1419 = vmatprep.subr.mxu0 %v1418
    %v1420 = vand.u32 %v163, 4294901760
    %1421 = vmatpush1.msra.mxu0 %v1420
    %v1422 = vand.u32 %v166, 4294901760
    %1423 = vmatprep.subr.mxu0 %v1422
    %v1424 = vand.u32 %v165, 4294901760
    %1425 = vmatpush1.msra.mxu0 %v1424
    %v1426 = vand.u32 %v168, 4294901760
    %1427 = vmatprep.subr.mxu0 %v1426
    %v1428 = vand.u32 %v167, 4294901760
    %1429 = vmatpush1.msra.mxu0 %v1428
    %v1430 = vand.u32 %v170, 4294901760
    %1431 = vmatprep.subr.mxu0 %v1430
    %v1432 = vand.u32 %v169, 4294901760
    %1433 = vmatpush1.msra.mxu0 %v1432
    %v1434 = vand.u32 %v172, 4294901760
    %1435 = vmatprep.subr.mxu0 %v1434
    %v1436 = vand.u32 %v171, 4294901760
    %1437 = vmatpush1.msra.mxu0 %v1436
    %v1438 = vand.u32 %v174, 4294901760
    %1439 = vmatprep.subr.mxu0 %v1438
    %v1440 = vand.u32 %v173, 4294901760
    %1441 = vmatpush1.msra.mxu0 %v1440
    %v1442 = vand.u32 %v176, 4294901760
    %1443 = vmatprep.subr.mxu0 %v1442
    %v1444 = vand.u32 %v175, 4294901760
    %1445 = vmatpush1.msra.mxu0 %v1444
    %v1446 = vand.u32 %v178, 4294901760
    %1447 = vmatprep.subr.mxu0 %v1446
    %v1448 = vand.u32 %v177, 4294901760
    %1449 = vmatpush1.msra.mxu0 %v1448
    %v1450 = vand.u32 %v180, 4294901760
    %1451 = vmatprep.subr.mxu0 %v1450
    %v1452 = vand.u32 %v179, 4294901760
    %1453 = vmatpush1.msra.mxu0 %v1452
    %v1454 = vand.u32 %v182, 4294901760
    %1455 = vmatprep.subr.mxu0 %v1454
    %v1456 = vand.u32 %v181, 4294901760
    %1457 = vmatpush1.msra.mxu0 %v1456
    %v1458 = vand.u32 %v184, 4294901760
    %1459 = vmatprep.subr.mxu0 %v1458
    %v1460 = vand.u32 %v183, 4294901760
    %1461 = vmatpush1.msra.mxu0 %v1460
    %v1462 = vand.u32 %v186, 4294901760
    %1463 = vmatprep.subr.mxu0 %v1462
    %v1464 = vand.u32 %v185, 4294901760
    %1465 = vmatpush1.msra.mxu0 %v1464
    %v1466 = vand.u32 %v188, 4294901760
    %1467 = vmatprep.subr.mxu0 %v1466
    %v1468 = vand.u32 %v187, 4294901760
    %1469 = vmatpush1.msra.mxu0 %v1468
    %v1470 = vand.u32 %v190, 4294901760
    %1471 = vmatprep.subr.mxu0 %v1470
    %v1472 = vand.u32 %v189, 4294901760
    %1473 = vmatpush1.msra.mxu0 %v1472
    %v1474 = vand.u32 %v192, 4294901760
    %1475 = vmatprep.subr.mxu0 %v1474
    %v1476 = vand.u32 %v191, 4294901760
    %1477 = vmatpush1.msra.mxu0 %v1476
    %v1478 = vand.u32 %v194, 4294901760
    %1479 = vmatprep.subr.mxu0 %v1478
    %v1480 = vand.u32 %v193, 4294901760
    %1481 = vmatpush1.msra.mxu0 %v1480
    %v1482 = vand.u32 %v204, 4294901760
    %1483 = vmatprep.mubr.f32.mxu0 %v1482
    %v1484 = vand.u32 %v203, 4294901760
    %1485 = vmatmul.mubr.f32.gmra.mrb[0].mxu0 %v1484
    %v1486 = vpop.f32.mrb[0].mxu0
    %v1487 = vadd.f32 %v1350, %v1486
    %v1488 = vpop.f32.mrb[0].mxu0
    %v1489 = vadd.f32 %v1352, %v1488
    %1490 = vdwg.mxu0
    %v1491 = vmax.f32 %v1487, 0.0
    %v1492 = vmax.f32 %v1489, 0.0
    %v1493 = vld [vmem:[#allocation10] sm:$0xff]
    %v1494 = vld [vmem:[#allocation10 + $0x8] sm:$0xff]
    %v1495 = vld [vmem:[#allocation10 + $0x10] sm:$0xff]
    %v1496 = vld [vmem:[#allocation10 + $0x18] sm:$0xff]
    %v1497 = vld [vmem:[#allocation10 + $0x20] sm:$0xff]
    %v1498 = vld [vmem:[#allocation10 + $0x28] sm:$0xff]
    %v1499 = vld [vmem:[#allocation10 + $0x30] sm:$0xff]
    %v1500 = vld [vmem:[#allocation10 + $0x38] sm:$0xff]
    %v1501 = vld [vmem:[#allocation10 + $0x40] sm:$0xff]
    %v1502 = vld [vmem:[#allocation10 + $0x48] sm:$0xff]
    %v1503 = vld [vmem:[#allocation10 + $0x50] sm:$0xff]
    %v1504 = vld [vmem:[#allocation10 + $0x58] sm:$0xff]
    %v1505 = vld [vmem:[#allocation10 + $0x60] sm:$0xff]
    %v1506 = vld [vmem:[#allocation10 + $0x68] sm:$0xff]
    %v1507 = vld [vmem:[#allocation10 + $0x70] sm:$0xff]
    %v1508 = vld [vmem:[#allocation10 + $0x78] sm:$0xff]
    %v1509 = vld [vmem:[#allocation10 + $0x80] sm:$0xff]
    %v1510 = vld [vmem:[#allocation10 + $0x88] sm:$0xff]
    %v1511 = vld [vmem:[#allocation10 + $0x90] sm:$0xff]
    %v1512 = vld [vmem:[#allocation10 + $0x98] sm:$0xff]
    %v1513 = vld [vmem:[#allocation10 + $0xa0] sm:$0xff]
    %v1514 = vld [vmem:[#allocation10 + $0xa8] sm:$0xff]
    %v1515 = vld [vmem:[#allocation10 + $0xb0] sm:$0xff]
    %v1516 = vld [vmem:[#allocation10 + $0xb8] sm:$0xff]
    %v1517 = vld [vmem:[#allocation10 + $0xc0] sm:$0xff]
    %v1518 = vld [vmem:[#allocation10 + $0xc8] sm:$0xff]
    %v1519 = vld [vmem:[#allocation10 + $0xd0] sm:$0xff]
    %v1520 = vld [vmem:[#allocation10 + $0xd8] sm:$0xff]
    %v1521 = vld [vmem:[#allocation10 + $0xe0] sm:$0xff]
    %v1522 = vld [vmem:[#allocation10 + $0xe8] sm:$0xff]
    %v1523 = vld [vmem:[#allocation10 + $0xf0] sm:$0xff]
    %v1524 = vld [vmem:[#allocation10 + $0xf8] sm:$0xff]
    %v1525 = vld [vmem:[#allocation10 + $0x100] sm:$0xff]
    %v1526 = vld [vmem:[#allocation10 + $0x108] sm:$0xff]
    %v1527 = vld [vmem:[#allocation10 + $0x110] sm:$0xff]
    %v1528 = vld [vmem:[#allocation10 + $0x118] sm:$0xff]
    %v1529 = vld [vmem:[#allocation10 + $0x120] sm:$0xff]
    %v1530 = vld [vmem:[#allocation10 + $0x128] sm:$0xff]
    %v1531 = vld [vmem:[#allocation10 + $0x130] sm:$0xff]
    %v1532 = vld [vmem:[#allocation10 + $0x138] sm:$0xff]
    %v1533 = vld [vmem:[#allocation10 + $0x140] sm:$0xff]
    %v1534 = vld [vmem:[#allocation10 + $0x148] sm:$0xff]
    %v1535 = vld [vmem:[#allocation10 + $0x150] sm:$0xff]
    %v1536 = vld [vmem:[#allocation10 + $0x158] sm:$0xff]
    %v1537 = vld [vmem:[#allocation10 + $0x160] sm:$0xff]
    %v1538 = vld [vmem:[#allocation10 + $0x168] sm:$0xff]
    %v1539 = vld [vmem:[#allocation10 + $0x170] sm:$0xff]
    %v1540 = vld [vmem:[#allocation10 + $0x178] sm:$0xff]
    %v1541 = vld [vmem:[#allocation10 + $0x180] sm:$0xff]
    %v1542 = vld [vmem:[#allocation10 + $0x188] sm:$0xff]
    %v1543 = vld [vmem:[#allocation10 + $0x190] sm:$0xff]
    %v1544 = vld [vmem:[#allocation10 + $0x198] sm:$0xff]
    %v1545 = vld [vmem:[#allocation10 + $0x1a0] sm:$0xff]
    %v1546 = vld [vmem:[#allocation10 + $0x1a8] sm:$0xff]
    %v1547 = vld [vmem:[#allocation10 + $0x1b0] sm:$0xff]
    %v1548 = vld [vmem:[#allocation10 + $0x1b8] sm:$0xff]
    %v1549 = vld [vmem:[#allocation10 + $0x1c0] sm:$0xff]
    %v1550 = vld [vmem:[#allocation10 + $0x1c8] sm:$0xff]
    %v1551 = vld [vmem:[#allocation10 + $0x1d0] sm:$0xff]
    %v1552 = vld [vmem:[#allocation10 + $0x1d8] sm:$0xff]
    %v1553 = vld [vmem:[#allocation10 + $0x1e0] sm:$0xff]
    %v1554 = vld [vmem:[#allocation10 + $0x1e8] sm:$0xff]
    %v1555 = vld [vmem:[#allocation10 + $0x1f0] sm:$0xff]
    %v1556 = vld [vmem:[#allocation10 + $0x1f8] sm:$0xff]
    %v1557 = vstv %s128
    %v1558 = vand.u32 %v1494, 4294901760
    %1559 = vmatprep.subr.mxu0 %v1558
    %v1560 = vand.u32 %v1493, 4294901760
    %1561 = vmatpush1.msra.mxu0 %v1560
    %v1562 = vand.u32 %v1496, 4294901760
    %1563 = vmatprep.subr.mxu0 %v1562
    %v1564 = vand.u32 %v1495, 4294901760
    %1565 = vmatpush1.msra.mxu0 %v1564
    %v1566 = vand.u32 %v1498, 4294901760
    %1567 = vmatprep.subr.mxu0 %v1566
    %v1568 = vand.u32 %v1497, 4294901760
    %1569 = vmatpush1.msra.mxu0 %v1568
    %v1570 = vand.u32 %v1500, 4294901760
    %1571 = vmatprep.subr.mxu0 %v1570
    %v1572 = vand.u32 %v1499, 4294901760
    %1573 = vmatpush1.msra.mxu0 %v1572
    %v1574 = vand.u32 %v1502, 4294901760
    %1575 = vmatprep.subr.mxu0 %v1574
    %v1576 = vand.u32 %v1501, 4294901760
    %1577 = vmatpush1.msra.mxu0 %v1576
    %v1578 = vand.u32 %v1504, 4294901760
    %1579 = vmatprep.subr.mxu0 %v1578
    %v1580 = vand.u32 %v1503, 4294901760
    %1581 = vmatpush1.msra.mxu0 %v1580
    %v1582 = vand.u32 %v1506, 4294901760
    %1583 = vmatprep.subr.mxu0 %v1582
    %v1584 = vand.u32 %v1505, 4294901760
    %1585 = vmatpush1.msra.mxu0 %v1584
    %v1586 = vand.u32 %v1508, 4294901760
    %1587 = vmatprep.subr.mxu0 %v1586
    %v1588 = vand.u32 %v1507, 4294901760
    %1589 = vmatpush1.msra.mxu0 %v1588
    %v1590 = vand.u32 %v1510, 4294901760
    %1591 = vmatprep.subr.mxu0 %v1590
    %v1592 = vand.u32 %v1509, 4294901760
    %1593 = vmatpush1.msra.mxu0 %v1592
    %v1594 = vand.u32 %v1512, 4294901760
    %1595 = vmatprep.subr.mxu0 %v1594
    %v1596 = vand.u32 %v1511, 4294901760
    %1597 = vmatpush1.msra.mxu0 %v1596
    %v1598 = vand.u32 %v1514, 4294901760
    %1599 = vmatprep.subr.mxu0 %v1598
    %v1600 = vand.u32 %v1513, 4294901760
    %1601 = vmatpush1.msra.mxu0 %v1600
    %v1602 = vand.u32 %v1516, 4294901760
    %1603 = vmatprep.subr.mxu0 %v1602
    %v1604 = vand.u32 %v1515, 4294901760
    %1605 = vmatpush1.msra.mxu0 %v1604
    %v1606 = vand.u32 %v1518, 4294901760
    %1607 = vmatprep.subr.mxu0 %v1606
    %v1608 = vand.u32 %v1517, 4294901760
    %1609 = vmatpush1.msra.mxu0 %v1608
    %v1610 = vand.u32 %v1520, 4294901760
    %1611 = vmatprep.subr.mxu0 %v1610
    %v1612 = vand.u32 %v1519, 4294901760
    %1613 = vmatpush1.msra.mxu0 %v1612
    %v1614 = vand.u32 %v1522, 4294901760
    %1615 = vmatprep.subr.mxu0 %v1614
    %v1616 = vand.u32 %v1521, 4294901760
    %1617 = vmatpush1.msra.mxu0 %v1616
    %v1618 = vand.u32 %v1524, 4294901760
    %1619 = vmatprep.subr.mxu0 %v1618
    %v1620 = vand.u32 %v1523, 4294901760
    %1621 = vmatpush1.msra.mxu0 %v1620
    %v1622 = vand.u32 %v1526, 4294901760
    %1623 = vmatprep.subr.mxu0 %v1622
    %v1624 = vand.u32 %v1525, 4294901760
    %1625 = vmatpush1.msra.mxu0 %v1624
    %v1626 = vand.u32 %v1528, 4294901760
    %1627 = vmatprep.subr.mxu0 %v1626
    %v1628 = vand.u32 %v1527, 4294901760
    %1629 = vmatpush1.msra.mxu0 %v1628
    %v1630 = vand.u32 %v1530, 4294901760
    %1631 = vmatprep.subr.mxu0 %v1630
    %v1632 = vand.u32 %v1529, 4294901760
    %1633 = vmatpush1.msra.mxu0 %v1632
    %v1634 = vand.u32 %v1532, 4294901760
    %1635 = vmatprep.subr.mxu0 %v1634
    %v1636 = vand.u32 %v1531, 4294901760
    %1637 = vmatpush1.msra.mxu0 %v1636
    %v1638 = vand.u32 %v1534, 4294901760
    %1639 = vmatprep.subr.mxu0 %v1638
    %v1640 = vand.u32 %v1533, 4294901760
    %1641 = vmatpush1.msra.mxu0 %v1640
    %v1642 = vand.u32 %v1536, 4294901760
    %1643 = vmatprep.subr.mxu0 %v1642
    %v1644 = vand.u32 %v1535, 4294901760
    %1645 = vmatpush1.msra.mxu0 %v1644
    %v1646 = vand.u32 %v1538, 4294901760
    %1647 = vmatprep.subr.mxu0 %v1646
    %v1648 = vand.u32 %v1537, 4294901760
    %1649 = vmatpush1.msra.mxu0 %v1648
    %v1650 = vand.u32 %v1540, 4294901760
    %1651 = vmatprep.subr.mxu0 %v1650
    %v1652 = vand.u32 %v1539, 4294901760
    %1653 = vmatpush1.msra.mxu0 %v1652
    %v1654 = vand.u32 %v1542, 4294901760
    %1655 = vmatprep.subr.mxu0 %v1654
    %v1656 = vand.u32 %v1541, 4294901760
    %1657 = vmatpush1.msra.mxu0 %v1656
    %v1658 = vand.u32 %v1544, 4294901760
    %1659 = vmatprep.subr.mxu0 %v1658
    %v1660 = vand.u32 %v1543, 4294901760
    %1661 = vmatpush1.msra.mxu0 %v1660
    %v1662 = vand.u32 %v1546, 4294901760
    %1663 = vmatprep.subr.mxu0 %v1662
    %v1664 = vand.u32 %v1545, 4294901760
    %1665 = vmatpush1.msra.mxu0 %v1664
    %v1666 = vand.u32 %v1548, 4294901760
    %1667 = vmatprep.subr.mxu0 %v1666
    %v1668 = vand.u32 %v1547, 4294901760
    %1669 = vmatpush1.msra.mxu0 %v1668
    %v1670 = vand.u32 %v1550, 4294901760
    %1671 = vmatprep.subr.mxu0 %v1670
    %v1672 = vand.u32 %v1549, 4294901760
    %1673 = vmatpush1.msra.mxu0 %v1672
    %v1674 = vand.u32 %v1552, 4294901760
    %1675 = vmatprep.subr.mxu0 %v1674
    %v1676 = vand.u32 %v1551, 4294901760
    %1677 = vmatpush1.msra.mxu0 %v1676
    %v1678 = vand.u32 %v1554, 4294901760
    %1679 = vmatprep.subr.mxu0 %v1678
    %v1680 = vand.u32 %v1553, 4294901760
    %1681 = vmatpush1.msra.mxu0 %v1680
    %v1682 = vand.u32 %v1556, 4294901760
    %1683 = vmatprep.subr.mxu0 %v1682
    %v1684 = vand.u32 %v1555, 4294901760
    %1685 = vmatpush1.msra.mxu0 %v1684
    %v1686 = vand.u32 %v1492, 4294901760
    %v1687 = vsub.f32 %v1492, %v1686
    %v1688 = vand.u32 %v1687, 4294901760
    %v1689 = vsub.f32 %v1687, %v1688
    %v1690 = vand.u32 %v1689, 4294901760
    %1691 = vmatprep.mubr.f32.mxu0 %v1690
    %v1692 = vand.u32 %v1491, 4294901760
    %v1693 = vsub.f32 %v1491, %v1692
    %v1694 = vand.u32 %v1693, 4294901760
    %v1695 = vsub.f32 %v1693, %v1694
    %v1696 = vand.u32 %v1695, 4294901760
    %1697 = vmatmul.mubr.f32.gmra.mrb[0].mxu0 %v1696
    %v1698 = vpop.f32.mrb[0].mxu0
    %v1699 = vadd.f32 %v1557, %v1698
    %v1700 = vpop.f32.mrb[0].mxu0
    %v1701 = vadd.f32 %v1557, %v1700
    %1702 = vdwg.mxu0
    %v1703 = vand.u32 %v1494, 4294901760
    %v1704 = vsub.f32 %v1494, %v1703
    %v1705 = vand.u32 %v1704, 4294901760
    %v1706 = vsub.f32 %v1704, %v1705
    %v1707 = vand.u32 %v1706, 4294901760
    %1708 = vmatprep.subr.mxu0 %v1707
    %v1709 = vand.u32 %v1493, 4294901760
    %v1710 = vsub.f32 %v1493, %v1709
    %v1711 = vand.u32 %v1710, 4294901760
    %v1712 = vsub.f32 %v1710, %v1711
    %v1713 = vand.u32 %v1712, 4294901760
    %1714 = vmatpush1.msra.mxu0 %v1713
    %v1715 = vand.u32 %v1496, 4294901760
    %v1716 = vsub.f32 %v1496, %v1715
    %v1717 = vand.u32 %v1716, 4294901760
    %v1718 = vsub.f32 %v1716, %v1717
    %v1719 = vand.u32 %v1718, 4294901760
    %1720 = vmatprep.subr.mxu0 %v1719
    %v1721 = vand.u32 %v1495, 4294901760
    %v1722 = vsub.f32 %v1495, %v1721
    %v1723 = vand.u32 %v1722, 4294901760
    %v1724 = vsub.f32 %v1722, %v1723
    %v1725 = vand.u32 %v1724, 4294901760
    %1726 = vmatpush1.msra.mxu0 %v1725
    %v1727 = vand.u32 %v1498, 4294901760
    %v1728 = vsub.f32 %v1498, %v1727
    %v1729 = vand.u32 %v1728, 4294901760
    %v1730 = vsub.f32 %v1728, %v1729
    %v1731 = vand.u32 %v1730, 4294901760
    %1732 = vmatprep.subr.mxu0 %v1731
    %v1733 = vand.u32 %v1497, 4294901760
    %v1734 = vsub.f32 %v1497, %v1733
    %v1735 = vand.u32 %v1734, 4294901760
    %v1736 = vsub.f32 %v1734, %v1735
    %v1737 = vand.u32 %v1736, 4294901760
    %1738 = vmatpush1.msra.mxu0 %v1737
    %v1739 = vand.u32 %v1500, 4294901760
    %v1740 = vsub.f32 %v1500, %v1739
    %v1741 = vand.u32 %v1740, 4294901760
    %v1742 = vsub.f32 %v1740, %v1741
    %v1743 = vand.u32 %v1742, 4294901760
    %1744 = vmatprep.subr.mxu0 %v1743
    %v1745 = vand.u32 %v1499, 4294901760
    %v1746 = vsub.f32 %v1499, %v1745
    %v1747 = vand.u32 %v1746, 4294901760
    %v1748 = vsub.f32 %v1746, %v1747
    %v1749 = vand.u32 %v1748, 4294901760
    %1750 = vmatpush1.msra.mxu0 %v1749
    %v1751 = vand.u32 %v1502, 4294901760
    %v1752 = vsub.f32 %v1502, %v1751
    %v1753 = vand.u32 %v1752, 4294901760
    %v1754 = vsub.f32 %v1752, %v1753
    %v1755 = vand.u32 %v1754, 4294901760
    %1756 = vmatprep.subr.mxu0 %v1755
    %v1757 = vand.u32 %v1501, 4294901760
    %v1758 = vsub.f32 %v1501, %v1757
    %v1759 = vand.u32 %v1758, 4294901760
    %v1760 = vsub.f32 %v1758, %v1759
    %v1761 = vand.u32 %v1760, 4294901760
    %1762 = vmatpush1.msra.mxu0 %v1761
    %v1763 = vand.u32 %v1504, 4294901760
    %v1764 = vsub.f32 %v1504, %v1763
    %v1765 = vand.u32 %v1764, 4294901760
    %v1766 = vsub.f32 %v1764, %v1765
    %v1767 = vand.u32 %v1766, 4294901760
    %1768 = vmatprep.subr.mxu0 %v1767
    %v1769 = vand.u32 %v1503, 4294901760
    %v1770 = vsub.f32 %v1503, %v1769
    %v1771 = vand.u32 %v1770, 4294901760
    %v1772 = vsub.f32 %v1770, %v1771
    %v1773 = vand.u32 %v1772, 4294901760
    %1774 = vmatpush1.msra.mxu0 %v1773
    %v1775 = vand.u32 %v1506, 4294901760
    %v1776 = vsub.f32 %v1506, %v1775
    %v1777 = vand.u32 %v1776, 4294901760
    %v1778 = vsub.f32 %v1776, %v1777
    %v1779 = vand.u32 %v1778, 4294901760
    %1780 = vmatprep.subr.mxu0 %v1779
    %v1781 = vand.u32 %v1505, 4294901760
    %v1782 = vsub.f32 %v1505, %v1781
    %v1783 = vand.u32 %v1782, 4294901760
    %v1784 = vsub.f32 %v1782, %v1783
    %v1785 = vand.u32 %v1784, 4294901760
    %1786 = vmatpush1.msra.mxu0 %v1785
    %v1787 = vand.u32 %v1508, 4294901760
    %v1788 = vsub.f32 %v1508, %v1787
    %v1789 = vand.u32 %v1788, 4294901760
    %v1790 = vsub.f32 %v1788, %v1789
    %v1791 = vand.u32 %v1790, 4294901760
    %1792 = vmatprep.subr.mxu0 %v1791
    %v1793 = vand.u32 %v1507, 4294901760
    %v1794 = vsub.f32 %v1507, %v1793
    %v1795 = vand.u32 %v1794, 4294901760
    %v1796 = vsub.f32 %v1794, %v1795
    %v1797 = vand.u32 %v1796, 4294901760
    %1798 = vmatpush1.msra.mxu0 %v1797
    %v1799 = vand.u32 %v1510, 4294901760
    %v1800 = vsub.f32 %v1510, %v1799
    %v1801 = vand.u32 %v1800, 4294901760
    %v1802 = vsub.f32 %v1800, %v1801
    %v1803 = vand.u32 %v1802, 4294901760
    %1804 = vmatprep.subr.mxu0 %v1803
    %v1805 = vand.u32 %v1509, 4294901760
    %v1806 = vsub.f32 %v1509, %v1805
    %v1807 = vand.u32 %v1806, 4294901760
    %v1808 = vsub.f32 %v1806, %v1807
    %v1809 = vand.u32 %v1808, 4294901760
    %1810 = vmatpush1.msra.mxu0 %v1809
    %v1811 = vand.u32 %v1512, 4294901760
    %v1812 = vsub.f32 %v1512, %v1811
    %v1813 = vand.u32 %v1812, 4294901760
    %v1814 = vsub.f32 %v1812, %v1813
    %v1815 = vand.u32 %v1814, 4294901760
    %1816 = vmatprep.subr.mxu0 %v1815
    %v1817 = vand.u32 %v1511, 4294901760
    %v1818 = vsub.f32 %v1511, %v1817
    %v1819 = vand.u32 %v1818, 4294901760
    %v1820 = vsub.f32 %v1818, %v1819
    %v1821 = vand.u32 %v1820, 4294901760
    %1822 = vmatpush1.msra.mxu0 %v1821
    %v1823 = vand.u32 %v1514, 4294901760
    %v1824 = vsub.f32 %v1514, %v1823
    %v1825 = vand.u32 %v1824, 4294901760
    %v1826 = vsub.f32 %v1824, %v1825
    %v1827 = vand.u32 %v1826, 4294901760
    %1828 = vmatprep.subr.mxu0 %v1827
    %v1829 = vand.u32 %v1513, 4294901760
    %v1830 = vsub.f32 %v1513, %v1829
    %v1831 = vand.u32 %v1830, 4294901760
    %v1832 = vsub.f32 %v1830, %v1831
    %v1833 = vand.u32 %v1832, 4294901760
    %1834 = vmatpush1.msra.mxu0 %v1833
    %v1835 = vand.u32 %v1516, 4294901760
    %v1836 = vsub.f32 %v1516, %v1835
    %v1837 = vand.u32 %v1836, 4294901760
    %v1838 = vsub.f32 %v1836, %v1837
    %v1839 = vand.u32 %v1838, 4294901760
    %1840 = vmatprep.subr.mxu0 %v1839
    %v1841 = vand.u32 %v1515, 4294901760
    %v1842 = vsub.f32 %v1515, %v1841
    %v1843 = vand.u32 %v1842, 4294901760
    %v1844 = vsub.f32 %v1842, %v1843
    %v1845 = vand.u32 %v1844, 4294901760
    %1846 = vmatpush1.msra.mxu0 %v1845
    %v1847 = vand.u32 %v1518, 4294901760
    %v1848 = vsub.f32 %v1518, %v1847
    %v1849 = vand.u32 %v1848, 4294901760
    %v1850 = vsub.f32 %v1848, %v1849
    %v1851 = vand.u32 %v1850, 4294901760
    %1852 = vmatprep.subr.mxu0 %v1851
    %v1853 = vand.u32 %v1517, 4294901760
    %v1854 = vsub.f32 %v1517, %v1853
    %v1855 = vand.u32 %v1854, 4294901760
    %v1856 = vsub.f32 %v1854, %v1855
    %v1857 = vand.u32 %v1856, 4294901760
    %1858 = vmatpush1.msra.mxu0 %v1857
    %v1859 = vand.u32 %v1520, 4294901760
    %v1860 = vsub.f32 %v1520, %v1859
    %v1861 = vand.u32 %v1860, 4294901760
    %v1862 = vsub.f32 %v1860, %v1861
    %v1863 = vand.u32 %v1862, 4294901760
    %1864 = vmatprep.subr.mxu0 %v1863
    %v1865 = vand.u32 %v1519, 4294901760
    %v1866 = vsub.f32 %v1519, %v1865
    %v1867 = vand.u32 %v1866, 4294901760
    %v1868 = vsub.f32 %v1866, %v1867
    %v1869 = vand.u32 %v1868, 4294901760
    %1870 = vmatpush1.msra.mxu0 %v1869
    %v1871 = vand.u32 %v1522, 4294901760
    %v1872 = vsub.f32 %v1522, %v1871
    %v1873 = vand.u32 %v1872, 4294901760
    %v1874 = vsub.f32 %v1872, %v1873
    %v1875 = vand.u32 %v1874, 4294901760
    %1876 = vmatprep.subr.mxu0 %v1875
    %v1877 = vand.u32 %v1521, 4294901760
    %v1878 = vsub.f32 %v1521, %v1877
    %v1879 = vand.u32 %v1878, 4294901760
    %v1880 = vsub.f32 %v1878, %v1879
    %v1881 = vand.u32 %v1880, 4294901760
    %1882 = vmatpush1.msra.mxu0 %v1881
    %v1883 = vand.u32 %v1524, 4294901760
    %v1884 = vsub.f32 %v1524, %v1883
    %v1885 = vand.u32 %v1884, 4294901760
    %v1886 = vsub.f32 %v1884, %v1885
    %v1887 = vand.u32 %v1886, 4294901760
    %1888 = vmatprep.subr.mxu0 %v1887
    %v1889 = vand.u32 %v1523, 4294901760
    %v1890 = vsub.f32 %v1523, %v1889
    %v1891 = vand.u32 %v1890, 4294901760
    %v1892 = vsub.f32 %v1890, %v1891
    %v1893 = vand.u32 %v1892, 4294901760
    %1894 = vmatpush1.msra.mxu0 %v1893
    %v1895 = vand.u32 %v1526, 4294901760
    %v1896 = vsub.f32 %v1526, %v1895
    %v1897 = vand.u32 %v1896, 4294901760
    %v1898 = vsub.f32 %v1896, %v1897
    %v1899 = vand.u32 %v1898, 4294901760
    %1900 = vmatprep.subr.mxu0 %v1899
    %v1901 = vand.u32 %v1525, 4294901760
    %v1902 = vsub.f32 %v1525, %v1901
    %v1903 = vand.u32 %v1902, 4294901760
    %v1904 = vsub.f32 %v1902, %v1903
    %v1905 = vand.u32 %v1904, 4294901760
    %1906 = vmatpush1.msra.mxu0 %v1905
    %v1907 = vand.u32 %v1528, 4294901760
    %v1908 = vsub.f32 %v1528, %v1907
    %v1909 = vand.u32 %v1908, 4294901760
    %v1910 = vsub.f32 %v1908, %v1909
    %v1911 = vand.u32 %v1910, 4294901760
    %1912 = vmatprep.subr.mxu0 %v1911
    %v1913 = vand.u32 %v1527, 4294901760
    %v1914 = vsub.f32 %v1527, %v1913
    %v1915 = vand.u32 %v1914, 4294901760
    %v1916 = vsub.f32 %v1914, %v1915
    %v1917 = vand.u32 %v1916, 4294901760
    %1918 = vmatpush1.msra.mxu0 %v1917
    %v1919 = vand.u32 %v1530, 4294901760
    %v1920 = vsub.f32 %v1530, %v1919
    %v1921 = vand.u32 %v1920, 4294901760
    %v1922 = vsub.f32 %v1920, %v1921
    %v1923 = vand.u32 %v1922, 4294901760
    %1924 = vmatprep.subr.mxu0 %v1923
    %v1925 = vand.u32 %v1529, 4294901760
    %v1926 = vsub.f32 %v1529, %v1925
    %v1927 = vand.u32 %v1926, 4294901760
    %v1928 = vsub.f32 %v1926, %v1927
    %v1929 = vand.u32 %v1928, 4294901760
    %1930 = vmatpush1.msra.mxu0 %v1929
    %v1931 = vand.u32 %v1532, 4294901760
    %v1932 = vsub.f32 %v1532, %v1931
    %v1933 = vand.u32 %v1932, 4294901760
    %v1934 = vsub.f32 %v1932, %v1933
    %v1935 = vand.u32 %v1934, 4294901760
    %1936 = vmatprep.subr.mxu0 %v1935
    %v1937 = vand.u32 %v1531, 4294901760
    %v1938 = vsub.f32 %v1531, %v1937
    %v1939 = vand.u32 %v1938, 4294901760
    %v1940 = vsub.f32 %v1938, %v1939
    %v1941 = vand.u32 %v1940, 4294901760
    %1942 = vmatpush1.msra.mxu0 %v1941
    %v1943 = vand.u32 %v1534, 4294901760
    %v1944 = vsub.f32 %v1534, %v1943
    %v1945 = vand.u32 %v1944, 4294901760
    %v1946 = vsub.f32 %v1944, %v1945
    %v1947 = vand.u32 %v1946, 4294901760
    %1948 = vmatprep.subr.mxu0 %v1947
    %v1949 = vand.u32 %v1533, 4294901760
    %v1950 = vsub.f32 %v1533, %v1949
    %v1951 = vand.u32 %v1950, 4294901760
    %v1952 = vsub.f32 %v1950, %v1951
    %v1953 = vand.u32 %v1952, 4294901760
    %1954 = vmatpush1.msra.mxu0 %v1953
    %v1955 = vand.u32 %v1536, 4294901760
    %v1956 = vsub.f32 %v1536, %v1955
    %v1957 = vand.u32 %v1956, 4294901760
    %v1958 = vsub.f32 %v1956, %v1957
    %v1959 = vand.u32 %v1958, 4294901760
    %1960 = vmatprep.subr.mxu0 %v1959
    %v1961 = vand.u32 %v1535, 4294901760
    %v1962 = vsub.f32 %v1535, %v1961
    %v1963 = vand.u32 %v1962, 4294901760
    %v1964 = vsub.f32 %v1962, %v1963
    %v1965 = vand.u32 %v1964, 4294901760
    %1966 = vmatpush1.msra.mxu0 %v1965
    %v1967 = vand.u32 %v1538, 4294901760
    %v1968 = vsub.f32 %v1538, %v1967
    %v1969 = vand.u32 %v1968, 4294901760
    %v1970 = vsub.f32 %v1968, %v1969
    %v1971 = vand.u32 %v1970, 4294901760
    %1972 = vmatprep.subr.mxu0 %v1971
    %v1973 = vand.u32 %v1537, 4294901760
    %v1974 = vsub.f32 %v1537, %v1973
    %v1975 = vand.u32 %v1974, 4294901760
    %v1976 = vsub.f32 %v1974, %v1975
    %v1977 = vand.u32 %v1976, 4294901760
    %1978 = vmatpush1.msra.mxu0 %v1977
    %v1979 = vand.u32 %v1540, 4294901760
    %v1980 = vsub.f32 %v1540, %v1979
    %v1981 = vand.u32 %v1980, 4294901760
    %v1982 = vsub.f32 %v1980, %v1981
    %v1983 = vand.u32 %v1982, 4294901760
    %1984 = vmatprep.subr.mxu0 %v1983
    %v1985 = vand.u32 %v1539, 4294901760
    %v1986 = vsub.f32 %v1539, %v1985
    %v1987 = vand.u32 %v1986, 4294901760
    %v1988 = vsub.f32 %v1986, %v1987
    %v1989 = vand.u32 %v1988, 4294901760
    %1990 = vmatpush1.msra.mxu0 %v1989
    %v1991 = vand.u32 %v1542, 4294901760
    %v1992 = vsub.f32 %v1542, %v1991
    %v1993 = vand.u32 %v1992, 4294901760
    %v1994 = vsub.f32 %v1992, %v1993
    %v1995 = vand.u32 %v1994, 4294901760
    %1996 = vmatprep.subr.mxu0 %v1995
    %v1997 = vand.u32 %v1541, 4294901760
    %v1998 = vsub.f32 %v1541, %v1997
    %v1999 = vand.u32 %v1998, 4294901760
    %v2000 = vsub.f32 %v1998, %v1999
    %v2001 = vand.u32 %v2000, 4294901760
    %2002 = vmatpush1.msra.mxu0 %v2001
    %v2003 = vand.u32 %v1544, 4294901760
    %v2004 = vsub.f32 %v1544, %v2003
    %v2005 = vand.u32 %v2004, 4294901760
    %v2006 = vsub.f32 %v2004, %v2005
    %v2007 = vand.u32 %v2006, 4294901760
    %2008 = vmatprep.subr.mxu0 %v2007
    %v2009 = vand.u32 %v1543, 4294901760
    %v2010 = vsub.f32 %v1543, %v2009
    %v2011 = vand.u32 %v2010, 4294901760
    %v2012 = vsub.f32 %v2010, %v2011
    %v2013 = vand.u32 %v2012, 4294901760
    %2014 = vmatpush1.msra.mxu0 %v2013
    %v2015 = vand.u32 %v1546, 4294901760
    %v2016 = vsub.f32 %v1546, %v2015
    %v2017 = vand.u32 %v2016, 4294901760
    %v2018 = vsub.f32 %v2016, %v2017
    %v2019 = vand.u32 %v2018, 4294901760
    %2020 = vmatprep.subr.mxu0 %v2019
    %v2021 = vand.u32 %v1545, 4294901760
    %v2022 = vsub.f32 %v1545, %v2021
    %v2023 = vand.u32 %v2022, 4294901760
    %v2024 = vsub.f32 %v2022, %v2023
    %v2025 = vand.u32 %v2024, 4294901760
    %2026 = vmatpush1.msra.mxu0 %v2025
    %v2027 = vand.u32 %v1548, 4294901760
    %v2028 = vsub.f32 %v1548, %v2027
    %v2029 = vand.u32 %v2028, 4294901760
    %v2030 = vsub.f32 %v2028, %v2029
    %v2031 = vand.u32 %v2030, 4294901760
    %2032 = vmatprep.subr.mxu0 %v2031
    %v2033 = vand.u32 %v1547, 4294901760
    %v2034 = vsub.f32 %v1547, %v2033
    %v2035 = vand.u32 %v2034, 4294901760
    %v2036 = vsub.f32 %v2034, %v2035
    %v2037 = vand.u32 %v2036, 4294901760
    %2038 = vmatpush1.msra.mxu0 %v2037
    %v2039 = vand.u32 %v1550, 4294901760
    %v2040 = vsub.f32 %v1550, %v2039
    %v2041 = vand.u32 %v2040, 4294901760
    %v2042 = vsub.f32 %v2040, %v2041
    %v2043 = vand.u32 %v2042, 4294901760
    %2044 = vmatprep.subr.mxu0 %v2043
    %v2045 = vand.u32 %v1549, 4294901760
    %v2046 = vsub.f32 %v1549, %v2045
    %v2047 = vand.u32 %v2046, 4294901760
    %v2048 = vsub.f32 %v2046, %v2047
    %v2049 = vand.u32 %v2048, 4294901760
    %2050 = vmatpush1.msra.mxu0 %v2049
    %v2051 = vand.u32 %v1552, 4294901760
    %v2052 = vsub.f32 %v1552, %v2051
    %v2053 = vand.u32 %v2052, 4294901760
    %v2054 = vsub.f32 %v2052, %v2053
    %v2055 = vand.u32 %v2054, 4294901760
    %2056 = vmatprep.subr.mxu0 %v2055
    %v2057 = vand.u32 %v1551, 4294901760
    %v2058 = vsub.f32 %v1551, %v2057
    %v2059 = vand.u32 %v2058, 4294901760
    %v2060 = vsub.f32 %v2058, %v2059
    %v2061 = vand.u32 %v2060, 4294901760
    %2062 = vmatpush1.msra.mxu0 %v2061
    %v2063 = vand.u32 %v1554, 4294901760
    %v2064 = vsub.f32 %v1554, %v2063
    %v2065 = vand.u32 %v2064, 4294901760
    %v2066 = vsub.f32 %v2064, %v2065
    %v2067 = vand.u32 %v2066, 4294901760
    %2068 = vmatprep.subr.mxu0 %v2067
    %v2069 = vand.u32 %v1553, 4294901760
    %v2070 = vsub.f32 %v1553, %v2069
    %v2071 = vand.u32 %v2070, 4294901760
    %v2072 = vsub.f32 %v2070, %v2071
    %v2073 = vand.u32 %v2072, 4294901760
    %2074 = vmatpush1.msra.mxu0 %v2073
    %v2075 = vand.u32 %v1556, 4294901760
    %v2076 = vsub.f32 %v1556, %v2075
    %v2077 = vand.u32 %v2076, 4294901760
    %v2078 = vsub.f32 %v2076, %v2077
    %v2079 = vand.u32 %v2078, 4294901760
    %2080 = vmatprep.subr.mxu0 %v2079
    %v2081 = vand.u32 %v1555, 4294901760
    %v2082 = vsub.f32 %v1555, %v2081
    %v2083 = vand.u32 %v2082, 4294901760
    %v2084 = vsub.f32 %v2082, %v2083
    %v2085 = vand.u32 %v2084, 4294901760
    %2086 = vmatpush1.msra.mxu0 %v2085
    %v2087 = vand.u32 %v1492, 4294901760
    %2088 = vmatprep.mubr.f32.mxu0 %v2087
    %v2089 = vand.u32 %v1491, 4294901760
    %2090 = vmatmul.mubr.f32.gmra.mrb[0].mxu0 %v2089
    %v2091 = vpop.f32.mrb[0].mxu0
    %v2092 = vadd.f32 %v1699, %v2091
    %v2093 = vpop.f32.mrb[0].mxu0
    %v2094 = vadd.f32 %v1701, %v2093
    %2095 = vdwg.mxu0
    %v2096 = vand.u32 %v1494, 4294901760
    %v2097 = vsub.f32 %v1494, %v2096
    %2098 = vmatprep.subr.mxu0 %v2097
    %v2099 = vand.u32 %v1493, 4294901760
    %v2100 = vsub.f32 %v1493, %v2099
    %2101 = vmatpush1.msra.mxu0 %v2100
    %v2102 = vand.u32 %v1496, 4294901760
    %v2103 = vsub.f32 %v1496, %v2102
    %2104 = vmatprep.subr.mxu0 %v2103
    %v2105 = vand.u32 %v1495, 4294901760
    %v2106 = vsub.f32 %v1495, %v2105
    %2107 = vmatpush1.msra.mxu0 %v2106
    %v2108 = vand.u32 %v1498, 4294901760
    %v2109 = vsub.f32 %v1498, %v2108
    %2110 = vmatprep.subr.mxu0 %v2109
    %v2111 = vand.u32 %v1497, 4294901760
    %v2112 = vsub.f32 %v1497, %v2111
    %2113 = vmatpush1.msra.mxu0 %v2112
    %v2114 = vand.u32 %v1500, 4294901760
    %v2115 = vsub.f32 %v1500, %v2114
    %2116 = vmatprep.subr.mxu0 %v2115
    %v2117 = vand.u32 %v1499, 4294901760
    %v2118 = vsub.f32 %v1499, %v2117
    %2119 = vmatpush1.msra.mxu0 %v2118
    %v2120 = vand.u32 %v1502, 4294901760
    %v2121 = vsub.f32 %v1502, %v2120
    %2122 = vmatprep.subr.mxu0 %v2121
    %v2123 = vand.u32 %v1501, 4294901760
    %v2124 = vsub.f32 %v1501, %v2123
    %2125 = vmatpush1.msra.mxu0 %v2124
    %v2126 = vand.u32 %v1504, 4294901760
    %v2127 = vsub.f32 %v1504, %v2126
    %2128 = vmatprep.subr.mxu0 %v2127
    %v2129 = vand.u32 %v1503, 4294901760
    %v2130 = vsub.f32 %v1503, %v2129
    %2131 = vmatpush1.msra.mxu0 %v2130
    %v2132 = vand.u32 %v1506, 4294901760
    %v2133 = vsub.f32 %v1506, %v2132
    %2134 = vmatprep.subr.mxu0 %v2133
    %v2135 = vand.u32 %v1505, 4294901760
    %v2136 = vsub.f32 %v1505, %v2135
    %2137 = vmatpush1.msra.mxu0 %v2136
    %v2138 = vand.u32 %v1508, 4294901760
    %v2139 = vsub.f32 %v1508, %v2138
    %2140 = vmatprep.subr.mxu0 %v2139
    %v2141 = vand.u32 %v1507, 4294901760
    %v2142 = vsub.f32 %v1507, %v2141
    %2143 = vmatpush1.msra.mxu0 %v2142
    %v2144 = vand.u32 %v1510, 4294901760
    %v2145 = vsub.f32 %v1510, %v2144
    %2146 = vmatprep.subr.mxu0 %v2145
    %v2147 = vand.u32 %v1509, 4294901760
    %v2148 = vsub.f32 %v1509, %v2147
    %2149 = vmatpush1.msra.mxu0 %v2148
    %v2150 = vand.u32 %v1512, 4294901760
    %v2151 = vsub.f32 %v1512, %v2150
    %2152 = vmatprep.subr.mxu0 %v2151
    %v2153 = vand.u32 %v1511, 4294901760
    %v2154 = vsub.f32 %v1511, %v2153
    %2155 = vmatpush1.msra.mxu0 %v2154
    %v2156 = vand.u32 %v1514, 4294901760
    %v2157 = vsub.f32 %v1514, %v2156
    %2158 = vmatprep.subr.mxu0 %v2157
    %v2159 = vand.u32 %v1513, 4294901760
    %v2160 = vsub.f32 %v1513, %v2159
    %2161 = vmatpush1.msra.mxu0 %v2160
    %v2162 = vand.u32 %v1516, 4294901760
    %v2163 = vsub.f32 %v1516, %v2162
    %2164 = vmatprep.subr.mxu0 %v2163
    %v2165 = vand.u32 %v1515, 4294901760
    %v2166 = vsub.f32 %v1515, %v2165
    %2167 = vmatpush1.msra.mxu0 %v2166
    %v2168 = vand.u32 %v1518, 4294901760
    %v2169 = vsub.f32 %v1518, %v2168
    %2170 = vmatprep.subr.mxu0 %v2169
    %v2171 = vand.u32 %v1517, 4294901760
    %v2172 = vsub.f32 %v1517, %v2171
    %2173 = vmatpush1.msra.mxu0 %v2172
    %v2174 = vand.u32 %v1520, 4294901760
    %v2175 = vsub.f32 %v1520, %v2174
    %2176 = vmatprep.subr.mxu0 %v2175
    %v2177 = vand.u32 %v1519, 4294901760
    %v2178 = vsub.f32 %v1519, %v2177
    %2179 = vmatpush1.msra.mxu0 %v2178
    %v2180 = vand.u32 %v1522, 4294901760
    %v2181 = vsub.f32 %v1522, %v2180
    %2182 = vmatprep.subr.mxu0 %v2181
    %v2183 = vand.u32 %v1521, 4294901760
    %v2184 = vsub.f32 %v1521, %v2183
    %2185 = vmatpush1.msra.mxu0 %v2184
    %v2186 = vand.u32 %v1524, 4294901760
    %v2187 = vsub.f32 %v1524, %v2186
    %2188 = vmatprep.subr.mxu0 %v2187
    %v2189 = vand.u32 %v1523, 4294901760
    %v2190 = vsub.f32 %v1523, %v2189
    %2191 = vmatpush1.msra.mxu0 %v2190
    %v2192 = vand.u32 %v1526, 4294901760
    %v2193 = vsub.f32 %v1526, %v2192
    %2194 = vmatprep.subr.mxu0 %v2193
    %v2195 = vand.u32 %v1525, 4294901760
    %v2196 = vsub.f32 %v1525, %v2195
    %2197 = vmatpush1.msra.mxu0 %v2196
    %v2198 = vand.u32 %v1528, 4294901760
    %v2199 = vsub.f32 %v1528, %v2198
    %2200 = vmatprep.subr.mxu0 %v2199
    %v2201 = vand.u32 %v1527, 4294901760
    %v2202 = vsub.f32 %v1527, %v2201
    %2203 = vmatpush1.msra.mxu0 %v2202
    %v2204 = vand.u32 %v1530, 4294901760
    %v2205 = vsub.f32 %v1530, %v2204
    %2206 = vmatprep.subr.mxu0 %v2205
    %v2207 = vand.u32 %v1529, 4294901760
    %v2208 = vsub.f32 %v1529, %v2207
    %2209 = vmatpush1.msra.mxu0 %v2208
    %v2210 = vand.u32 %v1532, 4294901760
    %v2211 = vsub.f32 %v1532, %v2210
    %2212 = vmatprep.subr.mxu0 %v2211
    %v2213 = vand.u32 %v1531, 4294901760
    %v2214 = vsub.f32 %v1531, %v2213
    %2215 = vmatpush1.msra.mxu0 %v2214
    %v2216 = vand.u32 %v1534, 4294901760
    %v2217 = vsub.f32 %v1534, %v2216
    %2218 = vmatprep.subr.mxu0 %v2217
    %v2219 = vand.u32 %v1533, 4294901760
    %v2220 = vsub.f32 %v1533, %v2219
    %2221 = vmatpush1.msra.mxu0 %v2220
    %v2222 = vand.u32 %v1536, 4294901760
    %v2223 = vsub.f32 %v1536, %v2222
    %2224 = vmatprep.subr.mxu0 %v2223
    %v2225 = vand.u32 %v1535, 4294901760
    %v2226 = vsub.f32 %v1535, %v2225
    %2227 = vmatpush1.msra.mxu0 %v2226
    %v2228 = vand.u32 %v1538, 4294901760
    %v2229 = vsub.f32 %v1538, %v2228
    %2230 = vmatprep.subr.mxu0 %v2229
    %v2231 = vand.u32 %v1537, 4294901760
    %v2232 = vsub.f32 %v1537, %v2231
    %2233 = vmatpush1.msra.mxu0 %v2232
    %v2234 = vand.u32 %v1540, 4294901760
    %v2235 = vsub.f32 %v1540, %v2234
    %2236 = vmatprep.subr.mxu0 %v2235
    %v2237 = vand.u32 %v1539, 4294901760
    %v2238 = vsub.f32 %v1539, %v2237
    %2239 = vmatpush1.msra.mxu0 %v2238
    %v2240 = vand.u32 %v1542, 4294901760
    %v2241 = vsub.f32 %v1542, %v2240
    %2242 = vmatprep.subr.mxu0 %v2241
    %v2243 = vand.u32 %v1541, 4294901760
    %v2244 = vsub.f32 %v1541, %v2243
    %2245 = vmatpush1.msra.mxu0 %v2244
    %v2246 = vand.u32 %v1544, 4294901760
    %v2247 = vsub.f32 %v1544, %v2246
    %2248 = vmatprep.subr.mxu0 %v2247
    %v2249 = vand.u32 %v1543, 4294901760
    %v2250 = vsub.f32 %v1543, %v2249
    %2251 = vmatpush1.msra.mxu0 %v2250
    %v2252 = vand.u32 %v1546, 4294901760
    %v2253 = vsub.f32 %v1546, %v2252
    %2254 = vmatprep.subr.mxu0 %v2253
    %v2255 = vand.u32 %v1545, 4294901760
    %v2256 = vsub.f32 %v1545, %v2255
    %2257 = vmatpush1.msra.mxu0 %v2256
    %v2258 = vand.u32 %v1548, 4294901760
    %v2259 = vsub.f32 %v1548, %v2258
    %2260 = vmatprep.subr.mxu0 %v2259
    %v2261 = vand.u32 %v1547, 4294901760
    %v2262 = vsub.f32 %v1547, %v2261
    %2263 = vmatpush1.msra.mxu0 %v2262
    %v2264 = vand.u32 %v1550, 4294901760
    %v2265 = vsub.f32 %v1550, %v2264
    %2266 = vmatprep.subr.mxu0 %v2265
    %v2267 = vand.u32 %v1549, 4294901760
    %v2268 = vsub.f32 %v1549, %v2267
    %2269 = vmatpush1.msra.mxu0 %v2268
    %v2270 = vand.u32 %v1552, 4294901760
    %v2271 = vsub.f32 %v1552, %v2270
    %2272 = vmatprep.subr.mxu0 %v2271
    %v2273 = vand.u32 %v1551, 4294901760
    %v2274 = vsub.f32 %v1551, %v2273
    %2275 = vmatpush1.msra.mxu0 %v2274
    %v2276 = vand.u32 %v1554, 4294901760
    %v2277 = vsub.f32 %v1554, %v2276
    %2278 = vmatprep.subr.mxu0 %v2277
    %v2279 = vand.u32 %v1553, 4294901760
    %v2280 = vsub.f32 %v1553, %v2279
    %2281 = vmatpush1.msra.mxu0 %v2280
    %v2282 = vand.u32 %v1556, 4294901760
    %v2283 = vsub.f32 %v1556, %v2282
    %2284 = vmatprep.subr.mxu0 %v2283
    %v2285 = vand.u32 %v1555, 4294901760
    %v2286 = vsub.f32 %v1555, %v2285
    %2287 = vmatpush1.msra.mxu0 %v2286
    %v2288 = vand.u32 %v1492, 4294901760
    %v2289 = vsub.f32 %v1492, %v2288
    %2290 = vmatprep.mubr.f32.mxu0 %v2289
    %v2291 = vand.u32 %v1491, 4294901760
    %v2292 = vsub.f32 %v1491, %v2291
    %2293 = vmatmul.mubr.f32.gmra.mrb[0].mxu0 %v2292
    %v2294 = vpop.f32.mrb[0].mxu0
    %v2295 = vadd.f32 %v2092, %v2294
    %v2296 = vpop.f32.mrb[0].mxu0
    %v2297 = vadd.f32 %v2094, %v2296
    %2298 = vdwg.mxu0
    %v2299 = vand.u32 %v1494, 4294901760
    %2300 = vmatprep.subr.mxu0 %v2299
    %v2301 = vand.u32 %v1493, 4294901760
    %2302 = vmatpush1.msra.mxu0 %v2301
    %v2303 = vand.u32 %v1496, 4294901760
    %2304 = vmatprep.subr.mxu0 %v2303
    %v2305 = vand.u32 %v1495, 4294901760
    %2306 = vmatpush1.msra.mxu0 %v2305
    %v2307 = vand.u32 %v1498, 4294901760
    %2308 = vmatprep.subr.mxu0 %v2307
    %v2309 = vand.u32 %v1497, 4294901760
    %2310 = vmatpush1.msra.mxu0 %v2309
    %v2311 = vand.u32 %v1500, 4294901760
    %2312 = vmatprep.subr.mxu0 %v2311
    %v2313 = vand.u32 %v1499, 4294901760
    %2314 = vmatpush1.msra.mxu0 %v2313
    %v2315 = vand.u32 %v1502, 4294901760
    %2316 = vmatprep.subr.mxu0 %v2315
    %v2317 = vand.u32 %v1501, 4294901760
    %2318 = vmatpush1.msra.mxu0 %v2317
    %v2319 = vand.u32 %v1504, 4294901760
    %2320 = vmatprep.subr.mxu0 %v2319
    %v2321 = vand.u32 %v1503, 4294901760
    %2322 = vmatpush1.msra.mxu0 %v2321
    %v2323 = vand.u32 %v1506, 4294901760
    %2324 = vmatprep.subr.mxu0 %v2323
    %v2325 = vand.u32 %v1505, 4294901760
    %2326 = vmatpush1.msra.mxu0 %v2325
    %v2327 = vand.u32 %v1508, 4294901760
    %2328 = vmatprep.subr.mxu0 %v2327
    %v2329 = vand.u32 %v1507, 4294901760
    %2330 = vmatpush1.msra.mxu0 %v2329
    %v2331 = vand.u32 %v1510, 4294901760
    %2332 = vmatprep.subr.mxu0 %v2331
    %v2333 = vand.u32 %v1509, 4294901760
    %2334 = vmatpush1.msra.mxu0 %v2333
    %v2335 = vand.u32 %v1512, 4294901760
    %2336 = vmatprep.subr.mxu0 %v2335
    %v2337 = vand.u32 %v1511, 4294901760
    %2338 = vmatpush1.msra.mxu0 %v2337
    %v2339 = vand.u32 %v1514, 4294901760
    %2340 = vmatprep.subr.mxu0 %v2339
    %v2341 = vand.u32 %v1513, 4294901760
    %2342 = vmatpush1.msra.mxu0 %v2341
    %v2343 = vand.u32 %v1516, 4294901760
    %2344 = vmatprep.subr.mxu0 %v2343
    %v2345 = vand.u32 %v1515, 4294901760
    %2346 = vmatpush1.msra.mxu0 %v2345
    %v2347 = vand.u32 %v1518, 4294901760
    %2348 = vmatprep.subr.mxu0 %v2347
    %v2349 = vand.u32 %v1517, 4294901760
    %2350 = vmatpush1.msra.mxu0 %v2349
    %v2351 = vand.u32 %v1520, 4294901760
    %2352 = vmatprep.subr.mxu0 %v2351
    %v2353 = vand.u32 %v1519, 4294901760
    %2354 = vmatpush1.msra.mxu0 %v2353
    %v2355 = vand.u32 %v1522, 4294901760
    %2356 = vmatprep.subr.mxu0 %v2355
    %v2357 = vand.u32 %v1521, 4294901760
    %2358 = vmatpush1.msra.mxu0 %v2357
    %v2359 = vand.u32 %v1524, 4294901760
    %2360 = vmatprep.subr.mxu0 %v2359
    %v2361 = vand.u32 %v1523, 4294901760
    %2362 = vmatpush1.msra.mxu0 %v2361
    %v2363 = vand.u32 %v1526, 4294901760
    %2364 = vmatprep.subr.mxu0 %v2363
    %v2365 = vand.u32 %v1525, 4294901760
    %2366 = vmatpush1.msra.mxu0 %v2365
    %v2367 = vand.u32 %v1528, 4294901760
    %2368 = vmatprep.subr.mxu0 %v2367
    %v2369 = vand.u32 %v1527, 4294901760
    %2370 = vmatpush1.msra.mxu0 %v2369
    %v2371 = vand.u32 %v1530, 4294901760
    %2372 = vmatprep.subr.mxu0 %v2371
    %v2373 = vand.u32 %v1529, 4294901760
    %2374 = vmatpush1.msra.mxu0 %v2373
    %v2375 = vand.u32 %v1532, 4294901760
    %2376 = vmatprep.subr.mxu0 %v2375
    %v2377 = vand.u32 %v1531, 4294901760
    %2378 = vmatpush1.msra.mxu0 %v2377
    %v2379 = vand.u32 %v1534, 4294901760
    %2380 = vmatprep.subr.mxu0 %v2379
    %v2381 = vand.u32 %v1533, 4294901760
    %2382 = vmatpush1.msra.mxu0 %v2381
    %v2383 = vand.u32 %v1536, 4294901760
    %2384 = vmatprep.subr.mxu0 %v2383
    %v2385 = vand.u32 %v1535, 4294901760
    %2386 = vmatpush1.msra.mxu0 %v2385
    %v2387 = vand.u32 %v1538, 4294901760
    %2388 = vmatprep.subr.mxu0 %v2387
    %v2389 = vand.u32 %v1537, 4294901760
    %2390 = vmatpush1.msra.mxu0 %v2389
    %v2391 = vand.u32 %v1540, 4294901760
    %2392 = vmatprep.subr.mxu0 %v2391
    %v2393 = vand.u32 %v1539, 4294901760
    %2394 = vmatpush1.msra.mxu0 %v2393
    %v2395 = vand.u32 %v1542, 4294901760
    %2396 = vmatprep.subr.mxu0 %v2395
    %v2397 = vand.u32 %v1541, 4294901760
    %2398 = vmatpush1.msra.mxu0 %v2397
    %v2399 = vand.u32 %v1544, 4294901760
    %2400 = vmatprep.subr.mxu0 %v2399
    %v2401 = vand.u32 %v1543, 4294901760
    %2402 = vmatpush1.msra.mxu0 %v2401
    %v2403 = vand.u32 %v1546, 4294901760
    %2404 = vmatprep.subr.mxu0 %v2403
    %v2405 = vand.u32 %v1545, 4294901760
    %2406 = vmatpush1.msra.mxu0 %v2405
    %v2407 = vand.u32 %v1548, 4294901760
    %2408 = vmatprep.subr.mxu0 %v2407
    %v2409 = vand.u32 %v1547, 4294901760
    %2410 = vmatpush1.msra.mxu0 %v2409
    %v2411 = vand.u32 %v1550, 4294901760
    %2412 = vmatprep.subr.mxu0 %v2411
    %v2413 = vand.u32 %v1549, 4294901760
    %2414 = vmatpush1.msra.mxu0 %v2413
    %v2415 = vand.u32 %v1552, 4294901760
    %2416 = vmatprep.subr.mxu0 %v2415
    %v2417 = vand.u32 %v1551, 4294901760
    %2418 = vmatpush1.msra.mxu0 %v2417
    %v2419 = vand.u32 %v1554, 4294901760
    %2420 = vmatprep.subr.mxu0 %v2419
    %v2421 = vand.u32 %v1553, 4294901760
    %2422 = vmatpush1.msra.mxu0 %v2421
    %v2423 = vand.u32 %v1556, 4294901760
    %2424 = vmatprep.subr.mxu0 %v2423
    %v2425 = vand.u32 %v1555, 4294901760
    %2426 = vmatpush1.msra.mxu0 %v2425
    %v2427 = vand.u32 %v1492, 4294901760
    %v2428 = vsub.f32 %v1492, %v2427
    %v2429 = vand.u32 %v2428, 4294901760
    %2430 = vmatprep.mubr.f32.mxu0 %v2429
    %v2431 = vand.u32 %v1491, 4294901760
    %v2432 = vsub.f32 %v1491, %v2431
    %v2433 = vand.u32 %v2432, 4294901760
    %2434 = vmatmul.mubr.f32.gmra.mrb[0].mxu0 %v2433
    %v2435 = vpop.f32.mrb[0].mxu0
    %v2436 = vadd.f32 %v2295, %v2435
    %v2437 = vpop.f32.mrb[0].mxu0
    %v2438 = vadd.f32 %v2297, %v2437
    %2439 = vdwg.mxu0
    %v2440 = vand.u32 %v1494, 4294901760
    %v2441 = vsub.f32 %v1494, %v2440
    %v2442 = vand.u32 %v2441, 4294901760
    %2443 = vmatprep.subr.mxu0 %v2442
    %v2444 = vand.u32 %v1493, 4294901760
    %v2445 = vsub.f32 %v1493, %v2444
    %v2446 = vand.u32 %v2445, 4294901760
    %2447 = vmatpush1.msra.mxu0 %v2446
    %v2448 = vand.u32 %v1496, 4294901760
    %v2449 = vsub.f32 %v1496, %v2448
    %v2450 = vand.u32 %v2449, 4294901760
    %2451 = vmatprep.subr.mxu0 %v2450
    %v2452 = vand.u32 %v1495, 4294901760
    %v2453 = vsub.f32 %v1495, %v2452
    %v2454 = vand.u32 %v2453, 4294901760
    %2455 = vmatpush1.msra.mxu0 %v2454
    %v2456 = vand.u32 %v1498, 4294901760
    %v2457 = vsub.f32 %v1498, %v2456
    %v2458 = vand.u32 %v2457, 4294901760
    %2459 = vmatprep.subr.mxu0 %v2458
    %v2460 = vand.u32 %v1497, 4294901760
    %v2461 = vsub.f32 %v1497, %v2460
    %v2462 = vand.u32 %v2461, 4294901760
    %2463 = vmatpush1.msra.mxu0 %v2462
    %v2464 = vand.u32 %v1500, 4294901760
    %v2465 = vsub.f32 %v1500, %v2464
    %v2466 = vand.u32 %v2465, 4294901760
    %2467 = vmatprep.subr.mxu0 %v2466
    %v2468 = vand.u32 %v1499, 4294901760
    %v2469 = vsub.f32 %v1499, %v2468
    %v2470 = vand.u32 %v2469, 4294901760
    %2471 = vmatpush1.msra.mxu0 %v2470
    %v2472 = vand.u32 %v1502, 4294901760
    %v2473 = vsub.f32 %v1502, %v2472
    %v2474 = vand.u32 %v2473, 4294901760
    %2475 = vmatprep.subr.mxu0 %v2474
    %v2476 = vand.u32 %v1501, 4294901760
    %v2477 = vsub.f32 %v1501, %v2476
    %v2478 = vand.u32 %v2477, 4294901760
    %2479 = vmatpush1.msra.mxu0 %v2478
    %v2480 = vand.u32 %v1504, 4294901760
    %v2481 = vsub.f32 %v1504, %v2480
    %v2482 = vand.u32 %v2481, 4294901760
    %2483 = vmatprep.subr.mxu0 %v2482
    %v2484 = vand.u32 %v1503, 4294901760
    %v2485 = vsub.f32 %v1503, %v2484
    %v2486 = vand.u32 %v2485, 4294901760
    %2487 = vmatpush1.msra.mxu0 %v2486
    %v2488 = vand.u32 %v1506, 4294901760
    %v2489 = vsub.f32 %v1506, %v2488
    %v2490 = vand.u32 %v2489, 4294901760
    %2491 = vmatprep.subr.mxu0 %v2490
    %v2492 = vand.u32 %v1505, 4294901760
    %v2493 = vsub.f32 %v1505, %v2492
    %v2494 = vand.u32 %v2493, 4294901760
    %2495 = vmatpush1.msra.mxu0 %v2494
    %v2496 = vand.u32 %v1508, 4294901760
    %v2497 = vsub.f32 %v1508, %v2496
    %v2498 = vand.u32 %v2497, 4294901760
    %2499 = vmatprep.subr.mxu0 %v2498
    %v2500 = vand.u32 %v1507, 4294901760
    %v2501 = vsub.f32 %v1507, %v2500
    %v2502 = vand.u32 %v2501, 4294901760
    %2503 = vmatpush1.msra.mxu0 %v2502
    %v2504 = vand.u32 %v1510, 4294901760
    %v2505 = vsub.f32 %v1510, %v2504
    %v2506 = vand.u32 %v2505, 4294901760
    %2507 = vmatprep.subr.mxu0 %v2506
    %v2508 = vand.u32 %v1509, 4294901760
    %v2509 = vsub.f32 %v1509, %v2508
    %v2510 = vand.u32 %v2509, 4294901760
    %2511 = vmatpush1.msra.mxu0 %v2510
    %v2512 = vand.u32 %v1512, 4294901760
    %v2513 = vsub.f32 %v1512, %v2512
    %v2514 = vand.u32 %v2513, 4294901760
    %2515 = vmatprep.subr.mxu0 %v2514
    %v2516 = vand.u32 %v1511, 4294901760
    %v2517 = vsub.f32 %v1511, %v2516
    %v2518 = vand.u32 %v2517, 4294901760
    %2519 = vmatpush1.msra.mxu0 %v2518
    %v2520 = vand.u32 %v1514, 4294901760
    %v2521 = vsub.f32 %v1514, %v2520
    %v2522 = vand.u32 %v2521, 4294901760
    %2523 = vmatprep.subr.mxu0 %v2522
    %v2524 = vand.u32 %v1513, 4294901760
    %v2525 = vsub.f32 %v1513, %v2524
    %v2526 = vand.u32 %v2525, 4294901760
    %2527 = vmatpush1.msra.mxu0 %v2526
    %v2528 = vand.u32 %v1516, 4294901760
    %v2529 = vsub.f32 %v1516, %v2528
    %v2530 = vand.u32 %v2529, 4294901760
    %2531 = vmatprep.subr.mxu0 %v2530
    %v2532 = vand.u32 %v1515, 4294901760
    %v2533 = vsub.f32 %v1515, %v2532
    %v2534 = vand.u32 %v2533, 4294901760
    %2535 = vmatpush1.msra.mxu0 %v2534
    %v2536 = vand.u32 %v1518, 4294901760
    %v2537 = vsub.f32 %v1518, %v2536
    %v2538 = vand.u32 %v2537, 4294901760
    %2539 = vmatprep.subr.mxu0 %v2538
    %v2540 = vand.u32 %v1517, 4294901760
    %v2541 = vsub.f32 %v1517, %v2540
    %v2542 = vand.u32 %v2541, 4294901760
    %2543 = vmatpush1.msra.mxu0 %v2542
    %v2544 = vand.u32 %v1520, 4294901760
    %v2545 = vsub.f32 %v1520, %v2544
    %v2546 = vand.u32 %v2545, 4294901760
    %2547 = vmatprep.subr.mxu0 %v2546
    %v2548 = vand.u32 %v1519, 4294901760
    %v2549 = vsub.f32 %v1519, %v2548
    %v2550 = vand.u32 %v2549, 4294901760
    %2551 = vmatpush1.msra.mxu0 %v2550
    %v2552 = vand.u32 %v1522, 4294901760
    %v2553 = vsub.f32 %v1522, %v2552
    %v2554 = vand.u32 %v2553, 4294901760
    %2555 = vmatprep.subr.mxu0 %v2554
    %v2556 = vand.u32 %v1521, 4294901760
    %v2557 = vsub.f32 %v1521, %v2556
    %v2558 = vand.u32 %v2557, 4294901760
    %2559 = vmatpush1.msra.mxu0 %v2558
    %v2560 = vand.u32 %v1524, 4294901760
    %v2561 = vsub.f32 %v1524, %v2560
    %v2562 = vand.u32 %v2561, 4294901760
    %2563 = vmatprep.subr.mxu0 %v2562
    %v2564 = vand.u32 %v1523, 4294901760
    %v2565 = vsub.f32 %v1523, %v2564
    %v2566 = vand.u32 %v2565, 4294901760
    %2567 = vmatpush1.msra.mxu0 %v2566
    %v2568 = vand.u32 %v1526, 4294901760
    %v2569 = vsub.f32 %v1526, %v2568
    %v2570 = vand.u32 %v2569, 4294901760
    %2571 = vmatprep.subr.mxu0 %v2570
    %v2572 = vand.u32 %v1525, 4294901760
    %v2573 = vsub.f32 %v1525, %v2572
    %v2574 = vand.u32 %v2573, 4294901760
    %2575 = vmatpush1.msra.mxu0 %v2574
    %v2576 = vand.u32 %v1528, 4294901760
    %v2577 = vsub.f32 %v1528, %v2576
    %v2578 = vand.u32 %v2577, 4294901760
    %2579 = vmatprep.subr.mxu0 %v2578
    %v2580 = vand.u32 %v1527, 4294901760
    %v2581 = vsub.f32 %v1527, %v2580
    %v2582 = vand.u32 %v2581, 4294901760
    %2583 = vmatpush1.msra.mxu0 %v2582
    %v2584 = vand.u32 %v1530, 4294901760
    %v2585 = vsub.f32 %v1530, %v2584
    %v2586 = vand.u32 %v2585, 4294901760
    %2587 = vmatprep.subr.mxu0 %v2586
    %v2588 = vand.u32 %v1529, 4294901760
    %v2589 = vsub.f32 %v1529, %v2588
    %v2590 = vand.u32 %v2589, 4294901760
    %2591 = vmatpush1.msra.mxu0 %v2590
    %v2592 = vand.u32 %v1532, 4294901760
    %v2593 = vsub.f32 %v1532, %v2592
    %v2594 = vand.u32 %v2593, 4294901760
    %2595 = vmatprep.subr.mxu0 %v2594
    %v2596 = vand.u32 %v1531, 4294901760
    %v2597 = vsub.f32 %v1531, %v2596
    %v2598 = vand.u32 %v2597, 4294901760
    %2599 = vmatpush1.msra.mxu0 %v2598
    %v2600 = vand.u32 %v1534, 4294901760
    %v2601 = vsub.f32 %v1534, %v2600
    %v2602 = vand.u32 %v2601, 4294901760
    %2603 = vmatprep.subr.mxu0 %v2602
    %v2604 = vand.u32 %v1533, 4294901760
    %v2605 = vsub.f32 %v1533, %v2604
    %v2606 = vand.u32 %v2605, 4294901760
    %2607 = vmatpush1.msra.mxu0 %v2606
    %v2608 = vand.u32 %v1536, 4294901760
    %v2609 = vsub.f32 %v1536, %v2608
    %v2610 = vand.u32 %v2609, 4294901760
    %2611 = vmatprep.subr.mxu0 %v2610
    %v2612 = vand.u32 %v1535, 4294901760
    %v2613 = vsub.f32 %v1535, %v2612
    %v2614 = vand.u32 %v2613, 4294901760
    %2615 = vmatpush1.msra.mxu0 %v2614
    %v2616 = vand.u32 %v1538, 4294901760
    %v2617 = vsub.f32 %v1538, %v2616
    %v2618 = vand.u32 %v2617, 4294901760
    %2619 = vmatprep.subr.mxu0 %v2618
    %v2620 = vand.u32 %v1537, 4294901760
    %v2621 = vsub.f32 %v1537, %v2620
    %v2622 = vand.u32 %v2621, 4294901760
    %2623 = vmatpush1.msra.mxu0 %v2622
    %v2624 = vand.u32 %v1540, 4294901760
    %v2625 = vsub.f32 %v1540, %v2624
    %v2626 = vand.u32 %v2625, 4294901760
    %2627 = vmatprep.subr.mxu0 %v2626
    %v2628 = vand.u32 %v1539, 4294901760
    %v2629 = vsub.f32 %v1539, %v2628
    %v2630 = vand.u32 %v2629, 4294901760
    %2631 = vmatpush1.msra.mxu0 %v2630
    %v2632 = vand.u32 %v1542, 4294901760
    %v2633 = vsub.f32 %v1542, %v2632
    %v2634 = vand.u32 %v2633, 4294901760
    %2635 = vmatprep.subr.mxu0 %v2634
    %v2636 = vand.u32 %v1541, 4294901760
    %v2637 = vsub.f32 %v1541, %v2636
    %v2638 = vand.u32 %v2637, 4294901760
    %2639 = vmatpush1.msra.mxu0 %v2638
    %v2640 = vand.u32 %v1544, 4294901760
    %v2641 = vsub.f32 %v1544, %v2640
    %v2642 = vand.u32 %v2641, 4294901760
    %2643 = vmatprep.subr.mxu0 %v2642
    %v2644 = vand.u32 %v1543, 4294901760
    %v2645 = vsub.f32 %v1543, %v2644
    %v2646 = vand.u32 %v2645, 4294901760
    %2647 = vmatpush1.msra.mxu0 %v2646
    %v2648 = vand.u32 %v1546, 4294901760
    %v2649 = vsub.f32 %v1546, %v2648
    %v2650 = vand.u32 %v2649, 4294901760
    %2651 = vmatprep.subr.mxu0 %v2650
    %v2652 = vand.u32 %v1545, 4294901760
    %v2653 = vsub.f32 %v1545, %v2652
    %v2654 = vand.u32 %v2653, 4294901760
    %2655 = vmatpush1.msra.mxu0 %v2654
    %v2656 = vand.u32 %v1548, 4294901760
    %v2657 = vsub.f32 %v1548, %v2656
    %v2658 = vand.u32 %v2657, 4294901760
    %2659 = vmatprep.subr.mxu0 %v2658
    %v2660 = vand.u32 %v1547, 4294901760
    %v2661 = vsub.f32 %v1547, %v2660
    %v2662 = vand.u32 %v2661, 4294901760
    %2663 = vmatpush1.msra.mxu0 %v2662
    %v2664 = vand.u32 %v1550, 4294901760
    %v2665 = vsub.f32 %v1550, %v2664
    %v2666 = vand.u32 %v2665, 4294901760
    %2667 = vmatprep.subr.mxu0 %v2666
    %v2668 = vand.u32 %v1549, 4294901760
    %v2669 = vsub.f32 %v1549, %v2668
    %v2670 = vand.u32 %v2669, 4294901760
    %2671 = vmatpush1.msra.mxu0 %v2670
    %v2672 = vand.u32 %v1552, 4294901760
    %v2673 = vsub.f32 %v1552, %v2672
    %v2674 = vand.u32 %v2673, 4294901760
    %2675 = vmatprep.subr.mxu0 %v2674
    %v2676 = vand.u32 %v1551, 4294901760
    %v2677 = vsub.f32 %v1551, %v2676
    %v2678 = vand.u32 %v2677, 4294901760
    %2679 = vmatpush1.msra.mxu0 %v2678
    %v2680 = vand.u32 %v1554, 4294901760
    %v2681 = vsub.f32 %v1554, %v2680
    %v2682 = vand.u32 %v2681, 4294901760
    %2683 = vmatprep.subr.mxu0 %v2682
    %v2684 = vand.u32 %v1553, 4294901760
    %v2685 = vsub.f32 %v1553, %v2684
    %v2686 = vand.u32 %v2685, 4294901760
    %2687 = vmatpush1.msra.mxu0 %v2686
    %v2688 = vand.u32 %v1556, 4294901760
    %v2689 = vsub.f32 %v1556, %v2688
    %v2690 = vand.u32 %v2689, 4294901760
    %2691 = vmatprep.subr.mxu0 %v2690
    %v2692 = vand.u32 %v1555, 4294901760
    %v2693 = vsub.f32 %v1555, %v2692
    %v2694 = vand.u32 %v2693, 4294901760
    %2695 = vmatpush1.msra.mxu0 %v2694
    %v2696 = vand.u32 %v1492, 4294901760
    %2697 = vmatprep.mubr.f32.mxu0 %v2696
    %v2698 = vand.u32 %v1491, 4294901760
    %2699 = vmatmul.mubr.f32.gmra.mrb[0].mxu0 %v2698
    %v2700 = vpop.f32.mrb[0].mxu0
    %v2701 = vadd.f32 %v2436, %v2700
    %v2702 = vpop.f32.mrb[0].mxu0
    %v2703 = vadd.f32 %v2438, %v2702
    %2704 = vdwg.mxu0
    %v2705 = vand.u32 %v1494, 4294901760
    %2706 = vmatprep.subr.mxu0 %v2705
    %v2707 = vand.u32 %v1493, 4294901760
    %2708 = vmatpush1.msra.mxu0 %v2707
    %v2709 = vand.u32 %v1496, 4294901760
    %2710 = vmatprep.subr.mxu0 %v2709
    %v2711 = vand.u32 %v1495, 4294901760
    %2712 = vmatpush1.msra.mxu0 %v2711
    %v2713 = vand.u32 %v1498, 4294901760
    %2714 = vmatprep.subr.mxu0 %v2713
    %v2715 = vand.u32 %v1497, 4294901760
    %2716 = vmatpush1.msra.mxu0 %v2715
    %v2717 = vand.u32 %v1500, 4294901760
    %2718 = vmatprep.subr.mxu0 %v2717
    %v2719 = vand.u32 %v1499, 4294901760
    %2720 = vmatpush1.msra.mxu0 %v2719
    %v2721 = vand.u32 %v1502, 4294901760
    %2722 = vmatprep.subr.mxu0 %v2721
    %v2723 = vand.u32 %v1501, 4294901760
    %2724 = vmatpush1.msra.mxu0 %v2723
    %v2725 = vand.u32 %v1504, 4294901760
    %2726 = vmatprep.subr.mxu0 %v2725
    %v2727 = vand.u32 %v1503, 4294901760
    %2728 = vmatpush1.msra.mxu0 %v2727
    %v2729 = vand.u32 %v1506, 4294901760
    %2730 = vmatprep.subr.mxu0 %v2729
    %v2731 = vand.u32 %v1505, 4294901760
    %2732 = vmatpush1.msra.mxu0 %v2731
    %v2733 = vand.u32 %v1508, 4294901760
    %2734 = vmatprep.subr.mxu0 %v2733
    %v2735 = vand.u32 %v1507, 4294901760
    %2736 = vmatpush1.msra.mxu0 %v2735
    %v2737 = vand.u32 %v1510, 4294901760
    %2738 = vmatprep.subr.mxu0 %v2737
    %v2739 = vand.u32 %v1509, 4294901760
    %2740 = vmatpush1.msra.mxu0 %v2739
    %v2741 = vand.u32 %v1512, 4294901760
    %2742 = vmatprep.subr.mxu0 %v2741
    %v2743 = vand.u32 %v1511, 4294901760
    %2744 = vmatpush1.msra.mxu0 %v2743
    %v2745 = vand.u32 %v1514, 4294901760
    %2746 = vmatprep.subr.mxu0 %v2745
    %v2747 = vand.u32 %v1513, 4294901760
    %2748 = vmatpush1.msra.mxu0 %v2747
    %v2749 = vand.u32 %v1516, 4294901760
    %2750 = vmatprep.subr.mxu0 %v2749
    %v2751 = vand.u32 %v1515, 4294901760
    %2752 = vmatpush1.msra.mxu0 %v2751
    %v2753 = vand.u32 %v1518, 4294901760
    %2754 = vmatprep.subr.mxu0 %v2753
    %v2755 = vand.u32 %v1517, 4294901760
    %2756 = vmatpush1.msra.mxu0 %v2755
    %v2757 = vand.u32 %v1520, 4294901760
    %2758 = vmatprep.subr.mxu0 %v2757
    %v2759 = vand.u32 %v1519, 4294901760
    %2760 = vmatpush1.msra.mxu0 %v2759
    %v2761 = vand.u32 %v1522, 4294901760
    %2762 = vmatprep.subr.mxu0 %v2761
    %v2763 = vand.u32 %v1521, 4294901760
    %2764 = vmatpush1.msra.mxu0 %v2763
    %v2765 = vand.u32 %v1524, 4294901760
    %2766 = vmatprep.subr.mxu0 %v2765
    %v2767 = vand.u32 %v1523, 4294901760
    %2768 = vmatpush1.msra.mxu0 %v2767
    %v2769 = vand.u32 %v1526, 4294901760
    %2770 = vmatprep.subr.mxu0 %v2769
    %v2771 = vand.u32 %v1525, 4294901760
    %2772 = vmatpush1.msra.mxu0 %v2771
    %v2773 = vand.u32 %v1528, 4294901760
    %2774 = vmatprep.subr.mxu0 %v2773
    %v2775 = vand.u32 %v1527, 4294901760
    %2776 = vmatpush1.msra.mxu0 %v2775
    %v2777 = vand.u32 %v1530, 4294901760
    %2778 = vmatprep.subr.mxu0 %v2777
    %v2779 = vand.u32 %v1529, 4294901760
    %2780 = vmatpush1.msra.mxu0 %v2779
    %v2781 = vand.u32 %v1532, 4294901760
    %2782 = vmatprep.subr.mxu0 %v2781
    %v2783 = vand.u32 %v1531, 4294901760
    %2784 = vmatpush1.msra.mxu0 %v2783
    %v2785 = vand.u32 %v1534, 4294901760
    %2786 = vmatprep.subr.mxu0 %v2785
    %v2787 = vand.u32 %v1533, 4294901760
    %2788 = vmatpush1.msra.mxu0 %v2787
    %v2789 = vand.u32 %v1536, 4294901760
    %2790 = vmatprep.subr.mxu0 %v2789
    %v2791 = vand.u32 %v1535, 4294901760
    %2792 = vmatpush1.msra.mxu0 %v2791
    %v2793 = vand.u32 %v1538, 4294901760
    %2794 = vmatprep.subr.mxu0 %v2793
    %v2795 = vand.u32 %v1537, 4294901760
    %2796 = vmatpush1.msra.mxu0 %v2795
    %v2797 = vand.u32 %v1540, 4294901760
    %2798 = vmatprep.subr.mxu0 %v2797
    %v2799 = vand.u32 %v1539, 4294901760
    %2800 = vmatpush1.msra.mxu0 %v2799
    %v2801 = vand.u32 %v1542, 4294901760
    %2802 = vmatprep.subr.mxu0 %v2801
    %v2803 = vand.u32 %v1541, 4294901760
    %2804 = vmatpush1.msra.mxu0 %v2803
    %v2805 = vand.u32 %v1544, 4294901760
    %2806 = vmatprep.subr.mxu0 %v2805
    %v2807 = vand.u32 %v1543, 4294901760
    %2808 = vmatpush1.msra.mxu0 %v2807
    %v2809 = vand.u32 %v1546, 4294901760
    %2810 = vmatprep.subr.mxu0 %v2809
    %v2811 = vand.u32 %v1545, 4294901760
    %2812 = vmatpush1.msra.mxu0 %v2811
    %v2813 = vand.u32 %v1548, 4294901760
    %2814 = vmatprep.subr.mxu0 %v2813
    %v2815 = vand.u32 %v1547, 4294901760
    %2816 = vmatpush1.msra.mxu0 %v2815
    %v2817 = vand.u32 %v1550, 4294901760
    %2818 = vmatprep.subr.mxu0 %v2817
    %v2819 = vand.u32 %v1549, 4294901760
    %2820 = vmatpush1.msra.mxu0 %v2819
    %v2821 = vand.u32 %v1552, 4294901760
    %2822 = vmatprep.subr.mxu0 %v2821
    %v2823 = vand.u32 %v1551, 4294901760
    %2824 = vmatpush1.msra.mxu0 %v2823
    %v2825 = vand.u32 %v1554, 4294901760
    %2826 = vmatprep.subr.mxu0 %v2825
    %v2827 = vand.u32 %v1553, 4294901760
    %2828 = vmatpush1.msra.mxu0 %v2827
    %v2829 = vand.u32 %v1556, 4294901760
    %2830 = vmatprep.subr.mxu0 %v2829
    %v2831 = vand.u32 %v1555, 4294901760
    %2832 = vmatpush1.msra.mxu0 %v2831
    %v2833 = vand.u32 %v1492, 4294901760
    %2834 = vmatprep.mubr.f32.mxu0 %v2833
    %v2835 = vand.u32 %v1491, 4294901760
    %2836 = vmatmul.mubr.f32.gmra.mrb[0].mxu0 %v2835
    %v2837 = vpop.f32.mrb[0].mxu0
    %v2838 = vadd.f32 %v2701, %v2837
    %v2839 = vpop.f32.mrb[0].mxu0
    %v2840 = vadd.f32 %v2703, %v2839
    %2841 = vdwg.mxu0
    %v2842 = vmax.f32 %v2838, 0.0
    %v2843 = vmax.f32 %v2840, 0.0
    %v2844 = vld [vmem:[#allocation12] sm:$0xff]
    %v2845 = vld [vmem:[#allocation12 + $0x8] sm:$0xff]
    %v2846 = vld [vmem:[#allocation12 + $0x10] sm:$0xff]
    %v2847 = vld [vmem:[#allocation12 + $0x18] sm:$0xff]
    %v2848 = vld [vmem:[#allocation12 + $0x20] sm:$0xff]
    %v2849 = vld [vmem:[#allocation12 + $0x28] sm:$0xff]
    %v2850 = vld [vmem:[#allocation12 + $0x30] sm:$0xff]
    %v2851 = vld [vmem:[#allocation12 + $0x38] sm:$0xff]
    %v2852 = vld [vmem:[#allocation12 + $0x40] sm:$0xff]
    %v2853 = vld [vmem:[#allocation12 + $0x48] sm:$0xff]
    %v2854 = vld [vmem:[#allocation12 + $0x50] sm:$0xff]
    %v2855 = vld [vmem:[#allocation12 + $0x58] sm:$0xff]
    %v2856 = vld [vmem:[#allocation12 + $0x60] sm:$0xff]
    %v2857 = vld [vmem:[#allocation12 + $0x68] sm:$0xff]
    %v2858 = vld [vmem:[#allocation12 + $0x70] sm:$0xff]
    %v2859 = vld [vmem:[#allocation12 + $0x78] sm:$0xff]
    %v2860 = vld [vmem:[#allocation12 + $0x80] sm:$0xff]
    %v2861 = vld [vmem:[#allocation12 + $0x88] sm:$0xff]
    %v2862 = vld [vmem:[#allocation12 + $0x90] sm:$0xff]
    %v2863 = vld [vmem:[#allocation12 + $0x98] sm:$0xff]
    %v2864 = vld [vmem:[#allocation12 + $0xa0] sm:$0xff]
    %v2865 = vld [vmem:[#allocation12 + $0xa8] sm:$0xff]
    %v2866 = vld [vmem:[#allocation12 + $0xb0] sm:$0xff]
    %v2867 = vld [vmem:[#allocation12 + $0xb8] sm:$0xff]
    %v2868 = vld [vmem:[#allocation12 + $0xc0] sm:$0xff]
    %v2869 = vld [vmem:[#allocation12 + $0xc8] sm:$0xff]
    %v2870 = vld [vmem:[#allocation12 + $0xd0] sm:$0xff]
    %v2871 = vld [vmem:[#allocation12 + $0xd8] sm:$0xff]
    %v2872 = vld [vmem:[#allocation12 + $0xe0] sm:$0xff]
    %v2873 = vld [vmem:[#allocation12 + $0xe8] sm:$0xff]
    %v2874 = vld [vmem:[#allocation12 + $0xf0] sm:$0xff]
    %v2875 = vld [vmem:[#allocation12 + $0xf8] sm:$0xff]
    %v2876 = vld [vmem:[#allocation12 + $0x100] sm:$0xff]
    %v2877 = vld [vmem:[#allocation12 + $0x108] sm:$0xff]
    %v2878 = vld [vmem:[#allocation12 + $0x110] sm:$0xff]
    %v2879 = vld [vmem:[#allocation12 + $0x118] sm:$0xff]
    %v2880 = vld [vmem:[#allocation12 + $0x120] sm:$0xff]
    %v2881 = vld [vmem:[#allocation12 + $0x128] sm:$0xff]
    %v2882 = vld [vmem:[#allocation12 + $0x130] sm:$0xff]
    %v2883 = vld [vmem:[#allocation12 + $0x138] sm:$0xff]
    %v2884 = vld [vmem:[#allocation12 + $0x140] sm:$0xff]
    %v2885 = vld [vmem:[#allocation12 + $0x148] sm:$0xff]
    %v2886 = vld [vmem:[#allocation12 + $0x150] sm:$0xff]
    %v2887 = vld [vmem:[#allocation12 + $0x158] sm:$0xff]
    %v2888 = vld [vmem:[#allocation12 + $0x160] sm:$0xff]
    %v2889 = vld [vmem:[#allocation12 + $0x168] sm:$0xff]
    %v2890 = vld [vmem:[#allocation12 + $0x170] sm:$0xff]
    %v2891 = vld [vmem:[#allocation12 + $0x178] sm:$0xff]
    %v2892 = vld [vmem:[#allocation12 + $0x180] sm:$0xff]
    %v2893 = vld [vmem:[#allocation12 + $0x188] sm:$0xff]
    %v2894 = vld [vmem:[#allocation12 + $0x190] sm:$0xff]
    %v2895 = vld [vmem:[#allocation12 + $0x198] sm:$0xff]
    %v2896 = vld [vmem:[#allocation12 + $0x1a0] sm:$0xff]
    %v2897 = vld [vmem:[#allocation12 + $0x1a8] sm:$0xff]
    %v2898 = vld [vmem:[#allocation12 + $0x1b0] sm:$0xff]
    %v2899 = vld [vmem:[#allocation12 + $0x1b8] sm:$0xff]
    %v2900 = vld [vmem:[#allocation12 + $0x1c0] sm:$0xff]
    %v2901 = vld [vmem:[#allocation12 + $0x1c8] sm:$0xff]
    %v2902 = vld [vmem:[#allocation12 + $0x1d0] sm:$0xff]
    %v2903 = vld [vmem:[#allocation12 + $0x1d8] sm:$0xff]
    %v2904 = vld [vmem:[#allocation12 + $0x1e0] sm:$0xff]
    %v2905 = vld [vmem:[#allocation12 + $0x1e8] sm:$0xff]
    %v2906 = vld [vmem:[#allocation12 + $0x1f0] sm:$0xff]
    %v2907 = vld [vmem:[#allocation12 + $0x1f8] sm:$0xff]
    %v2908 = vstv %s129
    %v2909 = vand.u32 %v2845, 4294901760
    %2910 = vmatprep.subr.mxu0 %v2909
    %v2911 = vand.u32 %v2844, 4294901760
    %2912 = vmatpush1.msra.mxu0 %v2911
    %v2913 = vand.u32 %v2847, 4294901760
    %2914 = vmatprep.subr.mxu0 %v2913
    %v2915 = vand.u32 %v2846, 4294901760
    %2916 = vmatpush1.msra.mxu0 %v2915
    %v2917 = vand.u32 %v2849, 4294901760
    %2918 = vmatprep.subr.mxu0 %v2917
    %v2919 = vand.u32 %v2848, 4294901760
    %2920 = vmatpush1.msra.mxu0 %v2919
    %v2921 = vand.u32 %v2851, 4294901760
    %2922 = vmatprep.subr.mxu0 %v2921
    %v2923 = vand.u32 %v2850, 4294901760
    %2924 = vmatpush1.msra.mxu0 %v2923
    %v2925 = vand.u32 %v2853, 4294901760
    %2926 = vmatprep.subr.mxu0 %v2925
    %v2927 = vand.u32 %v2852, 4294901760
    %2928 = vmatpush1.msra.mxu0 %v2927
    %v2929 = vand.u32 %v2855, 4294901760
    %2930 = vmatprep.subr.mxu0 %v2929
    %v2931 = vand.u32 %v2854, 4294901760
    %2932 = vmatpush1.msra.mxu0 %v2931
    %v2933 = vand.u32 %v2857, 4294901760
    %2934 = vmatprep.subr.mxu0 %v2933
    %v2935 = vand.u32 %v2856, 4294901760
    %2936 = vmatpush1.msra.mxu0 %v2935
    %v2937 = vand.u32 %v2859, 4294901760
    %2938 = vmatprep.subr.mxu0 %v2937
    %v2939 = vand.u32 %v2858, 4294901760
    %2940 = vmatpush1.msra.mxu0 %v2939
    %v2941 = vand.u32 %v2861, 4294901760
    %2942 = vmatprep.subr.mxu0 %v2941
    %v2943 = vand.u32 %v2860, 4294901760
    %2944 = vmatpush1.msra.mxu0 %v2943
    %v2945 = vand.u32 %v2863, 4294901760
    %2946 = vmatprep.subr.mxu0 %v2945
    %v2947 = vand.u32 %v2862, 4294901760
    %2948 = vmatpush1.msra.mxu0 %v2947
    %v2949 = vand.u32 %v2865, 4294901760
    %2950 = vmatprep.subr.mxu0 %v2949
    %v2951 = vand.u32 %v2864, 4294901760
    %2952 = vmatpush1.msra.mxu0 %v2951
    %v2953 = vand.u32 %v2867, 4294901760
    %2954 = vmatprep.subr.mxu0 %v2953
    %v2955 = vand.u32 %v2866, 4294901760
    %2956 = vmatpush1.msra.mxu0 %v2955
    %v2957 = vand.u32 %v2869, 4294901760
    %2958 = vmatprep.subr.mxu0 %v2957
    %v2959 = vand.u32 %v2868, 4294901760
    %2960 = vmatpush1.msra.mxu0 %v2959
    %v2961 = vand.u32 %v2871, 4294901760
    %2962 = vmatprep.subr.mxu0 %v2961
    %v2963 = vand.u32 %v2870, 4294901760
    %2964 = vmatpush1.msra.mxu0 %v2963
    %v2965 = vand.u32 %v2873, 4294901760
    %2966 = vmatprep.subr.mxu0 %v2965
    %v2967 = vand.u32 %v2872, 4294901760
    %2968 = vmatpush1.msra.mxu0 %v2967
    %v2969 = vand.u32 %v2875, 4294901760
    %2970 = vmatprep.subr.mxu0 %v2969
    %v2971 = vand.u32 %v2874, 4294901760
    %2972 = vmatpush1.msra.mxu0 %v2971
    %v2973 = vand.u32 %v2877, 4294901760
    %2974 = vmatprep.subr.mxu0 %v2973
    %v2975 = vand.u32 %v2876, 4294901760
    %2976 = vmatpush1.msra.mxu0 %v2975
    %v2977 = vand.u32 %v2879, 4294901760
    %2978 = vmatprep.subr.mxu0 %v2977
    %v2979 = vand.u32 %v2878, 4294901760
    %2980 = vmatpush1.msra.mxu0 %v2979
    %v2981 = vand.u32 %v2881, 4294901760
    %2982 = vmatprep.subr.mxu0 %v2981
    %v2983 = vand.u32 %v2880, 4294901760
    %2984 = vmatpush1.msra.mxu0 %v2983
    %v2985 = vand.u32 %v2883, 4294901760
    %2986 = vmatprep.subr.mxu0 %v2985
    %v2987 = vand.u32 %v2882, 4294901760
    %2988 = vmatpush1.msra.mxu0 %v2987
    %v2989 = vand.u32 %v2885, 4294901760
    %2990 = vmatprep.subr.mxu0 %v2989
    %v2991 = vand.u32 %v2884, 4294901760
    %2992 = vmatpush1.msra.mxu0 %v2991
    %v2993 = vand.u32 %v2887, 4294901760
    %2994 = vmatprep.subr.mxu0 %v2993
    %v2995 = vand.u32 %v2886, 4294901760
    %2996 = vmatpush1.msra.mxu0 %v2995
    %v2997 = vand.u32 %v2889, 4294901760
    %2998 = vmatprep.subr.mxu0 %v2997
    %v2999 = vand.u32 %v2888, 4294901760
    %3000 = vmatpush1.msra.mxu0 %v2999
    %v3001 = vand.u32 %v2891, 4294901760
    %3002 = vmatprep.subr.mxu0 %v3001
    %v3003 = vand.u32 %v2890, 4294901760
    %3004 = vmatpush1.msra.mxu0 %v3003
    %v3005 = vand.u32 %v2893, 4294901760
    %3006 = vmatprep.subr.mxu0 %v3005
    %v3007 = vand.u32 %v2892, 4294901760
    %3008 = vmatpush1.msra.mxu0 %v3007
    %v3009 = vand.u32 %v2895, 4294901760
    %3010 = vmatprep.subr.mxu0 %v3009
    %v3011 = vand.u32 %v2894, 4294901760
    %3012 = vmatpush1.msra.mxu0 %v3011
    %v3013 = vand.u32 %v2897, 4294901760
    %3014 = vmatprep.subr.mxu0 %v3013
    %v3015 = vand.u32 %v2896, 4294901760
    %3016 = vmatpush1.msra.mxu0 %v3015
    %v3017 = vand.u32 %v2899, 4294901760
    %3018 = vmatprep.subr.mxu0 %v3017
    %v3019 = vand.u32 %v2898, 4294901760
    %3020 = vmatpush1.msra.mxu0 %v3019
    %v3021 = vand.u32 %v2901, 4294901760
    %3022 = vmatprep.subr.mxu0 %v3021
    %v3023 = vand.u32 %v2900, 4294901760
    %3024 = vmatpush1.msra.mxu0 %v3023
    %v3025 = vand.u32 %v2903, 4294901760
    %3026 = vmatprep.subr.mxu0 %v3025
    %v3027 = vand.u32 %v2902, 4294901760
    %3028 = vmatpush1.msra.mxu0 %v3027
    %v3029 = vand.u32 %v2905, 4294901760
    %3030 = vmatprep.subr.mxu0 %v3029
    %v3031 = vand.u32 %v2904, 4294901760
    %3032 = vmatpush1.msra.mxu0 %v3031
    %v3033 = vand.u32 %v2907, 4294901760
    %3034 = vmatprep.subr.mxu0 %v3033
    %v3035 = vand.u32 %v2906, 4294901760
    %3036 = vmatpush1.msra.mxu0 %v3035
    %v3037 = vand.u32 %v2843, 4294901760
    %v3038 = vsub.f32 %v2843, %v3037
    %v3039 = vand.u32 %v3038, 4294901760
    %v3040 = vsub.f32 %v3038, %v3039
    %v3041 = vand.u32 %v3040, 4294901760
    %3042 = vmatprep.mubr.f32.mxu0 %v3041
    %v3043 = vand.u32 %v2842, 4294901760
    %v3044 = vsub.f32 %v2842, %v3043
    %v3045 = vand.u32 %v3044, 4294901760
    %v3046 = vsub.f32 %v3044, %v3045
    %v3047 = vand.u32 %v3046, 4294901760
    %3048 = vmatmul.mubr.f32.gmra.mrb[0].mxu0 %v3047
    %v3049 = vpop.f32.mrb[0].mxu0
    %v3050 = vadd.f32 %v2908, %v3049
    %v3051 = vpop.f32.mrb[0].mxu0
    %v3052 = vadd.f32 %v2908, %v3051
    %3053 = vdwg.mxu0
    %v3054 = vand.u32 %v2845, 4294901760
    %v3055 = vsub.f32 %v2845, %v3054
    %v3056 = vand.u32 %v3055, 4294901760
    %v3057 = vsub.f32 %v3055, %v3056
    %v3058 = vand.u32 %v3057, 4294901760
    %3059 = vmatprep.subr.mxu0 %v3058
    %v3060 = vand.u32 %v2844, 4294901760
    %v3061 = vsub.f32 %v2844, %v3060
    %v3062 = vand.u32 %v3061, 4294901760
    %v3063 = vsub.f32 %v3061, %v3062
    %v3064 = vand.u32 %v3063, 4294901760
    %3065 = vmatpush1.msra.mxu0 %v3064
    %v3066 = vand.u32 %v2847, 4294901760
    %v3067 = vsub.f32 %v2847, %v3066
    %v3068 = vand.u32 %v3067, 4294901760
    %v3069 = vsub.f32 %v3067, %v3068
    %v3070 = vand.u32 %v3069, 4294901760
    %3071 = vmatprep.subr.mxu0 %v3070
    %v3072 = vand.u32 %v2846, 4294901760
    %v3073 = vsub.f32 %v2846, %v3072
    %v3074 = vand.u32 %v3073, 4294901760
    %v3075 = vsub.f32 %v3073, %v3074
    %v3076 = vand.u32 %v3075, 4294901760
    %3077 = vmatpush1.msra.mxu0 %v3076
    %v3078 = vand.u32 %v2849, 4294901760
    %v3079 = vsub.f32 %v2849, %v3078
    %v3080 = vand.u32 %v3079, 4294901760
    %v3081 = vsub.f32 %v3079, %v3080
    %v3082 = vand.u32 %v3081, 4294901760
    %3083 = vmatprep.subr.mxu0 %v3082
    %v3084 = vand.u32 %v2848, 4294901760
    %v3085 = vsub.f32 %v2848, %v3084
    %v3086 = vand.u32 %v3085, 4294901760
    %v3087 = vsub.f32 %v3085, %v3086
    %v3088 = vand.u32 %v3087, 4294901760
    %3089 = vmatpush1.msra.mxu0 %v3088
    %v3090 = vand.u32 %v2851, 4294901760
    %v3091 = vsub.f32 %v2851, %v3090
    %v3092 = vand.u32 %v3091, 4294901760
    %v3093 = vsub.f32 %v3091, %v3092
    %v3094 = vand.u32 %v3093, 4294901760
    %3095 = vmatprep.subr.mxu0 %v3094
    %v3096 = vand.u32 %v2850, 4294901760
    %v3097 = vsub.f32 %v2850, %v3096
    %v3098 = vand.u32 %v3097, 4294901760
    %v3099 = vsub.f32 %v3097, %v3098
    %v3100 = vand.u32 %v3099, 4294901760
    %3101 = vmatpush1.msra.mxu0 %v3100
    %v3102 = vand.u32 %v2853, 4294901760
    %v3103 = vsub.f32 %v2853, %v3102
    %v3104 = vand.u32 %v3103, 4294901760
    %v3105 = vsub.f32 %v3103, %v3104
    %v3106 = vand.u32 %v3105, 4294901760
    %3107 = vmatprep.subr.mxu0 %v3106
    %v3108 = vand.u32 %v2852, 4294901760
    %v3109 = vsub.f32 %v2852, %v3108
    %v3110 = vand.u32 %v3109, 4294901760
    %v3111 = vsub.f32 %v3109, %v3110
    %v3112 = vand.u32 %v3111, 4294901760
    %3113 = vmatpush1.msra.mxu0 %v3112
    %v3114 = vand.u32 %v2855, 4294901760
    %v3115 = vsub.f32 %v2855, %v3114
    %v3116 = vand.u32 %v3115, 4294901760
    %v3117 = vsub.f32 %v3115, %v3116
    %v3118 = vand.u32 %v3117, 4294901760
    %3119 = vmatprep.subr.mxu0 %v3118
    %v3120 = vand.u32 %v2854, 4294901760
    %v3121 = vsub.f32 %v2854, %v3120
    %v3122 = vand.u32 %v3121, 4294901760
    %v3123 = vsub.f32 %v3121, %v3122
    %v3124 = vand.u32 %v3123, 4294901760
    %3125 = vmatpush1.msra.mxu0 %v3124
    %v3126 = vand.u32 %v2857, 4294901760
    %v3127 = vsub.f32 %v2857, %v3126
    %v3128 = vand.u32 %v3127, 4294901760
    %v3129 = vsub.f32 %v3127, %v3128
    %v3130 = vand.u32 %v3129, 4294901760
    %3131 = vmatprep.subr.mxu0 %v3130
    %v3132 = vand.u32 %v2856, 4294901760
    %v3133 = vsub.f32 %v2856, %v3132
    %v3134 = vand.u32 %v3133, 4294901760
    %v3135 = vsub.f32 %v3133, %v3134
    %v3136 = vand.u32 %v3135, 4294901760
    %3137 = vmatpush1.msra.mxu0 %v3136
    %v3138 = vand.u32 %v2859, 4294901760
    %v3139 = vsub.f32 %v2859, %v3138
    %v3140 = vand.u32 %v3139, 4294901760
    %v3141 = vsub.f32 %v3139, %v3140
    %v3142 = vand.u32 %v3141, 4294901760
    %3143 = vmatprep.subr.mxu0 %v3142
    %v3144 = vand.u32 %v2858, 4294901760
    %v3145 = vsub.f32 %v2858, %v3144
    %v3146 = vand.u32 %v3145, 4294901760
    %v3147 = vsub.f32 %v3145, %v3146
    %v3148 = vand.u32 %v3147, 4294901760
    %3149 = vmatpush1.msra.mxu0 %v3148
    %v3150 = vand.u32 %v2861, 4294901760
    %v3151 = vsub.f32 %v2861, %v3150
    %v3152 = vand.u32 %v3151, 4294901760
    %v3153 = vsub.f32 %v3151, %v3152
    %v3154 = vand.u32 %v3153, 4294901760
    %3155 = vmatprep.subr.mxu0 %v3154
    %v3156 = vand.u32 %v2860, 4294901760
    %v3157 = vsub.f32 %v2860, %v3156
    %v3158 = vand.u32 %v3157, 4294901760
    %v3159 = vsub.f32 %v3157, %v3158
    %v3160 = vand.u32 %v3159, 4294901760
    %3161 = vmatpush1.msra.mxu0 %v3160
    %v3162 = vand.u32 %v2863, 4294901760
    %v3163 = vsub.f32 %v2863, %v3162
    %v3164 = vand.u32 %v3163, 4294901760
    %v3165 = vsub.f32 %v3163, %v3164
    %v3166 = vand.u32 %v3165, 4294901760
    %3167 = vmatprep.subr.mxu0 %v3166
    %v3168 = vand.u32 %v2862, 4294901760
    %v3169 = vsub.f32 %v2862, %v3168
    %v3170 = vand.u32 %v3169, 4294901760
    %v3171 = vsub.f32 %v3169, %v3170
    %v3172 = vand.u32 %v3171, 4294901760
    %3173 = vmatpush1.msra.mxu0 %v3172
    %v3174 = vand.u32 %v2865, 4294901760
    %v3175 = vsub.f32 %v2865, %v3174
    %v3176 = vand.u32 %v3175, 4294901760
    %v3177 = vsub.f32 %v3175, %v3176
    %v3178 = vand.u32 %v3177, 4294901760
    %3179 = vmatprep.subr.mxu0 %v3178
    %v3180 = vand.u32 %v2864, 4294901760
    %v3181 = vsub.f32 %v2864, %v3180
    %v3182 = vand.u32 %v3181, 4294901760
    %v3183 = vsub.f32 %v3181, %v3182
    %v3184 = vand.u32 %v3183, 4294901760
    %3185 = vmatpush1.msra.mxu0 %v3184
    %v3186 = vand.u32 %v2867, 4294901760
    %v3187 = vsub.f32 %v2867, %v3186
    %v3188 = vand.u32 %v3187, 4294901760
    %v3189 = vsub.f32 %v3187, %v3188
    %v3190 = vand.u32 %v3189, 4294901760
    %3191 = vmatprep.subr.mxu0 %v3190
    %v3192 = vand.u32 %v2866, 4294901760
    %v3193 = vsub.f32 %v2866, %v3192
    %v3194 = vand.u32 %v3193, 4294901760
    %v3195 = vsub.f32 %v3193, %v3194
    %v3196 = vand.u32 %v3195, 4294901760
    %3197 = vmatpush1.msra.mxu0 %v3196
    %v3198 = vand.u32 %v2869, 4294901760
    %v3199 = vsub.f32 %v2869, %v3198
    %v3200 = vand.u32 %v3199, 4294901760
    %v3201 = vsub.f32 %v3199, %v3200
    %v3202 = vand.u32 %v3201, 4294901760
    %3203 = vmatprep.subr.mxu0 %v3202
    %v3204 = vand.u32 %v2868, 4294901760
    %v3205 = vsub.f32 %v2868, %v3204
    %v3206 = vand.u32 %v3205, 4294901760
    %v3207 = vsub.f32 %v3205, %v3206
    %v3208 = vand.u32 %v3207, 4294901760
    %3209 = vmatpush1.msra.mxu0 %v3208
    %v3210 = vand.u32 %v2871, 4294901760
    %v3211 = vsub.f32 %v2871, %v3210
    %v3212 = vand.u32 %v3211, 4294901760
    %v3213 = vsub.f32 %v3211, %v3212
    %v3214 = vand.u32 %v3213, 4294901760
    %3215 = vmatprep.subr.mxu0 %v3214
    %v3216 = vand.u32 %v2870, 4294901760
    %v3217 = vsub.f32 %v2870, %v3216
    %v3218 = vand.u32 %v3217, 4294901760
    %v3219 = vsub.f32 %v3217, %v3218
    %v3220 = vand.u32 %v3219, 4294901760
    %3221 = vmatpush1.msra.mxu0 %v3220
    %v3222 = vand.u32 %v2873, 4294901760
    %v3223 = vsub.f32 %v2873, %v3222
    %v3224 = vand.u32 %v3223, 4294901760
    %v3225 = vsub.f32 %v3223, %v3224
    %v3226 = vand.u32 %v3225, 4294901760
    %3227 = vmatprep.subr.mxu0 %v3226
    %v3228 = vand.u32 %v2872, 4294901760
    %v3229 = vsub.f32 %v2872, %v3228
    %v3230 = vand.u32 %v3229, 4294901760
    %v3231 = vsub.f32 %v3229, %v3230
    %v3232 = vand.u32 %v3231, 4294901760
    %3233 = vmatpush1.msra.mxu0 %v3232
    %v3234 = vand.u32 %v2875, 4294901760
    %v3235 = vsub.f32 %v2875, %v3234
    %v3236 = vand.u32 %v3235, 4294901760
    %v3237 = vsub.f32 %v3235, %v3236
    %v3238 = vand.u32 %v3237, 4294901760
    %3239 = vmatprep.subr.mxu0 %v3238
    %v3240 = vand.u32 %v2874, 4294901760
    %v3241 = vsub.f32 %v2874, %v3240
    %v3242 = vand.u32 %v3241, 4294901760
    %v3243 = vsub.f32 %v3241, %v3242
    %v3244 = vand.u32 %v3243, 4294901760
    %3245 = vmatpush1.msra.mxu0 %v3244
    %v3246 = vand.u32 %v2877, 4294901760
    %v3247 = vsub.f32 %v2877, %v3246
    %v3248 = vand.u32 %v3247, 4294901760
    %v3249 = vsub.f32 %v3247, %v3248
    %v3250 = vand.u32 %v3249, 4294901760
    %3251 = vmatprep.subr.mxu0 %v3250
    %v3252 = vand.u32 %v2876, 4294901760
    %v3253 = vsub.f32 %v2876, %v3252
    %v3254 = vand.u32 %v3253, 4294901760
    %v3255 = vsub.f32 %v3253, %v3254
    %v3256 = vand.u32 %v3255, 4294901760
    %3257 = vmatpush1.msra.mxu0 %v3256
    %v3258 = vand.u32 %v2879, 4294901760
    %v3259 = vsub.f32 %v2879, %v3258
    %v3260 = vand.u32 %v3259, 4294901760
    %v3261 = vsub.f32 %v3259, %v3260
    %v3262 = vand.u32 %v3261, 4294901760
    %3263 = vmatprep.subr.mxu0 %v3262
    %v3264 = vand.u32 %v2878, 4294901760
    %v3265 = vsub.f32 %v2878, %v3264
    %v3266 = vand.u32 %v3265, 4294901760
    %v3267 = vsub.f32 %v3265, %v3266
    %v3268 = vand.u32 %v3267, 4294901760
    %3269 = vmatpush1.msra.mxu0 %v3268
    %v3270 = vand.u32 %v2881, 4294901760
    %v3271 = vsub.f32 %v2881, %v3270
    %v3272 = vand.u32 %v3271, 4294901760
    %v3273 = vsub.f32 %v3271, %v3272
    %v3274 = vand.u32 %v3273, 4294901760
    %3275 = vmatprep.subr.mxu0 %v3274
    %v3276 = vand.u32 %v2880, 4294901760
    %v3277 = vsub.f32 %v2880, %v3276
    %v3278 = vand.u32 %v3277, 4294901760
    %v3279 = vsub.f32 %v3277, %v3278
    %v3280 = vand.u32 %v3279, 4294901760
    %3281 = vmatpush1.msra.mxu0 %v3280
    %v3282 = vand.u32 %v2883, 4294901760
    %v3283 = vsub.f32 %v2883, %v3282
    %v3284 = vand.u32 %v3283, 4294901760
    %v3285 = vsub.f32 %v3283, %v3284
    %v3286 = vand.u32 %v3285, 4294901760
    %3287 = vmatprep.subr.mxu0 %v3286
    %v3288 = vand.u32 %v2882, 4294901760
    %v3289 = vsub.f32 %v2882, %v3288
    %v3290 = vand.u32 %v3289, 4294901760
    %v3291 = vsub.f32 %v3289, %v3290
    %v3292 = vand.u32 %v3291, 4294901760
    %3293 = vmatpush1.msra.mxu0 %v3292
    %v3294 = vand.u32 %v2885, 4294901760
    %v3295 = vsub.f32 %v2885, %v3294
    %v3296 = vand.u32 %v3295, 4294901760
    %v3297 = vsub.f32 %v3295, %v3296
    %v3298 = vand.u32 %v3297, 4294901760
    %3299 = vmatprep.subr.mxu0 %v3298
    %v3300 = vand.u32 %v2884, 4294901760
    %v3301 = vsub.f32 %v2884, %v3300
    %v3302 = vand.u32 %v3301, 4294901760
    %v3303 = vsub.f32 %v3301, %v3302
    %v3304 = vand.u32 %v3303, 4294901760
    %3305 = vmatpush1.msra.mxu0 %v3304
    %v3306 = vand.u32 %v2887, 4294901760
    %v3307 = vsub.f32 %v2887, %v3306
    %v3308 = vand.u32 %v3307, 4294901760
    %v3309 = vsub.f32 %v3307, %v3308
    %v3310 = vand.u32 %v3309, 4294901760
    %3311 = vmatprep.subr.mxu0 %v3310
    %v3312 = vand.u32 %v2886, 4294901760
    %v3313 = vsub.f32 %v2886, %v3312
    %v3314 = vand.u32 %v3313, 4294901760
    %v3315 = vsub.f32 %v3313, %v3314
    %v3316 = vand.u32 %v3315, 4294901760
    %3317 = vmatpush1.msra.mxu0 %v3316
    %v3318 = vand.u32 %v2889, 4294901760
    %v3319 = vsub.f32 %v2889, %v3318
    %v3320 = vand.u32 %v3319, 4294901760
    %v3321 = vsub.f32 %v3319, %v3320
    %v3322 = vand.u32 %v3321, 4294901760
    %3323 = vmatprep.subr.mxu0 %v3322
    %v3324 = vand.u32 %v2888, 4294901760
    %v3325 = vsub.f32 %v2888, %v3324
    %v3326 = vand.u32 %v3325, 4294901760
    %v3327 = vsub.f32 %v3325, %v3326
    %v3328 = vand.u32 %v3327, 4294901760
    %3329 = vmatpush1.msra.mxu0 %v3328
    %v3330 = vand.u32 %v2891, 4294901760
    %v3331 = vsub.f32 %v2891, %v3330
    %v3332 = vand.u32 %v3331, 4294901760
    %v3333 = vsub.f32 %v3331, %v3332
    %v3334 = vand.u32 %v3333, 4294901760
    %3335 = vmatprep.subr.mxu0 %v3334
    %v3336 = vand.u32 %v2890, 4294901760
    %v3337 = vsub.f32 %v2890, %v3336
    %v3338 = vand.u32 %v3337, 4294901760
    %v3339 = vsub.f32 %v3337, %v3338
    %v3340 = vand.u32 %v3339, 4294901760
    %3341 = vmatpush1.msra.mxu0 %v3340
    %v3342 = vand.u32 %v2893, 4294901760
    %v3343 = vsub.f32 %v2893, %v3342
    %v3344 = vand.u32 %v3343, 4294901760
    %v3345 = vsub.f32 %v3343, %v3344
    %v3346 = vand.u32 %v3345, 4294901760
    %3347 = vmatprep.subr.mxu0 %v3346
    %v3348 = vand.u32 %v2892, 4294901760
    %v3349 = vsub.f32 %v2892, %v3348
    %v3350 = vand.u32 %v3349, 4294901760
    %v3351 = vsub.f32 %v3349, %v3350
    %v3352 = vand.u32 %v3351, 4294901760
    %3353 = vmatpush1.msra.mxu0 %v3352
    %v3354 = vand.u32 %v2895, 4294901760
    %v3355 = vsub.f32 %v2895, %v3354
    %v3356 = vand.u32 %v3355, 4294901760
    %v3357 = vsub.f32 %v3355, %v3356
    %v3358 = vand.u32 %v3357, 4294901760
    %3359 = vmatprep.subr.mxu0 %v3358
    %v3360 = vand.u32 %v2894, 4294901760
    %v3361 = vsub.f32 %v2894, %v3360
    %v3362 = vand.u32 %v3361, 4294901760
    %v3363 = vsub.f32 %v3361, %v3362
    %v3364 = vand.u32 %v3363, 4294901760
    %3365 = vmatpush1.msra.mxu0 %v3364
    %v3366 = vand.u32 %v2897, 4294901760
    %v3367 = vsub.f32 %v2897, %v3366
    %v3368 = vand.u32 %v3367, 4294901760
    %v3369 = vsub.f32 %v3367, %v3368
    %v3370 = vand.u32 %v3369, 4294901760
    %3371 = vmatprep.subr.mxu0 %v3370
    %v3372 = vand.u32 %v2896, 4294901760
    %v3373 = vsub.f32 %v2896, %v3372
    %v3374 = vand.u32 %v3373, 4294901760
    %v3375 = vsub.f32 %v3373, %v3374
    %v3376 = vand.u32 %v3375, 4294901760
    %3377 = vmatpush1.msra.mxu0 %v3376
    %v3378 = vand.u32 %v2899, 4294901760
    %v3379 = vsub.f32 %v2899, %v3378
    %v3380 = vand.u32 %v3379, 4294901760
    %v3381 = vsub.f32 %v3379, %v3380
    %v3382 = vand.u32 %v3381, 4294901760
    %3383 = vmatprep.subr.mxu0 %v3382
    %v3384 = vand.u32 %v2898, 4294901760
    %v3385 = vsub.f32 %v2898, %v3384
    %v3386 = vand.u32 %v3385, 4294901760
    %v3387 = vsub.f32 %v3385, %v3386
    %v3388 = vand.u32 %v3387, 4294901760
    %3389 = vmatpush1.msra.mxu0 %v3388
    %v3390 = vand.u32 %v2901, 4294901760
    %v3391 = vsub.f32 %v2901, %v3390
    %v3392 = vand.u32 %v3391, 4294901760
    %v3393 = vsub.f32 %v3391, %v3392
    %v3394 = vand.u32 %v3393, 4294901760
    %3395 = vmatprep.subr.mxu0 %v3394
    %v3396 = vand.u32 %v2900, 4294901760
    %v3397 = vsub.f32 %v2900, %v3396
    %v3398 = vand.u32 %v3397, 4294901760
    %v3399 = vsub.f32 %v3397, %v3398
    %v3400 = vand.u32 %v3399, 4294901760
    %3401 = vmatpush1.msra.mxu0 %v3400
    %v3402 = vand.u32 %v2903, 4294901760
    %v3403 = vsub.f32 %v2903, %v3402
    %v3404 = vand.u32 %v3403, 4294901760
    %v3405 = vsub.f32 %v3403, %v3404
    %v3406 = vand.u32 %v3405, 4294901760
    %3407 = vmatprep.subr.mxu0 %v3406
    %v3408 = vand.u32 %v2902, 4294901760
    %v3409 = vsub.f32 %v2902, %v3408
    %v3410 = vand.u32 %v3409, 4294901760
    %v3411 = vsub.f32 %v3409, %v3410
    %v3412 = vand.u32 %v3411, 4294901760
    %3413 = vmatpush1.msra.mxu0 %v3412
    %v3414 = vand.u32 %v2905, 4294901760
    %v3415 = vsub.f32 %v2905, %v3414
    %v3416 = vand.u32 %v3415, 4294901760
    %v3417 = vsub.f32 %v3415, %v3416
    %v3418 = vand.u32 %v3417, 4294901760
    %3419 = vmatprep.subr.mxu0 %v3418
    %v3420 = vand.u32 %v2904, 4294901760
    %v3421 = vsub.f32 %v2904, %v3420
    %v3422 = vand.u32 %v3421, 4294901760
    %v3423 = vsub.f32 %v3421, %v3422
    %v3424 = vand.u32 %v3423, 4294901760
    %3425 = vmatpush1.msra.mxu0 %v3424
    %v3426 = vand.u32 %v2907, 4294901760
    %v3427 = vsub.f32 %v2907, %v3426
    %v3428 = vand.u32 %v3427, 4294901760
    %v3429 = vsub.f32 %v3427, %v3428
    %v3430 = vand.u32 %v3429, 4294901760
    %3431 = vmatprep.subr.mxu0 %v3430
    %v3432 = vand.u32 %v2906, 4294901760
    %v3433 = vsub.f32 %v2906, %v3432
    %v3434 = vand.u32 %v3433, 4294901760
    %v3435 = vsub.f32 %v3433, %v3434
    %v3436 = vand.u32 %v3435, 4294901760
    %3437 = vmatpush1.msra.mxu0 %v3436
    %v3438 = vand.u32 %v2843, 4294901760
    %3439 = vmatprep.mubr.f32.mxu0 %v3438
    %v3440 = vand.u32 %v2842, 4294901760
    %3441 = vmatmul.mubr.f32.gmra.mrb[0].mxu0 %v3440
    %v3442 = vpop.f32.mrb[0].mxu0
    %v3443 = vadd.f32 %v3050, %v3442
    %v3444 = vpop.f32.mrb[0].mxu0
    %v3445 = vadd.f32 %v3052, %v3444
    %3446 = vdwg.mxu0
    %v3447 = vand.u32 %v2845, 4294901760
    %v3448 = vsub.f32 %v2845, %v3447
    %3449 = vmatprep.subr.mxu0 %v3448
    %v3450 = vand.u32 %v2844, 4294901760
    %v3451 = vsub.f32 %v2844, %v3450
    %3452 = vmatpush1.msra.mxu0 %v3451
    %v3453 = vand.u32 %v2847, 4294901760
    %v3454 = vsub.f32 %v2847, %v3453
    %3455 = vmatprep.subr.mxu0 %v3454
    %v3456 = vand.u32 %v2846, 4294901760
    %v3457 = vsub.f32 %v2846, %v3456
    %3458 = vmatpush1.msra.mxu0 %v3457
    %v3459 = vand.u32 %v2849, 4294901760
    %v3460 = vsub.f32 %v2849, %v3459
    %3461 = vmatprep.subr.mxu0 %v3460
    %v3462 = vand.u32 %v2848, 4294901760
    %v3463 = vsub.f32 %v2848, %v3462
    %3464 = vmatpush1.msra.mxu0 %v3463
    %v3465 = vand.u32 %v2851, 4294901760
    %v3466 = vsub.f32 %v2851, %v3465
    %3467 = vmatprep.subr.mxu0 %v3466
    %v3468 = vand.u32 %v2850, 4294901760
    %v3469 = vsub.f32 %v2850, %v3468
    %3470 = vmatpush1.msra.mxu0 %v3469
    %v3471 = vand.u32 %v2853, 4294901760
    %v3472 = vsub.f32 %v2853, %v3471
    %3473 = vmatprep.subr.mxu0 %v3472
    %v3474 = vand.u32 %v2852, 4294901760
    %v3475 = vsub.f32 %v2852, %v3474
    %3476 = vmatpush1.msra.mxu0 %v3475
    %v3477 = vand.u32 %v2855, 4294901760
    %v3478 = vsub.f32 %v2855, %v3477
    %3479 = vmatprep.subr.mxu0 %v3478
    %v3480 = vand.u32 %v2854, 4294901760
    %v3481 = vsub.f32 %v2854, %v3480
    %3482 = vmatpush1.msra.mxu0 %v3481
    %v3483 = vand.u32 %v2857, 4294901760
    %v3484 = vsub.f32 %v2857, %v3483
    %3485 = vmatprep.subr.mxu0 %v3484
    %v3486 = vand.u32 %v2856, 4294901760
    %v3487 = vsub.f32 %v2856, %v3486
    %3488 = vmatpush1.msra.mxu0 %v3487
    %v3489 = vand.u32 %v2859, 4294901760
    %v3490 = vsub.f32 %v2859, %v3489
    %3491 = vmatprep.subr.mxu0 %v3490
    %v3492 = vand.u32 %v2858, 4294901760
    %v3493 = vsub.f32 %v2858, %v3492
    %3494 = vmatpush1.msra.mxu0 %v3493
    %v3495 = vand.u32 %v2861, 4294901760
    %v3496 = vsub.f32 %v2861, %v3495
    %3497 = vmatprep.subr.mxu0 %v3496
    %v3498 = vand.u32 %v2860, 4294901760
    %v3499 = vsub.f32 %v2860, %v3498
    %3500 = vmatpush1.msra.mxu0 %v3499
    %v3501 = vand.u32 %v2863, 4294901760
    %v3502 = vsub.f32 %v2863, %v3501
    %3503 = vmatprep.subr.mxu0 %v3502
    %v3504 = vand.u32 %v2862, 4294901760
    %v3505 = vsub.f32 %v2862, %v3504
    %3506 = vmatpush1.msra.mxu0 %v3505
    %v3507 = vand.u32 %v2865, 4294901760
    %v3508 = vsub.f32 %v2865, %v3507
    %3509 = vmatprep.subr.mxu0 %v3508
    %v3510 = vand.u32 %v2864, 4294901760
    %v3511 = vsub.f32 %v2864, %v3510
    %3512 = vmatpush1.msra.mxu0 %v3511
    %v3513 = vand.u32 %v2867, 4294901760
    %v3514 = vsub.f32 %v2867, %v3513
    %3515 = vmatprep.subr.mxu0 %v3514
    %v3516 = vand.u32 %v2866, 4294901760
    %v3517 = vsub.f32 %v2866, %v3516
    %3518 = vmatpush1.msra.mxu0 %v3517
    %v3519 = vand.u32 %v2869, 4294901760
    %v3520 = vsub.f32 %v2869, %v3519
    %3521 = vmatprep.subr.mxu0 %v3520
    %v3522 = vand.u32 %v2868, 4294901760
    %v3523 = vsub.f32 %v2868, %v3522
    %3524 = vmatpush1.msra.mxu0 %v3523
    %v3525 = vand.u32 %v2871, 4294901760
    %v3526 = vsub.f32 %v2871, %v3525
    %3527 = vmatprep.subr.mxu0 %v3526
    %v3528 = vand.u32 %v2870, 4294901760
    %v3529 = vsub.f32 %v2870, %v3528
    %3530 = vmatpush1.msra.mxu0 %v3529
    %v3531 = vand.u32 %v2873, 4294901760
    %v3532 = vsub.f32 %v2873, %v3531
    %3533 = vmatprep.subr.mxu0 %v3532
    %v3534 = vand.u32 %v2872, 4294901760
    %v3535 = vsub.f32 %v2872, %v3534
    %3536 = vmatpush1.msra.mxu0 %v3535
    %v3537 = vand.u32 %v2875, 4294901760
    %v3538 = vsub.f32 %v2875, %v3537
    %3539 = vmatprep.subr.mxu0 %v3538
    %v3540 = vand.u32 %v2874, 4294901760
    %v3541 = vsub.f32 %v2874, %v3540
    %3542 = vmatpush1.msra.mxu0 %v3541
    %v3543 = vand.u32 %v2877, 4294901760
    %v3544 = vsub.f32 %v2877, %v3543
    %3545 = vmatprep.subr.mxu0 %v3544
    %v3546 = vand.u32 %v2876, 4294901760
    %v3547 = vsub.f32 %v2876, %v3546
    %3548 = vmatpush1.msra.mxu0 %v3547
    %v3549 = vand.u32 %v2879, 4294901760
    %v3550 = vsub.f32 %v2879, %v3549
    %3551 = vmatprep.subr.mxu0 %v3550
    %v3552 = vand.u32 %v2878, 4294901760
    %v3553 = vsub.f32 %v2878, %v3552
    %3554 = vmatpush1.msra.mxu0 %v3553
    %v3555 = vand.u32 %v2881, 4294901760
    %v3556 = vsub.f32 %v2881, %v3555
    %3557 = vmatprep.subr.mxu0 %v3556
    %v3558 = vand.u32 %v2880, 4294901760
    %v3559 = vsub.f32 %v2880, %v3558
    %3560 = vmatpush1.msra.mxu0 %v3559
    %v3561 = vand.u32 %v2883, 4294901760
    %v3562 = vsub.f32 %v2883, %v3561
    %3563 = vmatprep.subr.mxu0 %v3562
    %v3564 = vand.u32 %v2882, 4294901760
    %v3565 = vsub.f32 %v2882, %v3564
    %3566 = vmatpush1.msra.mxu0 %v3565
    %v3567 = vand.u32 %v2885, 4294901760
    %v3568 = vsub.f32 %v2885, %v3567
    %3569 = vmatprep.subr.mxu0 %v3568
    %v3570 = vand.u32 %v2884, 4294901760
    %v3571 = vsub.f32 %v2884, %v3570
    %3572 = vmatpush1.msra.mxu0 %v3571
    %v3573 = vand.u32 %v2887, 4294901760
    %v3574 = vsub.f32 %v2887, %v3573
    %3575 = vmatprep.subr.mxu0 %v3574
    %v3576 = vand.u32 %v2886, 4294901760
    %v3577 = vsub.f32 %v2886, %v3576
    %3578 = vmatpush1.msra.mxu0 %v3577
    %v3579 = vand.u32 %v2889, 4294901760
    %v3580 = vsub.f32 %v2889, %v3579
    %3581 = vmatprep.subr.mxu0 %v3580
    %v3582 = vand.u32 %v2888, 4294901760
    %v3583 = vsub.f32 %v2888, %v3582
    %3584 = vmatpush1.msra.mxu0 %v3583
    %v3585 = vand.u32 %v2891, 4294901760
    %v3586 = vsub.f32 %v2891, %v3585
    %3587 = vmatprep.subr.mxu0 %v3586
    %v3588 = vand.u32 %v2890, 4294901760
    %v3589 = vsub.f32 %v2890, %v3588
    %3590 = vmatpush1.msra.mxu0 %v3589
    %v3591 = vand.u32 %v2893, 4294901760
    %v3592 = vsub.f32 %v2893, %v3591
    %3593 = vmatprep.subr.mxu0 %v3592
    %v3594 = vand.u32 %v2892, 4294901760
    %v3595 = vsub.f32 %v2892, %v3594
    %3596 = vmatpush1.msra.mxu0 %v3595
    %v3597 = vand.u32 %v2895, 4294901760
    %v3598 = vsub.f32 %v2895, %v3597
    %3599 = vmatprep.subr.mxu0 %v3598
    %v3600 = vand.u32 %v2894, 4294901760
    %v3601 = vsub.f32 %v2894, %v3600
    %3602 = vmatpush1.msra.mxu0 %v3601
    %v3603 = vand.u32 %v2897, 4294901760
    %v3604 = vsub.f32 %v2897, %v3603
    %3605 = vmatprep.subr.mxu0 %v3604
    %v3606 = vand.u32 %v2896, 4294901760
    %v3607 = vsub.f32 %v2896, %v3606
    %3608 = vmatpush1.msra.mxu0 %v3607
    %v3609 = vand.u32 %v2899, 4294901760
    %v3610 = vsub.f32 %v2899, %v3609
    %3611 = vmatprep.subr.mxu0 %v3610
    %v3612 = vand.u32 %v2898, 4294901760
    %v3613 = vsub.f32 %v2898, %v3612
    %3614 = vmatpush1.msra.mxu0 %v3613
    %v3615 = vand.u32 %v2901, 4294901760
    %v3616 = vsub.f32 %v2901, %v3615
    %3617 = vmatprep.subr.mxu0 %v3616
    %v3618 = vand.u32 %v2900, 4294901760
    %v3619 = vsub.f32 %v2900, %v3618
    %3620 = vmatpush1.msra.mxu0 %v3619
    %v3621 = vand.u32 %v2903, 4294901760
    %v3622 = vsub.f32 %v2903, %v3621
    %3623 = vmatprep.subr.mxu0 %v3622
    %v3624 = vand.u32 %v2902, 4294901760
    %v3625 = vsub.f32 %v2902, %v3624
    %3626 = vmatpush1.msra.mxu0 %v3625
    %v3627 = vand.u32 %v2905, 4294901760
    %v3628 = vsub.f32 %v2905, %v3627
    %3629 = vmatprep.subr.mxu0 %v3628
    %v3630 = vand.u32 %v2904, 4294901760
    %v3631 = vsub.f32 %v2904, %v3630
    %3632 = vmatpush1.msra.mxu0 %v3631
    %v3633 = vand.u32 %v2907, 4294901760
    %v3634 = vsub.f32 %v2907, %v3633
    %3635 = vmatprep.subr.mxu0 %v3634
    %v3636 = vand.u32 %v2906, 4294901760
    %v3637 = vsub.f32 %v2906, %v3636
    %3638 = vmatpush1.msra.mxu0 %v3637
    %v3639 = vand.u32 %v2843, 4294901760
    %v3640 = vsub.f32 %v2843, %v3639
    %3641 = vmatprep.mubr.f32.mxu0 %v3640
    %v3642 = vand.u32 %v2842, 4294901760
    %v3643 = vsub.f32 %v2842, %v3642
    %3644 = vmatmul.mubr.f32.gmra.mrb[0].mxu0 %v3643
    %v3645 = vpop.f32.mrb[0].mxu0
    %v3646 = vadd.f32 %v3443, %v3645
    %v3647 = vpop.f32.mrb[0].mxu0
    %v3648 = vadd.f32 %v3445, %v3647
    %3649 = vdwg.mxu0
    %v3650 = vand.u32 %v2845, 4294901760
    %3651 = vmatprep.subr.mxu0 %v3650
    %v3652 = vand.u32 %v2844, 4294901760
    %3653 = vmatpush1.msra.mxu0 %v3652
    %v3654 = vand.u32 %v2847, 4294901760
    %3655 = vmatprep.subr.mxu0 %v3654
    %v3656 = vand.u32 %v2846, 4294901760
    %3657 = vmatpush1.msra.mxu0 %v3656
    %v3658 = vand.u32 %v2849, 4294901760
    %3659 = vmatprep.subr.mxu0 %v3658
    %v3660 = vand.u32 %v2848, 4294901760
    %3661 = vmatpush1.msra.mxu0 %v3660
    %v3662 = vand.u32 %v2851, 4294901760
    %3663 = vmatprep.subr.mxu0 %v3662
    %v3664 = vand.u32 %v2850, 4294901760
    %3665 = vmatpush1.msra.mxu0 %v3664
    %v3666 = vand.u32 %v2853, 4294901760
    %3667 = vmatprep.subr.mxu0 %v3666
    %v3668 = vand.u32 %v2852, 4294901760
    %3669 = vmatpush1.msra.mxu0 %v3668
    %v3670 = vand.u32 %v2855, 4294901760
    %3671 = vmatprep.subr.mxu0 %v3670
    %v3672 = vand.u32 %v2854, 4294901760
    %3673 = vmatpush1.msra.mxu0 %v3672
    %v3674 = vand.u32 %v2857, 4294901760
    %3675 = vmatprep.subr.mxu0 %v3674
    %v3676 = vand.u32 %v2856, 4294901760
    %3677 = vmatpush1.msra.mxu0 %v3676
    %v3678 = vand.u32 %v2859, 4294901760
    %3679 = vmatprep.subr.mxu0 %v3678
    %v3680 = vand.u32 %v2858, 4294901760
    %3681 = vmatpush1.msra.mxu0 %v3680
    %v3682 = vand.u32 %v2861, 4294901760
    %3683 = vmatprep.subr.mxu0 %v3682
    %v3684 = vand.u32 %v2860, 4294901760
    %3685 = vmatpush1.msra.mxu0 %v3684
    %v3686 = vand.u32 %v2863, 4294901760
    %3687 = vmatprep.subr.mxu0 %v3686
    %v3688 = vand.u32 %v2862, 4294901760
    %3689 = vmatpush1.msra.mxu0 %v3688
    %v3690 = vand.u32 %v2865, 4294901760
    %3691 = vmatprep.subr.mxu0 %v3690
    %v3692 = vand.u32 %v2864, 4294901760
    %3693 = vmatpush1.msra.mxu0 %v3692
    %v3694 = vand.u32 %v2867, 4294901760
    %3695 = vmatprep.subr.mxu0 %v3694
    %v3696 = vand.u32 %v2866, 4294901760
    %3697 = vmatpush1.msra.mxu0 %v3696
    %v3698 = vand.u32 %v2869, 4294901760
    %3699 = vmatprep.subr.mxu0 %v3698
    %v3700 = vand.u32 %v2868, 4294901760
    %3701 = vmatpush1.msra.mxu0 %v3700
    %v3702 = vand.u32 %v2871, 4294901760
    %3703 = vmatprep.subr.mxu0 %v3702
    %v3704 = vand.u32 %v2870, 4294901760
    %3705 = vmatpush1.msra.mxu0 %v3704
    %v3706 = vand.u32 %v2873, 4294901760
    %3707 = vmatprep.subr.mxu0 %v3706
    %v3708 = vand.u32 %v2872, 4294901760
    %3709 = vmatpush1.msra.mxu0 %v3708
    %v3710 = vand.u32 %v2875, 4294901760
    %3711 = vmatprep.subr.mxu0 %v3710
    %v3712 = vand.u32 %v2874, 4294901760
    %3713 = vmatpush1.msra.mxu0 %v3712
    %v3714 = vand.u32 %v2877, 4294901760
    %3715 = vmatprep.subr.mxu0 %v3714
    %v3716 = vand.u32 %v2876, 4294901760
    %3717 = vmatpush1.msra.mxu0 %v3716
    %v3718 = vand.u32 %v2879, 4294901760
    %3719 = vmatprep.subr.mxu0 %v3718
    %v3720 = vand.u32 %v2878, 4294901760
    %3721 = vmatpush1.msra.mxu0 %v3720
    %v3722 = vand.u32 %v2881, 4294901760
    %3723 = vmatprep.subr.mxu0 %v3722
    %v3724 = vand.u32 %v2880, 4294901760
    %3725 = vmatpush1.msra.mxu0 %v3724
    %v3726 = vand.u32 %v2883, 4294901760
    %3727 = vmatprep.subr.mxu0 %v3726
    %v3728 = vand.u32 %v2882, 4294901760
    %3729 = vmatpush1.msra.mxu0 %v3728
    %v3730 = vand.u32 %v2885, 4294901760
    %3731 = vmatprep.subr.mxu0 %v3730
    %v3732 = vand.u32 %v2884, 4294901760
    %3733 = vmatpush1.msra.mxu0 %v3732
    %v3734 = vand.u32 %v2887, 4294901760
    %3735 = vmatprep.subr.mxu0 %v3734
    %v3736 = vand.u32 %v2886, 4294901760
    %3737 = vmatpush1.msra.mxu0 %v3736
    %v3738 = vand.u32 %v2889, 4294901760
    %3739 = vmatprep.subr.mxu0 %v3738
    %v3740 = vand.u32 %v2888, 4294901760
    %3741 = vmatpush1.msra.mxu0 %v3740
    %v3742 = vand.u32 %v2891, 4294901760
    %3743 = vmatprep.subr.mxu0 %v3742
    %v3744 = vand.u32 %v2890, 4294901760
    %3745 = vmatpush1.msra.mxu0 %v3744
    %v3746 = vand.u32 %v2893, 4294901760
    %3747 = vmatprep.subr.mxu0 %v3746
    %v3748 = vand.u32 %v2892, 4294901760
    %3749 = vmatpush1.msra.mxu0 %v3748
    %v3750 = vand.u32 %v2895, 4294901760
    %3751 = vmatprep.subr.mxu0 %v3750
    %v3752 = vand.u32 %v2894, 4294901760
    %3753 = vmatpush1.msra.mxu0 %v3752
    %v3754 = vand.u32 %v2897, 4294901760
    %3755 = vmatprep.subr.mxu0 %v3754
    %v3756 = vand.u32 %v2896, 4294901760
    %3757 = vmatpush1.msra.mxu0 %v3756
    %v3758 = vand.u32 %v2899, 4294901760
    %3759 = vmatprep.subr.mxu0 %v3758
    %v3760 = vand.u32 %v2898, 4294901760
    %3761 = vmatpush1.msra.mxu0 %v3760
    %v3762 = vand.u32 %v2901, 4294901760
    %3763 = vmatprep.subr.mxu0 %v3762
    %v3764 = vand.u32 %v2900, 4294901760
    %3765 = vmatpush1.msra.mxu0 %v3764
    %v3766 = vand.u32 %v2903, 4294901760
    %3767 = vmatprep.subr.mxu0 %v3766
    %v3768 = vand.u32 %v2902, 4294901760
    %3769 = vmatpush1.msra.mxu0 %v3768
    %v3770 = vand.u32 %v2905, 4294901760
    %3771 = vmatprep.subr.mxu0 %v3770
    %v3772 = vand.u32 %v2904, 4294901760
    %3773 = vmatpush1.msra.mxu0 %v3772
    %v3774 = vand.u32 %v2907, 4294901760
    %3775 = vmatprep.subr.mxu0 %v3774
    %v3776 = vand.u32 %v2906, 4294901760
    %3777 = vmatpush1.msra.mxu0 %v3776
    %v3778 = vand.u32 %v2843, 4294901760
    %v3779 = vsub.f32 %v2843, %v3778
    %v3780 = vand.u32 %v3779, 4294901760
    %3781 = vmatprep.mubr.f32.mxu0 %v3780
    %v3782 = vand.u32 %v2842, 4294901760
    %v3783 = vsub.f32 %v2842, %v3782
    %v3784 = vand.u32 %v3783, 4294901760
    %3785 = vmatmul.mubr.f32.gmra.mrb[0].mxu0 %v3784
    %v3786 = vpop.f32.mrb[0].mxu0
    %v3787 = vadd.f32 %v3646, %v3786
    %v3788 = vpop.f32.mrb[0].mxu0
    %v3789 = vadd.f32 %v3648, %v3788
    %3790 = vdwg.mxu0
    %v3791 = vand.u32 %v2845, 4294901760
    %v3792 = vsub.f32 %v2845, %v3791
    %v3793 = vand.u32 %v3792, 4294901760
    %3794 = vmatprep.subr.mxu0 %v3793
    %v3795 = vand.u32 %v2844, 4294901760
    %v3796 = vsub.f32 %v2844, %v3795
    %v3797 = vand.u32 %v3796, 4294901760
    %3798 = vmatpush1.msra.mxu0 %v3797
    %v3799 = vand.u32 %v2847, 4294901760
    %v3800 = vsub.f32 %v2847, %v3799
    %v3801 = vand.u32 %v3800, 4294901760
    %3802 = vmatprep.subr.mxu0 %v3801
    %v3803 = vand.u32 %v2846, 4294901760
    %v3804 = vsub.f32 %v2846, %v3803
    %v3805 = vand.u32 %v3804, 4294901760
    %3806 = vmatpush1.msra.mxu0 %v3805
    %v3807 = vand.u32 %v2849, 4294901760
    %v3808 = vsub.f32 %v2849, %v3807
    %v3809 = vand.u32 %v3808, 4294901760
    %3810 = vmatprep.subr.mxu0 %v3809
    %v3811 = vand.u32 %v2848, 4294901760
    %v3812 = vsub.f32 %v2848, %v3811
    %v3813 = vand.u32 %v3812, 4294901760
    %3814 = vmatpush1.msra.mxu0 %v3813
    %v3815 = vand.u32 %v2851, 4294901760
    %v3816 = vsub.f32 %v2851, %v3815
    %v3817 = vand.u32 %v3816, 4294901760
    %3818 = vmatprep.subr.mxu0 %v3817
    %v3819 = vand.u32 %v2850, 4294901760
    %v3820 = vsub.f32 %v2850, %v3819
    %v3821 = vand.u32 %v3820, 4294901760
    %3822 = vmatpush1.msra.mxu0 %v3821
    %v3823 = vand.u32 %v2853, 4294901760
    %v3824 = vsub.f32 %v2853, %v3823
    %v3825 = vand.u32 %v3824, 4294901760
    %3826 = vmatprep.subr.mxu0 %v3825
    %v3827 = vand.u32 %v2852, 4294901760
    %v3828 = vsub.f32 %v2852, %v3827
    %v3829 = vand.u32 %v3828, 4294901760
    %3830 = vmatpush1.msra.mxu0 %v3829
    %v3831 = vand.u32 %v2855, 4294901760
    %v3832 = vsub.f32 %v2855, %v3831
    %v3833 = vand.u32 %v3832, 4294901760
    %3834 = vmatprep.subr.mxu0 %v3833
    %v3835 = vand.u32 %v2854, 4294901760
    %v3836 = vsub.f32 %v2854, %v3835
    %v3837 = vand.u32 %v3836, 4294901760
    %3838 = vmatpush1.msra.mxu0 %v3837
    %v3839 = vand.u32 %v2857, 4294901760
    %v3840 = vsub.f32 %v2857, %v3839
    %v3841 = vand.u32 %v3840, 4294901760
    %3842 = vmatprep.subr.mxu0 %v3841
    %v3843 = vand.u32 %v2856, 4294901760
    %v3844 = vsub.f32 %v2856, %v3843
    %v3845 = vand.u32 %v3844, 4294901760
    %3846 = vmatpush1.msra.mxu0 %v3845
    %v3847 = vand.u32 %v2859, 4294901760
    %v3848 = vsub.f32 %v2859, %v3847
    %v3849 = vand.u32 %v3848, 4294901760
    %3850 = vmatprep.subr.mxu0 %v3849
    %v3851 = vand.u32 %v2858, 4294901760
    %v3852 = vsub.f32 %v2858, %v3851
    %v3853 = vand.u32 %v3852, 4294901760
    %3854 = vmatpush1.msra.mxu0 %v3853
    %v3855 = vand.u32 %v2861, 4294901760
    %v3856 = vsub.f32 %v2861, %v3855
    %v3857 = vand.u32 %v3856, 4294901760
    %3858 = vmatprep.subr.mxu0 %v3857
    %v3859 = vand.u32 %v2860, 4294901760
    %v3860 = vsub.f32 %v2860, %v3859
    %v3861 = vand.u32 %v3860, 4294901760
    %3862 = vmatpush1.msra.mxu0 %v3861
    %v3863 = vand.u32 %v2863, 4294901760
    %v3864 = vsub.f32 %v2863, %v3863
    %v3865 = vand.u32 %v3864, 4294901760
    %3866 = vmatprep.subr.mxu0 %v3865
    %v3867 = vand.u32 %v2862, 4294901760
    %v3868 = vsub.f32 %v2862, %v3867
    %v3869 = vand.u32 %v3868, 4294901760
    %3870 = vmatpush1.msra.mxu0 %v3869
    %v3871 = vand.u32 %v2865, 4294901760
    %v3872 = vsub.f32 %v2865, %v3871
    %v3873 = vand.u32 %v3872, 4294901760
    %3874 = vmatprep.subr.mxu0 %v3873
    %v3875 = vand.u32 %v2864, 4294901760
    %v3876 = vsub.f32 %v2864, %v3875
    %v3877 = vand.u32 %v3876, 4294901760
    %3878 = vmatpush1.msra.mxu0 %v3877
    %v3879 = vand.u32 %v2867, 4294901760
    %v3880 = vsub.f32 %v2867, %v3879
    %v3881 = vand.u32 %v3880, 4294901760
    %3882 = vmatprep.subr.mxu0 %v3881
    %v3883 = vand.u32 %v2866, 4294901760
    %v3884 = vsub.f32 %v2866, %v3883
    %v3885 = vand.u32 %v3884, 4294901760
    %3886 = vmatpush1.msra.mxu0 %v3885
    %v3887 = vand.u32 %v2869, 4294901760
    %v3888 = vsub.f32 %v2869, %v3887
    %v3889 = vand.u32 %v3888, 4294901760
    %3890 = vmatprep.subr.mxu0 %v3889
    %v3891 = vand.u32 %v2868, 4294901760
    %v3892 = vsub.f32 %v2868, %v3891
    %v3893 = vand.u32 %v3892, 4294901760
    %3894 = vmatpush1.msra.mxu0 %v3893
    %v3895 = vand.u32 %v2871, 4294901760
    %v3896 = vsub.f32 %v2871, %v3895
    %v3897 = vand.u32 %v3896, 4294901760
    %3898 = vmatprep.subr.mxu0 %v3897
    %v3899 = vand.u32 %v2870, 4294901760
    %v3900 = vsub.f32 %v2870, %v3899
    %v3901 = vand.u32 %v3900, 4294901760
    %3902 = vmatpush1.msra.mxu0 %v3901
    %v3903 = vand.u32 %v2873, 4294901760
    %v3904 = vsub.f32 %v2873, %v3903
    %v3905 = vand.u32 %v3904, 4294901760
    %3906 = vmatprep.subr.mxu0 %v3905
    %v3907 = vand.u32 %v2872, 4294901760
    %v3908 = vsub.f32 %v2872, %v3907
    %v3909 = vand.u32 %v3908, 4294901760
    %3910 = vmatpush1.msra.mxu0 %v3909
    %v3911 = vand.u32 %v2875, 4294901760
    %v3912 = vsub.f32 %v2875, %v3911
    %v3913 = vand.u32 %v3912, 4294901760
    %3914 = vmatprep.subr.mxu0 %v3913
    %v3915 = vand.u32 %v2874, 4294901760
    %v3916 = vsub.f32 %v2874, %v3915
    %v3917 = vand.u32 %v3916, 4294901760
    %3918 = vmatpush1.msra.mxu0 %v3917
    %v3919 = vand.u32 %v2877, 4294901760
    %v3920 = vsub.f32 %v2877, %v3919
    %v3921 = vand.u32 %v3920, 4294901760
    %3922 = vmatprep.subr.mxu0 %v3921
    %v3923 = vand.u32 %v2876, 4294901760
    %v3924 = vsub.f32 %v2876, %v3923
    %v3925 = vand.u32 %v3924, 4294901760
    %3926 = vmatpush1.msra.mxu0 %v3925
    %v3927 = vand.u32 %v2879, 4294901760
    %v3928 = vsub.f32 %v2879, %v3927
    %v3929 = vand.u32 %v3928, 4294901760
    %3930 = vmatprep.subr.mxu0 %v3929
    %v3931 = vand.u32 %v2878, 4294901760
    %v3932 = vsub.f32 %v2878, %v3931
    %v3933 = vand.u32 %v3932, 4294901760
    %3934 = vmatpush1.msra.mxu0 %v3933
    %v3935 = vand.u32 %v2881, 4294901760
    %v3936 = vsub.f32 %v2881, %v3935
    %v3937 = vand.u32 %v3936, 4294901760
    %3938 = vmatprep.subr.mxu0 %v3937
    %v3939 = vand.u32 %v2880, 4294901760
    %v3940 = vsub.f32 %v2880, %v3939
    %v3941 = vand.u32 %v3940, 4294901760
    %3942 = vmatpush1.msra.mxu0 %v3941
    %v3943 = vand.u32 %v2883, 4294901760
    %v3944 = vsub.f32 %v2883, %v3943
    %v3945 = vand.u32 %v3944, 4294901760
    %3946 = vmatprep.subr.mxu0 %v3945
    %v3947 = vand.u32 %v2882, 4294901760
    %v3948 = vsub.f32 %v2882, %v3947
    %v3949 = vand.u32 %v3948, 4294901760
    %3950 = vmatpush1.msra.mxu0 %v3949
    %v3951 = vand.u32 %v2885, 4294901760
    %v3952 = vsub.f32 %v2885, %v3951
    %v3953 = vand.u32 %v3952, 4294901760
    %3954 = vmatprep.subr.mxu0 %v3953
    %v3955 = vand.u32 %v2884, 4294901760
    %v3956 = vsub.f32 %v2884, %v3955
    %v3957 = vand.u32 %v3956, 4294901760
    %3958 = vmatpush1.msra.mxu0 %v3957
    %v3959 = vand.u32 %v2887, 4294901760
    %v3960 = vsub.f32 %v2887, %v3959
    %v3961 = vand.u32 %v3960, 4294901760
    %3962 = vmatprep.subr.mxu0 %v3961
    %v3963 = vand.u32 %v2886, 4294901760
    %v3964 = vsub.f32 %v2886, %v3963
    %v3965 = vand.u32 %v3964, 4294901760
    %3966 = vmatpush1.msra.mxu0 %v3965
    %v3967 = vand.u32 %v2889, 4294901760
    %v3968 = vsub.f32 %v2889, %v3967
    %v3969 = vand.u32 %v3968, 4294901760
    %3970 = vmatprep.subr.mxu0 %v3969
    %v3971 = vand.u32 %v2888, 4294901760
    %v3972 = vsub.f32 %v2888, %v3971
    %v3973 = vand.u32 %v3972, 4294901760
    %3974 = vmatpush1.msra.mxu0 %v3973
    %v3975 = vand.u32 %v2891, 4294901760
    %v3976 = vsub.f32 %v2891, %v3975
    %v3977 = vand.u32 %v3976, 4294901760
    %3978 = vmatprep.subr.mxu0 %v3977
    %v3979 = vand.u32 %v2890, 4294901760
    %v3980 = vsub.f32 %v2890, %v3979
    %v3981 = vand.u32 %v3980, 4294901760
    %3982 = vmatpush1.msra.mxu0 %v3981
    %v3983 = vand.u32 %v2893, 4294901760
    %v3984 = vsub.f32 %v2893, %v3983
    %v3985 = vand.u32 %v3984, 4294901760
    %3986 = vmatprep.subr.mxu0 %v3985
    %v3987 = vand.u32 %v2892, 4294901760
    %v3988 = vsub.f32 %v2892, %v3987
    %v3989 = vand.u32 %v3988, 4294901760
    %3990 = vmatpush1.msra.mxu0 %v3989
    %v3991 = vand.u32 %v2895, 4294901760
    %v3992 = vsub.f32 %v2895, %v3991
    %v3993 = vand.u32 %v3992, 4294901760
    %3994 = vmatprep.subr.mxu0 %v3993
    %v3995 = vand.u32 %v2894, 4294901760
    %v3996 = vsub.f32 %v2894, %v3995
    %v3997 = vand.u32 %v3996, 4294901760
    %3998 = vmatpush1.msra.mxu0 %v3997
    %v3999 = vand.u32 %v2897, 4294901760
    %v4000 = vsub.f32 %v2897, %v3999
    %v4001 = vand.u32 %v4000, 4294901760
    %4002 = vmatprep.subr.mxu0 %v4001
    %v4003 = vand.u32 %v2896, 4294901760
    %v4004 = vsub.f32 %v2896, %v4003
    %v4005 = vand.u32 %v4004, 4294901760
    %4006 = vmatpush1.msra.mxu0 %v4005
    %v4007 = vand.u32 %v2899, 4294901760
    %v4008 = vsub.f32 %v2899, %v4007
    %v4009 = vand.u32 %v4008, 4294901760
    %4010 = vmatprep.subr.mxu0 %v4009
    %v4011 = vand.u32 %v2898, 4294901760
    %v4012 = vsub.f32 %v2898, %v4011
    %v4013 = vand.u32 %v4012, 4294901760
    %4014 = vmatpush1.msra.mxu0 %v4013
    %v4015 = vand.u32 %v2901, 4294901760
    %v4016 = vsub.f32 %v2901, %v4015
    %v4017 = vand.u32 %v4016, 4294901760
    %4018 = vmatprep.subr.mxu0 %v4017
    %v4019 = vand.u32 %v2900, 4294901760
    %v4020 = vsub.f32 %v2900, %v4019
    %v4021 = vand.u32 %v4020, 4294901760
    %4022 = vmatpush1.msra.mxu0 %v4021
    %v4023 = vand.u32 %v2903, 4294901760
    %v4024 = vsub.f32 %v2903, %v4023
    %v4025 = vand.u32 %v4024, 4294901760
    %4026 = vmatprep.subr.mxu0 %v4025
    %v4027 = vand.u32 %v2902, 4294901760
    %v4028 = vsub.f32 %v2902, %v4027
    %v4029 = vand.u32 %v4028, 4294901760
    %4030 = vmatpush1.msra.mxu0 %v4029
    %v4031 = vand.u32 %v2905, 4294901760
    %v4032 = vsub.f32 %v2905, %v4031
    %v4033 = vand.u32 %v4032, 4294901760
    %4034 = vmatprep.subr.mxu0 %v4033
    %v4035 = vand.u32 %v2904, 4294901760
    %v4036 = vsub.f32 %v2904, %v4035
    %v4037 = vand.u32 %v4036, 4294901760
    %4038 = vmatpush1.msra.mxu0 %v4037
    %v4039 = vand.u32 %v2907, 4294901760
    %v4040 = vsub.f32 %v2907, %v4039
    %v4041 = vand.u32 %v4040, 4294901760
    %4042 = vmatprep.subr.mxu0 %v4041
    %v4043 = vand.u32 %v2906, 4294901760
    %v4044 = vsub.f32 %v2906, %v4043
    %v4045 = vand.u32 %v4044, 4294901760
    %4046 = vmatpush1.msra.mxu0 %v4045
    %v4047 = vand.u32 %v2843, 4294901760
    %4048 = vmatprep.mubr.f32.mxu0 %v4047
    %v4049 = vand.u32 %v2842, 4294901760
    %4050 = vmatmul.mubr.f32.gmra.mrb[0].mxu0 %v4049
    %v4051 = vpop.f32.mrb[0].mxu0
    %v4052 = vadd.f32 %v3787, %v4051
    %v4053 = vpop.f32.mrb[0].mxu0
    %v4054 = vadd.f32 %v3789, %v4053
    %4055 = vdwg.mxu0
    %v4056 = vand.u32 %v2845, 4294901760
    %4057 = vmatprep.subr.mxu0 %v4056
    %v4058 = vand.u32 %v2844, 4294901760
    %4059 = vmatpush1.msra.mxu0 %v4058
    %v4060 = vand.u32 %v2847, 4294901760
    %4061 = vmatprep.subr.mxu0 %v4060
    %v4062 = vand.u32 %v2846, 4294901760
    %4063 = vmatpush1.msra.mxu0 %v4062
    %v4064 = vand.u32 %v2849, 4294901760
    %4065 = vmatprep.subr.mxu0 %v4064
    %v4066 = vand.u32 %v2848, 4294901760
    %4067 = vmatpush1.msra.mxu0 %v4066
    %v4068 = vand.u32 %v2851, 4294901760
    %4069 = vmatprep.subr.mxu0 %v4068
    %v4070 = vand.u32 %v2850, 4294901760
    %4071 = vmatpush1.msra.mxu0 %v4070
    %v4072 = vand.u32 %v2853, 4294901760
    %4073 = vmatprep.subr.mxu0 %v4072
    %v4074 = vand.u32 %v2852, 4294901760
    %4075 = vmatpush1.msra.mxu0 %v4074
    %v4076 = vand.u32 %v2855, 4294901760
    %4077 = vmatprep.subr.mxu0 %v4076
    %v4078 = vand.u32 %v2854, 4294901760
    %4079 = vmatpush1.msra.mxu0 %v4078
    %v4080 = vand.u32 %v2857, 4294901760
    %4081 = vmatprep.subr.mxu0 %v4080
    %v4082 = vand.u32 %v2856, 4294901760
    %4083 = vmatpush1.msra.mxu0 %v4082
    %v4084 = vand.u32 %v2859, 4294901760
    %4085 = vmatprep.subr.mxu0 %v4084
    %v4086 = vand.u32 %v2858, 4294901760
    %4087 = vmatpush1.msra.mxu0 %v4086
    %v4088 = vand.u32 %v2861, 4294901760
    %4089 = vmatprep.subr.mxu0 %v4088
    %v4090 = vand.u32 %v2860, 4294901760
    %4091 = vmatpush1.msra.mxu0 %v4090
    %v4092 = vand.u32 %v2863, 4294901760
    %4093 = vmatprep.subr.mxu0 %v4092
    %v4094 = vand.u32 %v2862, 4294901760
    %4095 = vmatpush1.msra.mxu0 %v4094
    %v4096 = vand.u32 %v2865, 4294901760
    %4097 = vmatprep.subr.mxu0 %v4096
    %v4098 = vand.u32 %v2864, 4294901760
    %4099 = vmatpush1.msra.mxu0 %v4098
    %v4100 = vand.u32 %v2867, 4294901760
    %4101 = vmatprep.subr.mxu0 %v4100
    %v4102 = vand.u32 %v2866, 4294901760
    %4103 = vmatpush1.msra.mxu0 %v4102
    %v4104 = vand.u32 %v2869, 4294901760
    %4105 = vmatprep.subr.mxu0 %v4104
    %v4106 = vand.u32 %v2868, 4294901760
    %4107 = vmatpush1.msra.mxu0 %v4106
    %v4108 = vand.u32 %v2871, 4294901760
    %4109 = vmatprep.subr.mxu0 %v4108
    %v4110 = vand.u32 %v2870, 4294901760
    %4111 = vmatpush1.msra.mxu0 %v4110
    %v4112 = vand.u32 %v2873, 4294901760
    %4113 = vmatprep.subr.mxu0 %v4112
    %v4114 = vand.u32 %v2872, 4294901760
    %4115 = vmatpush1.msra.mxu0 %v4114
    %v4116 = vand.u32 %v2875, 4294901760
    %4117 = vmatprep.subr.mxu0 %v4116
    %v4118 = vand.u32 %v2874, 4294901760
    %4119 = vmatpush1.msra.mxu0 %v4118
    %v4120 = vand.u32 %v2877, 4294901760
    %4121 = vmatprep.subr.mxu0 %v4120
    %v4122 = vand.u32 %v2876, 4294901760
    %4123 = vmatpush1.msra.mxu0 %v4122
    %v4124 = vand.u32 %v2879, 4294901760
    %4125 = vmatprep.subr.mxu0 %v4124
    %v4126 = vand.u32 %v2878, 4294901760
    %4127 = vmatpush1.msra.mxu0 %v4126
    %v4128 = vand.u32 %v2881, 4294901760
    %4129 = vmatprep.subr.mxu0 %v4128
    %v4130 = vand.u32 %v2880, 4294901760
    %4131 = vmatpush1.msra.mxu0 %v4130
    %v4132 = vand.u32 %v2883, 4294901760
    %4133 = vmatprep.subr.mxu0 %v4132
    %v4134 = vand.u32 %v2882, 4294901760
    %4135 = vmatpush1.msra.mxu0 %v4134
    %v4136 = vand.u32 %v2885, 4294901760
    %4137 = vmatprep.subr.mxu0 %v4136
    %v4138 = vand.u32 %v2884, 4294901760
    %4139 = vmatpush1.msra.mxu0 %v4138
    %v4140 = vand.u32 %v2887, 4294901760
    %4141 = vmatprep.subr.mxu0 %v4140
    %v4142 = vand.u32 %v2886, 4294901760
    %4143 = vmatpush1.msra.mxu0 %v4142
    %v4144 = vand.u32 %v2889, 4294901760
    %4145 = vmatprep.subr.mxu0 %v4144
    %v4146 = vand.u32 %v2888, 4294901760
    %4147 = vmatpush1.msra.mxu0 %v4146
    %v4148 = vand.u32 %v2891, 4294901760
    %4149 = vmatprep.subr.mxu0 %v4148
    %v4150 = vand.u32 %v2890, 4294901760
    %4151 = vmatpush1.msra.mxu0 %v4150
    %v4152 = vand.u32 %v2893, 4294901760
    %4153 = vmatprep.subr.mxu0 %v4152
    %v4154 = vand.u32 %v2892, 4294901760
    %4155 = vmatpush1.msra.mxu0 %v4154
    %v4156 = vand.u32 %v2895, 4294901760
    %4157 = vmatprep.subr.mxu0 %v4156
    %v4158 = vand.u32 %v2894, 4294901760
    %4159 = vmatpush1.msra.mxu0 %v4158
    %v4160 = vand.u32 %v2897, 4294901760
    %4161 = vmatprep.subr.mxu0 %v4160
    %v4162 = vand.u32 %v2896, 4294901760
    %4163 = vmatpush1.msra.mxu0 %v4162
    %v4164 = vand.u32 %v2899, 4294901760
    %4165 = vmatprep.subr.mxu0 %v4164
    %v4166 = vand.u32 %v2898, 4294901760
    %4167 = vmatpush1.msra.mxu0 %v4166
    %v4168 = vand.u32 %v2901, 4294901760
    %4169 = vmatprep.subr.mxu0 %v4168
    %v4170 = vand.u32 %v2900, 4294901760
    %4171 = vmatpush1.msra.mxu0 %v4170
    %v4172 = vand.u32 %v2903, 4294901760
    %4173 = vmatprep.subr.mxu0 %v4172
    %v4174 = vand.u32 %v2902, 4294901760
    %4175 = vmatpush1.msra.mxu0 %v4174
    %v4176 = vand.u32 %v2905, 4294901760
    %4177 = vmatprep.subr.mxu0 %v4176
    %v4178 = vand.u32 %v2904, 4294901760
    %4179 = vmatpush1.msra.mxu0 %v4178
    %v4180 = vand.u32 %v2907, 4294901760
    %4181 = vmatprep.subr.mxu0 %v4180
    %v4182 = vand.u32 %v2906, 4294901760
    %4183 = vmatpush1.msra.mxu0 %v4182
    %v4184 = vand.u32 %v2843, 4294901760
    %4185 = vmatprep.mubr.f32.mxu0 %v4184
    %v4186 = vand.u32 %v2842, 4294901760
    %4187 = vmatmul.mubr.f32.gmra.mrb[0].mxu0 %v4186
    %v4188 = vpop.f32.mrb[0].mxu0
    %v4189 = vadd.f32 %v4052, %v4188
    %v4190 = vpop.f32.mrb[0].mxu0
    %v4191 = vadd.f32 %v4054, %v4190
    %4192 = vdwg.mxu0
    %v4193 = vld [vmem:[#allocation7] sm:$0xff]
    %v4194 = vld [vmem:[#allocation7 + $0x8] sm:$0xff]
    %v4195 = vld [vmem:[#allocation13] sm:$0xff]
    %v4196 = vld [vmem:[#allocation13 + $0x8] sm:$0xff]
    %v4197 = vld [vmem:[#allocation13 + $0x10] sm:$0xff]
    %v4198 = vld [vmem:[#allocation13 + $0x18] sm:$0xff]
    %v4199 = vld [vmem:[#allocation13 + $0x20] sm:$0xff]
    %v4200 = vld [vmem:[#allocation13 + $0x28] sm:$0xff]
    %v4201 = vld [vmem:[#allocation13 + $0x30] sm:$0xff]
    %v4202 = vld [vmem:[#allocation13 + $0x38] sm:$0xff]
    %v4203 = vld [vmem:[#allocation13 + $0x40] sm:$0xff]
    %v4204 = vld [vmem:[#allocation13 + $0x48] sm:$0xff]
    %v4205 = vld [vmem:[#allocation13 + $0x50] sm:$0xff]
    %v4206 = vld [vmem:[#allocation13 + $0x58] sm:$0xff]
    %v4207 = vld [vmem:[#allocation13 + $0x60] sm:$0xff]
    %v4208 = vld [vmem:[#allocation13 + $0x68] sm:$0xff]
    %v4209 = vld [vmem:[#allocation13 + $0x70] sm:$0xff]
    %v4210 = vld [vmem:[#allocation13 + $0x78] sm:$0xff]
    %v4211 = vld [vmem:[#allocation13 + $0x80] sm:$0xff]
    %v4212 = vld [vmem:[#allocation13 + $0x88] sm:$0xff]
    %v4213 = vld [vmem:[#allocation13 + $0x90] sm:$0xff]
    %v4214 = vld [vmem:[#allocation13 + $0x98] sm:$0xff]
    %v4215 = vld [vmem:[#allocation13 + $0xa0] sm:$0xff]
    %v4216 = vld [vmem:[#allocation13 + $0xa8] sm:$0xff]
    %v4217 = vld [vmem:[#allocation13 + $0xb0] sm:$0xff]
    %v4218 = vld [vmem:[#allocation13 + $0xb8] sm:$0xff]
    %v4219 = vld [vmem:[#allocation13 + $0xc0] sm:$0xff]
    %v4220 = vld [vmem:[#allocation13 + $0xc8] sm:$0xff]
    %v4221 = vld [vmem:[#allocation13 + $0xd0] sm:$0xff]
    %v4222 = vld [vmem:[#allocation13 + $0xd8] sm:$0xff]
    %v4223 = vld [vmem:[#allocation13 + $0xe0] sm:$0xff]
    %v4224 = vld [vmem:[#allocation13 + $0xe8] sm:$0xff]
    %v4225 = vld [vmem:[#allocation13 + $0xf0] sm:$0xff]
    %v4226 = vld [vmem:[#allocation13 + $0xf8] sm:$0xff]
    %v4227 = vld [vmem:[#allocation13 + $0x100] sm:$0xff]
    %v4228 = vld [vmem:[#allocation13 + $0x108] sm:$0xff]
    %v4229 = vld [vmem:[#allocation13 + $0x110] sm:$0xff]
    %v4230 = vld [vmem:[#allocation13 + $0x118] sm:$0xff]
    %v4231 = vld [vmem:[#allocation13 + $0x120] sm:$0xff]
    %v4232 = vld [vmem:[#allocation13 + $0x128] sm:$0xff]
    %v4233 = vld [vmem:[#allocation13 + $0x130] sm:$0xff]
    %v4234 = vld [vmem:[#allocation13 + $0x138] sm:$0xff]
    %v4235 = vld [vmem:[#allocation13 + $0x140] sm:$0xff]
    %v4236 = vld [vmem:[#allocation13 + $0x148] sm:$0xff]
    %v4237 = vld [vmem:[#allocation13 + $0x150] sm:$0xff]
    %v4238 = vld [vmem:[#allocation13 + $0x158] sm:$0xff]
    %v4239 = vld [vmem:[#allocation13 + $0x160] sm:$0xff]
    %v4240 = vld [vmem:[#allocation13 + $0x168] sm:$0xff]
    %v4241 = vld [vmem:[#allocation13 + $0x170] sm:$0xff]
    %v4242 = vld [vmem:[#allocation13 + $0x178] sm:$0xff]
    %v4243 = vld [vmem:[#allocation13 + $0x180] sm:$0xff]
    %v4244 = vld [vmem:[#allocation13 + $0x188] sm:$0xff]
    %v4245 = vld [vmem:[#allocation13 + $0x190] sm:$0xff]
    %v4246 = vld [vmem:[#allocation13 + $0x198] sm:$0xff]
    %v4247 = vld [vmem:[#allocation13 + $0x1a0] sm:$0xff]
    %v4248 = vld [vmem:[#allocation13 + $0x1a8] sm:$0xff]
    %v4249 = vld [vmem:[#allocation13 + $0x1b0] sm:$0xff]
    %v4250 = vld [vmem:[#allocation13 + $0x1b8] sm:$0xff]
    %v4251 = vld [vmem:[#allocation13 + $0x1c0] sm:$0xff]
    %v4252 = vld [vmem:[#allocation13 + $0x1c8] sm:$0xff]
    %v4253 = vld [vmem:[#allocation13 + $0x1d0] sm:$0xff]
    %v4254 = vld [vmem:[#allocation13 + $0x1d8] sm:$0xff]
    %v4255 = vld [vmem:[#allocation13 + $0x1e0] sm:$0xff]
    %v4256 = vld [vmem:[#allocation13 + $0x1e8] sm:$0xff]
    %v4257 = vld [vmem:[#allocation13 + $0x1f0] sm:$0xff]
    %v4258 = vld [vmem:[#allocation13 + $0x1f8] sm:$0xff]
    %v4259 = vld [vmem:[#allocation13 + $0x200] sm:$0xff]
    %v4260 = vld [vmem:[#allocation13 + $0x208] sm:$0xff]
    %v4261 = vld [vmem:[#allocation13 + $0x210] sm:$0xff]
    %v4262 = vld [vmem:[#allocation13 + $0x218] sm:$0xff]
    %v4263 = vld [vmem:[#allocation13 + $0x220] sm:$0xff]
    %v4264 = vld [vmem:[#allocation13 + $0x228] sm:$0xff]
    %v4265 = vld [vmem:[#allocation13 + $0x230] sm:$0xff]
    %v4266 = vld [vmem:[#allocation13 + $0x238] sm:$0xff]
    %v4267 = vld [vmem:[#allocation13 + $0x240] sm:$0xff]
    %v4268 = vld [vmem:[#allocation13 + $0x248] sm:$0xff]
    %v4269 = vld [vmem:[#allocation13 + $0x250] sm:$0xff]
    %v4270 = vld [vmem:[#allocation13 + $0x258] sm:$0xff]
    %v4271 = vld [vmem:[#allocation13 + $0x260] sm:$0xff]
    %v4272 = vld [vmem:[#allocation13 + $0x268] sm:$0xff]
    %v4273 = vld [vmem:[#allocation13 + $0x270] sm:$0xff]
    %v4274 = vld [vmem:[#allocation13 + $0x278] sm:$0xff]
    %v4275 = vld [vmem:[#allocation13 + $0x280] sm:$0xff]
    %v4276 = vld [vmem:[#allocation13 + $0x288] sm:$0xff]
    %v4277 = vld [vmem:[#allocation13 + $0x290] sm:$0xff]
    %v4278 = vld [vmem:[#allocation13 + $0x298] sm:$0xff]
    %v4279 = vld [vmem:[#allocation13 + $0x2a0] sm:$0xff]
    %v4280 = vld [vmem:[#allocation13 + $0x2a8] sm:$0xff]
    %v4281 = vld [vmem:[#allocation13 + $0x2b0] sm:$0xff]
    %v4282 = vld [vmem:[#allocation13 + $0x2b8] sm:$0xff]
    %v4283 = vld [vmem:[#allocation13 + $0x2c0] sm:$0xff]
    %v4284 = vld [vmem:[#allocation13 + $0x2c8] sm:$0xff]
    %v4285 = vld [vmem:[#allocation13 + $0x2d0] sm:$0xff]
    %v4286 = vld [vmem:[#allocation13 + $0x2d8] sm:$0xff]
    %v4287 = vld [vmem:[#allocation13 + $0x2e0] sm:$0xff]
    %v4288 = vld [vmem:[#allocation13 + $0x2e8] sm:$0xff]
    %v4289 = vld [vmem:[#allocation13 + $0x2f0] sm:$0xff]
    %v4290 = vld [vmem:[#allocation13 + $0x2f8] sm:$0xff]
    %v4291 = vld [vmem:[#allocation13 + $0x300] sm:$0xff]
    %v4292 = vld [vmem:[#allocation13 + $0x308] sm:$0xff]
    %v4293 = vld [vmem:[#allocation13 + $0x310] sm:$0xff]
    %v4294 = vld [vmem:[#allocation13 + $0x318] sm:$0xff]
    %v4295 = vld [vmem:[#allocation13 + $0x320] sm:$0xff]
    %v4296 = vld [vmem:[#allocation13 + $0x328] sm:$0xff]
    %v4297 = vld [vmem:[#allocation13 + $0x330] sm:$0xff]
    %v4298 = vld [vmem:[#allocation13 + $0x338] sm:$0xff]
    %v4299 = vld [vmem:[#allocation13 + $0x340] sm:$0xff]
    %v4300 = vld [vmem:[#allocation13 + $0x348] sm:$0xff]
    %v4301 = vld [vmem:[#allocation13 + $0x350] sm:$0xff]
    %v4302 = vld [vmem:[#allocation13 + $0x358] sm:$0xff]
    %v4303 = vld [vmem:[#allocation13 + $0x360] sm:$0xff]
    %v4304 = vld [vmem:[#allocation13 + $0x368] sm:$0xff]
    %v4305 = vld [vmem:[#allocation13 + $0x370] sm:$0xff]
    %v4306 = vld [vmem:[#allocation13 + $0x378] sm:$0xff]
    %v4307 = vld [vmem:[#allocation13 + $0x380] sm:$0xff]
    %v4308 = vld [vmem:[#allocation13 + $0x388] sm:$0xff]
    %v4309 = vld [vmem:[#allocation13 + $0x390] sm:$0xff]
    %v4310 = vld [vmem:[#allocation13 + $0x398] sm:$0xff]
    %v4311 = vld [vmem:[#allocation13 + $0x3a0] sm:$0xff]
    %v4312 = vld [vmem:[#allocation13 + $0x3a8] sm:$0xff]
    %v4313 = vld [vmem:[#allocation13 + $0x3b0] sm:$0xff]
    %v4314 = vld [vmem:[#allocation13 + $0x3b8] sm:$0xff]
    %v4315 = vld [vmem:[#allocation13 + $0x3c0] sm:$0xff]
    %v4316 = vld [vmem:[#allocation13 + $0x3c8] sm:$0xff]
    %v4317 = vld [vmem:[#allocation13 + $0x3d0] sm:$0xff]
    %v4318 = vld [vmem:[#allocation13 + $0x3d8] sm:$0xff]
    %v4319 = vld [vmem:[#allocation13 + $0x3e0] sm:$0xff]
    %v4320 = vld [vmem:[#allocation13 + $0x3e8] sm:$0xff]
    %v4321 = vld [vmem:[#allocation13 + $0x3f0] sm:$0xff]
    %v4322 = vld [vmem:[#allocation13 + $0x3f8] sm:$0xff]
    %v4323 = vld [vmem:[#allocation13 + $0x400] sm:$0xff]
    %v4324 = vld [vmem:[#allocation13 + $0x408] sm:$0xff]
    %v4325 = vld [vmem:[#allocation13 + $0x410] sm:$0xff]
    %v4326 = vld [vmem:[#allocation13 + $0x418] sm:$0xff]
    %v4327 = vld [vmem:[#allocation13 + $0x420] sm:$0xff]
    %v4328 = vld [vmem:[#allocation13 + $0x428] sm:$0xff]
    %v4329 = vld [vmem:[#allocation13 + $0x430] sm:$0xff]
    %v4330 = vld [vmem:[#allocation13 + $0x438] sm:$0xff]
    %v4331 = vld [vmem:[#allocation13 + $0x440] sm:$0xff]
    %v4332 = vld [vmem:[#allocation13 + $0x448] sm:$0xff]
    %v4333 = vld [vmem:[#allocation13 + $0x450] sm:$0xff]
    %v4334 = vld [vmem:[#allocation13 + $0x458] sm:$0xff]
    %v4335 = vld [vmem:[#allocation13 + $0x460] sm:$0xff]
    %v4336 = vld [vmem:[#allocation13 + $0x468] sm:$0xff]
    %v4337 = vld [vmem:[#allocation13 + $0x470] sm:$0xff]
    %v4338 = vld [vmem:[#allocation13 + $0x478] sm:$0xff]
    %v4339 = vld [vmem:[#allocation13 + $0x480] sm:$0xff]
    %v4340 = vld [vmem:[#allocation13 + $0x488] sm:$0xff]
    %v4341 = vld [vmem:[#allocation13 + $0x490] sm:$0xff]
    %v4342 = vld [vmem:[#allocation13 + $0x498] sm:$0xff]
    %v4343 = vld [vmem:[#allocation13 + $0x4a0] sm:$0xff]
    %v4344 = vld [vmem:[#allocation13 + $0x4a8] sm:$0xff]
    %v4345 = vld [vmem:[#allocation13 + $0x4b0] sm:$0xff]
    %v4346 = vld [vmem:[#allocation13 + $0x4b8] sm:$0xff]
    %v4347 = vld [vmem:[#allocation13 + $0x4c0] sm:$0xff]
    %v4348 = vld [vmem:[#allocation13 + $0x4c8] sm:$0xff]
    %v4349 = vld [vmem:[#allocation13 + $0x4d0] sm:$0xff]
    %v4350 = vld [vmem:[#allocation13 + $0x4d8] sm:$0xff]
    %v4351 = vld [vmem:[#allocation13 + $0x4e0] sm:$0xff]
    %v4352 = vld [vmem:[#allocation13 + $0x4e8] sm:$0xff]
    %v4353 = vld [vmem:[#allocation13 + $0x4f0] sm:$0xff]
    %v4354 = vld [vmem:[#allocation13 + $0x4f8] sm:$0xff]
    %v4355 = vld [vmem:[#allocation13 + $0x500] sm:$0xff]
    %v4356 = vld [vmem:[#allocation13 + $0x508] sm:$0xff]
    %v4357 = vld [vmem:[#allocation13 + $0x510] sm:$0xff]
    %v4358 = vld [vmem:[#allocation13 + $0x518] sm:$0xff]
    %v4359 = vld [vmem:[#allocation13 + $0x520] sm:$0xff]
    %v4360 = vld [vmem:[#allocation13 + $0x528] sm:$0xff]
    %v4361 = vld [vmem:[#allocation13 + $0x530] sm:$0xff]
    %v4362 = vld [vmem:[#allocation13 + $0x538] sm:$0xff]
    %v4363 = vld [vmem:[#allocation13 + $0x540] sm:$0xff]
    %v4364 = vld [vmem:[#allocation13 + $0x548] sm:$0xff]
    %v4365 = vld [vmem:[#allocation13 + $0x550] sm:$0xff]
    %v4366 = vld [vmem:[#allocation13 + $0x558] sm:$0xff]
    %v4367 = vld [vmem:[#allocation13 + $0x560] sm:$0xff]
    %v4368 = vld [vmem:[#allocation13 + $0x568] sm:$0xff]
    %v4369 = vld [vmem:[#allocation13 + $0x570] sm:$0xff]
    %v4370 = vld [vmem:[#allocation13 + $0x578] sm:$0xff]
    %v4371 = vld [vmem:[#allocation13 + $0x580] sm:$0xff]
    %v4372 = vld [vmem:[#allocation13 + $0x588] sm:$0xff]
    %v4373 = vld [vmem:[#allocation13 + $0x590] sm:$0xff]
    %v4374 = vld [vmem:[#allocation13 + $0x598] sm:$0xff]
    %v4375 = vld [vmem:[#allocation13 + $0x5a0] sm:$0xff]
    %v4376 = vld [vmem:[#allocation13 + $0x5a8] sm:$0xff]
    %v4377 = vld [vmem:[#allocation13 + $0x5b0] sm:$0xff]
    %v4378 = vld [vmem:[#allocation13 + $0x5b8] sm:$0xff]
    %v4379 = vld [vmem:[#allocation13 + $0x5c0] sm:$0xff]
    %v4380 = vld [vmem:[#allocation13 + $0x5c8] sm:$0xff]
    %v4381 = vld [vmem:[#allocation13 + $0x5d0] sm:$0xff]
    %v4382 = vld [vmem:[#allocation13 + $0x5d8] sm:$0xff]
    %v4383 = vld [vmem:[#allocation13 + $0x5e0] sm:$0xff]
    %v4384 = vld [vmem:[#allocation13 + $0x5e8] sm:$0xff]
    %v4385 = vld [vmem:[#allocation13 + $0x5f0] sm:$0xff]
    %v4386 = vld [vmem:[#allocation13 + $0x5f8] sm:$0xff]
    %v4387 = vld [vmem:[#allocation13 + $0x600] sm:$0xff]
    %v4388 = vld [vmem:[#allocation13 + $0x608] sm:$0xff]
    %v4389 = vld [vmem:[#allocation13 + $0x610] sm:$0xff]
    %v4390 = vld [vmem:[#allocation13 + $0x618] sm:$0xff]
    %v4391 = vld [vmem:[#allocation13 + $0x620] sm:$0xff]
    %v4392 = vld [vmem:[#allocation13 + $0x628] sm:$0xff]
    %v4393 = vld [vmem:[#allocation13 + $0x630] sm:$0xff]
    %v4394 = vld [vmem:[#allocation13 + $0x638] sm:$0xff]
    %v4395 = vld [vmem:[#allocation13 + $0x640] sm:$0xff]
    %v4396 = vld [vmem:[#allocation13 + $0x648] sm:$0xff]
    %v4397 = vld [vmem:[#allocation13 + $0x650] sm:$0xff]
    %v4398 = vld [vmem:[#allocation13 + $0x658] sm:$0xff]
    %v4399 = vld [vmem:[#allocation13 + $0x660] sm:$0xff]
    %v4400 = vld [vmem:[#allocation13 + $0x668] sm:$0xff]
    %v4401 = vld [vmem:[#allocation13 + $0x670] sm:$0xff]
    %v4402 = vld [vmem:[#allocation13 + $0x678] sm:$0xff]
    %v4403 = vld [vmem:[#allocation13 + $0x680] sm:$0xff]
    %v4404 = vld [vmem:[#allocation13 + $0x688] sm:$0xff]
    %v4405 = vld [vmem:[#allocation13 + $0x690] sm:$0xff]
    %v4406 = vld [vmem:[#allocation13 + $0x698] sm:$0xff]
    %v4407 = vld [vmem:[#allocation13 + $0x6a0] sm:$0xff]
    %v4408 = vld [vmem:[#allocation13 + $0x6a8] sm:$0xff]
    %v4409 = vld [vmem:[#allocation13 + $0x6b0] sm:$0xff]
    %v4410 = vld [vmem:[#allocation13 + $0x6b8] sm:$0xff]
    %v4411 = vld [vmem:[#allocation13 + $0x6c0] sm:$0xff]
    %v4412 = vld [vmem:[#allocation13 + $0x6c8] sm:$0xff]
    %v4413 = vld [vmem:[#allocation13 + $0x6d0] sm:$0xff]
    %v4414 = vld [vmem:[#allocation13 + $0x6d8] sm:$0xff]
    %v4415 = vld [vmem:[#allocation13 + $0x6e0] sm:$0xff]
    %v4416 = vld [vmem:[#allocation13 + $0x6e8] sm:$0xff]
    %v4417 = vld [vmem:[#allocation13 + $0x6f0] sm:$0xff]
    %v4418 = vld [vmem:[#allocation13 + $0x6f8] sm:$0xff]
    %v4419 = vld [vmem:[#allocation13 + $0x700] sm:$0xff]
    %v4420 = vld [vmem:[#allocation13 + $0x708] sm:$0xff]
    %v4421 = vld [vmem:[#allocation13 + $0x710] sm:$0xff]
    %v4422 = vld [vmem:[#allocation13 + $0x718] sm:$0xff]
    %v4423 = vld [vmem:[#allocation13 + $0x720] sm:$0xff]
    %v4424 = vld [vmem:[#allocation13 + $0x728] sm:$0xff]
    %v4425 = vld [vmem:[#allocation13 + $0x730] sm:$0xff]
    %v4426 = vld [vmem:[#allocation13 + $0x738] sm:$0xff]
    %v4427 = vld [vmem:[#allocation13 + $0x740] sm:$0xff]
    %v4428 = vld [vmem:[#allocation13 + $0x748] sm:$0xff]
    %v4429 = vld [vmem:[#allocation13 + $0x750] sm:$0xff]
    %v4430 = vld [vmem:[#allocation13 + $0x758] sm:$0xff]
    %v4431 = vld [vmem:[#allocation13 + $0x760] sm:$0xff]
    %v4432 = vld [vmem:[#allocation13 + $0x768] sm:$0xff]
    %v4433 = vld [vmem:[#allocation13 + $0x770] sm:$0xff]
    %v4434 = vld [vmem:[#allocation13 + $0x778] sm:$0xff]
    %v4435 = vld [vmem:[#allocation13 + $0x780] sm:$0xff]
    %v4436 = vld [vmem:[#allocation13 + $0x788] sm:$0xff]
    %v4437 = vld [vmem:[#allocation13 + $0x790] sm:$0xff]
    %v4438 = vld [vmem:[#allocation13 + $0x798] sm:$0xff]
    %v4439 = vld [vmem:[#allocation13 + $0x7a0] sm:$0xff]
    %v4440 = vld [vmem:[#allocation13 + $0x7a8] sm:$0xff]
    %v4441 = vld [vmem:[#allocation13 + $0x7b0] sm:$0xff]
    %v4442 = vld [vmem:[#allocation13 + $0x7b8] sm:$0xff]
    %v4443 = vld [vmem:[#allocation13 + $0x7c0] sm:$0xff]
    %v4444 = vld [vmem:[#allocation13 + $0x7c8] sm:$0xff]
    %v4445 = vld [vmem:[#allocation13 + $0x7d0] sm:$0xff]
    %v4446 = vld [vmem:[#allocation13 + $0x7d8] sm:$0xff]
    %v4447 = vld [vmem:[#allocation13 + $0x7e0] sm:$0xff]
    %v4448 = vld [vmem:[#allocation13 + $0x7e8] sm:$0xff]
    %v4449 = vld [vmem:[#allocation13 + $0x7f0] sm:$0xff]
    %v4450 = vld [vmem:[#allocation13 + $0x7f8] sm:$0xff]
    %v4451 = vstv %s130
    %v4454 = vcombine.high %v4193, %v4193
    %v4456 = vunpack.c.l.s4 1983009808
    %v4457 = vunpack.c.0.s8 %v4456
    %v4458 = vlaneseq
    %v4459 = vshrl.u32 %v4458, 7
    %v4460 = vsub.s32 %v4457, %v4459
    %v4461 = vrot.slane %v4193, %v4460
    %v4463 = vunpack.c.l.s4 1983009808
    %v4464 = vunpack.c.0.s8 %v4463
    %v4465 = vlaneseq
    %v4466 = vshrl.u32 %v4465, 7
    %v4467 = vsub.s32 %v4464, %v4466
    %v4468 = vrot.slane %v4454, %v4467
    %v4469 = vcombine.high %v4461, %v4461
    %v4470 = vcombine.high %v4468, %v4468
    %v4471 = vcombine.high %v4194, %v4194
    %v4473 = vunpack.c.l.s4 1983009808
    %v4474 = vunpack.c.0.s8 %v4473
    %v4475 = vlaneseq
    %v4476 = vshrl.u32 %v4475, 7
    %v4477 = vsub.s32 %v4474, %v4476
    %v4478 = vrot.slane %v4194, %v4477
    %v4480 = vunpack.c.l.s4 1983009808
    %v4481 = vunpack.c.0.s8 %v4480
    %v4482 = vlaneseq
    %v4483 = vshrl.u32 %v4482, 7
    %v4484 = vsub.s32 %v4481, %v4483
    %v4485 = vrot.slane %v4471, %v4484
    %v4486 = vcombine.high %v4478, %v4478
    %v4487 = vcombine.high %v4485, %v4485
    %v4496 = vand.u32 %v4196, 4294901760
    %4497 = vmatprep.subr.mxu0 %v4496
    %v4498 = vand.u32 %v4195, 4294901760
    %4499 = vmatpush1.msra.mxu0 %v4498
    %v4500 = vand.u32 %v4198, 4294901760
    %4501 = vmatprep.subr.mxu0 %v4500
    %v4502 = vand.u32 %v4197, 4294901760
    %4503 = vmatpush1.msra.mxu0 %v4502
    %v4504 = vand.u32 %v4200, 4294901760
    %4505 = vmatprep.subr.mxu0 %v4504
    %v4506 = vand.u32 %v4199, 4294901760
    %4507 = vmatpush1.msra.mxu0 %v4506
    %v4508 = vand.u32 %v4202, 4294901760
    %4509 = vmatprep.subr.mxu0 %v4508
    %v4510 = vand.u32 %v4201, 4294901760
    %4511 = vmatpush1.msra.mxu0 %v4510
    %v4512 = vand.u32 %v4204, 4294901760
    %4513 = vmatprep.subr.mxu0 %v4512
    %v4514 = vand.u32 %v4203, 4294901760
    %4515 = vmatpush1.msra.mxu0 %v4514
    %v4516 = vand.u32 %v4206, 4294901760
    %4517 = vmatprep.subr.mxu0 %v4516
    %v4518 = vand.u32 %v4205, 4294901760
    %4519 = vmatpush1.msra.mxu0 %v4518
    %v4520 = vand.u32 %v4208, 4294901760
    %4521 = vmatprep.subr.mxu0 %v4520
    %v4522 = vand.u32 %v4207, 4294901760
    %4523 = vmatpush1.msra.mxu0 %v4522
    %v4524 = vand.u32 %v4210, 4294901760
    %4525 = vmatprep.subr.mxu0 %v4524
    %v4526 = vand.u32 %v4209, 4294901760
    %4527 = vmatpush1.msra.mxu0 %v4526
    %v4528 = vand.u32 %v4212, 4294901760
    %4529 = vmatprep.subr.mxu0 %v4528
    %v4530 = vand.u32 %v4211, 4294901760
    %4531 = vmatpush1.msra.mxu0 %v4530
    %v4532 = vand.u32 %v4214, 4294901760
    %4533 = vmatprep.subr.mxu0 %v4532
    %v4534 = vand.u32 %v4213, 4294901760
    %4535 = vmatpush1.msra.mxu0 %v4534
    %v4536 = vand.u32 %v4216, 4294901760
    %4537 = vmatprep.subr.mxu0 %v4536
    %v4538 = vand.u32 %v4215, 4294901760
    %4539 = vmatpush1.msra.mxu0 %v4538
    %v4540 = vand.u32 %v4218, 4294901760
    %4541 = vmatprep.subr.mxu0 %v4540
    %v4542 = vand.u32 %v4217, 4294901760
    %4543 = vmatpush1.msra.mxu0 %v4542
    %v4544 = vand.u32 %v4220, 4294901760
    %4545 = vmatprep.subr.mxu0 %v4544
    %v4546 = vand.u32 %v4219, 4294901760
    %4547 = vmatpush1.msra.mxu0 %v4546
    %v4548 = vand.u32 %v4222, 4294901760
    %4549 = vmatprep.subr.mxu0 %v4548
    %v4550 = vand.u32 %v4221, 4294901760
    %4551 = vmatpush1.msra.mxu0 %v4550
    %v4552 = vand.u32 %v4224, 4294901760
    %4553 = vmatprep.subr.mxu0 %v4552
    %v4554 = vand.u32 %v4223, 4294901760
    %4555 = vmatpush1.msra.mxu0 %v4554
    %v4556 = vand.u32 %v4226, 4294901760
    %4557 = vmatprep.subr.mxu0 %v4556
    %v4558 = vand.u32 %v4225, 4294901760
    %4559 = vmatpush1.msra.mxu0 %v4558
    %v4560 = vand.u32 %v4228, 4294901760
    %4561 = vmatprep.subr.mxu0 %v4560
    %v4562 = vand.u32 %v4227, 4294901760
    %4563 = vmatpush1.msra.mxu0 %v4562
    %v4564 = vand.u32 %v4230, 4294901760
    %4565 = vmatprep.subr.mxu0 %v4564
    %v4566 = vand.u32 %v4229, 4294901760
    %4567 = vmatpush1.msra.mxu0 %v4566
    %v4568 = vand.u32 %v4232, 4294901760
    %4569 = vmatprep.subr.mxu0 %v4568
    %v4570 = vand.u32 %v4231, 4294901760
    %4571 = vmatpush1.msra.mxu0 %v4570
    %v4572 = vand.u32 %v4234, 4294901760
    %4573 = vmatprep.subr.mxu0 %v4572
    %v4574 = vand.u32 %v4233, 4294901760
    %4575 = vmatpush1.msra.mxu0 %v4574
    %v4576 = vand.u32 %v4236, 4294901760
    %4577 = vmatprep.subr.mxu0 %v4576
    %v4578 = vand.u32 %v4235, 4294901760
    %4579 = vmatpush1.msra.mxu0 %v4578
    %v4580 = vand.u32 %v4238, 4294901760
    %4581 = vmatprep.subr.mxu0 %v4580
    %v4582 = vand.u32 %v4237, 4294901760
    %4583 = vmatpush1.msra.mxu0 %v4582
    %v4584 = vand.u32 %v4240, 4294901760
    %4585 = vmatprep.subr.mxu0 %v4584
    %v4586 = vand.u32 %v4239, 4294901760
    %4587 = vmatpush1.msra.mxu0 %v4586
    %v4588 = vand.u32 %v4242, 4294901760
    %4589 = vmatprep.subr.mxu0 %v4588
    %v4590 = vand.u32 %v4241, 4294901760
    %4591 = vmatpush1.msra.mxu0 %v4590
    %v4592 = vand.u32 %v4244, 4294901760
    %4593 = vmatprep.subr.mxu0 %v4592
    %v4594 = vand.u32 %v4243, 4294901760
    %4595 = vmatpush1.msra.mxu0 %v4594
    %v4596 = vand.u32 %v4246, 4294901760
    %4597 = vmatprep.subr.mxu0 %v4596
    %v4598 = vand.u32 %v4245, 4294901760
    %4599 = vmatpush1.msra.mxu0 %v4598
    %v4600 = vand.u32 %v4248, 4294901760
    %4601 = vmatprep.subr.mxu0 %v4600
    %v4602 = vand.u32 %v4247, 4294901760
    %4603 = vmatpush1.msra.mxu0 %v4602
    %v4604 = vand.u32 %v4250, 4294901760
    %4605 = vmatprep.subr.mxu0 %v4604
    %v4606 = vand.u32 %v4249, 4294901760
    %4607 = vmatpush1.msra.mxu0 %v4606
    %v4608 = vand.u32 %v4252, 4294901760
    %4609 = vmatprep.subr.mxu0 %v4608
    %v4610 = vand.u32 %v4251, 4294901760
    %4611 = vmatpush1.msra.mxu0 %v4610
    %v4612 = vand.u32 %v4254, 4294901760
    %4613 = vmatprep.subr.mxu0 %v4612
    %v4614 = vand.u32 %v4253, 4294901760
    %4615 = vmatpush1.msra.mxu0 %v4614
    %v4616 = vand.u32 %v4256, 4294901760
    %4617 = vmatprep.subr.mxu0 %v4616
    %v4618 = vand.u32 %v4255, 4294901760
    %4619 = vmatpush1.msra.mxu0 %v4618
    %v4620 = vand.u32 %v4258, 4294901760
    %4621 = vmatprep.subr.mxu0 %v4620
    %v4622 = vand.u32 %v4257, 4294901760
    %4623 = vmatpush1.msra.mxu0 %v4622
    %v4624 = vand.u32 %v4469, 4294901760
    %v4625 = vsub.f32 %v4469, %v4624
    %v4626 = vand.u32 %v4625, 4294901760
    %v4627 = vsub.f32 %v4625, %v4626
    %v4628 = vand.u32 %v4627, 4294901760
    %4629 = vmatprep.mubr.f32.mxu0 %v4628
    %v4630 = vand.u32 %v4461, 4294901760
    %v4631 = vsub.f32 %v4461, %v4630
    %v4632 = vand.u32 %v4631, 4294901760
    %v4633 = vsub.f32 %v4631, %v4632
    %v4634 = vand.u32 %v4633, 4294901760
    %4635 = vmatmul.mubr.f32.gmra.mrb[0].mxu0 %v4634
    %v4636 = vpop.f32.mrb[0].mxu0
    %v4637 = vadd.f32 %v4451, %v4636
    %v4638 = vpop.f32.mrb[0].mxu0
    %v4639 = vadd.f32 %v4451, %v4638
    %4640 = vdwg.mxu0
    %v4641 = vand.u32 %v4196, 4294901760
    %v4642 = vsub.f32 %v4196, %v4641
    %v4643 = vand.u32 %v4642, 4294901760
    %v4644 = vsub.f32 %v4642, %v4643
    %v4645 = vand.u32 %v4644, 4294901760
    %4646 = vmatprep.subr.mxu0 %v4645
    %v4647 = vand.u32 %v4195, 4294901760
    %v4648 = vsub.f32 %v4195, %v4647
    %v4649 = vand.u32 %v4648, 4294901760
    %v4650 = vsub.f32 %v4648, %v4649
    %v4651 = vand.u32 %v4650, 4294901760
    %4652 = vmatpush1.msra.mxu0 %v4651
    %v4653 = vand.u32 %v4198, 4294901760
    %v4654 = vsub.f32 %v4198, %v4653
    %v4655 = vand.u32 %v4654, 4294901760
    %v4656 = vsub.f32 %v4654, %v4655
    %v4657 = vand.u32 %v4656, 4294901760
    %4658 = vmatprep.subr.mxu0 %v4657
    %v4659 = vand.u32 %v4197, 4294901760
    %v4660 = vsub.f32 %v4197, %v4659
    %v4661 = vand.u32 %v4660, 4294901760
    %v4662 = vsub.f32 %v4660, %v4661
    %v4663 = vand.u32 %v4662, 4294901760
    %4664 = vmatpush1.msra.mxu0 %v4663
    %v4665 = vand.u32 %v4200, 4294901760
    %v4666 = vsub.f32 %v4200, %v4665
    %v4667 = vand.u32 %v4666, 4294901760
    %v4668 = vsub.f32 %v4666, %v4667
    %v4669 = vand.u32 %v4668, 4294901760
    %4670 = vmatprep.subr.mxu0 %v4669
    %v4671 = vand.u32 %v4199, 4294901760
    %v4672 = vsub.f32 %v4199, %v4671
    %v4673 = vand.u32 %v4672, 4294901760
    %v4674 = vsub.f32 %v4672, %v4673
    %v4675 = vand.u32 %v4674, 4294901760
    %4676 = vmatpush1.msra.mxu0 %v4675
    %v4677 = vand.u32 %v4202, 4294901760
    %v4678 = vsub.f32 %v4202, %v4677
    %v4679 = vand.u32 %v4678, 4294901760
    %v4680 = vsub.f32 %v4678, %v4679
    %v4681 = vand.u32 %v4680, 4294901760
    %4682 = vmatprep.subr.mxu0 %v4681
    %v4683 = vand.u32 %v4201, 4294901760
    %v4684 = vsub.f32 %v4201, %v4683
    %v4685 = vand.u32 %v4684, 4294901760
    %v4686 = vsub.f32 %v4684, %v4685
    %v4687 = vand.u32 %v4686, 4294901760
    %4688 = vmatpush1.msra.mxu0 %v4687
    %v4689 = vand.u32 %v4204, 4294901760
    %v4690 = vsub.f32 %v4204, %v4689
    %v4691 = vand.u32 %v4690, 4294901760
    %v4692 = vsub.f32 %v4690, %v4691
    %v4693 = vand.u32 %v4692, 4294901760
    %4694 = vmatprep.subr.mxu0 %v4693
    %v4695 = vand.u32 %v4203, 4294901760
    %v4696 = vsub.f32 %v4203, %v4695
    %v4697 = vand.u32 %v4696, 4294901760
    %v4698 = vsub.f32 %v4696, %v4697
    %v4699 = vand.u32 %v4698, 4294901760
    %4700 = vmatpush1.msra.mxu0 %v4699
    %v4701 = vand.u32 %v4206, 4294901760
    %v4702 = vsub.f32 %v4206, %v4701
    %v4703 = vand.u32 %v4702, 4294901760
    %v4704 = vsub.f32 %v4702, %v4703
    %v4705 = vand.u32 %v4704, 4294901760
    %4706 = vmatprep.subr.mxu0 %v4705
    %v4707 = vand.u32 %v4205, 4294901760
    %v4708 = vsub.f32 %v4205, %v4707
    %v4709 = vand.u32 %v4708, 4294901760
    %v4710 = vsub.f32 %v4708, %v4709
    %v4711 = vand.u32 %v4710, 4294901760
    %4712 = vmatpush1.msra.mxu0 %v4711
    %v4713 = vand.u32 %v4208, 4294901760
    %v4714 = vsub.f32 %v4208, %v4713
    %v4715 = vand.u32 %v4714, 4294901760
    %v4716 = vsub.f32 %v4714, %v4715
    %v4717 = vand.u32 %v4716, 4294901760
    %4718 = vmatprep.subr.mxu0 %v4717
    %v4719 = vand.u32 %v4207, 4294901760
    %v4720 = vsub.f32 %v4207, %v4719
    %v4721 = vand.u32 %v4720, 4294901760
    %v4722 = vsub.f32 %v4720, %v4721
    %v4723 = vand.u32 %v4722, 4294901760
    %4724 = vmatpush1.msra.mxu0 %v4723
    %v4725 = vand.u32 %v4210, 4294901760
    %v4726 = vsub.f32 %v4210, %v4725
    %v4727 = vand.u32 %v4726, 4294901760
    %v4728 = vsub.f32 %v4726, %v4727
    %v4729 = vand.u32 %v4728, 4294901760
    %4730 = vmatprep.subr.mxu0 %v4729
    %v4731 = vand.u32 %v4209, 4294901760
    %v4732 = vsub.f32 %v4209, %v4731
    %v4733 = vand.u32 %v4732, 4294901760
    %v4734 = vsub.f32 %v4732, %v4733
    %v4735 = vand.u32 %v4734, 4294901760
    %4736 = vmatpush1.msra.mxu0 %v4735
    %v4737 = vand.u32 %v4212, 4294901760
    %v4738 = vsub.f32 %v4212, %v4737
    %v4739 = vand.u32 %v4738, 4294901760
    %v4740 = vsub.f32 %v4738, %v4739
    %v4741 = vand.u32 %v4740, 4294901760
    %4742 = vmatprep.subr.mxu0 %v4741
    %v4743 = vand.u32 %v4211, 4294901760
    %v4744 = vsub.f32 %v4211, %v4743
    %v4745 = vand.u32 %v4744, 4294901760
    %v4746 = vsub.f32 %v4744, %v4745
    %v4747 = vand.u32 %v4746, 4294901760
    %4748 = vmatpush1.msra.mxu0 %v4747
    %v4749 = vand.u32 %v4214, 4294901760
    %v4750 = vsub.f32 %v4214, %v4749
    %v4751 = vand.u32 %v4750, 4294901760
    %v4752 = vsub.f32 %v4750, %v4751
    %v4753 = vand.u32 %v4752, 4294901760
    %4754 = vmatprep.subr.mxu0 %v4753
    %v4755 = vand.u32 %v4213, 4294901760
    %v4756 = vsub.f32 %v4213, %v4755
    %v4757 = vand.u32 %v4756, 4294901760
    %v4758 = vsub.f32 %v4756, %v4757
    %v4759 = vand.u32 %v4758, 4294901760
    %4760 = vmatpush1.msra.mxu0 %v4759
    %v4761 = vand.u32 %v4216, 4294901760
    %v4762 = vsub.f32 %v4216, %v4761
    %v4763 = vand.u32 %v4762, 4294901760
    %v4764 = vsub.f32 %v4762, %v4763
    %v4765 = vand.u32 %v4764, 4294901760
    %4766 = vmatprep.subr.mxu0 %v4765
    %v4767 = vand.u32 %v4215, 4294901760
    %v4768 = vsub.f32 %v4215, %v4767
    %v4769 = vand.u32 %v4768, 4294901760
    %v4770 = vsub.f32 %v4768, %v4769
    %v4771 = vand.u32 %v4770, 4294901760
    %4772 = vmatpush1.msra.mxu0 %v4771
    %v4773 = vand.u32 %v4218, 4294901760
    %v4774 = vsub.f32 %v4218, %v4773
    %v4775 = vand.u32 %v4774, 4294901760
    %v4776 = vsub.f32 %v4774, %v4775
    %v4777 = vand.u32 %v4776, 4294901760
    %4778 = vmatprep.subr.mxu0 %v4777
    %v4779 = vand.u32 %v4217, 4294901760
    %v4780 = vsub.f32 %v4217, %v4779
    %v4781 = vand.u32 %v4780, 4294901760
    %v4782 = vsub.f32 %v4780, %v4781
    %v4783 = vand.u32 %v4782, 4294901760
    %4784 = vmatpush1.msra.mxu0 %v4783
    %v4785 = vand.u32 %v4220, 4294901760
    %v4786 = vsub.f32 %v4220, %v4785
    %v4787 = vand.u32 %v4786, 4294901760
    %v4788 = vsub.f32 %v4786, %v4787
    %v4789 = vand.u32 %v4788, 4294901760
    %4790 = vmatprep.subr.mxu0 %v4789
    %v4791 = vand.u32 %v4219, 4294901760
    %v4792 = vsub.f32 %v4219, %v4791
    %v4793 = vand.u32 %v4792, 4294901760
    %v4794 = vsub.f32 %v4792, %v4793
    %v4795 = vand.u32 %v4794, 4294901760
    %4796 = vmatpush1.msra.mxu0 %v4795
    %v4797 = vand.u32 %v4222, 4294901760
    %v4798 = vsub.f32 %v4222, %v4797
    %v4799 = vand.u32 %v4798, 4294901760
    %v4800 = vsub.f32 %v4798, %v4799
    %v4801 = vand.u32 %v4800, 4294901760
    %4802 = vmatprep.subr.mxu0 %v4801
    %v4803 = vand.u32 %v4221, 4294901760
    %v4804 = vsub.f32 %v4221, %v4803
    %v4805 = vand.u32 %v4804, 4294901760
    %v4806 = vsub.f32 %v4804, %v4805
    %v4807 = vand.u32 %v4806, 4294901760
    %4808 = vmatpush1.msra.mxu0 %v4807
    %v4809 = vand.u32 %v4224, 4294901760
    %v4810 = vsub.f32 %v4224, %v4809
    %v4811 = vand.u32 %v4810, 4294901760
    %v4812 = vsub.f32 %v4810, %v4811
    %v4813 = vand.u32 %v4812, 4294901760
    %4814 = vmatprep.subr.mxu0 %v4813
    %v4815 = vand.u32 %v4223, 4294901760
    %v4816 = vsub.f32 %v4223, %v4815
    %v4817 = vand.u32 %v4816, 4294901760
    %v4818 = vsub.f32 %v4816, %v4817
    %v4819 = vand.u32 %v4818, 4294901760
    %4820 = vmatpush1.msra.mxu0 %v4819
    %v4821 = vand.u32 %v4226, 4294901760
    %v4822 = vsub.f32 %v4226, %v4821
    %v4823 = vand.u32 %v4822, 4294901760
    %v4824 = vsub.f32 %v4822, %v4823
    %v4825 = vand.u32 %v4824, 4294901760
    %4826 = vmatprep.subr.mxu0 %v4825
    %v4827 = vand.u32 %v4225, 4294901760
    %v4828 = vsub.f32 %v4225, %v4827
    %v4829 = vand.u32 %v4828, 4294901760
    %v4830 = vsub.f32 %v4828, %v4829
    %v4831 = vand.u32 %v4830, 4294901760
    %4832 = vmatpush1.msra.mxu0 %v4831
    %v4833 = vand.u32 %v4228, 4294901760
    %v4834 = vsub.f32 %v4228, %v4833
    %v4835 = vand.u32 %v4834, 4294901760
    %v4836 = vsub.f32 %v4834, %v4835
    %v4837 = vand.u32 %v4836, 4294901760
    %4838 = vmatprep.subr.mxu0 %v4837
    %v4839 = vand.u32 %v4227, 4294901760
    %v4840 = vsub.f32 %v4227, %v4839
    %v4841 = vand.u32 %v4840, 4294901760
    %v4842 = vsub.f32 %v4840, %v4841
    %v4843 = vand.u32 %v4842, 4294901760
    %4844 = vmatpush1.msra.mxu0 %v4843
    %v4845 = vand.u32 %v4230, 4294901760
    %v4846 = vsub.f32 %v4230, %v4845
    %v4847 = vand.u32 %v4846, 4294901760
    %v4848 = vsub.f32 %v4846, %v4847
    %v4849 = vand.u32 %v4848, 4294901760
    %4850 = vmatprep.subr.mxu0 %v4849
    %v4851 = vand.u32 %v4229, 4294901760
    %v4852 = vsub.f32 %v4229, %v4851
    %v4853 = vand.u32 %v4852, 4294901760
    %v4854 = vsub.f32 %v4852, %v4853
    %v4855 = vand.u32 %v4854, 4294901760
    %4856 = vmatpush1.msra.mxu0 %v4855
    %v4857 = vand.u32 %v4232, 4294901760
    %v4858 = vsub.f32 %v4232, %v4857
    %v4859 = vand.u32 %v4858, 4294901760
    %v4860 = vsub.f32 %v4858, %v4859
    %v4861 = vand.u32 %v4860, 4294901760
    %4862 = vmatprep.subr.mxu0 %v4861
    %v4863 = vand.u32 %v4231, 4294901760
    %v4864 = vsub.f32 %v4231, %v4863
    %v4865 = vand.u32 %v4864, 4294901760
    %v4866 = vsub.f32 %v4864, %v4865
    %v4867 = vand.u32 %v4866, 4294901760
    %4868 = vmatpush1.msra.mxu0 %v4867
    %v4869 = vand.u32 %v4234, 4294901760
    %v4870 = vsub.f32 %v4234, %v4869
    %v4871 = vand.u32 %v4870, 4294901760
    %v4872 = vsub.f32 %v4870, %v4871
    %v4873 = vand.u32 %v4872, 4294901760
    %4874 = vmatprep.subr.mxu0 %v4873
    %v4875 = vand.u32 %v4233, 4294901760
    %v4876 = vsub.f32 %v4233, %v4875
    %v4877 = vand.u32 %v4876, 4294901760
    %v4878 = vsub.f32 %v4876, %v4877
    %v4879 = vand.u32 %v4878, 4294901760
    %4880 = vmatpush1.msra.mxu0 %v4879
    %v4881 = vand.u32 %v4236, 4294901760
    %v4882 = vsub.f32 %v4236, %v4881
    %v4883 = vand.u32 %v4882, 4294901760
    %v4884 = vsub.f32 %v4882, %v4883
    %v4885 = vand.u32 %v4884, 4294901760
    %4886 = vmatprep.subr.mxu0 %v4885
    %v4887 = vand.u32 %v4235, 4294901760
    %v4888 = vsub.f32 %v4235, %v4887
    %v4889 = vand.u32 %v4888, 4294901760
    %v4890 = vsub.f32 %v4888, %v4889
    %v4891 = vand.u32 %v4890, 4294901760
    %4892 = vmatpush1.msra.mxu0 %v4891
    %v4893 = vand.u32 %v4238, 4294901760
    %v4894 = vsub.f32 %v4238, %v4893
    %v4895 = vand.u32 %v4894, 4294901760
    %v4896 = vsub.f32 %v4894, %v4895
    %v4897 = vand.u32 %v4896, 4294901760
    %4898 = vmatprep.subr.mxu0 %v4897
    %v4899 = vand.u32 %v4237, 4294901760
    %v4900 = vsub.f32 %v4237, %v4899
    %v4901 = vand.u32 %v4900, 4294901760
    %v4902 = vsub.f32 %v4900, %v4901
    %v4903 = vand.u32 %v4902, 4294901760
    %4904 = vmatpush1.msra.mxu0 %v4903
    %v4905 = vand.u32 %v4240, 4294901760
    %v4906 = vsub.f32 %v4240, %v4905
    %v4907 = vand.u32 %v4906, 4294901760
    %v4908 = vsub.f32 %v4906, %v4907
    %v4909 = vand.u32 %v4908, 4294901760
    %4910 = vmatprep.subr.mxu0 %v4909
    %v4911 = vand.u32 %v4239, 4294901760
    %v4912 = vsub.f32 %v4239, %v4911
    %v4913 = vand.u32 %v4912, 4294901760
    %v4914 = vsub.f32 %v4912, %v4913
    %v4915 = vand.u32 %v4914, 4294901760
    %4916 = vmatpush1.msra.mxu0 %v4915
    %v4917 = vand.u32 %v4242, 4294901760
    %v4918 = vsub.f32 %v4242, %v4917
    %v4919 = vand.u32 %v4918, 4294901760
    %v4920 = vsub.f32 %v4918, %v4919
    %v4921 = vand.u32 %v4920, 4294901760
    %4922 = vmatprep.subr.mxu0 %v4921
    %v4923 = vand.u32 %v4241, 4294901760
    %v4924 = vsub.f32 %v4241, %v4923
    %v4925 = vand.u32 %v4924, 4294901760
    %v4926 = vsub.f32 %v4924, %v4925
    %v4927 = vand.u32 %v4926, 4294901760
    %4928 = vmatpush1.msra.mxu0 %v4927
    %v4929 = vand.u32 %v4244, 4294901760
    %v4930 = vsub.f32 %v4244, %v4929
    %v4931 = vand.u32 %v4930, 4294901760
    %v4932 = vsub.f32 %v4930, %v4931
    %v4933 = vand.u32 %v4932, 4294901760
    %4934 = vmatprep.subr.mxu0 %v4933
    %v4935 = vand.u32 %v4243, 4294901760
    %v4936 = vsub.f32 %v4243, %v4935
    %v4937 = vand.u32 %v4936, 4294901760
    %v4938 = vsub.f32 %v4936, %v4937
    %v4939 = vand.u32 %v4938, 4294901760
    %4940 = vmatpush1.msra.mxu0 %v4939
    %v4941 = vand.u32 %v4246, 4294901760
    %v4942 = vsub.f32 %v4246, %v4941
    %v4943 = vand.u32 %v4942, 4294901760
    %v4944 = vsub.f32 %v4942, %v4943
    %v4945 = vand.u32 %v4944, 4294901760
    %4946 = vmatprep.subr.mxu0 %v4945
    %v4947 = vand.u32 %v4245, 4294901760
    %v4948 = vsub.f32 %v4245, %v4947
    %v4949 = vand.u32 %v4948, 4294901760
    %v4950 = vsub.f32 %v4948, %v4949
    %v4951 = vand.u32 %v4950, 4294901760
    %4952 = vmatpush1.msra.mxu0 %v4951
    %v4953 = vand.u32 %v4248, 4294901760
    %v4954 = vsub.f32 %v4248, %v4953
    %v4955 = vand.u32 %v4954, 4294901760
    %v4956 = vsub.f32 %v4954, %v4955
    %v4957 = vand.u32 %v4956, 4294901760
    %4958 = vmatprep.subr.mxu0 %v4957
    %v4959 = vand.u32 %v4247, 4294901760
    %v4960 = vsub.f32 %v4247, %v4959
    %v4961 = vand.u32 %v4960, 4294901760
    %v4962 = vsub.f32 %v4960, %v4961
    %v4963 = vand.u32 %v4962, 4294901760
    %4964 = vmatpush1.msra.mxu0 %v4963
    %v4965 = vand.u32 %v4250, 4294901760
    %v4966 = vsub.f32 %v4250, %v4965
    %v4967 = vand.u32 %v4966, 4294901760
    %v4968 = vsub.f32 %v4966, %v4967
    %v4969 = vand.u32 %v4968, 4294901760
    %4970 = vmatprep.subr.mxu0 %v4969
    %v4971 = vand.u32 %v4249, 4294901760
    %v4972 = vsub.f32 %v4249, %v4971
    %v4973 = vand.u32 %v4972, 4294901760
    %v4974 = vsub.f32 %v4972, %v4973
    %v4975 = vand.u32 %v4974, 4294901760
    %4976 = vmatpush1.msra.mxu0 %v4975
    %v4977 = vand.u32 %v4252, 4294901760
    %v4978 = vsub.f32 %v4252, %v4977
    %v4979 = vand.u32 %v4978, 4294901760
    %v4980 = vsub.f32 %v4978, %v4979
    %v4981 = vand.u32 %v4980, 4294901760
    %4982 = vmatprep.subr.mxu0 %v4981
    %v4983 = vand.u32 %v4251, 4294901760
    %v4984 = vsub.f32 %v4251, %v4983
    %v4985 = vand.u32 %v4984, 4294901760
    %v4986 = vsub.f32 %v4984, %v4985
    %v4987 = vand.u32 %v4986, 4294901760
    %4988 = vmatpush1.msra.mxu0 %v4987
    %v4989 = vand.u32 %v4254, 4294901760
    %v4990 = vsub.f32 %v4254, %v4989
    %v4991 = vand.u32 %v4990, 4294901760
    %v4992 = vsub.f32 %v4990, %v4991
    %v4993 = vand.u32 %v4992, 4294901760
    %4994 = vmatprep.subr.mxu0 %v4993
    %v4995 = vand.u32 %v4253, 4294901760
    %v4996 = vsub.f32 %v4253, %v4995
    %v4997 = vand.u32 %v4996, 4294901760
    %v4998 = vsub.f32 %v4996, %v4997
    %v4999 = vand.u32 %v4998, 4294901760
    %5000 = vmatpush1.msra.mxu0 %v4999
    %v5001 = vand.u32 %v4256, 4294901760
    %v5002 = vsub.f32 %v4256, %v5001
    %v5003 = vand.u32 %v5002, 4294901760
    %v5004 = vsub.f32 %v5002, %v5003
    %v5005 = vand.u32 %v5004, 4294901760
    %5006 = vmatprep.subr.mxu0 %v5005
    %v5007 = vand.u32 %v4255, 4294901760
    %v5008 = vsub.f32 %v4255, %v5007
    %v5009 = vand.u32 %v5008, 4294901760
    %v5010 = vsub.f32 %v5008, %v5009
    %v5011 = vand.u32 %v5010, 4294901760
    %5012 = vmatpush1.msra.mxu0 %v5011
    %v5013 = vand.u32 %v4258, 4294901760
    %v5014 = vsub.f32 %v4258, %v5013
    %v5015 = vand.u32 %v5014, 4294901760
    %v5016 = vsub.f32 %v5014, %v5015
    %v5017 = vand.u32 %v5016, 4294901760
    %5018 = vmatprep.subr.mxu0 %v5017
    %v5019 = vand.u32 %v4257, 4294901760
    %v5020 = vsub.f32 %v4257, %v5019
    %v5021 = vand.u32 %v5020, 4294901760
    %v5022 = vsub.f32 %v5020, %v5021
    %v5023 = vand.u32 %v5022, 4294901760
    %5024 = vmatpush1.msra.mxu0 %v5023
    %v5025 = vand.u32 %v4469, 4294901760
    %5026 = vmatprep.mubr.f32.mxu0 %v5025
    %v5027 = vand.u32 %v4461, 4294901760
    %5028 = vmatmul.mubr.f32.gmra.mrb[0].mxu0 %v5027
    %v5029 = vpop.f32.mrb[0].mxu0
    %v5030 = vadd.f32 %v4637, %v5029
    %v5031 = vpop.f32.mrb[0].mxu0
    %v5032 = vadd.f32 %v4639, %v5031
    %5033 = vdwg.mxu0
    %v5034 = vand.u32 %v4196, 4294901760
    %v5035 = vsub.f32 %v4196, %v5034
    %5036 = vmatprep.subr.mxu0 %v5035
    %v5037 = vand.u32 %v4195, 4294901760
    %v5038 = vsub.f32 %v4195, %v5037
    %5039 = vmatpush1.msra.mxu0 %v5038
    %v5040 = vand.u32 %v4198, 4294901760
    %v5041 = vsub.f32 %v4198, %v5040
    %5042 = vmatprep.subr.mxu0 %v5041
    %v5043 = vand.u32 %v4197, 4294901760
    %v5044 = vsub.f32 %v4197, %v5043
    %5045 = vmatpush1.msra.mxu0 %v5044
    %v5046 = vand.u32 %v4200, 4294901760
    %v5047 = vsub.f32 %v4200, %v5046
    %5048 = vmatprep.subr.mxu0 %v5047
    %v5049 = vand.u32 %v4199, 4294901760
    %v5050 = vsub.f32 %v4199, %v5049
    %5051 = vmatpush1.msra.mxu0 %v5050
    %v5052 = vand.u32 %v4202, 4294901760
    %v5053 = vsub.f32 %v4202, %v5052
    %5054 = vmatprep.subr.mxu0 %v5053
    %v5055 = vand.u32 %v4201, 4294901760
    %v5056 = vsub.f32 %v4201, %v5055
    %5057 = vmatpush1.msra.mxu0 %v5056
    %v5058 = vand.u32 %v4204, 4294901760
    %v5059 = vsub.f32 %v4204, %v5058
    %5060 = vmatprep.subr.mxu0 %v5059
    %v5061 = vand.u32 %v4203, 4294901760
    %v5062 = vsub.f32 %v4203, %v5061
    %5063 = vmatpush1.msra.mxu0 %v5062
    %v5064 = vand.u32 %v4206, 4294901760
    %v5065 = vsub.f32 %v4206, %v5064
    %5066 = vmatprep.subr.mxu0 %v5065
    %v5067 = vand.u32 %v4205, 4294901760
    %v5068 = vsub.f32 %v4205, %v5067
    %5069 = vmatpush1.msra.mxu0 %v5068
    %v5070 = vand.u32 %v4208, 4294901760
    %v5071 = vsub.f32 %v4208, %v5070
    %5072 = vmatprep.subr.mxu0 %v5071
    %v5073 = vand.u32 %v4207, 4294901760
    %v5074 = vsub.f32 %v4207, %v5073
    %5075 = vmatpush1.msra.mxu0 %v5074
    %v5076 = vand.u32 %v4210, 4294901760
    %v5077 = vsub.f32 %v4210, %v5076
    %5078 = vmatprep.subr.mxu0 %v5077
    %v5079 = vand.u32 %v4209, 4294901760
    %v5080 = vsub.f32 %v4209, %v5079
    %5081 = vmatpush1.msra.mxu0 %v5080
    %v5082 = vand.u32 %v4212, 4294901760
    %v5083 = vsub.f32 %v4212, %v5082
    %5084 = vmatprep.subr.mxu0 %v5083
    %v5085 = vand.u32 %v4211, 4294901760
    %v5086 = vsub.f32 %v4211, %v5085
    %5087 = vmatpush1.msra.mxu0 %v5086
    %v5088 = vand.u32 %v4214, 4294901760
    %v5089 = vsub.f32 %v4214, %v5088
    %5090 = vmatprep.subr.mxu0 %v5089
    %v5091 = vand.u32 %v4213, 4294901760
    %v5092 = vsub.f32 %v4213, %v5091
    %5093 = vmatpush1.msra.mxu0 %v5092
    %v5094 = vand.u32 %v4216, 4294901760
    %v5095 = vsub.f32 %v4216, %v5094
    %5096 = vmatprep.subr.mxu0 %v5095
    %v5097 = vand.u32 %v4215, 4294901760
    %v5098 = vsub.f32 %v4215, %v5097
    %5099 = vmatpush1.msra.mxu0 %v5098
    %v5100 = vand.u32 %v4218, 4294901760
    %v5101 = vsub.f32 %v4218, %v5100
    %5102 = vmatprep.subr.mxu0 %v5101
    %v5103 = vand.u32 %v4217, 4294901760
    %v5104 = vsub.f32 %v4217, %v5103
    %5105 = vmatpush1.msra.mxu0 %v5104
    %v5106 = vand.u32 %v4220, 4294901760
    %v5107 = vsub.f32 %v4220, %v5106
    %5108 = vmatprep.subr.mxu0 %v5107
    %v5109 = vand.u32 %v4219, 4294901760
    %v5110 = vsub.f32 %v4219, %v5109
    %5111 = vmatpush1.msra.mxu0 %v5110
    %v5112 = vand.u32 %v4222, 4294901760
    %v5113 = vsub.f32 %v4222, %v5112
    %5114 = vmatprep.subr.mxu0 %v5113
    %v5115 = vand.u32 %v4221, 4294901760
    %v5116 = vsub.f32 %v4221, %v5115
    %5117 = vmatpush1.msra.mxu0 %v5116
    %v5118 = vand.u32 %v4224, 4294901760
    %v5119 = vsub.f32 %v4224, %v5118
    %5120 = vmatprep.subr.mxu0 %v5119
    %v5121 = vand.u32 %v4223, 4294901760
    %v5122 = vsub.f32 %v4223, %v5121
    %5123 = vmatpush1.msra.mxu0 %v5122
    %v5124 = vand.u32 %v4226, 4294901760
    %v5125 = vsub.f32 %v4226, %v5124
    %5126 = vmatprep.subr.mxu0 %v5125
    %v5127 = vand.u32 %v4225, 4294901760
    %v5128 = vsub.f32 %v4225, %v5127
    %5129 = vmatpush1.msra.mxu0 %v5128
    %v5130 = vand.u32 %v4228, 4294901760
    %v5131 = vsub.f32 %v4228, %v5130
    %5132 = vmatprep.subr.mxu0 %v5131
    %v5133 = vand.u32 %v4227, 4294901760
    %v5134 = vsub.f32 %v4227, %v5133
    %5135 = vmatpush1.msra.mxu0 %v5134
    %v5136 = vand.u32 %v4230, 4294901760
    %v5137 = vsub.f32 %v4230, %v5136
    %5138 = vmatprep.subr.mxu0 %v5137
    %v5139 = vand.u32 %v4229, 4294901760
    %v5140 = vsub.f32 %v4229, %v5139
    %5141 = vmatpush1.msra.mxu0 %v5140
    %v5142 = vand.u32 %v4232, 4294901760
    %v5143 = vsub.f32 %v4232, %v5142
    %5144 = vmatprep.subr.mxu0 %v5143
    %v5145 = vand.u32 %v4231, 4294901760
    %v5146 = vsub.f32 %v4231, %v5145
    %5147 = vmatpush1.msra.mxu0 %v5146
    %v5148 = vand.u32 %v4234, 4294901760
    %v5149 = vsub.f32 %v4234, %v5148
    %5150 = vmatprep.subr.mxu0 %v5149
    %v5151 = vand.u32 %v4233, 4294901760
    %v5152 = vsub.f32 %v4233, %v5151
    %5153 = vmatpush1.msra.mxu0 %v5152
    %v5154 = vand.u32 %v4236, 4294901760
    %v5155 = vsub.f32 %v4236, %v5154
    %5156 = vmatprep.subr.mxu0 %v5155
    %v5157 = vand.u32 %v4235, 4294901760
    %v5158 = vsub.f32 %v4235, %v5157
    %5159 = vmatpush1.msra.mxu0 %v5158
    %v5160 = vand.u32 %v4238, 4294901760
    %v5161 = vsub.f32 %v4238, %v5160
    %5162 = vmatprep.subr.mxu0 %v5161
    %v5163 = vand.u32 %v4237, 4294901760
    %v5164 = vsub.f32 %v4237, %v5163
    %5165 = vmatpush1.msra.mxu0 %v5164
    %v5166 = vand.u32 %v4240, 4294901760
    %v5167 = vsub.f32 %v4240, %v5166
    %5168 = vmatprep.subr.mxu0 %v5167
    %v5169 = vand.u32 %v4239, 4294901760
    %v5170 = vsub.f32 %v4239, %v5169
    %5171 = vmatpush1.msra.mxu0 %v5170
    %v5172 = vand.u32 %v4242, 4294901760
    %v5173 = vsub.f32 %v4242, %v5172
    %5174 = vmatprep.subr.mxu0 %v5173
    %v5175 = vand.u32 %v4241, 4294901760
    %v5176 = vsub.f32 %v4241, %v5175
    %5177 = vmatpush1.msra.mxu0 %v5176
    %v5178 = vand.u32 %v4244, 4294901760
    %v5179 = vsub.f32 %v4244, %v5178
    %5180 = vmatprep.subr.mxu0 %v5179
    %v5181 = vand.u32 %v4243, 4294901760
    %v5182 = vsub.f32 %v4243, %v5181
    %5183 = vmatpush1.msra.mxu0 %v5182
    %v5184 = vand.u32 %v4246, 4294901760
    %v5185 = vsub.f32 %v4246, %v5184
    %5186 = vmatprep.subr.mxu0 %v5185
    %v5187 = vand.u32 %v4245, 4294901760
    %v5188 = vsub.f32 %v4245, %v5187
    %5189 = vmatpush1.msra.mxu0 %v5188
    %v5190 = vand.u32 %v4248, 4294901760
    %v5191 = vsub.f32 %v4248, %v5190
    %5192 = vmatprep.subr.mxu0 %v5191
    %v5193 = vand.u32 %v4247, 4294901760
    %v5194 = vsub.f32 %v4247, %v5193
    %5195 = vmatpush1.msra.mxu0 %v5194
    %v5196 = vand.u32 %v4250, 4294901760
    %v5197 = vsub.f32 %v4250, %v5196
    %5198 = vmatprep.subr.mxu0 %v5197
    %v5199 = vand.u32 %v4249, 4294901760
    %v5200 = vsub.f32 %v4249, %v5199
    %5201 = vmatpush1.msra.mxu0 %v5200
    %v5202 = vand.u32 %v4252, 4294901760
    %v5203 = vsub.f32 %v4252, %v5202
    %5204 = vmatprep.subr.mxu0 %v5203
    %v5205 = vand.u32 %v4251, 4294901760
    %v5206 = vsub.f32 %v4251, %v5205
    %5207 = vmatpush1.msra.mxu0 %v5206
    %v5208 = vand.u32 %v4254, 4294901760
    %v5209 = vsub.f32 %v4254, %v5208
    %5210 = vmatprep.subr.mxu0 %v5209
    %v5211 = vand.u32 %v4253, 4294901760
    %v5212 = vsub.f32 %v4253, %v5211
    %5213 = vmatpush1.msra.mxu0 %v5212
    %v5214 = vand.u32 %v4256, 4294901760
    %v5215 = vsub.f32 %v4256, %v5214
    %5216 = vmatprep.subr.mxu0 %v5215
    %v5217 = vand.u32 %v4255, 4294901760
    %v5218 = vsub.f32 %v4255, %v5217
    %5219 = vmatpush1.msra.mxu0 %v5218
    %v5220 = vand.u32 %v4258, 4294901760
    %v5221 = vsub.f32 %v4258, %v5220
    %5222 = vmatprep.subr.mxu0 %v5221
    %v5223 = vand.u32 %v4257, 4294901760
    %v5224 = vsub.f32 %v4257, %v5223
    %5225 = vmatpush1.msra.mxu0 %v5224
    %v5226 = vand.u32 %v4469, 4294901760
    %v5227 = vsub.f32 %v4469, %v5226
    %5228 = vmatprep.mubr.f32.mxu0 %v5227
    %v5229 = vand.u32 %v4461, 4294901760
    %v5230 = vsub.f32 %v4461, %v5229
    %5231 = vmatmul.mubr.f32.gmra.mrb[0].mxu0 %v5230
    %v5232 = vpop.f32.mrb[0].mxu0
    %v5233 = vadd.f32 %v5030, %v5232
    %v5234 = vpop.f32.mrb[0].mxu0
    %v5235 = vadd.f32 %v5032, %v5234
    %5236 = vdwg.mxu0
    %v5237 = vand.u32 %v4196, 4294901760
    %5238 = vmatprep.subr.mxu0 %v5237
    %v5239 = vand.u32 %v4195, 4294901760
    %5240 = vmatpush1.msra.mxu0 %v5239
    %v5241 = vand.u32 %v4198, 4294901760
    %5242 = vmatprep.subr.mxu0 %v5241
    %v5243 = vand.u32 %v4197, 4294901760
    %5244 = vmatpush1.msra.mxu0 %v5243
    %v5245 = vand.u32 %v4200, 4294901760
    %5246 = vmatprep.subr.mxu0 %v5245
    %v5247 = vand.u32 %v4199, 4294901760
    %5248 = vmatpush1.msra.mxu0 %v5247
    %v5249 = vand.u32 %v4202, 4294901760
    %5250 = vmatprep.subr.mxu0 %v5249
    %v5251 = vand.u32 %v4201, 4294901760
    %5252 = vmatpush1.msra.mxu0 %v5251
    %v5253 = vand.u32 %v4204, 4294901760
    %5254 = vmatprep.subr.mxu0 %v5253
    %v5255 = vand.u32 %v4203, 4294901760
    %5256 = vmatpush1.msra.mxu0 %v5255
    %v5257 = vand.u32 %v4206, 4294901760
    %5258 = vmatprep.subr.mxu0 %v5257
    %v5259 = vand.u32 %v4205, 4294901760
    %5260 = vmatpush1.msra.mxu0 %v5259
    %v5261 = vand.u32 %v4208, 4294901760
    %5262 = vmatprep.subr.mxu0 %v5261
    %v5263 = vand.u32 %v4207, 4294901760
    %5264 = vmatpush1.msra.mxu0 %v5263
    %v5265 = vand.u32 %v4210, 4294901760
    %5266 = vmatprep.subr.mxu0 %v5265
    %v5267 = vand.u32 %v4209, 4294901760
    %5268 = vmatpush1.msra.mxu0 %v5267
    %v5269 = vand.u32 %v4212, 4294901760
    %5270 = vmatprep.subr.mxu0 %v5269
    %v5271 = vand.u32 %v4211, 4294901760
    %5272 = vmatpush1.msra.mxu0 %v5271
    %v5273 = vand.u32 %v4214, 4294901760
    %5274 = vmatprep.subr.mxu0 %v5273
    %v5275 = vand.u32 %v4213, 4294901760
    %5276 = vmatpush1.msra.mxu0 %v5275
    %v5277 = vand.u32 %v4216, 4294901760
    %5278 = vmatprep.subr.mxu0 %v5277
    %v5279 = vand.u32 %v4215, 4294901760
    %5280 = vmatpush1.msra.mxu0 %v5279
    %v5281 = vand.u32 %v4218, 4294901760
    %5282 = vmatprep.subr.mxu0 %v5281
    %v5283 = vand.u32 %v4217, 4294901760
    %5284 = vmatpush1.msra.mxu0 %v5283
    %v5285 = vand.u32 %v4220, 4294901760
    %5286 = vmatprep.subr.mxu0 %v5285
    %v5287 = vand.u32 %v4219, 4294901760
    %5288 = vmatpush1.msra.mxu0 %v5287
    %v5289 = vand.u32 %v4222, 4294901760
    %5290 = vmatprep.subr.mxu0 %v5289
    %v5291 = vand.u32 %v4221, 4294901760
    %5292 = vmatpush1.msra.mxu0 %v5291
    %v5293 = vand.u32 %v4224, 4294901760
    %5294 = vmatprep.subr.mxu0 %v5293
    %v5295 = vand.u32 %v4223, 4294901760
    %5296 = vmatpush1.msra.mxu0 %v5295
    %v5297 = vand.u32 %v4226, 4294901760
    %5298 = vmatprep.subr.mxu0 %v5297
    %v5299 = vand.u32 %v4225, 4294901760
    %5300 = vmatpush1.msra.mxu0 %v5299
    %v5301 = vand.u32 %v4228, 4294901760
    %5302 = vmatprep.subr.mxu0 %v5301
    %v5303 = vand.u32 %v4227, 4294901760
    %5304 = vmatpush1.msra.mxu0 %v5303
    %v5305 = vand.u32 %v4230, 4294901760
    %5306 = vmatprep.subr.mxu0 %v5305
    %v5307 = vand.u32 %v4229, 4294901760
    %5308 = vmatpush1.msra.mxu0 %v5307
    %v5309 = vand.u32 %v4232, 4294901760
    %5310 = vmatprep.subr.mxu0 %v5309
    %v5311 = vand.u32 %v4231, 4294901760
    %5312 = vmatpush1.msra.mxu0 %v5311
    %v5313 = vand.u32 %v4234, 4294901760
    %5314 = vmatprep.subr.mxu0 %v5313
    %v5315 = vand.u32 %v4233, 4294901760
    %5316 = vmatpush1.msra.mxu0 %v5315
    %v5317 = vand.u32 %v4236, 4294901760
    %5318 = vmatprep.subr.mxu0 %v5317
    %v5319 = vand.u32 %v4235, 4294901760
    %5320 = vmatpush1.msra.mxu0 %v5319
    %v5321 = vand.u32 %v4238, 4294901760
    %5322 = vmatprep.subr.mxu0 %v5321
    %v5323 = vand.u32 %v4237, 4294901760
    %5324 = vmatpush1.msra.mxu0 %v5323
    %v5325 = vand.u32 %v4240, 4294901760
    %5326 = vmatprep.subr.mxu0 %v5325
    %v5327 = vand.u32 %v4239, 4294901760
    %5328 = vmatpush1.msra.mxu0 %v5327
    %v5329 = vand.u32 %v4242, 4294901760
    %5330 = vmatprep.subr.mxu0 %v5329
    %v5331 = vand.u32 %v4241, 4294901760
    %5332 = vmatpush1.msra.mxu0 %v5331
    %v5333 = vand.u32 %v4244, 4294901760
    %5334 = vmatprep.subr.mxu0 %v5333
    %v5335 = vand.u32 %v4243, 4294901760
    %5336 = vmatpush1.msra.mxu0 %v5335
    %v5337 = vand.u32 %v4246, 4294901760
    %5338 = vmatprep.subr.mxu0 %v5337
    %v5339 = vand.u32 %v4245, 4294901760
    %5340 = vmatpush1.msra.mxu0 %v5339
    %v5341 = vand.u32 %v4248, 4294901760
    %5342 = vmatprep.subr.mxu0 %v5341
    %v5343 = vand.u32 %v4247, 4294901760
    %5344 = vmatpush1.msra.mxu0 %v5343
    %v5345 = vand.u32 %v4250, 4294901760
    %5346 = vmatprep.subr.mxu0 %v5345
    %v5347 = vand.u32 %v4249, 4294901760
    %5348 = vmatpush1.msra.mxu0 %v5347
    %v5349 = vand.u32 %v4252, 4294901760
    %5350 = vmatprep.subr.mxu0 %v5349
    %v5351 = vand.u32 %v4251, 4294901760
    %5352 = vmatpush1.msra.mxu0 %v5351
    %v5353 = vand.u32 %v4254, 4294901760
    %5354 = vmatprep.subr.mxu0 %v5353
    %v5355 = vand.u32 %v4253, 4294901760
    %5356 = vmatpush1.msra.mxu0 %v5355
    %v5357 = vand.u32 %v4256, 4294901760
    %5358 = vmatprep.subr.mxu0 %v5357
    %v5359 = vand.u32 %v4255, 4294901760
    %5360 = vmatpush1.msra.mxu0 %v5359
    %v5361 = vand.u32 %v4258, 4294901760
    %5362 = vmatprep.subr.mxu0 %v5361
    %v5363 = vand.u32 %v4257, 4294901760
    %5364 = vmatpush1.msra.mxu0 %v5363
    %v5365 = vand.u32 %v4469, 4294901760
    %v5366 = vsub.f32 %v4469, %v5365
    %v5367 = vand.u32 %v5366, 4294901760
    %5368 = vmatprep.mubr.f32.mxu0 %v5367
    %v5369 = vand.u32 %v4461, 4294901760
    %v5370 = vsub.f32 %v4461, %v5369
    %v5371 = vand.u32 %v5370, 4294901760
    %5372 = vmatmul.mubr.f32.gmra.mrb[0].mxu0 %v5371
    %v5373 = vpop.f32.mrb[0].mxu0
    %v5374 = vadd.f32 %v5233, %v5373
    %v5375 = vpop.f32.mrb[0].mxu0
    %v5376 = vadd.f32 %v5235, %v5375
    %5377 = vdwg.mxu0
    %v5378 = vand.u32 %v4196, 4294901760
    %v5379 = vsub.f32 %v4196, %v5378
    %v5380 = vand.u32 %v5379, 4294901760
    %5381 = vmatprep.subr.mxu0 %v5380
    %v5382 = vand.u32 %v4195, 4294901760
    %v5383 = vsub.f32 %v4195, %v5382
    %v5384 = vand.u32 %v5383, 4294901760
    %5385 = vmatpush1.msra.mxu0 %v5384
    %v5386 = vand.u32 %v4198, 4294901760
    %v5387 = vsub.f32 %v4198, %v5386
    %v5388 = vand.u32 %v5387, 4294901760
    %5389 = vmatprep.subr.mxu0 %v5388
    %v5390 = vand.u32 %v4197, 4294901760
    %v5391 = vsub.f32 %v4197, %v5390
    %v5392 = vand.u32 %v5391, 4294901760
    %5393 = vmatpush1.msra.mxu0 %v5392
    %v5394 = vand.u32 %v4200, 4294901760
    %v5395 = vsub.f32 %v4200, %v5394
    %v5396 = vand.u32 %v5395, 4294901760
    %5397 = vmatprep.subr.mxu0 %v5396
    %v5398 = vand.u32 %v4199, 4294901760
    %v5399 = vsub.f32 %v4199, %v5398
    %v5400 = vand.u32 %v5399, 4294901760
    %5401 = vmatpush1.msra.mxu0 %v5400
    %v5402 = vand.u32 %v4202, 4294901760
    %v5403 = vsub.f32 %v4202, %v5402
    %v5404 = vand.u32 %v5403, 4294901760
    %5405 = vmatprep.subr.mxu0 %v5404
    %v5406 = vand.u32 %v4201, 4294901760
    %v5407 = vsub.f32 %v4201, %v5406
    %v5408 = vand.u32 %v5407, 4294901760
    %5409 = vmatpush1.msra.mxu0 %v5408
    %v5410 = vand.u32 %v4204, 4294901760
    %v5411 = vsub.f32 %v4204, %v5410
    %v5412 = vand.u32 %v5411, 4294901760
    %5413 = vmatprep.subr.mxu0 %v5412
    %v5414 = vand.u32 %v4203, 4294901760
    %v5415 = vsub.f32 %v4203, %v5414
    %v5416 = vand.u32 %v5415, 4294901760
    %5417 = vmatpush1.msra.mxu0 %v5416
    %v5418 = vand.u32 %v4206, 4294901760
    %v5419 = vsub.f32 %v4206, %v5418
    %v5420 = vand.u32 %v5419, 4294901760
    %5421 = vmatprep.subr.mxu0 %v5420
    %v5422 = vand.u32 %v4205, 4294901760
    %v5423 = vsub.f32 %v4205, %v5422
    %v5424 = vand.u32 %v5423, 4294901760
    %5425 = vmatpush1.msra.mxu0 %v5424
    %v5426 = vand.u32 %v4208, 4294901760
    %v5427 = vsub.f32 %v4208, %v5426
    %v5428 = vand.u32 %v5427, 4294901760
    %5429 = vmatprep.subr.mxu0 %v5428
    %v5430 = vand.u32 %v4207, 4294901760
    %v5431 = vsub.f32 %v4207, %v5430
    %v5432 = vand.u32 %v5431, 4294901760
    %5433 = vmatpush1.msra.mxu0 %v5432
    %v5434 = vand.u32 %v4210, 4294901760
    %v5435 = vsub.f32 %v4210, %v5434
    %v5436 = vand.u32 %v5435, 4294901760
    %5437 = vmatprep.subr.mxu0 %v5436
    %v5438 = vand.u32 %v4209, 4294901760
    %v5439 = vsub.f32 %v4209, %v5438
    %v5440 = vand.u32 %v5439, 4294901760
    %5441 = vmatpush1.msra.mxu0 %v5440
    %v5442 = vand.u32 %v4212, 4294901760
    %v5443 = vsub.f32 %v4212, %v5442
    %v5444 = vand.u32 %v5443, 4294901760
    %5445 = vmatprep.subr.mxu0 %v5444
    %v5446 = vand.u32 %v4211, 4294901760
    %v5447 = vsub.f32 %v4211, %v5446
    %v5448 = vand.u32 %v5447, 4294901760
    %5449 = vmatpush1.msra.mxu0 %v5448
    %v5450 = vand.u32 %v4214, 4294901760
    %v5451 = vsub.f32 %v4214, %v5450
    %v5452 = vand.u32 %v5451, 4294901760
    %5453 = vmatprep.subr.mxu0 %v5452
    %v5454 = vand.u32 %v4213, 4294901760
    %v5455 = vsub.f32 %v4213, %v5454
    %v5456 = vand.u32 %v5455, 4294901760
    %5457 = vmatpush1.msra.mxu0 %v5456
    %v5458 = vand.u32 %v4216, 4294901760
    %v5459 = vsub.f32 %v4216, %v5458
    %v5460 = vand.u32 %v5459, 4294901760
    %5461 = vmatprep.subr.mxu0 %v5460
    %v5462 = vand.u32 %v4215, 4294901760
    %v5463 = vsub.f32 %v4215, %v5462
    %v5464 = vand.u32 %v5463, 4294901760
    %5465 = vmatpush1.msra.mxu0 %v5464
    %v5466 = vand.u32 %v4218, 4294901760
    %v5467 = vsub.f32 %v4218, %v5466
    %v5468 = vand.u32 %v5467, 4294901760
    %5469 = vmatprep.subr.mxu0 %v5468
    %v5470 = vand.u32 %v4217, 4294901760
    %v5471 = vsub.f32 %v4217, %v5470
    %v5472 = vand.u32 %v5471, 4294901760
    %5473 = vmatpush1.msra.mxu0 %v5472
    %v5474 = vand.u32 %v4220, 4294901760
    %v5475 = vsub.f32 %v4220, %v5474
    %v5476 = vand.u32 %v5475, 4294901760
    %5477 = vmatprep.subr.mxu0 %v5476
    %v5478 = vand.u32 %v4219, 4294901760
    %v5479 = vsub.f32 %v4219, %v5478
    %v5480 = vand.u32 %v5479, 4294901760
    %5481 = vmatpush1.msra.mxu0 %v5480
    %v5482 = vand.u32 %v4222, 4294901760
    %v5483 = vsub.f32 %v4222, %v5482
    %v5484 = vand.u32 %v5483, 4294901760
    %5485 = vmatprep.subr.mxu0 %v5484
    %v5486 = vand.u32 %v4221, 4294901760
    %v5487 = vsub.f32 %v4221, %v5486
    %v5488 = vand.u32 %v5487, 4294901760
    %5489 = vmatpush1.msra.mxu0 %v5488
    %v5490 = vand.u32 %v4224, 4294901760
    %v5491 = vsub.f32 %v4224, %v5490
    %v5492 = vand.u32 %v5491, 4294901760
    %5493 = vmatprep.subr.mxu0 %v5492
    %v5494 = vand.u32 %v4223, 4294901760
    %v5495 = vsub.f32 %v4223, %v5494
    %v5496 = vand.u32 %v5495, 4294901760
    %5497 = vmatpush1.msra.mxu0 %v5496
    %v5498 = vand.u32 %v4226, 4294901760
    %v5499 = vsub.f32 %v4226, %v5498
    %v5500 = vand.u32 %v5499, 4294901760
    %5501 = vmatprep.subr.mxu0 %v5500
    %v5502 = vand.u32 %v4225, 4294901760
    %v5503 = vsub.f32 %v4225, %v5502
    %v5504 = vand.u32 %v5503, 4294901760
    %5505 = vmatpush1.msra.mxu0 %v5504
    %v5506 = vand.u32 %v4228, 4294901760
    %v5507 = vsub.f32 %v4228, %v5506
    %v5508 = vand.u32 %v5507, 4294901760
    %5509 = vmatprep.subr.mxu0 %v5508
    %v5510 = vand.u32 %v4227, 4294901760
    %v5511 = vsub.f32 %v4227, %v5510
    %v5512 = vand.u32 %v5511, 4294901760
    %5513 = vmatpush1.msra.mxu0 %v5512
    %v5514 = vand.u32 %v4230, 4294901760
    %v5515 = vsub.f32 %v4230, %v5514
    %v5516 = vand.u32 %v5515, 4294901760
    %5517 = vmatprep.subr.mxu0 %v5516
    %v5518 = vand.u32 %v4229, 4294901760
    %v5519 = vsub.f32 %v4229, %v5518
    %v5520 = vand.u32 %v5519, 4294901760
    %5521 = vmatpush1.msra.mxu0 %v5520
    %v5522 = vand.u32 %v4232, 4294901760
    %v5523 = vsub.f32 %v4232, %v5522
    %v5524 = vand.u32 %v5523, 4294901760
    %5525 = vmatprep.subr.mxu0 %v5524
    %v5526 = vand.u32 %v4231, 4294901760
    %v5527 = vsub.f32 %v4231, %v5526
    %v5528 = vand.u32 %v5527, 4294901760
    %5529 = vmatpush1.msra.mxu0 %v5528
    %v5530 = vand.u32 %v4234, 4294901760
    %v5531 = vsub.f32 %v4234, %v5530
    %v5532 = vand.u32 %v5531, 4294901760
    %5533 = vmatprep.subr.mxu0 %v5532
    %v5534 = vand.u32 %v4233, 4294901760
    %v5535 = vsub.f32 %v4233, %v5534
    %v5536 = vand.u32 %v5535, 4294901760
    %5537 = vmatpush1.msra.mxu0 %v5536
    %v5538 = vand.u32 %v4236, 4294901760
    %v5539 = vsub.f32 %v4236, %v5538
    %v5540 = vand.u32 %v5539, 4294901760
    %5541 = vmatprep.subr.mxu0 %v5540
    %v5542 = vand.u32 %v4235, 4294901760
    %v5543 = vsub.f32 %v4235, %v5542
    %v5544 = vand.u32 %v5543, 4294901760
    %5545 = vmatpush1.msra.mxu0 %v5544
    %v5546 = vand.u32 %v4238, 4294901760
    %v5547 = vsub.f32 %v4238, %v5546
    %v5548 = vand.u32 %v5547, 4294901760
    %5549 = vmatprep.subr.mxu0 %v5548
    %v5550 = vand.u32 %v4237, 4294901760
    %v5551 = vsub.f32 %v4237, %v5550
    %v5552 = vand.u32 %v5551, 4294901760
    %5553 = vmatpush1.msra.mxu0 %v5552
    %v5554 = vand.u32 %v4240, 4294901760
    %v5555 = vsub.f32 %v4240, %v5554
    %v5556 = vand.u32 %v5555, 4294901760
    %5557 = vmatprep.subr.mxu0 %v5556
    %v5558 = vand.u32 %v4239, 4294901760
    %v5559 = vsub.f32 %v4239, %v5558
    %v5560 = vand.u32 %v5559, 4294901760
    %5561 = vmatpush1.msra.mxu0 %v5560
    %v5562 = vand.u32 %v4242, 4294901760
    %v5563 = vsub.f32 %v4242, %v5562
    %v5564 = vand.u32 %v5563, 4294901760
    %5565 = vmatprep.subr.mxu0 %v5564
    %v5566 = vand.u32 %v4241, 4294901760
    %v5567 = vsub.f32 %v4241, %v5566
    %v5568 = vand.u32 %v5567, 4294901760
    %5569 = vmatpush1.msra.mxu0 %v5568
    %v5570 = vand.u32 %v4244, 4294901760
    %v5571 = vsub.f32 %v4244, %v5570
    %v5572 = vand.u32 %v5571, 4294901760
    %5573 = vmatprep.subr.mxu0 %v5572
    %v5574 = vand.u32 %v4243, 4294901760
    %v5575 = vsub.f32 %v4243, %v5574
    %v5576 = vand.u32 %v5575, 4294901760
    %5577 = vmatpush1.msra.mxu0 %v5576
    %v5578 = vand.u32 %v4246, 4294901760
    %v5579 = vsub.f32 %v4246, %v5578
    %v5580 = vand.u32 %v5579, 4294901760
    %5581 = vmatprep.subr.mxu0 %v5580
    %v5582 = vand.u32 %v4245, 4294901760
    %v5583 = vsub.f32 %v4245, %v5582
    %v5584 = vand.u32 %v5583, 4294901760
    %5585 = vmatpush1.msra.mxu0 %v5584
    %v5586 = vand.u32 %v4248, 4294901760
    %v5587 = vsub.f32 %v4248, %v5586
    %v5588 = vand.u32 %v5587, 4294901760
    %5589 = vmatprep.subr.mxu0 %v5588
    %v5590 = vand.u32 %v4247, 4294901760
    %v5591 = vsub.f32 %v4247, %v5590
    %v5592 = vand.u32 %v5591, 4294901760
    %5593 = vmatpush1.msra.mxu0 %v5592
    %v5594 = vand.u32 %v4250, 4294901760
    %v5595 = vsub.f32 %v4250, %v5594
    %v5596 = vand.u32 %v5595, 4294901760
    %5597 = vmatprep.subr.mxu0 %v5596
    %v5598 = vand.u32 %v4249, 4294901760
    %v5599 = vsub.f32 %v4249, %v5598
    %v5600 = vand.u32 %v5599, 4294901760
    %5601 = vmatpush1.msra.mxu0 %v5600
    %v5602 = vand.u32 %v4252, 4294901760
    %v5603 = vsub.f32 %v4252, %v5602
    %v5604 = vand.u32 %v5603, 4294901760
    %5605 = vmatprep.subr.mxu0 %v5604
    %v5606 = vand.u32 %v4251, 4294901760
    %v5607 = vsub.f32 %v4251, %v5606
    %v5608 = vand.u32 %v5607, 4294901760
    %5609 = vmatpush1.msra.mxu0 %v5608
    %v5610 = vand.u32 %v4254, 4294901760
    %v5611 = vsub.f32 %v4254, %v5610
    %v5612 = vand.u32 %v5611, 4294901760
    %5613 = vmatprep.subr.mxu0 %v5612
    %v5614 = vand.u32 %v4253, 4294901760
    %v5615 = vsub.f32 %v4253, %v5614
    %v5616 = vand.u32 %v5615, 4294901760
    %5617 = vmatpush1.msra.mxu0 %v5616
    %v5618 = vand.u32 %v4256, 4294901760
    %v5619 = vsub.f32 %v4256, %v5618
    %v5620 = vand.u32 %v5619, 4294901760
    %5621 = vmatprep.subr.mxu0 %v5620
    %v5622 = vand.u32 %v4255, 4294901760
    %v5623 = vsub.f32 %v4255, %v5622
    %v5624 = vand.u32 %v5623, 4294901760
    %5625 = vmatpush1.msra.mxu0 %v5624
    %v5626 = vand.u32 %v4258, 4294901760
    %v5627 = vsub.f32 %v4258, %v5626
    %v5628 = vand.u32 %v5627, 4294901760
    %5629 = vmatprep.subr.mxu0 %v5628
    %v5630 = vand.u32 %v4257, 4294901760
    %v5631 = vsub.f32 %v4257, %v5630
    %v5632 = vand.u32 %v5631, 4294901760
    %5633 = vmatpush1.msra.mxu0 %v5632
    %v5634 = vand.u32 %v4469, 4294901760
    %5635 = vmatprep.mubr.f32.mxu0 %v5634
    %v5636 = vand.u32 %v4461, 4294901760
    %5637 = vmatmul.mubr.f32.gmra.mrb[0].mxu0 %v5636
    %v5638 = vpop.f32.mrb[0].mxu0
    %v5639 = vadd.f32 %v5374, %v5638
    %v5640 = vpop.f32.mrb[0].mxu0
    %v5641 = vadd.f32 %v5376, %v5640
    %5642 = vdwg.mxu0
    %v5643 = vand.u32 %v4196, 4294901760
    %5644 = vmatprep.subr.mxu0 %v5643
    %v5645 = vand.u32 %v4195, 4294901760
    %5646 = vmatpush1.msra.mxu0 %v5645
    %v5647 = vand.u32 %v4198, 4294901760
    %5648 = vmatprep.subr.mxu0 %v5647
    %v5649 = vand.u32 %v4197, 4294901760
    %5650 = vmatpush1.msra.mxu0 %v5649
    %v5651 = vand.u32 %v4200, 4294901760
    %5652 = vmatprep.subr.mxu0 %v5651
    %v5653 = vand.u32 %v4199, 4294901760
    %5654 = vmatpush1.msra.mxu0 %v5653
    %v5655 = vand.u32 %v4202, 4294901760
    %5656 = vmatprep.subr.mxu0 %v5655
    %v5657 = vand.u32 %v4201, 4294901760
    %5658 = vmatpush1.msra.mxu0 %v5657
    %v5659 = vand.u32 %v4204, 4294901760
    %5660 = vmatprep.subr.mxu0 %v5659
    %v5661 = vand.u32 %v4203, 4294901760
    %5662 = vmatpush1.msra.mxu0 %v5661
    %v5663 = vand.u32 %v4206, 4294901760
    %5664 = vmatprep.subr.mxu0 %v5663
    %v5665 = vand.u32 %v4205, 4294901760
    %5666 = vmatpush1.msra.mxu0 %v5665
    %v5667 = vand.u32 %v4208, 4294901760
    %5668 = vmatprep.subr.mxu0 %v5667
    %v5669 = vand.u32 %v4207, 4294901760
    %5670 = vmatpush1.msra.mxu0 %v5669
    %v5671 = vand.u32 %v4210, 4294901760
    %5672 = vmatprep.subr.mxu0 %v5671
    %v5673 = vand.u32 %v4209, 4294901760
    %5674 = vmatpush1.msra.mxu0 %v5673
    %v5675 = vand.u32 %v4212, 4294901760
    %5676 = vmatprep.subr.mxu0 %v5675
    %v5677 = vand.u32 %v4211, 4294901760
    %5678 = vmatpush1.msra.mxu0 %v5677
    %v5679 = vand.u32 %v4214, 4294901760
    %5680 = vmatprep.subr.mxu0 %v5679
    %v5681 = vand.u32 %v4213, 4294901760
    %5682 = vmatpush1.msra.mxu0 %v5681
    %v5683 = vand.u32 %v4216, 4294901760
    %5684 = vmatprep.subr.mxu0 %v5683
    %v5685 = vand.u32 %v4215, 4294901760
    %5686 = vmatpush1.msra.mxu0 %v5685
    %v5687 = vand.u32 %v4218, 4294901760
    %5688 = vmatprep.subr.mxu0 %v5687
    %v5689 = vand.u32 %v4217, 4294901760
    %5690 = vmatpush1.msra.mxu0 %v5689
    %v5691 = vand.u32 %v4220, 4294901760
    %5692 = vmatprep.subr.mxu0 %v5691
    %v5693 = vand.u32 %v4219, 4294901760
    %5694 = vmatpush1.msra.mxu0 %v5693
    %v5695 = vand.u32 %v4222, 4294901760
    %5696 = vmatprep.subr.mxu0 %v5695
    %v5697 = vand.u32 %v4221, 4294901760
    %5698 = vmatpush1.msra.mxu0 %v5697
    %v5699 = vand.u32 %v4224, 4294901760
    %5700 = vmatprep.subr.mxu0 %v5699
    %v5701 = vand.u32 %v4223, 4294901760
    %5702 = vmatpush1.msra.mxu0 %v5701
    %v5703 = vand.u32 %v4226, 4294901760
    %5704 = vmatprep.subr.mxu0 %v5703
    %v5705 = vand.u32 %v4225, 4294901760
    %5706 = vmatpush1.msra.mxu0 %v5705
    %v5707 = vand.u32 %v4228, 4294901760
    %5708 = vmatprep.subr.mxu0 %v5707
    %v5709 = vand.u32 %v4227, 4294901760
    %5710 = vmatpush1.msra.mxu0 %v5709
    %v5711 = vand.u32 %v4230, 4294901760
    %5712 = vmatprep.subr.mxu0 %v5711
    %v5713 = vand.u32 %v4229, 4294901760
    %5714 = vmatpush1.msra.mxu0 %v5713
    %v5715 = vand.u32 %v4232, 4294901760
    %5716 = vmatprep.subr.mxu0 %v5715
    %v5717 = vand.u32 %v4231, 4294901760
    %5718 = vmatpush1.msra.mxu0 %v5717
    %v5719 = vand.u32 %v4234, 4294901760
    %5720 = vmatprep.subr.mxu0 %v5719
    %v5721 = vand.u32 %v4233, 4294901760
    %5722 = vmatpush1.msra.mxu0 %v5721
    %v5723 = vand.u32 %v4236, 4294901760
    %5724 = vmatprep.subr.mxu0 %v5723
    %v5725 = vand.u32 %v4235, 4294901760
    %5726 = vmatpush1.msra.mxu0 %v5725
    %v5727 = vand.u32 %v4238, 4294901760
    %5728 = vmatprep.subr.mxu0 %v5727
    %v5729 = vand.u32 %v4237, 4294901760
    %5730 = vmatpush1.msra.mxu0 %v5729
    %v5731 = vand.u32 %v4240, 4294901760
    %5732 = vmatprep.subr.mxu0 %v5731
    %v5733 = vand.u32 %v4239, 4294901760
    %5734 = vmatpush1.msra.mxu0 %v5733
    %v5735 = vand.u32 %v4242, 4294901760
    %5736 = vmatprep.subr.mxu0 %v5735
    %v5737 = vand.u32 %v4241, 4294901760
    %5738 = vmatpush1.msra.mxu0 %v5737
    %v5739 = vand.u32 %v4244, 4294901760
    %5740 = vmatprep.subr.mxu0 %v5739
    %v5741 = vand.u32 %v4243, 4294901760
    %5742 = vmatpush1.msra.mxu0 %v5741
    %v5743 = vand.u32 %v4246, 4294901760
    %5744 = vmatprep.subr.mxu0 %v5743
    %v5745 = vand.u32 %v4245, 4294901760
    %5746 = vmatpush1.msra.mxu0 %v5745
    %v5747 = vand.u32 %v4248, 4294901760
    %5748 = vmatprep.subr.mxu0 %v5747
    %v5749 = vand.u32 %v4247, 4294901760
    %5750 = vmatpush1.msra.mxu0 %v5749
    %v5751 = vand.u32 %v4250, 4294901760
    %5752 = vmatprep.subr.mxu0 %v5751
    %v5753 = vand.u32 %v4249, 4294901760
    %5754 = vmatpush1.msra.mxu0 %v5753
    %v5755 = vand.u32 %v4252, 4294901760
    %5756 = vmatprep.subr.mxu0 %v5755
    %v5757 = vand.u32 %v4251, 4294901760
    %5758 = vmatpush1.msra.mxu0 %v5757
    %v5759 = vand.u32 %v4254, 4294901760
    %5760 = vmatprep.subr.mxu0 %v5759
    %v5761 = vand.u32 %v4253, 4294901760
    %5762 = vmatpush1.msra.mxu0 %v5761
    %v5763 = vand.u32 %v4256, 4294901760
    %5764 = vmatprep.subr.mxu0 %v5763
    %v5765 = vand.u32 %v4255, 4294901760
    %5766 = vmatpush1.msra.mxu0 %v5765
    %v5767 = vand.u32 %v4258, 4294901760
    %5768 = vmatprep.subr.mxu0 %v5767
    %v5769 = vand.u32 %v4257, 4294901760
    %5770 = vmatpush1.msra.mxu0 %v5769
    %v5771 = vand.u32 %v4469, 4294901760
    %5772 = vmatprep.mubr.f32.mxu0 %v5771
    %v5773 = vand.u32 %v4461, 4294901760
    %5774 = vmatmul.mubr.f32.gmra.mrb[0].mxu0 %v5773
    %v5775 = vpop.f32.mrb[0].mxu0
    %v5776 = vadd.f32 %v5639, %v5775
    %v5777 = vpop.f32.mrb[0].mxu0
    %v5778 = vadd.f32 %v5641, %v5777
    %5779 = vdwg.mxu0
    %v5780 = vand.u32 %v4260, 4294901760
    %5781 = vmatprep.subr.mxu0 %v5780
    %v5782 = vand.u32 %v4259, 4294901760
    %5783 = vmatpush1.msra.mxu0 %v5782
    %v5784 = vand.u32 %v4262, 4294901760
    %5785 = vmatprep.subr.mxu0 %v5784
    %v5786 = vand.u32 %v4261, 4294901760
    %5787 = vmatpush1.msra.mxu0 %v5786
    %v5788 = vand.u32 %v4264, 4294901760
    %5789 = vmatprep.subr.mxu0 %v5788
    %v5790 = vand.u32 %v4263, 4294901760
    %5791 = vmatpush1.msra.mxu0 %v5790
    %v5792 = vand.u32 %v4266, 4294901760
    %5793 = vmatprep.subr.mxu0 %v5792
    %v5794 = vand.u32 %v4265, 4294901760
    %5795 = vmatpush1.msra.mxu0 %v5794
    %v5796 = vand.u32 %v4268, 4294901760
    %5797 = vmatprep.subr.mxu0 %v5796
    %v5798 = vand.u32 %v4267, 4294901760
    %5799 = vmatpush1.msra.mxu0 %v5798
    %v5800 = vand.u32 %v4270, 4294901760
    %5801 = vmatprep.subr.mxu0 %v5800
    %v5802 = vand.u32 %v4269, 4294901760
    %5803 = vmatpush1.msra.mxu0 %v5802
    %v5804 = vand.u32 %v4272, 4294901760
    %5805 = vmatprep.subr.mxu0 %v5804
    %v5806 = vand.u32 %v4271, 4294901760
    %5807 = vmatpush1.msra.mxu0 %v5806
    %v5808 = vand.u32 %v4274, 4294901760
    %5809 = vmatprep.subr.mxu0 %v5808
    %v5810 = vand.u32 %v4273, 4294901760
    %5811 = vmatpush1.msra.mxu0 %v5810
    %v5812 = vand.u32 %v4276, 4294901760
    %5813 = vmatprep.subr.mxu0 %v5812
    %v5814 = vand.u32 %v4275, 4294901760
    %5815 = vmatpush1.msra.mxu0 %v5814
    %v5816 = vand.u32 %v4278, 4294901760
    %5817 = vmatprep.subr.mxu0 %v5816
    %v5818 = vand.u32 %v4277, 4294901760
    %5819 = vmatpush1.msra.mxu0 %v5818
    %v5820 = vand.u32 %v4280, 4294901760
    %5821 = vmatprep.subr.mxu0 %v5820
    %v5822 = vand.u32 %v4279, 4294901760
    %5823 = vmatpush1.msra.mxu0 %v5822
    %v5824 = vand.u32 %v4282, 4294901760
    %5825 = vmatprep.subr.mxu0 %v5824
    %v5826 = vand.u32 %v4281, 4294901760
    %5827 = vmatpush1.msra.mxu0 %v5826
    %v5828 = vand.u32 %v4284, 4294901760
    %5829 = vmatprep.subr.mxu0 %v5828
    %v5830 = vand.u32 %v4283, 4294901760
    %5831 = vmatpush1.msra.mxu0 %v5830
    %v5832 = vand.u32 %v4286, 4294901760
    %5833 = vmatprep.subr.mxu0 %v5832
    %v5834 = vand.u32 %v4285, 4294901760
    %5835 = vmatpush1.msra.mxu0 %v5834
    %v5836 = vand.u32 %v4288, 4294901760
    %5837 = vmatprep.subr.mxu0 %v5836
    %v5838 = vand.u32 %v4287, 4294901760
    %5839 = vmatpush1.msra.mxu0 %v5838
    %v5840 = vand.u32 %v4290, 4294901760
    %5841 = vmatprep.subr.mxu0 %v5840
    %v5842 = vand.u32 %v4289, 4294901760
    %5843 = vmatpush1.msra.mxu0 %v5842
    %v5844 = vand.u32 %v4292, 4294901760
    %5845 = vmatprep.subr.mxu0 %v5844
    %v5846 = vand.u32 %v4291, 4294901760
    %5847 = vmatpush1.msra.mxu0 %v5846
    %v5848 = vand.u32 %v4294, 4294901760
    %5849 = vmatprep.subr.mxu0 %v5848
    %v5850 = vand.u32 %v4293, 4294901760
    %5851 = vmatpush1.msra.mxu0 %v5850
    %v5852 = vand.u32 %v4296, 4294901760
    %5853 = vmatprep.subr.mxu0 %v5852
    %v5854 = vand.u32 %v4295, 4294901760
    %5855 = vmatpush1.msra.mxu0 %v5854
    %v5856 = vand.u32 %v4298, 4294901760
    %5857 = vmatprep.subr.mxu0 %v5856
    %v5858 = vand.u32 %v4297, 4294901760
    %5859 = vmatpush1.msra.mxu0 %v5858
    %v5860 = vand.u32 %v4300, 4294901760
    %5861 = vmatprep.subr.mxu0 %v5860
    %v5862 = vand.u32 %v4299, 4294901760
    %5863 = vmatpush1.msra.mxu0 %v5862
    %v5864 = vand.u32 %v4302, 4294901760
    %5865 = vmatprep.subr.mxu0 %v5864
    %v5866 = vand.u32 %v4301, 4294901760
    %5867 = vmatpush1.msra.mxu0 %v5866
    %v5868 = vand.u32 %v4304, 4294901760
    %5869 = vmatprep.subr.mxu0 %v5868
    %v5870 = vand.u32 %v4303, 4294901760
    %5871 = vmatpush1.msra.mxu0 %v5870
    %v5872 = vand.u32 %v4306, 4294901760
    %5873 = vmatprep.subr.mxu0 %v5872
    %v5874 = vand.u32 %v4305, 4294901760
    %5875 = vmatpush1.msra.mxu0 %v5874
    %v5876 = vand.u32 %v4308, 4294901760
    %5877 = vmatprep.subr.mxu0 %v5876
    %v5878 = vand.u32 %v4307, 4294901760
    %5879 = vmatpush1.msra.mxu0 %v5878
    %v5880 = vand.u32 %v4310, 4294901760
    %5881 = vmatprep.subr.mxu0 %v5880
    %v5882 = vand.u32 %v4309, 4294901760
    %5883 = vmatpush1.msra.mxu0 %v5882
    %v5884 = vand.u32 %v4312, 4294901760
    %5885 = vmatprep.subr.mxu0 %v5884
    %v5886 = vand.u32 %v4311, 4294901760
    %5887 = vmatpush1.msra.mxu0 %v5886
    %v5888 = vand.u32 %v4314, 4294901760
    %5889 = vmatprep.subr.mxu0 %v5888
    %v5890 = vand.u32 %v4313, 4294901760
    %5891 = vmatpush1.msra.mxu0 %v5890
    %v5892 = vand.u32 %v4316, 4294901760
    %5893 = vmatprep.subr.mxu0 %v5892
    %v5894 = vand.u32 %v4315, 4294901760
    %5895 = vmatpush1.msra.mxu0 %v5894
    %v5896 = vand.u32 %v4318, 4294901760
    %5897 = vmatprep.subr.mxu0 %v5896
    %v5898 = vand.u32 %v4317, 4294901760
    %5899 = vmatpush1.msra.mxu0 %v5898
    %v5900 = vand.u32 %v4320, 4294901760
    %5901 = vmatprep.subr.mxu0 %v5900
    %v5902 = vand.u32 %v4319, 4294901760
    %5903 = vmatpush1.msra.mxu0 %v5902
    %v5904 = vand.u32 %v4322, 4294901760
    %5905 = vmatprep.subr.mxu0 %v5904
    %v5906 = vand.u32 %v4321, 4294901760
    %5907 = vmatpush1.msra.mxu0 %v5906
    %v5908 = vand.u32 %v4470, 4294901760
    %v5909 = vsub.f32 %v4470, %v5908
    %v5910 = vand.u32 %v5909, 4294901760
    %v5911 = vsub.f32 %v5909, %v5910
    %v5912 = vand.u32 %v5911, 4294901760
    %5913 = vmatprep.mubr.f32.mxu0 %v5912
    %v5914 = vand.u32 %v4468, 4294901760
    %v5915 = vsub.f32 %v4468, %v5914
    %v5916 = vand.u32 %v5915, 4294901760
    %v5917 = vsub.f32 %v5915, %v5916
    %v5918 = vand.u32 %v5917, 4294901760
    %5919 = vmatmul.mubr.f32.gmra.mrb[0].mxu0 %v5918
    %v5920 = vpop.f32.mrb[0].mxu0
    %v5921 = vadd.f32 %v5776, %v5920
    %v5922 = vpop.f32.mrb[0].mxu0
    %v5923 = vadd.f32 %v5778, %v5922
    %5924 = vdwg.mxu0
    %v5925 = vand.u32 %v4260, 4294901760
    %v5926 = vsub.f32 %v4260, %v5925
    %v5927 = vand.u32 %v5926, 4294901760
    %v5928 = vsub.f32 %v5926, %v5927
    %v5929 = vand.u32 %v5928, 4294901760
    %5930 = vmatprep.subr.mxu0 %v5929
    %v5931 = vand.u32 %v4259, 4294901760
    %v5932 = vsub.f32 %v4259, %v5931
    %v5933 = vand.u32 %v5932, 4294901760
    %v5934 = vsub.f32 %v5932, %v5933
    %v5935 = vand.u32 %v5934, 4294901760
    %5936 = vmatpush1.msra.mxu0 %v5935
    %v5937 = vand.u32 %v4262, 4294901760
    %v5938 = vsub.f32 %v4262, %v5937
    %v5939 = vand.u32 %v5938, 4294901760
    %v5940 = vsub.f32 %v5938, %v5939
    %v5941 = vand.u32 %v5940, 4294901760
    %5942 = vmatprep.subr.mxu0 %v5941
    %v5943 = vand.u32 %v4261, 4294901760
    %v5944 = vsub.f32 %v4261, %v5943
    %v5945 = vand.u32 %v5944, 4294901760
    %v5946 = vsub.f32 %v5944, %v5945
    %v5947 = vand.u32 %v5946, 4294901760
    %5948 = vmatpush1.msra.mxu0 %v5947
    %v5949 = vand.u32 %v4264, 4294901760
    %v5950 = vsub.f32 %v4264, %v5949
    %v5951 = vand.u32 %v5950, 4294901760
    %v5952 = vsub.f32 %v5950, %v5951
    %v5953 = vand.u32 %v5952, 4294901760
    %5954 = vmatprep.subr.mxu0 %v5953
    %v5955 = vand.u32 %v4263, 4294901760
    %v5956 = vsub.f32 %v4263, %v5955
    %v5957 = vand.u32 %v5956, 4294901760
    %v5958 = vsub.f32 %v5956, %v5957
    %v5959 = vand.u32 %v5958, 4294901760
    %5960 = vmatpush1.msra.mxu0 %v5959
    %v5961 = vand.u32 %v4266, 4294901760
    %v5962 = vsub.f32 %v4266, %v5961
    %v5963 = vand.u32 %v5962, 4294901760
    %v5964 = vsub.f32 %v5962, %v5963
    %v5965 = vand.u32 %v5964, 4294901760
    %5966 = vmatprep.subr.mxu0 %v5965
    %v5967 = vand.u32 %v4265, 4294901760
    %v5968 = vsub.f32 %v4265, %v5967
    %v5969 = vand.u32 %v5968, 4294901760
    %v5970 = vsub.f32 %v5968, %v5969
    %v5971 = vand.u32 %v5970, 4294901760
    %5972 = vmatpush1.msra.mxu0 %v5971
    %v5973 = vand.u32 %v4268, 4294901760
    %v5974 = vsub.f32 %v4268, %v5973
    %v5975 = vand.u32 %v5974, 4294901760
    %v5976 = vsub.f32 %v5974, %v5975
    %v5977 = vand.u32 %v5976, 4294901760
    %5978 = vmatprep.subr.mxu0 %v5977
    %v5979 = vand.u32 %v4267, 4294901760
    %v5980 = vsub.f32 %v4267, %v5979
    %v5981 = vand.u32 %v5980, 4294901760
    %v5982 = vsub.f32 %v5980, %v5981
    %v5983 = vand.u32 %v5982, 4294901760
    %5984 = vmatpush1.msra.mxu0 %v5983
    %v5985 = vand.u32 %v4270, 4294901760
    %v5986 = vsub.f32 %v4270, %v5985
    %v5987 = vand.u32 %v5986, 4294901760
    %v5988 = vsub.f32 %v5986, %v5987
    %v5989 = vand.u32 %v5988, 4294901760
    %5990 = vmatprep.subr.mxu0 %v5989
    %v5991 = vand.u32 %v4269, 4294901760
    %v5992 = vsub.f32 %v4269, %v5991
    %v5993 = vand.u32 %v5992, 4294901760
    %v5994 = vsub.f32 %v5992, %v5993
    %v5995 = vand.u32 %v5994, 4294901760
    %5996 = vmatpush1.msra.mxu0 %v5995
    %v5997 = vand.u32 %v4272, 4294901760
    %v5998 = vsub.f32 %v4272, %v5997
    %v5999 = vand.u32 %v5998, 4294901760
    %v6000 = vsub.f32 %v5998, %v5999
    %v6001 = vand.u32 %v6000, 4294901760
    %6002 = vmatprep.subr.mxu0 %v6001
    %v6003 = vand.u32 %v4271, 4294901760
    %v6004 = vsub.f32 %v4271, %v6003
    %v6005 = vand.u32 %v6004, 4294901760
    %v6006 = vsub.f32 %v6004, %v6005
    %v6007 = vand.u32 %v6006, 4294901760
    %6008 = vmatpush1.msra.mxu0 %v6007
    %v6009 = vand.u32 %v4274, 4294901760
    %v6010 = vsub.f32 %v4274, %v6009
    %v6011 = vand.u32 %v6010, 4294901760
    %v6012 = vsub.f32 %v6010, %v6011
    %v6013 = vand.u32 %v6012, 4294901760
    %6014 = vmatprep.subr.mxu0 %v6013
    %v6015 = vand.u32 %v4273, 4294901760
    %v6016 = vsub.f32 %v4273, %v6015
    %v6017 = vand.u32 %v6016, 4294901760
    %v6018 = vsub.f32 %v6016, %v6017
    %v6019 = vand.u32 %v6018, 4294901760
    %6020 = vmatpush1.msra.mxu0 %v6019
    %v6021 = vand.u32 %v4276, 4294901760
    %v6022 = vsub.f32 %v4276, %v6021
    %v6023 = vand.u32 %v6022, 4294901760
    %v6024 = vsub.f32 %v6022, %v6023
    %v6025 = vand.u32 %v6024, 4294901760
    %6026 = vmatprep.subr.mxu0 %v6025
    %v6027 = vand.u32 %v4275, 4294901760
    %v6028 = vsub.f32 %v4275, %v6027
    %v6029 = vand.u32 %v6028, 4294901760
    %v6030 = vsub.f32 %v6028, %v6029
    %v6031 = vand.u32 %v6030, 4294901760
    %6032 = vmatpush1.msra.mxu0 %v6031
    %v6033 = vand.u32 %v4278, 4294901760
    %v6034 = vsub.f32 %v4278, %v6033
    %v6035 = vand.u32 %v6034, 4294901760
    %v6036 = vsub.f32 %v6034, %v6035
    %v6037 = vand.u32 %v6036, 4294901760
    %6038 = vmatprep.subr.mxu0 %v6037
    %v6039 = vand.u32 %v4277, 4294901760
    %v6040 = vsub.f32 %v4277, %v6039
    %v6041 = vand.u32 %v6040, 4294901760
    %v6042 = vsub.f32 %v6040, %v6041
    %v6043 = vand.u32 %v6042, 4294901760
    %6044 = vmatpush1.msra.mxu0 %v6043
    %v6045 = vand.u32 %v4280, 4294901760
    %v6046 = vsub.f32 %v4280, %v6045
    %v6047 = vand.u32 %v6046, 4294901760
    %v6048 = vsub.f32 %v6046, %v6047
    %v6049 = vand.u32 %v6048, 4294901760
    %6050 = vmatprep.subr.mxu0 %v6049
    %v6051 = vand.u32 %v4279, 4294901760
    %v6052 = vsub.f32 %v4279, %v6051
    %v6053 = vand.u32 %v6052, 4294901760
    %v6054 = vsub.f32 %v6052, %v6053
    %v6055 = vand.u32 %v6054, 4294901760
    %6056 = vmatpush1.msra.mxu0 %v6055
    %v6057 = vand.u32 %v4282, 4294901760
    %v6058 = vsub.f32 %v4282, %v6057
    %v6059 = vand.u32 %v6058, 4294901760
    %v6060 = vsub.f32 %v6058, %v6059
    %v6061 = vand.u32 %v6060, 4294901760
    %6062 = vmatprep.subr.mxu0 %v6061
    %v6063 = vand.u32 %v4281, 4294901760
    %v6064 = vsub.f32 %v4281, %v6063
    %v6065 = vand.u32 %v6064, 4294901760
    %v6066 = vsub.f32 %v6064, %v6065
    %v6067 = vand.u32 %v6066, 4294901760
    %6068 = vmatpush1.msra.mxu0 %v6067
    %v6069 = vand.u32 %v4284, 4294901760
    %v6070 = vsub.f32 %v4284, %v6069
    %v6071 = vand.u32 %v6070, 4294901760
    %v6072 = vsub.f32 %v6070, %v6071
    %v6073 = vand.u32 %v6072, 4294901760
    %6074 = vmatprep.subr.mxu0 %v6073
    %v6075 = vand.u32 %v4283, 4294901760
    %v6076 = vsub.f32 %v4283, %v6075
    %v6077 = vand.u32 %v6076, 4294901760
    %v6078 = vsub.f32 %v6076, %v6077
    %v6079 = vand.u32 %v6078, 4294901760
    %6080 = vmatpush1.msra.mxu0 %v6079
    %v6081 = vand.u32 %v4286, 4294901760
    %v6082 = vsub.f32 %v4286, %v6081
    %v6083 = vand.u32 %v6082, 4294901760
    %v6084 = vsub.f32 %v6082, %v6083
    %v6085 = vand.u32 %v6084, 4294901760
    %6086 = vmatprep.subr.mxu0 %v6085
    %v6087 = vand.u32 %v4285, 4294901760
    %v6088 = vsub.f32 %v4285, %v6087
    %v6089 = vand.u32 %v6088, 4294901760
    %v6090 = vsub.f32 %v6088, %v6089
    %v6091 = vand.u32 %v6090, 4294901760
    %6092 = vmatpush1.msra.mxu0 %v6091
    %v6093 = vand.u32 %v4288, 4294901760
    %v6094 = vsub.f32 %v4288, %v6093
    %v6095 = vand.u32 %v6094, 4294901760
    %v6096 = vsub.f32 %v6094, %v6095
    %v6097 = vand.u32 %v6096, 4294901760
    %6098 = vmatprep.subr.mxu0 %v6097
    %v6099 = vand.u32 %v4287, 4294901760
    %v6100 = vsub.f32 %v4287, %v6099
    %v6101 = vand.u32 %v6100, 4294901760
    %v6102 = vsub.f32 %v6100, %v6101
    %v6103 = vand.u32 %v6102, 4294901760
    %6104 = vmatpush1.msra.mxu0 %v6103
    %v6105 = vand.u32 %v4290, 4294901760
    %v6106 = vsub.f32 %v4290, %v6105
    %v6107 = vand.u32 %v6106, 4294901760
    %v6108 = vsub.f32 %v6106, %v6107
    %v6109 = vand.u32 %v6108, 4294901760
    %6110 = vmatprep.subr.mxu0 %v6109
    %v6111 = vand.u32 %v4289, 4294901760
    %v6112 = vsub.f32 %v4289, %v6111
    %v6113 = vand.u32 %v6112, 4294901760
    %v6114 = vsub.f32 %v6112, %v6113
    %v6115 = vand.u32 %v6114, 4294901760
    %6116 = vmatpush1.msra.mxu0 %v6115
    %v6117 = vand.u32 %v4292, 4294901760
    %v6118 = vsub.f32 %v4292, %v6117
    %v6119 = vand.u32 %v6118, 4294901760
    %v6120 = vsub.f32 %v6118, %v6119
    %v6121 = vand.u32 %v6120, 4294901760
    %6122 = vmatprep.subr.mxu0 %v6121
    %v6123 = vand.u32 %v4291, 4294901760
    %v6124 = vsub.f32 %v4291, %v6123
    %v6125 = vand.u32 %v6124, 4294901760
    %v6126 = vsub.f32 %v6124, %v6125
    %v6127 = vand.u32 %v6126, 4294901760
    %6128 = vmatpush1.msra.mxu0 %v6127
    %v6129 = vand.u32 %v4294, 4294901760
    %v6130 = vsub.f32 %v4294, %v6129
    %v6131 = vand.u32 %v6130, 4294901760
    %v6132 = vsub.f32 %v6130, %v6131
    %v6133 = vand.u32 %v6132, 4294901760
    %6134 = vmatprep.subr.mxu0 %v6133
    %v6135 = vand.u32 %v4293, 4294901760
    %v6136 = vsub.f32 %v4293, %v6135
    %v6137 = vand.u32 %v6136, 4294901760
    %v6138 = vsub.f32 %v6136, %v6137
    %v6139 = vand.u32 %v6138, 4294901760
    %6140 = vmatpush1.msra.mxu0 %v6139
    %v6141 = vand.u32 %v4296, 4294901760
    %v6142 = vsub.f32 %v4296, %v6141
    %v6143 = vand.u32 %v6142, 4294901760
    %v6144 = vsub.f32 %v6142, %v6143
    %v6145 = vand.u32 %v6144, 4294901760
    %6146 = vmatprep.subr.mxu0 %v6145
    %v6147 = vand.u32 %v4295, 4294901760
    %v6148 = vsub.f32 %v4295, %v6147
    %v6149 = vand.u32 %v6148, 4294901760
    %v6150 = vsub.f32 %v6148, %v6149
    %v6151 = vand.u32 %v6150, 4294901760
    %6152 = vmatpush1.msra.mxu0 %v6151
    %v6153 = vand.u32 %v4298, 4294901760
    %v6154 = vsub.f32 %v4298, %v6153
    %v6155 = vand.u32 %v6154, 4294901760
    %v6156 = vsub.f32 %v6154, %v6155
    %v6157 = vand.u32 %v6156, 4294901760
    %6158 = vmatprep.subr.mxu0 %v6157
    %v6159 = vand.u32 %v4297, 4294901760
    %v6160 = vsub.f32 %v4297, %v6159
    %v6161 = vand.u32 %v6160, 4294901760
    %v6162 = vsub.f32 %v6160, %v6161
    %v6163 = vand.u32 %v6162, 4294901760
    %6164 = vmatpush1.msra.mxu0 %v6163
    %v6165 = vand.u32 %v4300, 4294901760
    %v6166 = vsub.f32 %v4300, %v6165
    %v6167 = vand.u32 %v6166, 4294901760
    %v6168 = vsub.f32 %v6166, %v6167
    %v6169 = vand.u32 %v6168, 4294901760
    %6170 = vmatprep.subr.mxu0 %v6169
    %v6171 = vand.u32 %v4299, 4294901760
    %v6172 = vsub.f32 %v4299, %v6171
    %v6173 = vand.u32 %v6172, 4294901760
    %v6174 = vsub.f32 %v6172, %v6173
    %v6175 = vand.u32 %v6174, 4294901760
    %6176 = vmatpush1.msra.mxu0 %v6175
    %v6177 = vand.u32 %v4302, 4294901760
    %v6178 = vsub.f32 %v4302, %v6177
    %v6179 = vand.u32 %v6178, 4294901760
    %v6180 = vsub.f32 %v6178, %v6179
    %v6181 = vand.u32 %v6180, 4294901760
    %6182 = vmatprep.subr.mxu0 %v6181
    %v6183 = vand.u32 %v4301, 4294901760
    %v6184 = vsub.f32 %v4301, %v6183
    %v6185 = vand.u32 %v6184, 4294901760
    %v6186 = vsub.f32 %v6184, %v6185
    %v6187 = vand.u32 %v6186, 4294901760
    %6188 = vmatpush1.msra.mxu0 %v6187
    %v6189 = vand.u32 %v4304, 4294901760
    %v6190 = vsub.f32 %v4304, %v6189
    %v6191 = vand.u32 %v6190, 4294901760
    %v6192 = vsub.f32 %v6190, %v6191
    %v6193 = vand.u32 %v6192, 4294901760
    %6194 = vmatprep.subr.mxu0 %v6193
    %v6195 = vand.u32 %v4303, 4294901760
    %v6196 = vsub.f32 %v4303, %v6195
    %v6197 = vand.u32 %v6196, 4294901760
    %v6198 = vsub.f32 %v6196, %v6197
    %v6199 = vand.u32 %v6198, 4294901760
    %6200 = vmatpush1.msra.mxu0 %v6199
    %v6201 = vand.u32 %v4306, 4294901760
    %v6202 = vsub.f32 %v4306, %v6201
    %v6203 = vand.u32 %v6202, 4294901760
    %v6204 = vsub.f32 %v6202, %v6203
    %v6205 = vand.u32 %v6204, 4294901760
    %6206 = vmatprep.subr.mxu0 %v6205
    %v6207 = vand.u32 %v4305, 4294901760
    %v6208 = vsub.f32 %v4305, %v6207
    %v6209 = vand.u32 %v6208, 4294901760
    %v6210 = vsub.f32 %v6208, %v6209
    %v6211 = vand.u32 %v6210, 4294901760
    %6212 = vmatpush1.msra.mxu0 %v6211
    %v6213 = vand.u32 %v4308, 4294901760
    %v6214 = vsub.f32 %v4308, %v6213
    %v6215 = vand.u32 %v6214, 4294901760
    %v6216 = vsub.f32 %v6214, %v6215
    %v6217 = vand.u32 %v6216, 4294901760
    %6218 = vmatprep.subr.mxu0 %v6217
    %v6219 = vand.u32 %v4307, 4294901760
    %v6220 = vsub.f32 %v4307, %v6219
    %v6221 = vand.u32 %v6220, 4294901760
    %v6222 = vsub.f32 %v6220, %v6221
    %v6223 = vand.u32 %v6222, 4294901760
    %6224 = vmatpush1.msra.mxu0 %v6223
    %v6225 = vand.u32 %v4310, 4294901760
    %v6226 = vsub.f32 %v4310, %v6225
    %v6227 = vand.u32 %v6226, 4294901760
    %v6228 = vsub.f32 %v6226, %v6227
    %v6229 = vand.u32 %v6228, 4294901760
    %6230 = vmatprep.subr.mxu0 %v6229
    %v6231 = vand.u32 %v4309, 4294901760
    %v6232 = vsub.f32 %v4309, %v6231
    %v6233 = vand.u32 %v6232, 4294901760
    %v6234 = vsub.f32 %v6232, %v6233
    %v6235 = vand.u32 %v6234, 4294901760
    %6236 = vmatpush1.msra.mxu0 %v6235
    %v6237 = vand.u32 %v4312, 4294901760
    %v6238 = vsub.f32 %v4312, %v6237
    %v6239 = vand.u32 %v6238, 4294901760
    %v6240 = vsub.f32 %v6238, %v6239
    %v6241 = vand.u32 %v6240, 4294901760
    %6242 = vmatprep.subr.mxu0 %v6241
    %v6243 = vand.u32 %v4311, 4294901760
    %v6244 = vsub.f32 %v4311, %v6243
    %v6245 = vand.u32 %v6244, 4294901760
    %v6246 = vsub.f32 %v6244, %v6245
    %v6247 = vand.u32 %v6246, 4294901760
    %6248 = vmatpush1.msra.mxu0 %v6247
    %v6249 = vand.u32 %v4314, 4294901760
    %v6250 = vsub.f32 %v4314, %v6249
    %v6251 = vand.u32 %v6250, 4294901760
    %v6252 = vsub.f32 %v6250, %v6251
    %v6253 = vand.u32 %v6252, 4294901760
    %6254 = vmatprep.subr.mxu0 %v6253
    %v6255 = vand.u32 %v4313, 4294901760
    %v6256 = vsub.f32 %v4313, %v6255
    %v6257 = vand.u32 %v6256, 4294901760
    %v6258 = vsub.f32 %v6256, %v6257
    %v6259 = vand.u32 %v6258, 4294901760
    %6260 = vmatpush1.msra.mxu0 %v6259
    %v6261 = vand.u32 %v4316, 4294901760
    %v6262 = vsub.f32 %v4316, %v6261
    %v6263 = vand.u32 %v6262, 4294901760
    %v6264 = vsub.f32 %v6262, %v6263
    %v6265 = vand.u32 %v6264, 4294901760
    %6266 = vmatprep.subr.mxu0 %v6265
    %v6267 = vand.u32 %v4315, 4294901760
    %v6268 = vsub.f32 %v4315, %v6267
    %v6269 = vand.u32 %v6268, 4294901760
    %v6270 = vsub.f32 %v6268, %v6269
    %v6271 = vand.u32 %v6270, 4294901760
    %6272 = vmatpush1.msra.mxu0 %v6271
    %v6273 = vand.u32 %v4318, 4294901760
    %v6274 = vsub.f32 %v4318, %v6273
    %v6275 = vand.u32 %v6274, 4294901760
    %v6276 = vsub.f32 %v6274, %v6275
    %v6277 = vand.u32 %v6276, 4294901760
    %6278 = vmatprep.subr.mxu0 %v6277
    %v6279 = vand.u32 %v4317, 4294901760
    %v6280 = vsub.f32 %v4317, %v6279
    %v6281 = vand.u32 %v6280, 4294901760
    %v6282 = vsub.f32 %v6280, %v6281
    %v6283 = vand.u32 %v6282, 4294901760
    %6284 = vmatpush1.msra.mxu0 %v6283
    %v6285 = vand.u32 %v4320, 4294901760
    %v6286 = vsub.f32 %v4320, %v6285
    %v6287 = vand.u32 %v6286, 4294901760
    %v6288 = vsub.f32 %v6286, %v6287
    %v6289 = vand.u32 %v6288, 4294901760
    %6290 = vmatprep.subr.mxu0 %v6289
    %v6291 = vand.u32 %v4319, 4294901760
    %v6292 = vsub.f32 %v4319, %v6291
    %v6293 = vand.u32 %v6292, 4294901760
    %v6294 = vsub.f32 %v6292, %v6293
    %v6295 = vand.u32 %v6294, 4294901760
    %6296 = vmatpush1.msra.mxu0 %v6295
    %v6297 = vand.u32 %v4322, 4294901760
    %v6298 = vsub.f32 %v4322, %v6297
    %v6299 = vand.u32 %v6298, 4294901760
    %v6300 = vsub.f32 %v6298, %v6299
    %v6301 = vand.u32 %v6300, 4294901760
    %6302 = vmatprep.subr.mxu0 %v6301
    %v6303 = vand.u32 %v4321, 4294901760
    %v6304 = vsub.f32 %v4321, %v6303
    %v6305 = vand.u32 %v6304, 4294901760
    %v6306 = vsub.f32 %v6304, %v6305
    %v6307 = vand.u32 %v6306, 4294901760
    %6308 = vmatpush1.msra.mxu0 %v6307
    %v6309 = vand.u32 %v4470, 4294901760
    %6310 = vmatprep.mubr.f32.mxu0 %v6309
    %v6311 = vand.u32 %v4468, 4294901760
    %6312 = vmatmul.mubr.f32.gmra.mrb[0].mxu0 %v6311
    %v6313 = vpop.f32.mrb[0].mxu0
    %v6314 = vadd.f32 %v5921, %v6313
    %v6315 = vpop.f32.mrb[0].mxu0
    %v6316 = vadd.f32 %v5923, %v6315
    %6317 = vdwg.mxu0
    %v6318 = vand.u32 %v4260, 4294901760
    %v6319 = vsub.f32 %v4260, %v6318
    %6320 = vmatprep.subr.mxu0 %v6319
    %v6321 = vand.u32 %v4259, 4294901760
    %v6322 = vsub.f32 %v4259, %v6321
    %6323 = vmatpush1.msra.mxu0 %v6322
    %v6324 = vand.u32 %v4262, 4294901760
    %v6325 = vsub.f32 %v4262, %v6324
    %6326 = vmatprep.subr.mxu0 %v6325
    %v6327 = vand.u32 %v4261, 4294901760
    %v6328 = vsub.f32 %v4261, %v6327
    %6329 = vmatpush1.msra.mxu0 %v6328
    %v6330 = vand.u32 %v4264, 4294901760
    %v6331 = vsub.f32 %v4264, %v6330
    %6332 = vmatprep.subr.mxu0 %v6331
    %v6333 = vand.u32 %v4263, 4294901760
    %v6334 = vsub.f32 %v4263, %v6333
    %6335 = vmatpush1.msra.mxu0 %v6334
    %v6336 = vand.u32 %v4266, 4294901760
    %v6337 = vsub.f32 %v4266, %v6336
    %6338 = vmatprep.subr.mxu0 %v6337
    %v6339 = vand.u32 %v4265, 4294901760
    %v6340 = vsub.f32 %v4265, %v6339
    %6341 = vmatpush1.msra.mxu0 %v6340
    %v6342 = vand.u32 %v4268, 4294901760
    %v6343 = vsub.f32 %v4268, %v6342
    %6344 = vmatprep.subr.mxu0 %v6343
    %v6345 = vand.u32 %v4267, 4294901760
    %v6346 = vsub.f32 %v4267, %v6345
    %6347 = vmatpush1.msra.mxu0 %v6346
    %v6348 = vand.u32 %v4270, 4294901760
    %v6349 = vsub.f32 %v4270, %v6348
    %6350 = vmatprep.subr.mxu0 %v6349
    %v6351 = vand.u32 %v4269, 4294901760
    %v6352 = vsub.f32 %v4269, %v6351
    %6353 = vmatpush1.msra.mxu0 %v6352
    %v6354 = vand.u32 %v4272, 4294901760
    %v6355 = vsub.f32 %v4272, %v6354
    %6356 = vmatprep.subr.mxu0 %v6355
    %v6357 = vand.u32 %v4271, 4294901760
    %v6358 = vsub.f32 %v4271, %v6357
    %6359 = vmatpush1.msra.mxu0 %v6358
    %v6360 = vand.u32 %v4274, 4294901760
    %v6361 = vsub.f32 %v4274, %v6360
    %6362 = vmatprep.subr.mxu0 %v6361
    %v6363 = vand.u32 %v4273, 4294901760
    %v6364 = vsub.f32 %v4273, %v6363
    %6365 = vmatpush1.msra.mxu0 %v6364
    %v6366 = vand.u32 %v4276, 4294901760
    %v6367 = vsub.f32 %v4276, %v6366
    %6368 = vmatprep.subr.mxu0 %v6367
    %v6369 = vand.u32 %v4275, 4294901760
    %v6370 = vsub.f32 %v4275, %v6369
    %6371 = vmatpush1.msra.mxu0 %v6370
    %v6372 = vand.u32 %v4278, 4294901760
    %v6373 = vsub.f32 %v4278, %v6372
    %6374 = vmatprep.subr.mxu0 %v6373
    %v6375 = vand.u32 %v4277, 4294901760
    %v6376 = vsub.f32 %v4277, %v6375
    %6377 = vmatpush1.msra.mxu0 %v6376
    %v6378 = vand.u32 %v4280, 4294901760
    %v6379 = vsub.f32 %v4280, %v6378
    %6380 = vmatprep.subr.mxu0 %v6379
    %v6381 = vand.u32 %v4279, 4294901760
    %v6382 = vsub.f32 %v4279, %v6381
    %6383 = vmatpush1.msra.mxu0 %v6382
    %v6384 = vand.u32 %v4282, 4294901760
    %v6385 = vsub.f32 %v4282, %v6384
    %6386 = vmatprep.subr.mxu0 %v6385
    %v6387 = vand.u32 %v4281, 4294901760
    %v6388 = vsub.f32 %v4281, %v6387
    %6389 = vmatpush1.msra.mxu0 %v6388
    %v6390 = vand.u32 %v4284, 4294901760
    %v6391 = vsub.f32 %v4284, %v6390
    %6392 = vmatprep.subr.mxu0 %v6391
    %v6393 = vand.u32 %v4283, 4294901760
    %v6394 = vsub.f32 %v4283, %v6393
    %6395 = vmatpush1.msra.mxu0 %v6394
    %v6396 = vand.u32 %v4286, 4294901760
    %v6397 = vsub.f32 %v4286, %v6396
    %6398 = vmatprep.subr.mxu0 %v6397
    %v6399 = vand.u32 %v4285, 4294901760
    %v6400 = vsub.f32 %v4285, %v6399
    %6401 = vmatpush1.msra.mxu0 %v6400
    %v6402 = vand.u32 %v4288, 4294901760
    %v6403 = vsub.f32 %v4288, %v6402
    %6404 = vmatprep.subr.mxu0 %v6403
    %v6405 = vand.u32 %v4287, 4294901760
    %v6406 = vsub.f32 %v4287, %v6405
    %6407 = vmatpush1.msra.mxu0 %v6406
    %v6408 = vand.u32 %v4290, 4294901760
    %v6409 = vsub.f32 %v4290, %v6408
    %6410 = vmatprep.subr.mxu0 %v6409
    %v6411 = vand.u32 %v4289, 4294901760
    %v6412 = vsub.f32 %v4289, %v6411
    %6413 = vmatpush1.msra.mxu0 %v6412
    %v6414 = vand.u32 %v4292, 4294901760
    %v6415 = vsub.f32 %v4292, %v6414
    %6416 = vmatprep.subr.mxu0 %v6415
    %v6417 = vand.u32 %v4291, 4294901760
    %v6418 = vsub.f32 %v4291, %v6417
    %6419 = vmatpush1.msra.mxu0 %v6418
    %v6420 = vand.u32 %v4294, 4294901760
    %v6421 = vsub.f32 %v4294, %v6420
    %6422 = vmatprep.subr.mxu0 %v6421
    %v6423 = vand.u32 %v4293, 4294901760
    %v6424 = vsub.f32 %v4293, %v6423
    %6425 = vmatpush1.msra.mxu0 %v6424
    %v6426 = vand.u32 %v4296, 4294901760
    %v6427 = vsub.f32 %v4296, %v6426
    %6428 = vmatprep.subr.mxu0 %v6427
    %v6429 = vand.u32 %v4295, 4294901760
    %v6430 = vsub.f32 %v4295, %v6429
    %6431 = vmatpush1.msra.mxu0 %v6430
    %v6432 = vand.u32 %v4298, 4294901760
    %v6433 = vsub.f32 %v4298, %v6432
    %6434 = vmatprep.subr.mxu0 %v6433
    %v6435 = vand.u32 %v4297, 4294901760
    %v6436 = vsub.f32 %v4297, %v6435
    %6437 = vmatpush1.msra.mxu0 %v6436
    %v6438 = vand.u32 %v4300, 4294901760
    %v6439 = vsub.f32 %v4300, %v6438
    %6440 = vmatprep.subr.mxu0 %v6439
    %v6441 = vand.u32 %v4299, 4294901760
    %v6442 = vsub.f32 %v4299, %v6441
    %6443 = vmatpush1.msra.mxu0 %v6442
    %v6444 = vand.u32 %v4302, 4294901760
    %v6445 = vsub.f32 %v4302, %v6444
    %6446 = vmatprep.subr.mxu0 %v6445
    %v6447 = vand.u32 %v4301, 4294901760
    %v6448 = vsub.f32 %v4301, %v6447
    %6449 = vmatpush1.msra.mxu0 %v6448
    %v6450 = vand.u32 %v4304, 4294901760
    %v6451 = vsub.f32 %v4304, %v6450
    %6452 = vmatprep.subr.mxu0 %v6451
    %v6453 = vand.u32 %v4303, 4294901760
    %v6454 = vsub.f32 %v4303, %v6453
    %6455 = vmatpush1.msra.mxu0 %v6454
    %v6456 = vand.u32 %v4306, 4294901760
    %v6457 = vsub.f32 %v4306, %v6456
    %6458 = vmatprep.subr.mxu0 %v6457
    %v6459 = vand.u32 %v4305, 4294901760
    %v6460 = vsub.f32 %v4305, %v6459
    %6461 = vmatpush1.msra.mxu0 %v6460
    %v6462 = vand.u32 %v4308, 4294901760
    %v6463 = vsub.f32 %v4308, %v6462
    %6464 = vmatprep.subr.mxu0 %v6463
    %v6465 = vand.u32 %v4307, 4294901760
    %v6466 = vsub.f32 %v4307, %v6465
    %6467 = vmatpush1.msra.mxu0 %v6466
    %v6468 = vand.u32 %v4310, 4294901760
    %v6469 = vsub.f32 %v4310, %v6468
    %6470 = vmatprep.subr.mxu0 %v6469
    %v6471 = vand.u32 %v4309, 4294901760
    %v6472 = vsub.f32 %v4309, %v6471
    %6473 = vmatpush1.msra.mxu0 %v6472
    %v6474 = vand.u32 %v4312, 4294901760
    %v6475 = vsub.f32 %v4312, %v6474
    %6476 = vmatprep.subr.mxu0 %v6475
    %v6477 = vand.u32 %v4311, 4294901760
    %v6478 = vsub.f32 %v4311, %v6477
    %6479 = vmatpush1.msra.mxu0 %v6478
    %v6480 = vand.u32 %v4314, 4294901760
    %v6481 = vsub.f32 %v4314, %v6480
    %6482 = vmatprep.subr.mxu0 %v6481
    %v6483 = vand.u32 %v4313, 4294901760
    %v6484 = vsub.f32 %v4313, %v6483
    %6485 = vmatpush1.msra.mxu0 %v6484
    %v6486 = vand.u32 %v4316, 4294901760
    %v6487 = vsub.f32 %v4316, %v6486
    %6488 = vmatprep.subr.mxu0 %v6487
    %v6489 = vand.u32 %v4315, 4294901760
    %v6490 = vsub.f32 %v4315, %v6489
    %6491 = vmatpush1.msra.mxu0 %v6490
    %v6492 = vand.u32 %v4318, 4294901760
    %v6493 = vsub.f32 %v4318, %v6492
    %6494 = vmatprep.subr.mxu0 %v6493
    %v6495 = vand.u32 %v4317, 4294901760
    %v6496 = vsub.f32 %v4317, %v6495
    %6497 = vmatpush1.msra.mxu0 %v6496
    %v6498 = vand.u32 %v4320, 4294901760
    %v6499 = vsub.f32 %v4320, %v6498
    %6500 = vmatprep.subr.mxu0 %v6499
    %v6501 = vand.u32 %v4319, 4294901760
    %v6502 = vsub.f32 %v4319, %v6501
    %6503 = vmatpush1.msra.mxu0 %v6502
    %v6504 = vand.u32 %v4322, 4294901760
    %v6505 = vsub.f32 %v4322, %v6504
    %6506 = vmatprep.subr.mxu0 %v6505
    %v6507 = vand.u32 %v4321, 4294901760
    %v6508 = vsub.f32 %v4321, %v6507
    %6509 = vmatpush1.msra.mxu0 %v6508
    %v6510 = vand.u32 %v4470, 4294901760
    %v6511 = vsub.f32 %v4470, %v6510
    %6512 = vmatprep.mubr.f32.mxu0 %v6511
    %v6513 = vand.u32 %v4468, 4294901760
    %v6514 = vsub.f32 %v4468, %v6513
    %6515 = vmatmul.mubr.f32.gmra.mrb[0].mxu0 %v6514
    %v6516 = vpop.f32.mrb[0].mxu0
    %v6517 = vadd.f32 %v6314, %v6516
    %v6518 = vpop.f32.mrb[0].mxu0
    %v6519 = vadd.f32 %v6316, %v6518
    %6520 = vdwg.mxu0
    %v6521 = vand.u32 %v4260, 4294901760
    %6522 = vmatprep.subr.mxu0 %v6521
    %v6523 = vand.u32 %v4259, 4294901760
    %6524 = vmatpush1.msra.mxu0 %v6523
    %v6525 = vand.u32 %v4262, 4294901760
    %6526 = vmatprep.subr.mxu0 %v6525
    %v6527 = vand.u32 %v4261, 4294901760
    %6528 = vmatpush1.msra.mxu0 %v6527
    %v6529 = vand.u32 %v4264, 4294901760
    %6530 = vmatprep.subr.mxu0 %v6529
    %v6531 = vand.u32 %v4263, 4294901760
    %6532 = vmatpush1.msra.mxu0 %v6531
    %v6533 = vand.u32 %v4266, 4294901760
    %6534 = vmatprep.subr.mxu0 %v6533
    %v6535 = vand.u32 %v4265, 4294901760
    %6536 = vmatpush1.msra.mxu0 %v6535
    %v6537 = vand.u32 %v4268, 4294901760
    %6538 = vmatprep.subr.mxu0 %v6537
    %v6539 = vand.u32 %v4267, 4294901760
    %6540 = vmatpush1.msra.mxu0 %v6539
    %v6541 = vand.u32 %v4270, 4294901760
    %6542 = vmatprep.subr.mxu0 %v6541
    %v6543 = vand.u32 %v4269, 4294901760
    %6544 = vmatpush1.msra.mxu0 %v6543
    %v6545 = vand.u32 %v4272, 4294901760
    %6546 = vmatprep.subr.mxu0 %v6545
    %v6547 = vand.u32 %v4271, 4294901760
    %6548 = vmatpush1.msra.mxu0 %v6547
    %v6549 = vand.u32 %v4274, 4294901760
    %6550 = vmatprep.subr.mxu0 %v6549
    %v6551 = vand.u32 %v4273, 4294901760
    %6552 = vmatpush1.msra.mxu0 %v6551
    %v6553 = vand.u32 %v4276, 4294901760
    %6554 = vmatprep.subr.mxu0 %v6553
    %v6555 = vand.u32 %v4275, 4294901760
    %6556 = vmatpush1.msra.mxu0 %v6555
    %v6557 = vand.u32 %v4278, 4294901760
    %6558 = vmatprep.subr.mxu0 %v6557
    %v6559 = vand.u32 %v4277, 4294901760
    %6560 = vmatpush1.msra.mxu0 %v6559
    %v6561 = vand.u32 %v4280, 4294901760
    %6562 = vmatprep.subr.mxu0 %v6561
    %v6563 = vand.u32 %v4279, 4294901760
    %6564 = vmatpush1.msra.mxu0 %v6563
    %v6565 = vand.u32 %v4282, 4294901760
    %6566 = vmatprep.subr.mxu0 %v6565
    %v6567 = vand.u32 %v4281, 4294901760
    %6568 = vmatpush1.msra.mxu0 %v6567
    %v6569 = vand.u32 %v4284, 4294901760
    %6570 = vmatprep.subr.mxu0 %v6569
    %v6571 = vand.u32 %v4283, 4294901760
    %6572 = vmatpush1.msra.mxu0 %v6571
    %v6573 = vand.u32 %v4286, 4294901760
    %6574 = vmatprep.subr.mxu0 %v6573
    %v6575 = vand.u32 %v4285, 4294901760
    %6576 = vmatpush1.msra.mxu0 %v6575
    %v6577 = vand.u32 %v4288, 4294901760
    %6578 = vmatprep.subr.mxu0 %v6577
    %v6579 = vand.u32 %v4287, 4294901760
    %6580 = vmatpush1.msra.mxu0 %v6579
    %v6581 = vand.u32 %v4290, 4294901760
    %6582 = vmatprep.subr.mxu0 %v6581
    %v6583 = vand.u32 %v4289, 4294901760
    %6584 = vmatpush1.msra.mxu0 %v6583
    %v6585 = vand.u32 %v4292, 4294901760
    %6586 = vmatprep.subr.mxu0 %v6585
    %v6587 = vand.u32 %v4291, 4294901760
    %6588 = vmatpush1.msra.mxu0 %v6587
    %v6589 = vand.u32 %v4294, 4294901760
    %6590 = vmatprep.subr.mxu0 %v6589
    %v6591 = vand.u32 %v4293, 4294901760
    %6592 = vmatpush1.msra.mxu0 %v6591
    %v6593 = vand.u32 %v4296, 4294901760
    %6594 = vmatprep.subr.mxu0 %v6593
    %v6595 = vand.u32 %v4295, 4294901760
    %6596 = vmatpush1.msra.mxu0 %v6595
    %v6597 = vand.u32 %v4298, 4294901760
    %6598 = vmatprep.subr.mxu0 %v6597
    %v6599 = vand.u32 %v4297, 4294901760
    %6600 = vmatpush1.msra.mxu0 %v6599
    %v6601 = vand.u32 %v4300, 4294901760
    %6602 = vmatprep.subr.mxu0 %v6601
    %v6603 = vand.u32 %v4299, 4294901760
    %6604 = vmatpush1.msra.mxu0 %v6603
    %v6605 = vand.u32 %v4302, 4294901760
    %6606 = vmatprep.subr.mxu0 %v6605
    %v6607 = vand.u32 %v4301, 4294901760
    %6608 = vmatpush1.msra.mxu0 %v6607
    %v6609 = vand.u32 %v4304, 4294901760
    %6610 = vmatprep.subr.mxu0 %v6609
    %v6611 = vand.u32 %v4303, 4294901760
    %6612 = vmatpush1.msra.mxu0 %v6611
    %v6613 = vand.u32 %v4306, 4294901760
    %6614 = vmatprep.subr.mxu0 %v6613
    %v6615 = vand.u32 %v4305, 4294901760
    %6616 = vmatpush1.msra.mxu0 %v6615
    %v6617 = vand.u32 %v4308, 4294901760
    %6618 = vmatprep.subr.mxu0 %v6617
    %v6619 = vand.u32 %v4307, 4294901760
    %6620 = vmatpush1.msra.mxu0 %v6619
    %v6621 = vand.u32 %v4310, 4294901760
    %6622 = vmatprep.subr.mxu0 %v6621
    %v6623 = vand.u32 %v4309, 4294901760
    %6624 = vmatpush1.msra.mxu0 %v6623
    %v6625 = vand.u32 %v4312, 4294901760
    %6626 = vmatprep.subr.mxu0 %v6625
    %v6627 = vand.u32 %v4311, 4294901760
    %6628 = vmatpush1.msra.mxu0 %v6627
    %v6629 = vand.u32 %v4314, 4294901760
    %6630 = vmatprep.subr.mxu0 %v6629
    %v6631 = vand.u32 %v4313, 4294901760
    %6632 = vmatpush1.msra.mxu0 %v6631
    %v6633 = vand.u32 %v4316, 4294901760
    %6634 = vmatprep.subr.mxu0 %v6633
    %v6635 = vand.u32 %v4315, 4294901760
    %6636 = vmatpush1.msra.mxu0 %v6635
    %v6637 = vand.u32 %v4318, 4294901760
    %6638 = vmatprep.subr.mxu0 %v6637
    %v6639 = vand.u32 %v4317, 4294901760
    %6640 = vmatpush1.msra.mxu0 %v6639
    %v6641 = vand.u32 %v4320, 4294901760
    %6642 = vmatprep.subr.mxu0 %v6641
    %v6643 = vand.u32 %v4319, 4294901760
    %6644 = vmatpush1.msra.mxu0 %v6643
    %v6645 = vand.u32 %v4322, 4294901760
    %6646 = vmatprep.subr.mxu0 %v6645
    %v6647 = vand.u32 %v4321, 4294901760
    %6648 = vmatpush1.msra.mxu0 %v6647
    %v6649 = vand.u32 %v4470, 4294901760
    %v6650 = vsub.f32 %v4470, %v6649
    %v6651 = vand.u32 %v6650, 4294901760
    %6652 = vmatprep.mubr.f32.mxu0 %v6651
    %v6653 = vand.u32 %v4468, 4294901760
    %v6654 = vsub.f32 %v4468, %v6653
    %v6655 = vand.u32 %v6654, 4294901760
    %6656 = vmatmul.mubr.f32.gmra.mrb[0].mxu0 %v6655
    %v6657 = vpop.f32.mrb[0].mxu0
    %v6658 = vadd.f32 %v6517, %v6657
    %v6659 = vpop.f32.mrb[0].mxu0
    %v6660 = vadd.f32 %v6519, %v6659
    %6661 = vdwg.mxu0
    %v6662 = vand.u32 %v4260, 4294901760
    %v6663 = vsub.f32 %v4260, %v6662
    %v6664 = vand.u32 %v6663, 4294901760
    %6665 = vmatprep.subr.mxu0 %v6664
    %v6666 = vand.u32 %v4259, 4294901760
    %v6667 = vsub.f32 %v4259, %v6666
    %v6668 = vand.u32 %v6667, 4294901760
    %6669 = vmatpush1.msra.mxu0 %v6668
    %v6670 = vand.u32 %v4262, 4294901760
    %v6671 = vsub.f32 %v4262, %v6670
    %v6672 = vand.u32 %v6671, 4294901760
    %6673 = vmatprep.subr.mxu0 %v6672
    %v6674 = vand.u32 %v4261, 4294901760
    %v6675 = vsub.f32 %v4261, %v6674
    %v6676 = vand.u32 %v6675, 4294901760
    %6677 = vmatpush1.msra.mxu0 %v6676
    %v6678 = vand.u32 %v4264, 4294901760
    %v6679 = vsub.f32 %v4264, %v6678
    %v6680 = vand.u32 %v6679, 4294901760
    %6681 = vmatprep.subr.mxu0 %v6680
    %v6682 = vand.u32 %v4263, 4294901760
    %v6683 = vsub.f32 %v4263, %v6682
    %v6684 = vand.u32 %v6683, 4294901760
    %6685 = vmatpush1.msra.mxu0 %v6684
    %v6686 = vand.u32 %v4266, 4294901760
    %v6687 = vsub.f32 %v4266, %v6686
    %v6688 = vand.u32 %v6687, 4294901760
    %6689 = vmatprep.subr.mxu0 %v6688
    %v6690 = vand.u32 %v4265, 4294901760
    %v6691 = vsub.f32 %v4265, %v6690
    %v6692 = vand.u32 %v6691, 4294901760
    %6693 = vmatpush1.msra.mxu0 %v6692
    %v6694 = vand.u32 %v4268, 4294901760
    %v6695 = vsub.f32 %v4268, %v6694
    %v6696 = vand.u32 %v6695, 4294901760
    %6697 = vmatprep.subr.mxu0 %v6696
    %v6698 = vand.u32 %v4267, 4294901760
    %v6699 = vsub.f32 %v4267, %v6698
    %v6700 = vand.u32 %v6699, 4294901760
    %6701 = vmatpush1.msra.mxu0 %v6700
    %v6702 = vand.u32 %v4270, 4294901760
    %v6703 = vsub.f32 %v4270, %v6702
    %v6704 = vand.u32 %v6703, 4294901760
    %6705 = vmatprep.subr.mxu0 %v6704
    %v6706 = vand.u32 %v4269, 4294901760
    %v6707 = vsub.f32 %v4269, %v6706
    %v6708 = vand.u32 %v6707, 4294901760
    %6709 = vmatpush1.msra.mxu0 %v6708
    %v6710 = vand.u32 %v4272, 4294901760
    %v6711 = vsub.f32 %v4272, %v6710
    %v6712 = vand.u32 %v6711, 4294901760
    %6713 = vmatprep.subr.mxu0 %v6712
    %v6714 = vand.u32 %v4271, 4294901760
    %v6715 = vsub.f32 %v4271, %v6714
    %v6716 = vand.u32 %v6715, 4294901760
    %6717 = vmatpush1.msra.mxu0 %v6716
    %v6718 = vand.u32 %v4274, 4294901760
    %v6719 = vsub.f32 %v4274, %v6718
    %v6720 = vand.u32 %v6719, 4294901760
    %6721 = vmatprep.subr.mxu0 %v6720
    %v6722 = vand.u32 %v4273, 4294901760
    %v6723 = vsub.f32 %v4273, %v6722
    %v6724 = vand.u32 %v6723, 4294901760
    %6725 = vmatpush1.msra.mxu0 %v6724
    %v6726 = vand.u32 %v4276, 4294901760
    %v6727 = vsub.f32 %v4276, %v6726
    %v6728 = vand.u32 %v6727, 4294901760
    %6729 = vmatprep.subr.mxu0 %v6728
    %v6730 = vand.u32 %v4275, 4294901760
    %v6731 = vsub.f32 %v4275, %v6730
    %v6732 = vand.u32 %v6731, 4294901760
    %6733 = vmatpush1.msra.mxu0 %v6732
    %v6734 = vand.u32 %v4278, 4294901760
    %v6735 = vsub.f32 %v4278, %v6734
    %v6736 = vand.u32 %v6735, 4294901760
    %6737 = vmatprep.subr.mxu0 %v6736
    %v6738 = vand.u32 %v4277, 4294901760
    %v6739 = vsub.f32 %v4277, %v6738
    %v6740 = vand.u32 %v6739, 4294901760
    %6741 = vmatpush1.msra.mxu0 %v6740
    %v6742 = vand.u32 %v4280, 4294901760
    %v6743 = vsub.f32 %v4280, %v6742
    %v6744 = vand.u32 %v6743, 4294901760
    %6745 = vmatprep.subr.mxu0 %v6744
    %v6746 = vand.u32 %v4279, 4294901760
    %v6747 = vsub.f32 %v4279, %v6746
    %v6748 = vand.u32 %v6747, 4294901760
    %6749 = vmatpush1.msra.mxu0 %v6748
    %v6750 = vand.u32 %v4282, 4294901760
    %v6751 = vsub.f32 %v4282, %v6750
    %v6752 = vand.u32 %v6751, 4294901760
    %6753 = vmatprep.subr.mxu0 %v6752
    %v6754 = vand.u32 %v4281, 4294901760
    %v6755 = vsub.f32 %v4281, %v6754
    %v6756 = vand.u32 %v6755, 4294901760
    %6757 = vmatpush1.msra.mxu0 %v6756
    %v6758 = vand.u32 %v4284, 4294901760
    %v6759 = vsub.f32 %v4284, %v6758
    %v6760 = vand.u32 %v6759, 4294901760
    %6761 = vmatprep.subr.mxu0 %v6760
    %v6762 = vand.u32 %v4283, 4294901760
    %v6763 = vsub.f32 %v4283, %v6762
    %v6764 = vand.u32 %v6763, 4294901760
    %6765 = vmatpush1.msra.mxu0 %v6764
    %v6766 = vand.u32 %v4286, 4294901760
    %v6767 = vsub.f32 %v4286, %v6766
    %v6768 = vand.u32 %v6767, 4294901760
    %6769 = vmatprep.subr.mxu0 %v6768
    %v6770 = vand.u32 %v4285, 4294901760
    %v6771 = vsub.f32 %v4285, %v6770
    %v6772 = vand.u32 %v6771, 4294901760
    %6773 = vmatpush1.msra.mxu0 %v6772
    %v6774 = vand.u32 %v4288, 4294901760
    %v6775 = vsub.f32 %v4288, %v6774
    %v6776 = vand.u32 %v6775, 4294901760
    %6777 = vmatprep.subr.mxu0 %v6776
    %v6778 = vand.u32 %v4287, 4294901760
    %v6779 = vsub.f32 %v4287, %v6778
    %v6780 = vand.u32 %v6779, 4294901760
    %6781 = vmatpush1.msra.mxu0 %v6780
    %v6782 = vand.u32 %v4290, 4294901760
    %v6783 = vsub.f32 %v4290, %v6782
    %v6784 = vand.u32 %v6783, 4294901760
    %6785 = vmatprep.subr.mxu0 %v6784
    %v6786 = vand.u32 %v4289, 4294901760
    %v6787 = vsub.f32 %v4289, %v6786
    %v6788 = vand.u32 %v6787, 4294901760
    %6789 = vmatpush1.msra.mxu0 %v6788
    %v6790 = vand.u32 %v4292, 4294901760
    %v6791 = vsub.f32 %v4292, %v6790
    %v6792 = vand.u32 %v6791, 4294901760
    %6793 = vmatprep.subr.mxu0 %v6792
    %v6794 = vand.u32 %v4291, 4294901760
    %v6795 = vsub.f32 %v4291, %v6794
    %v6796 = vand.u32 %v6795, 4294901760
    %6797 = vmatpush1.msra.mxu0 %v6796
    %v6798 = vand.u32 %v4294, 4294901760
    %v6799 = vsub.f32 %v4294, %v6798
    %v6800 = vand.u32 %v6799, 4294901760
    %6801 = vmatprep.subr.mxu0 %v6800
    %v6802 = vand.u32 %v4293, 4294901760
    %v6803 = vsub.f32 %v4293, %v6802
    %v6804 = vand.u32 %v6803, 4294901760
    %6805 = vmatpush1.msra.mxu0 %v6804
    %v6806 = vand.u32 %v4296, 4294901760
    %v6807 = vsub.f32 %v4296, %v6806
    %v6808 = vand.u32 %v6807, 4294901760
    %6809 = vmatprep.subr.mxu0 %v6808
    %v6810 = vand.u32 %v4295, 4294901760
    %v6811 = vsub.f32 %v4295, %v6810
    %v6812 = vand.u32 %v6811, 4294901760
    %6813 = vmatpush1.msra.mxu0 %v6812
    %v6814 = vand.u32 %v4298, 4294901760
    %v6815 = vsub.f32 %v4298, %v6814
    %v6816 = vand.u32 %v6815, 4294901760
    %6817 = vmatprep.subr.mxu0 %v6816
    %v6818 = vand.u32 %v4297, 4294901760
    %v6819 = vsub.f32 %v4297, %v6818
    %v6820 = vand.u32 %v6819, 4294901760
    %6821 = vmatpush1.msra.mxu0 %v6820
    %v6822 = vand.u32 %v4300, 4294901760
    %v6823 = vsub.f32 %v4300, %v6822
    %v6824 = vand.u32 %v6823, 4294901760
    %6825 = vmatprep.subr.mxu0 %v6824
    %v6826 = vand.u32 %v4299, 4294901760
    %v6827 = vsub.f32 %v4299, %v6826
    %v6828 = vand.u32 %v6827, 4294901760
    %6829 = vmatpush1.msra.mxu0 %v6828
    %v6830 = vand.u32 %v4302, 4294901760
    %v6831 = vsub.f32 %v4302, %v6830
    %v6832 = vand.u32 %v6831, 4294901760
    %6833 = vmatprep.subr.mxu0 %v6832
    %v6834 = vand.u32 %v4301, 4294901760
    %v6835 = vsub.f32 %v4301, %v6834
    %v6836 = vand.u32 %v6835, 4294901760
    %6837 = vmatpush1.msra.mxu0 %v6836
    %v6838 = vand.u32 %v4304, 4294901760
    %v6839 = vsub.f32 %v4304, %v6838
    %v6840 = vand.u32 %v6839, 4294901760
    %6841 = vmatprep.subr.mxu0 %v6840
    %v6842 = vand.u32 %v4303, 4294901760
    %v6843 = vsub.f32 %v4303, %v6842
    %v6844 = vand.u32 %v6843, 4294901760
    %6845 = vmatpush1.msra.mxu0 %v6844
    %v6846 = vand.u32 %v4306, 4294901760
    %v6847 = vsub.f32 %v4306, %v6846
    %v6848 = vand.u32 %v6847, 4294901760
    %6849 = vmatprep.subr.mxu0 %v6848
    %v6850 = vand.u32 %v4305, 4294901760
    %v6851 = vsub.f32 %v4305, %v6850
    %v6852 = vand.u32 %v6851, 4294901760
    %6853 = vmatpush1.msra.mxu0 %v6852
    %v6854 = vand.u32 %v4308, 4294901760
    %v6855 = vsub.f32 %v4308, %v6854
    %v6856 = vand.u32 %v6855, 4294901760
    %6857 = vmatprep.subr.mxu0 %v6856
    %v6858 = vand.u32 %v4307, 4294901760
    %v6859 = vsub.f32 %v4307, %v6858
    %v6860 = vand.u32 %v6859, 4294901760
    %6861 = vmatpush1.msra.mxu0 %v6860
    %v6862 = vand.u32 %v4310, 4294901760
    %v6863 = vsub.f32 %v4310, %v6862
    %v6864 = vand.u32 %v6863, 4294901760
    %6865 = vmatprep.subr.mxu0 %v6864
    %v6866 = vand.u32 %v4309, 4294901760
    %v6867 = vsub.f32 %v4309, %v6866
    %v6868 = vand.u32 %v6867, 4294901760
    %6869 = vmatpush1.msra.mxu0 %v6868
    %v6870 = vand.u32 %v4312, 4294901760
    %v6871 = vsub.f32 %v4312, %v6870
    %v6872 = vand.u32 %v6871, 4294901760
    %6873 = vmatprep.subr.mxu0 %v6872
    %v6874 = vand.u32 %v4311, 4294901760
    %v6875 = vsub.f32 %v4311, %v6874
    %v6876 = vand.u32 %v6875, 4294901760
    %6877 = vmatpush1.msra.mxu0 %v6876
    %v6878 = vand.u32 %v4314, 4294901760
    %v6879 = vsub.f32 %v4314, %v6878
    %v6880 = vand.u32 %v6879, 4294901760
    %6881 = vmatprep.subr.mxu0 %v6880
    %v6882 = vand.u32 %v4313, 4294901760
    %v6883 = vsub.f32 %v4313, %v6882
    %v6884 = vand.u32 %v6883, 4294901760
    %6885 = vmatpush1.msra.mxu0 %v6884
    %v6886 = vand.u32 %v4316, 4294901760
    %v6887 = vsub.f32 %v4316, %v6886
    %v6888 = vand.u32 %v6887, 4294901760
    %6889 = vmatprep.subr.mxu0 %v6888
    %v6890 = vand.u32 %v4315, 4294901760
    %v6891 = vsub.f32 %v4315, %v6890
    %v6892 = vand.u32 %v6891, 4294901760
    %6893 = vmatpush1.msra.mxu0 %v6892
    %v6894 = vand.u32 %v4318, 4294901760
    %v6895 = vsub.f32 %v4318, %v6894
    %v6896 = vand.u32 %v6895, 4294901760
    %6897 = vmatprep.subr.mxu0 %v6896
    %v6898 = vand.u32 %v4317, 4294901760
    %v6899 = vsub.f32 %v4317, %v6898
    %v6900 = vand.u32 %v6899, 4294901760
    %6901 = vmatpush1.msra.mxu0 %v6900
    %v6902 = vand.u32 %v4320, 4294901760
    %v6903 = vsub.f32 %v4320, %v6902
    %v6904 = vand.u32 %v6903, 4294901760
    %6905 = vmatprep.subr.mxu0 %v6904
    %v6906 = vand.u32 %v4319, 4294901760
    %v6907 = vsub.f32 %v4319, %v6906
    %v6908 = vand.u32 %v6907, 4294901760
    %6909 = vmatpush1.msra.mxu0 %v6908
    %v6910 = vand.u32 %v4322, 4294901760
    %v6911 = vsub.f32 %v4322, %v6910
    %v6912 = vand.u32 %v6911, 4294901760
    %6913 = vmatprep.subr.mxu0 %v6912
    %v6914 = vand.u32 %v4321, 4294901760
    %v6915 = vsub.f32 %v4321, %v6914
    %v6916 = vand.u32 %v6915, 4294901760
    %6917 = vmatpush1.msra.mxu0 %v6916
    %v6918 = vand.u32 %v4470, 4294901760
    %6919 = vmatprep.mubr.f32.mxu0 %v6918
    %v6920 = vand.u32 %v4468, 4294901760
    %6921 = vmatmul.mubr.f32.gmra.mrb[0].mxu0 %v6920
    %v6922 = vpop.f32.mrb[0].mxu0
    %v6923 = vadd.f32 %v6658, %v6922
    %v6924 = vpop.f32.mrb[0].mxu0
    %v6925 = vadd.f32 %v6660, %v6924
    %6926 = vdwg.mxu0
    %v6927 = vand.u32 %v4260, 4294901760
    %6928 = vmatprep.subr.mxu0 %v6927
    %v6929 = vand.u32 %v4259, 4294901760
    %6930 = vmatpush1.msra.mxu0 %v6929
    %v6931 = vand.u32 %v4262, 4294901760
    %6932 = vmatprep.subr.mxu0 %v6931
    %v6933 = vand.u32 %v4261, 4294901760
    %6934 = vmatpush1.msra.mxu0 %v6933
    %v6935 = vand.u32 %v4264, 4294901760
    %6936 = vmatprep.subr.mxu0 %v6935
    %v6937 = vand.u32 %v4263, 4294901760
    %6938 = vmatpush1.msra.mxu0 %v6937
    %v6939 = vand.u32 %v4266, 4294901760
    %6940 = vmatprep.subr.mxu0 %v6939
    %v6941 = vand.u32 %v4265, 4294901760
    %6942 = vmatpush1.msra.mxu0 %v6941
    %v6943 = vand.u32 %v4268, 4294901760
    %6944 = vmatprep.subr.mxu0 %v6943
    %v6945 = vand.u32 %v4267, 4294901760
    %6946 = vmatpush1.msra.mxu0 %v6945
    %v6947 = vand.u32 %v4270, 4294901760
    %6948 = vmatprep.subr.mxu0 %v6947
    %v6949 = vand.u32 %v4269, 4294901760
    %6950 = vmatpush1.msra.mxu0 %v6949
    %v6951 = vand.u32 %v4272, 4294901760
    %6952 = vmatprep.subr.mxu0 %v6951
    %v6953 = vand.u32 %v4271, 4294901760
    %6954 = vmatpush1.msra.mxu0 %v6953
    %v6955 = vand.u32 %v4274, 4294901760
    %6956 = vmatprep.subr.mxu0 %v6955
    %v6957 = vand.u32 %v4273, 4294901760
    %6958 = vmatpush1.msra.mxu0 %v6957
    %v6959 = vand.u32 %v4276, 4294901760
    %6960 = vmatprep.subr.mxu0 %v6959
    %v6961 = vand.u32 %v4275, 4294901760
    %6962 = vmatpush1.msra.mxu0 %v6961
    %v6963 = vand.u32 %v4278, 4294901760
    %6964 = vmatprep.subr.mxu0 %v6963
    %v6965 = vand.u32 %v4277, 4294901760
    %6966 = vmatpush1.msra.mxu0 %v6965
    %v6967 = vand.u32 %v4280, 4294901760
    %6968 = vmatprep.subr.mxu0 %v6967
    %v6969 = vand.u32 %v4279, 4294901760
    %6970 = vmatpush1.msra.mxu0 %v6969
    %v6971 = vand.u32 %v4282, 4294901760
    %6972 = vmatprep.subr.mxu0 %v6971
    %v6973 = vand.u32 %v4281, 4294901760
    %6974 = vmatpush1.msra.mxu0 %v6973
    %v6975 = vand.u32 %v4284, 4294901760
    %6976 = vmatprep.subr.mxu0 %v6975
    %v6977 = vand.u32 %v4283, 4294901760
    %6978 = vmatpush1.msra.mxu0 %v6977
    %v6979 = vand.u32 %v4286, 4294901760
    %6980 = vmatprep.subr.mxu0 %v6979
    %v6981 = vand.u32 %v4285, 4294901760
    %6982 = vmatpush1.msra.mxu0 %v6981
    %v6983 = vand.u32 %v4288, 4294901760
    %6984 = vmatprep.subr.mxu0 %v6983
    %v6985 = vand.u32 %v4287, 4294901760
    %6986 = vmatpush1.msra.mxu0 %v6985
    %v6987 = vand.u32 %v4290, 4294901760
    %6988 = vmatprep.subr.mxu0 %v6987
    %v6989 = vand.u32 %v4289, 4294901760
    %6990 = vmatpush1.msra.mxu0 %v6989
    %v6991 = vand.u32 %v4292, 4294901760
    %6992 = vmatprep.subr.mxu0 %v6991
    %v6993 = vand.u32 %v4291, 4294901760
    %6994 = vmatpush1.msra.mxu0 %v6993
    %v6995 = vand.u32 %v4294, 4294901760
    %6996 = vmatprep.subr.mxu0 %v6995
    %v6997 = vand.u32 %v4293, 4294901760
    %6998 = vmatpush1.msra.mxu0 %v6997
    %v6999 = vand.u32 %v4296, 4294901760
    %7000 = vmatprep.subr.mxu0 %v6999
    %v7001 = vand.u32 %v4295, 4294901760
    %7002 = vmatpush1.msra.mxu0 %v7001
    %v7003 = vand.u32 %v4298, 4294901760
    %7004 = vmatprep.subr.mxu0 %v7003
    %v7005 = vand.u32 %v4297, 4294901760
    %7006 = vmatpush1.msra.mxu0 %v7005
    %v7007 = vand.u32 %v4300, 4294901760
    %7008 = vmatprep.subr.mxu0 %v7007
    %v7009 = vand.u32 %v4299, 4294901760
    %7010 = vmatpush1.msra.mxu0 %v7009
    %v7011 = vand.u32 %v4302, 4294901760
    %7012 = vmatprep.subr.mxu0 %v7011
    %v7013 = vand.u32 %v4301, 4294901760
    %7014 = vmatpush1.msra.mxu0 %v7013
    %v7015 = vand.u32 %v4304, 4294901760
    %7016 = vmatprep.subr.mxu0 %v7015
    %v7017 = vand.u32 %v4303, 4294901760
    %7018 = vmatpush1.msra.mxu0 %v7017
    %v7019 = vand.u32 %v4306, 4294901760
    %7020 = vmatprep.subr.mxu0 %v7019
    %v7021 = vand.u32 %v4305, 4294901760
    %7022 = vmatpush1.msra.mxu0 %v7021
    %v7023 = vand.u32 %v4308, 4294901760
    %7024 = vmatprep.subr.mxu0 %v7023
    %v7025 = vand.u32 %v4307, 4294901760
    %7026 = vmatpush1.msra.mxu0 %v7025
    %v7027 = vand.u32 %v4310, 4294901760
    %7028 = vmatprep.subr.mxu0 %v7027
    %v7029 = vand.u32 %v4309, 4294901760
    %7030 = vmatpush1.msra.mxu0 %v7029
    %v7031 = vand.u32 %v4312, 4294901760
    %7032 = vmatprep.subr.mxu0 %v7031
    %v7033 = vand.u32 %v4311, 4294901760
    %7034 = vmatpush1.msra.mxu0 %v7033
    %v7035 = vand.u32 %v4314, 4294901760
    %7036 = vmatprep.subr.mxu0 %v7035
    %v7037 = vand.u32 %v4313, 4294901760
    %7038 = vmatpush1.msra.mxu0 %v7037
    %v7039 = vand.u32 %v4316, 4294901760
    %7040 = vmatprep.subr.mxu0 %v7039
    %v7041 = vand.u32 %v4315, 4294901760
    %7042 = vmatpush1.msra.mxu0 %v7041
    %v7043 = vand.u32 %v4318, 4294901760
    %7044 = vmatprep.subr.mxu0 %v7043
    %v7045 = vand.u32 %v4317, 4294901760
    %7046 = vmatpush1.msra.mxu0 %v7045
    %v7047 = vand.u32 %v4320, 4294901760
    %7048 = vmatprep.subr.mxu0 %v7047
    %v7049 = vand.u32 %v4319, 4294901760
    %7050 = vmatpush1.msra.mxu0 %v7049
    %v7051 = vand.u32 %v4322, 4294901760
    %7052 = vmatprep.subr.mxu0 %v7051
    %v7053 = vand.u32 %v4321, 4294901760
    %7054 = vmatpush1.msra.mxu0 %v7053
    %v7055 = vand.u32 %v4470, 4294901760
    %7056 = vmatprep.mubr.f32.mxu0 %v7055
    %v7057 = vand.u32 %v4468, 4294901760
    %7058 = vmatmul.mubr.f32.gmra.mrb[0].mxu0 %v7057
    %v7059 = vpop.f32.mrb[0].mxu0
    %v7060 = vadd.f32 %v6923, %v7059
    %v7061 = vpop.f32.mrb[0].mxu0
    %v7062 = vadd.f32 %v6925, %v7061
    %7063 = vdwg.mxu0
    %v7064 = vand.u32 %v4324, 4294901760
    %7065 = vmatprep.subr.mxu0 %v7064
    %v7066 = vand.u32 %v4323, 4294901760
    %7067 = vmatpush1.msra.mxu0 %v7066
    %v7068 = vand.u32 %v4326, 4294901760
    %7069 = vmatprep.subr.mxu0 %v7068
    %v7070 = vand.u32 %v4325, 4294901760
    %7071 = vmatpush1.msra.mxu0 %v7070
    %v7072 = vand.u32 %v4328, 4294901760
    %7073 = vmatprep.subr.mxu0 %v7072
    %v7074 = vand.u32 %v4327, 4294901760
    %7075 = vmatpush1.msra.mxu0 %v7074
    %v7076 = vand.u32 %v4330, 4294901760
    %7077 = vmatprep.subr.mxu0 %v7076
    %v7078 = vand.u32 %v4329, 4294901760
    %7079 = vmatpush1.msra.mxu0 %v7078
    %v7080 = vand.u32 %v4332, 4294901760
    %7081 = vmatprep.subr.mxu0 %v7080
    %v7082 = vand.u32 %v4331, 4294901760
    %7083 = vmatpush1.msra.mxu0 %v7082
    %v7084 = vand.u32 %v4334, 4294901760
    %7085 = vmatprep.subr.mxu0 %v7084
    %v7086 = vand.u32 %v4333, 4294901760
    %7087 = vmatpush1.msra.mxu0 %v7086
    %v7088 = vand.u32 %v4336, 4294901760
    %7089 = vmatprep.subr.mxu0 %v7088
    %v7090 = vand.u32 %v4335, 4294901760
    %7091 = vmatpush1.msra.mxu0 %v7090
    %v7092 = vand.u32 %v4338, 4294901760
    %7093 = vmatprep.subr.mxu0 %v7092
    %v7094 = vand.u32 %v4337, 4294901760
    %7095 = vmatpush1.msra.mxu0 %v7094
    %v7096 = vand.u32 %v4340, 4294901760
    %7097 = vmatprep.subr.mxu0 %v7096
    %v7098 = vand.u32 %v4339, 4294901760
    %7099 = vmatpush1.msra.mxu0 %v7098
    %v7100 = vand.u32 %v4342, 4294901760
    %7101 = vmatprep.subr.mxu0 %v7100
    %v7102 = vand.u32 %v4341, 4294901760
    %7103 = vmatpush1.msra.mxu0 %v7102
    %v7104 = vand.u32 %v4344, 4294901760
    %7105 = vmatprep.subr.mxu0 %v7104
    %v7106 = vand.u32 %v4343, 4294901760
    %7107 = vmatpush1.msra.mxu0 %v7106
    %v7108 = vand.u32 %v4346, 4294901760
    %7109 = vmatprep.subr.mxu0 %v7108
    %v7110 = vand.u32 %v4345, 4294901760
    %7111 = vmatpush1.msra.mxu0 %v7110
    %v7112 = vand.u32 %v4348, 4294901760
    %7113 = vmatprep.subr.mxu0 %v7112
    %v7114 = vand.u32 %v4347, 4294901760
    %7115 = vmatpush1.msra.mxu0 %v7114
    %v7116 = vand.u32 %v4350, 4294901760
    %7117 = vmatprep.subr.mxu0 %v7116
    %v7118 = vand.u32 %v4349, 4294901760
    %7119 = vmatpush1.msra.mxu0 %v7118
    %v7120 = vand.u32 %v4352, 4294901760
    %7121 = vmatprep.subr.mxu0 %v7120
    %v7122 = vand.u32 %v4351, 4294901760
    %7123 = vmatpush1.msra.mxu0 %v7122
    %v7124 = vand.u32 %v4354, 4294901760
    %7125 = vmatprep.subr.mxu0 %v7124
    %v7126 = vand.u32 %v4353, 4294901760
    %7127 = vmatpush1.msra.mxu0 %v7126
    %v7128 = vand.u32 %v4356, 4294901760
    %7129 = vmatprep.subr.mxu0 %v7128
    %v7130 = vand.u32 %v4355, 4294901760
    %7131 = vmatpush1.msra.mxu0 %v7130
    %v7132 = vand.u32 %v4358, 4294901760
    %7133 = vmatprep.subr.mxu0 %v7132
    %v7134 = vand.u32 %v4357, 4294901760
    %7135 = vmatpush1.msra.mxu0 %v7134
    %v7136 = vand.u32 %v4360, 4294901760
    %7137 = vmatprep.subr.mxu0 %v7136
    %v7138 = vand.u32 %v4359, 4294901760
    %7139 = vmatpush1.msra.mxu0 %v7138
    %v7140 = vand.u32 %v4362, 4294901760
    %7141 = vmatprep.subr.mxu0 %v7140
    %v7142 = vand.u32 %v4361, 4294901760
    %7143 = vmatpush1.msra.mxu0 %v7142
    %v7144 = vand.u32 %v4364, 4294901760
    %7145 = vmatprep.subr.mxu0 %v7144
    %v7146 = vand.u32 %v4363, 4294901760
    %7147 = vmatpush1.msra.mxu0 %v7146
    %v7148 = vand.u32 %v4366, 4294901760
    %7149 = vmatprep.subr.mxu0 %v7148
    %v7150 = vand.u32 %v4365, 4294901760
    %7151 = vmatpush1.msra.mxu0 %v7150
    %v7152 = vand.u32 %v4368, 4294901760
    %7153 = vmatprep.subr.mxu0 %v7152
    %v7154 = vand.u32 %v4367, 4294901760
    %7155 = vmatpush1.msra.mxu0 %v7154
    %v7156 = vand.u32 %v4370, 4294901760
    %7157 = vmatprep.subr.mxu0 %v7156
    %v7158 = vand.u32 %v4369, 4294901760
    %7159 = vmatpush1.msra.mxu0 %v7158
    %v7160 = vand.u32 %v4372, 4294901760
    %7161 = vmatprep.subr.mxu0 %v7160
    %v7162 = vand.u32 %v4371, 4294901760
    %7163 = vmatpush1.msra.mxu0 %v7162
    %v7164 = vand.u32 %v4374, 4294901760
    %7165 = vmatprep.subr.mxu0 %v7164
    %v7166 = vand.u32 %v4373, 4294901760
    %7167 = vmatpush1.msra.mxu0 %v7166
    %v7168 = vand.u32 %v4376, 4294901760
    %7169 = vmatprep.subr.mxu0 %v7168
    %v7170 = vand.u32 %v4375, 4294901760
    %7171 = vmatpush1.msra.mxu0 %v7170
    %v7172 = vand.u32 %v4378, 4294901760
    %7173 = vmatprep.subr.mxu0 %v7172
    %v7174 = vand.u32 %v4377, 4294901760
    %7175 = vmatpush1.msra.mxu0 %v7174
    %v7176 = vand.u32 %v4380, 4294901760
    %7177 = vmatprep.subr.mxu0 %v7176
    %v7178 = vand.u32 %v4379, 4294901760
    %7179 = vmatpush1.msra.mxu0 %v7178
    %v7180 = vand.u32 %v4382, 4294901760
    %7181 = vmatprep.subr.mxu0 %v7180
    %v7182 = vand.u32 %v4381, 4294901760
    %7183 = vmatpush1.msra.mxu0 %v7182
    %v7184 = vand.u32 %v4384, 4294901760
    %7185 = vmatprep.subr.mxu0 %v7184
    %v7186 = vand.u32 %v4383, 4294901760
    %7187 = vmatpush1.msra.mxu0 %v7186
    %v7188 = vand.u32 %v4386, 4294901760
    %7189 = vmatprep.subr.mxu0 %v7188
    %v7190 = vand.u32 %v4385, 4294901760
    %7191 = vmatpush1.msra.mxu0 %v7190
    %v7192 = vand.u32 %v4486, 4294901760
    %v7193 = vsub.f32 %v4486, %v7192
    %v7194 = vand.u32 %v7193, 4294901760
    %v7195 = vsub.f32 %v7193, %v7194
    %v7196 = vand.u32 %v7195, 4294901760
    %7197 = vmatprep.mubr.f32.mxu0 %v7196
    %v7198 = vand.u32 %v4478, 4294901760
    %v7199 = vsub.f32 %v4478, %v7198
    %v7200 = vand.u32 %v7199, 4294901760
    %v7201 = vsub.f32 %v7199, %v7200
    %v7202 = vand.u32 %v7201, 4294901760
    %7203 = vmatmul.mubr.f32.gmra.mrb[0].mxu0 %v7202
    %v7204 = vpop.f32.mrb[0].mxu0
    %v7205 = vadd.f32 %v7060, %v7204
    %v7206 = vpop.f32.mrb[0].mxu0
    %v7207 = vadd.f32 %v7062, %v7206
    %7208 = vdwg.mxu0
    %v7209 = vand.u32 %v4324, 4294901760
    %v7210 = vsub.f32 %v4324, %v7209
    %v7211 = vand.u32 %v7210, 4294901760
    %v7212 = vsub.f32 %v7210, %v7211
    %v7213 = vand.u32 %v7212, 4294901760
    %7214 = vmatprep.subr.mxu0 %v7213
    %v7215 = vand.u32 %v4323, 4294901760
    %v7216 = vsub.f32 %v4323, %v7215
    %v7217 = vand.u32 %v7216, 4294901760
    %v7218 = vsub.f32 %v7216, %v7217
    %v7219 = vand.u32 %v7218, 4294901760
    %7220 = vmatpush1.msra.mxu0 %v7219
    %v7221 = vand.u32 %v4326, 4294901760
    %v7222 = vsub.f32 %v4326, %v7221
    %v7223 = vand.u32 %v7222, 4294901760
    %v7224 = vsub.f32 %v7222, %v7223
    %v7225 = vand.u32 %v7224, 4294901760
    %7226 = vmatprep.subr.mxu0 %v7225
    %v7227 = vand.u32 %v4325, 4294901760
    %v7228 = vsub.f32 %v4325, %v7227
    %v7229 = vand.u32 %v7228, 4294901760
    %v7230 = vsub.f32 %v7228, %v7229
    %v7231 = vand.u32 %v7230, 4294901760
    %7232 = vmatpush1.msra.mxu0 %v7231
    %v7233 = vand.u32 %v4328, 4294901760
    %v7234 = vsub.f32 %v4328, %v7233
    %v7235 = vand.u32 %v7234, 4294901760
    %v7236 = vsub.f32 %v7234, %v7235
    %v7237 = vand.u32 %v7236, 4294901760
    %7238 = vmatprep.subr.mxu0 %v7237
    %v7239 = vand.u32 %v4327, 4294901760
    %v7240 = vsub.f32 %v4327, %v7239
    %v7241 = vand.u32 %v7240, 4294901760
    %v7242 = vsub.f32 %v7240, %v7241
    %v7243 = vand.u32 %v7242, 4294901760
    %7244 = vmatpush1.msra.mxu0 %v7243
    %v7245 = vand.u32 %v4330, 4294901760
    %v7246 = vsub.f32 %v4330, %v7245
    %v7247 = vand.u32 %v7246, 4294901760
    %v7248 = vsub.f32 %v7246, %v7247
    %v7249 = vand.u32 %v7248, 4294901760
    %7250 = vmatprep.subr.mxu0 %v7249
    %v7251 = vand.u32 %v4329, 4294901760
    %v7252 = vsub.f32 %v4329, %v7251
    %v7253 = vand.u32 %v7252, 4294901760
    %v7254 = vsub.f32 %v7252, %v7253
    %v7255 = vand.u32 %v7254, 4294901760
    %7256 = vmatpush1.msra.mxu0 %v7255
    %v7257 = vand.u32 %v4332, 4294901760
    %v7258 = vsub.f32 %v4332, %v7257
    %v7259 = vand.u32 %v7258, 4294901760
    %v7260 = vsub.f32 %v7258, %v7259
    %v7261 = vand.u32 %v7260, 4294901760
    %7262 = vmatprep.subr.mxu0 %v7261
    %v7263 = vand.u32 %v4331, 4294901760
    %v7264 = vsub.f32 %v4331, %v7263
    %v7265 = vand.u32 %v7264, 4294901760
    %v7266 = vsub.f32 %v7264, %v7265
    %v7267 = vand.u32 %v7266, 4294901760
    %7268 = vmatpush1.msra.mxu0 %v7267
    %v7269 = vand.u32 %v4334, 4294901760
    %v7270 = vsub.f32 %v4334, %v7269
    %v7271 = vand.u32 %v7270, 4294901760
    %v7272 = vsub.f32 %v7270, %v7271
    %v7273 = vand.u32 %v7272, 4294901760
    %7274 = vmatprep.subr.mxu0 %v7273
    %v7275 = vand.u32 %v4333, 4294901760
    %v7276 = vsub.f32 %v4333, %v7275
    %v7277 = vand.u32 %v7276, 4294901760
    %v7278 = vsub.f32 %v7276, %v7277
    %v7279 = vand.u32 %v7278, 4294901760
    %7280 = vmatpush1.msra.mxu0 %v7279
    %v7281 = vand.u32 %v4336, 4294901760
    %v7282 = vsub.f32 %v4336, %v7281
    %v7283 = vand.u32 %v7282, 4294901760
    %v7284 = vsub.f32 %v7282, %v7283
    %v7285 = vand.u32 %v7284, 4294901760
    %7286 = vmatprep.subr.mxu0 %v7285
    %v7287 = vand.u32 %v4335, 4294901760
    %v7288 = vsub.f32 %v4335, %v7287
    %v7289 = vand.u32 %v7288, 4294901760
    %v7290 = vsub.f32 %v7288, %v7289
    %v7291 = vand.u32 %v7290, 4294901760
    %7292 = vmatpush1.msra.mxu0 %v7291
    %v7293 = vand.u32 %v4338, 4294901760
    %v7294 = vsub.f32 %v4338, %v7293
    %v7295 = vand.u32 %v7294, 4294901760
    %v7296 = vsub.f32 %v7294, %v7295
    %v7297 = vand.u32 %v7296, 4294901760
    %7298 = vmatprep.subr.mxu0 %v7297
    %v7299 = vand.u32 %v4337, 4294901760
    %v7300 = vsub.f32 %v4337, %v7299
    %v7301 = vand.u32 %v7300, 4294901760
    %v7302 = vsub.f32 %v7300, %v7301
    %v7303 = vand.u32 %v7302, 4294901760
    %7304 = vmatpush1.msra.mxu0 %v7303
    %v7305 = vand.u32 %v4340, 4294901760
    %v7306 = vsub.f32 %v4340, %v7305
    %v7307 = vand.u32 %v7306, 4294901760
    %v7308 = vsub.f32 %v7306, %v7307
    %v7309 = vand.u32 %v7308, 4294901760
    %7310 = vmatprep.subr.mxu0 %v7309
    %v7311 = vand.u32 %v4339, 4294901760
    %v7312 = vsub.f32 %v4339, %v7311
    %v7313 = vand.u32 %v7312, 4294901760
    %v7314 = vsub.f32 %v7312, %v7313
    %v7315 = vand.u32 %v7314, 4294901760
    %7316 = vmatpush1.msra.mxu0 %v7315
    %v7317 = vand.u32 %v4342, 4294901760
    %v7318 = vsub.f32 %v4342, %v7317
    %v7319 = vand.u32 %v7318, 4294901760
    %v7320 = vsub.f32 %v7318, %v7319
    %v7321 = vand.u32 %v7320, 4294901760
    %7322 = vmatprep.subr.mxu0 %v7321
    %v7323 = vand.u32 %v4341, 4294901760
    %v7324 = vsub.f32 %v4341, %v7323
    %v7325 = vand.u32 %v7324, 4294901760
    %v7326 = vsub.f32 %v7324, %v7325
    %v7327 = vand.u32 %v7326, 4294901760
    %7328 = vmatpush1.msra.mxu0 %v7327
    %v7329 = vand.u32 %v4344, 4294901760
    %v7330 = vsub.f32 %v4344, %v7329
    %v7331 = vand.u32 %v7330, 4294901760
    %v7332 = vsub.f32 %v7330, %v7331
    %v7333 = vand.u32 %v7332, 4294901760
    %7334 = vmatprep.subr.mxu0 %v7333
    %v7335 = vand.u32 %v4343, 4294901760
    %v7336 = vsub.f32 %v4343, %v7335
    %v7337 = vand.u32 %v7336, 4294901760
    %v7338 = vsub.f32 %v7336, %v7337
    %v7339 = vand.u32 %v7338, 4294901760
    %7340 = vmatpush1.msra.mxu0 %v7339
    %v7341 = vand.u32 %v4346, 4294901760
    %v7342 = vsub.f32 %v4346, %v7341
    %v7343 = vand.u32 %v7342, 4294901760
    %v7344 = vsub.f32 %v7342, %v7343
    %v7345 = vand.u32 %v7344, 4294901760
    %7346 = vmatprep.subr.mxu0 %v7345
    %v7347 = vand.u32 %v4345, 4294901760
    %v7348 = vsub.f32 %v4345, %v7347
    %v7349 = vand.u32 %v7348, 4294901760
    %v7350 = vsub.f32 %v7348, %v7349
    %v7351 = vand.u32 %v7350, 4294901760
    %7352 = vmatpush1.msra.mxu0 %v7351
    %v7353 = vand.u32 %v4348, 4294901760
    %v7354 = vsub.f32 %v4348, %v7353
    %v7355 = vand.u32 %v7354, 4294901760
    %v7356 = vsub.f32 %v7354, %v7355
    %v7357 = vand.u32 %v7356, 4294901760
    %7358 = vmatprep.subr.mxu0 %v7357
    %v7359 = vand.u32 %v4347, 4294901760
    %v7360 = vsub.f32 %v4347, %v7359
    %v7361 = vand.u32 %v7360, 4294901760
    %v7362 = vsub.f32 %v7360, %v7361
    %v7363 = vand.u32 %v7362, 4294901760
    %7364 = vmatpush1.msra.mxu0 %v7363
    %v7365 = vand.u32 %v4350, 4294901760
    %v7366 = vsub.f32 %v4350, %v7365
    %v7367 = vand.u32 %v7366, 4294901760
    %v7368 = vsub.f32 %v7366, %v7367
    %v7369 = vand.u32 %v7368, 4294901760
    %7370 = vmatprep.subr.mxu0 %v7369
    %v7371 = vand.u32 %v4349, 4294901760
    %v7372 = vsub.f32 %v4349, %v7371
    %v7373 = vand.u32 %v7372, 4294901760
    %v7374 = vsub.f32 %v7372, %v7373
    %v7375 = vand.u32 %v7374, 4294901760
    %7376 = vmatpush1.msra.mxu0 %v7375
    %v7377 = vand.u32 %v4352, 4294901760
    %v7378 = vsub.f32 %v4352, %v7377
    %v7379 = vand.u32 %v7378, 4294901760
    %v7380 = vsub.f32 %v7378, %v7379
    %v7381 = vand.u32 %v7380, 4294901760
    %7382 = vmatprep.subr.mxu0 %v7381
    %v7383 = vand.u32 %v4351, 4294901760
    %v7384 = vsub.f32 %v4351, %v7383
    %v7385 = vand.u32 %v7384, 4294901760
    %v7386 = vsub.f32 %v7384, %v7385
    %v7387 = vand.u32 %v7386, 4294901760
    %7388 = vmatpush1.msra.mxu0 %v7387
    %v7389 = vand.u32 %v4354, 4294901760
    %v7390 = vsub.f32 %v4354, %v7389
    %v7391 = vand.u32 %v7390, 4294901760
    %v7392 = vsub.f32 %v7390, %v7391
    %v7393 = vand.u32 %v7392, 4294901760
    %7394 = vmatprep.subr.mxu0 %v7393
    %v7395 = vand.u32 %v4353, 4294901760
    %v7396 = vsub.f32 %v4353, %v7395
    %v7397 = vand.u32 %v7396, 4294901760
    %v7398 = vsub.f32 %v7396, %v7397
    %v7399 = vand.u32 %v7398, 4294901760
    %7400 = vmatpush1.msra.mxu0 %v7399
    %v7401 = vand.u32 %v4356, 4294901760
    %v7402 = vsub.f32 %v4356, %v7401
    %v7403 = vand.u32 %v7402, 4294901760
    %v7404 = vsub.f32 %v7402, %v7403
    %v7405 = vand.u32 %v7404, 4294901760
    %7406 = vmatprep.subr.mxu0 %v7405
    %v7407 = vand.u32 %v4355, 4294901760
    %v7408 = vsub.f32 %v4355, %v7407
    %v7409 = vand.u32 %v7408, 4294901760
    %v7410 = vsub.f32 %v7408, %v7409
    %v7411 = vand.u32 %v7410, 4294901760
    %7412 = vmatpush1.msra.mxu0 %v7411
    %v7413 = vand.u32 %v4358, 4294901760
    %v7414 = vsub.f32 %v4358, %v7413
    %v7415 = vand.u32 %v7414, 4294901760
    %v7416 = vsub.f32 %v7414, %v7415
    %v7417 = vand.u32 %v7416, 4294901760
    %7418 = vmatprep.subr.mxu0 %v7417
    %v7419 = vand.u32 %v4357, 4294901760
    %v7420 = vsub.f32 %v4357, %v7419
    %v7421 = vand.u32 %v7420, 4294901760
    %v7422 = vsub.f32 %v7420, %v7421
    %v7423 = vand.u32 %v7422, 4294901760
    %7424 = vmatpush1.msra.mxu0 %v7423
    %v7425 = vand.u32 %v4360, 4294901760
    %v7426 = vsub.f32 %v4360, %v7425
    %v7427 = vand.u32 %v7426, 4294901760
    %v7428 = vsub.f32 %v7426, %v7427
    %v7429 = vand.u32 %v7428, 4294901760
    %7430 = vmatprep.subr.mxu0 %v7429
    %v7431 = vand.u32 %v4359, 4294901760
    %v7432 = vsub.f32 %v4359, %v7431
    %v7433 = vand.u32 %v7432, 4294901760
    %v7434 = vsub.f32 %v7432, %v7433
    %v7435 = vand.u32 %v7434, 4294901760
    %7436 = vmatpush1.msra.mxu0 %v7435
    %v7437 = vand.u32 %v4362, 4294901760
    %v7438 = vsub.f32 %v4362, %v7437
    %v7439 = vand.u32 %v7438, 4294901760
    %v7440 = vsub.f32 %v7438, %v7439
    %v7441 = vand.u32 %v7440, 4294901760
    %7442 = vmatprep.subr.mxu0 %v7441
    %v7443 = vand.u32 %v4361, 4294901760
    %v7444 = vsub.f32 %v4361, %v7443
    %v7445 = vand.u32 %v7444, 4294901760
    %v7446 = vsub.f32 %v7444, %v7445
    %v7447 = vand.u32 %v7446, 4294901760
    %7448 = vmatpush1.msra.mxu0 %v7447
    %v7449 = vand.u32 %v4364, 4294901760
    %v7450 = vsub.f32 %v4364, %v7449
    %v7451 = vand.u32 %v7450, 4294901760
    %v7452 = vsub.f32 %v7450, %v7451
    %v7453 = vand.u32 %v7452, 4294901760
    %7454 = vmatprep.subr.mxu0 %v7453
    %v7455 = vand.u32 %v4363, 4294901760
    %v7456 = vsub.f32 %v4363, %v7455
    %v7457 = vand.u32 %v7456, 4294901760
    %v7458 = vsub.f32 %v7456, %v7457
    %v7459 = vand.u32 %v7458, 4294901760
    %7460 = vmatpush1.msra.mxu0 %v7459
    %v7461 = vand.u32 %v4366, 4294901760
    %v7462 = vsub.f32 %v4366, %v7461
    %v7463 = vand.u32 %v7462, 4294901760
    %v7464 = vsub.f32 %v7462, %v7463
    %v7465 = vand.u32 %v7464, 4294901760
    %7466 = vmatprep.subr.mxu0 %v7465
    %v7467 = vand.u32 %v4365, 4294901760
    %v7468 = vsub.f32 %v4365, %v7467
    %v7469 = vand.u32 %v7468, 4294901760
    %v7470 = vsub.f32 %v7468, %v7469
    %v7471 = vand.u32 %v7470, 4294901760
    %7472 = vmatpush1.msra.mxu0 %v7471
    %v7473 = vand.u32 %v4368, 4294901760
    %v7474 = vsub.f32 %v4368, %v7473
    %v7475 = vand.u32 %v7474, 4294901760
    %v7476 = vsub.f32 %v7474, %v7475
    %v7477 = vand.u32 %v7476, 4294901760
    %7478 = vmatprep.subr.mxu0 %v7477
    %v7479 = vand.u32 %v4367, 4294901760
    %v7480 = vsub.f32 %v4367, %v7479
    %v7481 = vand.u32 %v7480, 4294901760
    %v7482 = vsub.f32 %v7480, %v7481
    %v7483 = vand.u32 %v7482, 4294901760
    %7484 = vmatpush1.msra.mxu0 %v7483
    %v7485 = vand.u32 %v4370, 4294901760
    %v7486 = vsub.f32 %v4370, %v7485
    %v7487 = vand.u32 %v7486, 4294901760
    %v7488 = vsub.f32 %v7486, %v7487
    %v7489 = vand.u32 %v7488, 4294901760
    %7490 = vmatprep.subr.mxu0 %v7489
    %v7491 = vand.u32 %v4369, 4294901760
    %v7492 = vsub.f32 %v4369, %v7491
    %v7493 = vand.u32 %v7492, 4294901760
    %v7494 = vsub.f32 %v7492, %v7493
    %v7495 = vand.u32 %v7494, 4294901760
    %7496 = vmatpush1.msra.mxu0 %v7495
    %v7497 = vand.u32 %v4372, 4294901760
    %v7498 = vsub.f32 %v4372, %v7497
    %v7499 = vand.u32 %v7498, 4294901760
    %v7500 = vsub.f32 %v7498, %v7499
    %v7501 = vand.u32 %v7500, 4294901760
    %7502 = vmatprep.subr.mxu0 %v7501
    %v7503 = vand.u32 %v4371, 4294901760
    %v7504 = vsub.f32 %v4371, %v7503
    %v7505 = vand.u32 %v7504, 4294901760
    %v7506 = vsub.f32 %v7504, %v7505
    %v7507 = vand.u32 %v7506, 4294901760
    %7508 = vmatpush1.msra.mxu0 %v7507
    %v7509 = vand.u32 %v4374, 4294901760
    %v7510 = vsub.f32 %v4374, %v7509
    %v7511 = vand.u32 %v7510, 4294901760
    %v7512 = vsub.f32 %v7510, %v7511
    %v7513 = vand.u32 %v7512, 4294901760
    %7514 = vmatprep.subr.mxu0 %v7513
    %v7515 = vand.u32 %v4373, 4294901760
    %v7516 = vsub.f32 %v4373, %v7515
    %v7517 = vand.u32 %v7516, 4294901760
    %v7518 = vsub.f32 %v7516, %v7517
    %v7519 = vand.u32 %v7518, 4294901760
    %7520 = vmatpush1.msra.mxu0 %v7519
    %v7521 = vand.u32 %v4376, 4294901760
    %v7522 = vsub.f32 %v4376, %v7521
    %v7523 = vand.u32 %v7522, 4294901760
    %v7524 = vsub.f32 %v7522, %v7523
    %v7525 = vand.u32 %v7524, 4294901760
    %7526 = vmatprep.subr.mxu0 %v7525
    %v7527 = vand.u32 %v4375, 4294901760
    %v7528 = vsub.f32 %v4375, %v7527
    %v7529 = vand.u32 %v7528, 4294901760
    %v7530 = vsub.f32 %v7528, %v7529
    %v7531 = vand.u32 %v7530, 4294901760
    %7532 = vmatpush1.msra.mxu0 %v7531
    %v7533 = vand.u32 %v4378, 4294901760
    %v7534 = vsub.f32 %v4378, %v7533
    %v7535 = vand.u32 %v7534, 4294901760
    %v7536 = vsub.f32 %v7534, %v7535
    %v7537 = vand.u32 %v7536, 4294901760
    %7538 = vmatprep.subr.mxu0 %v7537
    %v7539 = vand.u32 %v4377, 4294901760
    %v7540 = vsub.f32 %v4377, %v7539
    %v7541 = vand.u32 %v7540, 4294901760
    %v7542 = vsub.f32 %v7540, %v7541
    %v7543 = vand.u32 %v7542, 4294901760
    %7544 = vmatpush1.msra.mxu0 %v7543
    %v7545 = vand.u32 %v4380, 4294901760
    %v7546 = vsub.f32 %v4380, %v7545
    %v7547 = vand.u32 %v7546, 4294901760
    %v7548 = vsub.f32 %v7546, %v7547
    %v7549 = vand.u32 %v7548, 4294901760
    %7550 = vmatprep.subr.mxu0 %v7549
    %v7551 = vand.u32 %v4379, 4294901760
    %v7552 = vsub.f32 %v4379, %v7551
    %v7553 = vand.u32 %v7552, 4294901760
    %v7554 = vsub.f32 %v7552, %v7553
    %v7555 = vand.u32 %v7554, 4294901760
    %7556 = vmatpush1.msra.mxu0 %v7555
    %v7557 = vand.u32 %v4382, 4294901760
    %v7558 = vsub.f32 %v4382, %v7557
    %v7559 = vand.u32 %v7558, 4294901760
    %v7560 = vsub.f32 %v7558, %v7559
    %v7561 = vand.u32 %v7560, 4294901760
    %7562 = vmatprep.subr.mxu0 %v7561
    %v7563 = vand.u32 %v4381, 4294901760
    %v7564 = vsub.f32 %v4381, %v7563
    %v7565 = vand.u32 %v7564, 4294901760
    %v7566 = vsub.f32 %v7564, %v7565
    %v7567 = vand.u32 %v7566, 4294901760
    %7568 = vmatpush1.msra.mxu0 %v7567
    %v7569 = vand.u32 %v4384, 4294901760
    %v7570 = vsub.f32 %v4384, %v7569
    %v7571 = vand.u32 %v7570, 4294901760
    %v7572 = vsub.f32 %v7570, %v7571
    %v7573 = vand.u32 %v7572, 4294901760
    %7574 = vmatprep.subr.mxu0 %v7573
    %v7575 = vand.u32 %v4383, 4294901760
    %v7576 = vsub.f32 %v4383, %v7575
    %v7577 = vand.u32 %v7576, 4294901760
    %v7578 = vsub.f32 %v7576, %v7577
    %v7579 = vand.u32 %v7578, 4294901760
    %7580 = vmatpush1.msra.mxu0 %v7579
    %v7581 = vand.u32 %v4386, 4294901760
    %v7582 = vsub.f32 %v4386, %v7581
    %v7583 = vand.u32 %v7582, 4294901760
    %v7584 = vsub.f32 %v7582, %v7583
    %v7585 = vand.u32 %v7584, 4294901760
    %7586 = vmatprep.subr.mxu0 %v7585
    %v7587 = vand.u32 %v4385, 4294901760
    %v7588 = vsub.f32 %v4385, %v7587
    %v7589 = vand.u32 %v7588, 4294901760
    %v7590 = vsub.f32 %v7588, %v7589
    %v7591 = vand.u32 %v7590, 4294901760
    %7592 = vmatpush1.msra.mxu0 %v7591
    %v7593 = vand.u32 %v4486, 4294901760
    %7594 = vmatprep.mubr.f32.mxu0 %v7593
    %v7595 = vand.u32 %v4478, 4294901760
    %7596 = vmatmul.mubr.f32.gmra.mrb[0].mxu0 %v7595
    %v7597 = vpop.f32.mrb[0].mxu0
    %v7598 = vadd.f32 %v7205, %v7597
    %v7599 = vpop.f32.mrb[0].mxu0
    %v7600 = vadd.f32 %v7207, %v7599
    %7601 = vdwg.mxu0
    %v7602 = vand.u32 %v4324, 4294901760
    %v7603 = vsub.f32 %v4324, %v7602
    %7604 = vmatprep.subr.mxu0 %v7603
    %v7605 = vand.u32 %v4323, 4294901760
    %v7606 = vsub.f32 %v4323, %v7605
    %7607 = vmatpush1.msra.mxu0 %v7606
    %v7608 = vand.u32 %v4326, 4294901760
    %v7609 = vsub.f32 %v4326, %v7608
    %7610 = vmatprep.subr.mxu0 %v7609
    %v7611 = vand.u32 %v4325, 4294901760
    %v7612 = vsub.f32 %v4325, %v7611
    %7613 = vmatpush1.msra.mxu0 %v7612
    %v7614 = vand.u32 %v4328, 4294901760
    %v7615 = vsub.f32 %v4328, %v7614
    %7616 = vmatprep.subr.mxu0 %v7615
    %v7617 = vand.u32 %v4327, 4294901760
    %v7618 = vsub.f32 %v4327, %v7617
    %7619 = vmatpush1.msra.mxu0 %v7618
    %v7620 = vand.u32 %v4330, 4294901760
    %v7621 = vsub.f32 %v4330, %v7620
    %7622 = vmatprep.subr.mxu0 %v7621
    %v7623 = vand.u32 %v4329, 4294901760
    %v7624 = vsub.f32 %v4329, %v7623
    %7625 = vmatpush1.msra.mxu0 %v7624
    %v7626 = vand.u32 %v4332, 4294901760
    %v7627 = vsub.f32 %v4332, %v7626
    %7628 = vmatprep.subr.mxu0 %v7627
    %v7629 = vand.u32 %v4331, 4294901760
    %v7630 = vsub.f32 %v4331, %v7629
    %7631 = vmatpush1.msra.mxu0 %v7630
    %v7632 = vand.u32 %v4334, 4294901760
    %v7633 = vsub.f32 %v4334, %v7632
    %7634 = vmatprep.subr.mxu0 %v7633
    %v7635 = vand.u32 %v4333, 4294901760
    %v7636 = vsub.f32 %v4333, %v7635
    %7637 = vmatpush1.msra.mxu0 %v7636
    %v7638 = vand.u32 %v4336, 4294901760
    %v7639 = vsub.f32 %v4336, %v7638
    %7640 = vmatprep.subr.mxu0 %v7639
    %v7641 = vand.u32 %v4335, 4294901760
    %v7642 = vsub.f32 %v4335, %v7641
    %7643 = vmatpush1.msra.mxu0 %v7642
    %v7644 = vand.u32 %v4338, 4294901760
    %v7645 = vsub.f32 %v4338, %v7644
    %7646 = vmatprep.subr.mxu0 %v7645
    %v7647 = vand.u32 %v4337, 4294901760
    %v7648 = vsub.f32 %v4337, %v7647
    %7649 = vmatpush1.msra.mxu0 %v7648
    %v7650 = vand.u32 %v4340, 4294901760
    %v7651 = vsub.f32 %v4340, %v7650
    %7652 = vmatprep.subr.mxu0 %v7651
    %v7653 = vand.u32 %v4339, 4294901760
    %v7654 = vsub.f32 %v4339, %v7653
    %7655 = vmatpush1.msra.mxu0 %v7654
    %v7656 = vand.u32 %v4342, 4294901760
    %v7657 = vsub.f32 %v4342, %v7656
    %7658 = vmatprep.subr.mxu0 %v7657
    %v7659 = vand.u32 %v4341, 4294901760
    %v7660 = vsub.f32 %v4341, %v7659
    %7661 = vmatpush1.msra.mxu0 %v7660
    %v7662 = vand.u32 %v4344, 4294901760
    %v7663 = vsub.f32 %v4344, %v7662
    %7664 = vmatprep.subr.mxu0 %v7663
    %v7665 = vand.u32 %v4343, 4294901760
    %v7666 = vsub.f32 %v4343, %v7665
    %7667 = vmatpush1.msra.mxu0 %v7666
    %v7668 = vand.u32 %v4346, 4294901760
    %v7669 = vsub.f32 %v4346, %v7668
    %7670 = vmatprep.subr.mxu0 %v7669
    %v7671 = vand.u32 %v4345, 4294901760
    %v7672 = vsub.f32 %v4345, %v7671
    %7673 = vmatpush1.msra.mxu0 %v7672
    %v7674 = vand.u32 %v4348, 4294901760
    %v7675 = vsub.f32 %v4348, %v7674
    %7676 = vmatprep.subr.mxu0 %v7675
    %v7677 = vand.u32 %v4347, 4294901760
    %v7678 = vsub.f32 %v4347, %v7677
    %7679 = vmatpush1.msra.mxu0 %v7678
    %v7680 = vand.u32 %v4350, 4294901760
    %v7681 = vsub.f32 %v4350, %v7680
    %7682 = vmatprep.subr.mxu0 %v7681
    %v7683 = vand.u32 %v4349, 4294901760
    %v7684 = vsub.f32 %v4349, %v7683
    %7685 = vmatpush1.msra.mxu0 %v7684
    %v7686 = vand.u32 %v4352, 4294901760
    %v7687 = vsub.f32 %v4352, %v7686
    %7688 = vmatprep.subr.mxu0 %v7687
    %v7689 = vand.u32 %v4351, 4294901760
    %v7690 = vsub.f32 %v4351, %v7689
    %7691 = vmatpush1.msra.mxu0 %v7690
    %v7692 = vand.u32 %v4354, 4294901760
    %v7693 = vsub.f32 %v4354, %v7692
    %7694 = vmatprep.subr.mxu0 %v7693
    %v7695 = vand.u32 %v4353, 4294901760
    %v7696 = vsub.f32 %v4353, %v7695
    %7697 = vmatpush1.msra.mxu0 %v7696
    %v7698 = vand.u32 %v4356, 4294901760
    %v7699 = vsub.f32 %v4356, %v7698
    %7700 = vmatprep.subr.mxu0 %v7699
    %v7701 = vand.u32 %v4355, 4294901760
    %v7702 = vsub.f32 %v4355, %v7701
    %7703 = vmatpush1.msra.mxu0 %v7702
    %v7704 = vand.u32 %v4358, 4294901760
    %v7705 = vsub.f32 %v4358, %v7704
    %7706 = vmatprep.subr.mxu0 %v7705
    %v7707 = vand.u32 %v4357, 4294901760
    %v7708 = vsub.f32 %v4357, %v7707
    %7709 = vmatpush1.msra.mxu0 %v7708
    %v7710 = vand.u32 %v4360, 4294901760
    %v7711 = vsub.f32 %v4360, %v7710
    %7712 = vmatprep.subr.mxu0 %v7711
    %v7713 = vand.u32 %v4359, 4294901760
    %v7714 = vsub.f32 %v4359, %v7713
    %7715 = vmatpush1.msra.mxu0 %v7714
    %v7716 = vand.u32 %v4362, 4294901760
    %v7717 = vsub.f32 %v4362, %v7716
    %7718 = vmatprep.subr.mxu0 %v7717
    %v7719 = vand.u32 %v4361, 4294901760
    %v7720 = vsub.f32 %v4361, %v7719
    %7721 = vmatpush1.msra.mxu0 %v7720
    %v7722 = vand.u32 %v4364, 4294901760
    %v7723 = vsub.f32 %v4364, %v7722
    %7724 = vmatprep.subr.mxu0 %v7723
    %v7725 = vand.u32 %v4363, 4294901760
    %v7726 = vsub.f32 %v4363, %v7725
    %7727 = vmatpush1.msra.mxu0 %v7726
    %v7728 = vand.u32 %v4366, 4294901760
    %v7729 = vsub.f32 %v4366, %v7728
    %7730 = vmatprep.subr.mxu0 %v7729
    %v7731 = vand.u32 %v4365, 4294901760
    %v7732 = vsub.f32 %v4365, %v7731
    %7733 = vmatpush1.msra.mxu0 %v7732
    %v7734 = vand.u32 %v4368, 4294901760
    %v7735 = vsub.f32 %v4368, %v7734
    %7736 = vmatprep.subr.mxu0 %v7735
    %v7737 = vand.u32 %v4367, 4294901760
    %v7738 = vsub.f32 %v4367, %v7737
    %7739 = vmatpush1.msra.mxu0 %v7738
    %v7740 = vand.u32 %v4370, 4294901760
    %v7741 = vsub.f32 %v4370, %v7740
    %7742 = vmatprep.subr.mxu0 %v7741
    %v7743 = vand.u32 %v4369, 4294901760
    %v7744 = vsub.f32 %v4369, %v7743
    %7745 = vmatpush1.msra.mxu0 %v7744
    %v7746 = vand.u32 %v4372, 4294901760
    %v7747 = vsub.f32 %v4372, %v7746
    %7748 = vmatprep.subr.mxu0 %v7747
    %v7749 = vand.u32 %v4371, 4294901760
    %v7750 = vsub.f32 %v4371, %v7749
    %7751 = vmatpush1.msra.mxu0 %v7750
    %v7752 = vand.u32 %v4374, 4294901760
    %v7753 = vsub.f32 %v4374, %v7752
    %7754 = vmatprep.subr.mxu0 %v7753
    %v7755 = vand.u32 %v4373, 4294901760
    %v7756 = vsub.f32 %v4373, %v7755
    %7757 = vmatpush1.msra.mxu0 %v7756
    %v7758 = vand.u32 %v4376, 4294901760
    %v7759 = vsub.f32 %v4376, %v7758
    %7760 = vmatprep.subr.mxu0 %v7759
    %v7761 = vand.u32 %v4375, 4294901760
    %v7762 = vsub.f32 %v4375, %v7761
    %7763 = vmatpush1.msra.mxu0 %v7762
    %v7764 = vand.u32 %v4378, 4294901760
    %v7765 = vsub.f32 %v4378, %v7764
    %7766 = vmatprep.subr.mxu0 %v7765
    %v7767 = vand.u32 %v4377, 4294901760
    %v7768 = vsub.f32 %v4377, %v7767
    %7769 = vmatpush1.msra.mxu0 %v7768
    %v7770 = vand.u32 %v4380, 4294901760
    %v7771 = vsub.f32 %v4380, %v7770
    %7772 = vmatprep.subr.mxu0 %v7771
    %v7773 = vand.u32 %v4379, 4294901760
    %v7774 = vsub.f32 %v4379, %v7773
    %7775 = vmatpush1.msra.mxu0 %v7774
    %v7776 = vand.u32 %v4382, 4294901760
    %v7777 = vsub.f32 %v4382, %v7776
    %7778 = vmatprep.subr.mxu0 %v7777
    %v7779 = vand.u32 %v4381, 4294901760
    %v7780 = vsub.f32 %v4381, %v7779
    %7781 = vmatpush1.msra.mxu0 %v7780
    %v7782 = vand.u32 %v4384, 4294901760
    %v7783 = vsub.f32 %v4384, %v7782
    %7784 = vmatprep.subr.mxu0 %v7783
    %v7785 = vand.u32 %v4383, 4294901760
    %v7786 = vsub.f32 %v4383, %v7785
    %7787 = vmatpush1.msra.mxu0 %v7786
    %v7788 = vand.u32 %v4386, 4294901760
    %v7789 = vsub.f32 %v4386, %v7788
    %7790 = vmatprep.subr.mxu0 %v7789
    %v7791 = vand.u32 %v4385, 4294901760
    %v7792 = vsub.f32 %v4385, %v7791
    %7793 = vmatpush1.msra.mxu0 %v7792
    %v7794 = vand.u32 %v4486, 4294901760
    %v7795 = vsub.f32 %v4486, %v7794
    %7796 = vmatprep.mubr.f32.mxu0 %v7795
    %v7797 = vand.u32 %v4478, 4294901760
    %v7798 = vsub.f32 %v4478, %v7797
    %7799 = vmatmul.mubr.f32.gmra.mrb[0].mxu0 %v7798
    %v7800 = vpop.f32.mrb[0].mxu0
    %v7801 = vadd.f32 %v7598, %v7800
    %v7802 = vpop.f32.mrb[0].mxu0
    %v7803 = vadd.f32 %v7600, %v7802
    %7804 = vdwg.mxu0
    %v7805 = vand.u32 %v4324, 4294901760
    %7806 = vmatprep.subr.mxu0 %v7805
    %v7807 = vand.u32 %v4323, 4294901760
    %7808 = vmatpush1.msra.mxu0 %v7807
    %v7809 = vand.u32 %v4326, 4294901760
    %7810 = vmatprep.subr.mxu0 %v7809
    %v7811 = vand.u32 %v4325, 4294901760
    %7812 = vmatpush1.msra.mxu0 %v7811
    %v7813 = vand.u32 %v4328, 4294901760
    %7814 = vmatprep.subr.mxu0 %v7813
    %v7815 = vand.u32 %v4327, 4294901760
    %7816 = vmatpush1.msra.mxu0 %v7815
    %v7817 = vand.u32 %v4330, 4294901760
    %7818 = vmatprep.subr.mxu0 %v7817
    %v7819 = vand.u32 %v4329, 4294901760
    %7820 = vmatpush1.msra.mxu0 %v7819
    %v7821 = vand.u32 %v4332, 4294901760
    %7822 = vmatprep.subr.mxu0 %v7821
    %v7823 = vand.u32 %v4331, 4294901760
    %7824 = vmatpush1.msra.mxu0 %v7823
    %v7825 = vand.u32 %v4334, 4294901760
    %7826 = vmatprep.subr.mxu0 %v7825
    %v7827 = vand.u32 %v4333, 4294901760
    %7828 = vmatpush1.msra.mxu0 %v7827
    %v7829 = vand.u32 %v4336, 4294901760
    %7830 = vmatprep.subr.mxu0 %v7829
    %v7831 = vand.u32 %v4335, 4294901760
    %7832 = vmatpush1.msra.mxu0 %v7831
    %v7833 = vand.u32 %v4338, 4294901760
    %7834 = vmatprep.subr.mxu0 %v7833
    %v7835 = vand.u32 %v4337, 4294901760
    %7836 = vmatpush1.msra.mxu0 %v7835
    %v7837 = vand.u32 %v4340, 4294901760
    %7838 = vmatprep.subr.mxu0 %v7837
    %v7839 = vand.u32 %v4339, 4294901760
    %7840 = vmatpush1.msra.mxu0 %v7839
    %v7841 = vand.u32 %v4342, 4294901760
    %7842 = vmatprep.subr.mxu0 %v7841
    %v7843 = vand.u32 %v4341, 4294901760
    %7844 = vmatpush1.msra.mxu0 %v7843
    %v7845 = vand.u32 %v4344, 4294901760
    %7846 = vmatprep.subr.mxu0 %v7845
    %v7847 = vand.u32 %v4343, 4294901760
    %7848 = vmatpush1.msra.mxu0 %v7847
    %v7849 = vand.u32 %v4346, 4294901760
    %7850 = vmatprep.subr.mxu0 %v7849
    %v7851 = vand.u32 %v4345, 4294901760
    %7852 = vmatpush1.msra.mxu0 %v7851
    %v7853 = vand.u32 %v4348, 4294901760
    %7854 = vmatprep.subr.mxu0 %v7853
    %v7855 = vand.u32 %v4347, 4294901760
    %7856 = vmatpush1.msra.mxu0 %v7855
    %v7857 = vand.u32 %v4350, 4294901760
    %7858 = vmatprep.subr.mxu0 %v7857
    %v7859 = vand.u32 %v4349, 4294901760
    %7860 = vmatpush1.msra.mxu0 %v7859
    %v7861 = vand.u32 %v4352, 4294901760
    %7862 = vmatprep.subr.mxu0 %v7861
    %v7863 = vand.u32 %v4351, 4294901760
    %7864 = vmatpush1.msra.mxu0 %v7863
    %v7865 = vand.u32 %v4354, 4294901760
    %7866 = vmatprep.subr.mxu0 %v7865
    %v7867 = vand.u32 %v4353, 4294901760
    %7868 = vmatpush1.msra.mxu0 %v7867
    %v7869 = vand.u32 %v4356, 4294901760
    %7870 = vmatprep.subr.mxu0 %v7869
    %v7871 = vand.u32 %v4355, 4294901760
    %7872 = vmatpush1.msra.mxu0 %v7871
    %v7873 = vand.u32 %v4358, 4294901760
    %7874 = vmatprep.subr.mxu0 %v7873
    %v7875 = vand.u32 %v4357, 4294901760
    %7876 = vmatpush1.msra.mxu0 %v7875
    %v7877 = vand.u32 %v4360, 4294901760
    %7878 = vmatprep.subr.mxu0 %v7877
    %v7879 = vand.u32 %v4359, 4294901760
    %7880 = vmatpush1.msra.mxu0 %v7879
    %v7881 = vand.u32 %v4362, 4294901760
    %7882 = vmatprep.subr.mxu0 %v7881
    %v7883 = vand.u32 %v4361, 4294901760
    %7884 = vmatpush1.msra.mxu0 %v7883
    %v7885 = vand.u32 %v4364, 4294901760
    %7886 = vmatprep.subr.mxu0 %v7885
    %v7887 = vand.u32 %v4363, 4294901760
    %7888 = vmatpush1.msra.mxu0 %v7887
    %v7889 = vand.u32 %v4366, 4294901760
    %7890 = vmatprep.subr.mxu0 %v7889
    %v7891 = vand.u32 %v4365, 4294901760
    %7892 = vmatpush1.msra.mxu0 %v7891
    %v7893 = vand.u32 %v4368, 4294901760
    %7894 = vmatprep.subr.mxu0 %v7893
    %v7895 = vand.u32 %v4367, 4294901760
    %7896 = vmatpush1.msra.mxu0 %v7895
    %v7897 = vand.u32 %v4370, 4294901760
    %7898 = vmatprep.subr.mxu0 %v7897
    %v7899 = vand.u32 %v4369, 4294901760
    %7900 = vmatpush1.msra.mxu0 %v7899
    %v7901 = vand.u32 %v4372, 4294901760
    %7902 = vmatprep.subr.mxu0 %v7901
    %v7903 = vand.u32 %v4371, 4294901760
    %7904 = vmatpush1.msra.mxu0 %v7903
    %v7905 = vand.u32 %v4374, 4294901760
    %7906 = vmatprep.subr.mxu0 %v7905
    %v7907 = vand.u32 %v4373, 4294901760
    %7908 = vmatpush1.msra.mxu0 %v7907
    %v7909 = vand.u32 %v4376, 4294901760
    %7910 = vmatprep.subr.mxu0 %v7909
    %v7911 = vand.u32 %v4375, 4294901760
    %7912 = vmatpush1.msra.mxu0 %v7911
    %v7913 = vand.u32 %v4378, 4294901760
    %7914 = vmatprep.subr.mxu0 %v7913
    %v7915 = vand.u32 %v4377, 4294901760
    %7916 = vmatpush1.msra.mxu0 %v7915
    %v7917 = vand.u32 %v4380, 4294901760
    %7918 = vmatprep.subr.mxu0 %v7917
    %v7919 = vand.u32 %v4379, 4294901760
    %7920 = vmatpush1.msra.mxu0 %v7919
    %v7921 = vand.u32 %v4382, 4294901760
    %7922 = vmatprep.subr.mxu0 %v7921
    %v7923 = vand.u32 %v4381, 4294901760
    %7924 = vmatpush1.msra.mxu0 %v7923
    %v7925 = vand.u32 %v4384, 4294901760
    %7926 = vmatprep.subr.mxu0 %v7925
    %v7927 = vand.u32 %v4383, 4294901760
    %7928 = vmatpush1.msra.mxu0 %v7927
    %v7929 = vand.u32 %v4386, 4294901760
    %7930 = vmatprep.subr.mxu0 %v7929
    %v7931 = vand.u32 %v4385, 4294901760
    %7932 = vmatpush1.msra.mxu0 %v7931
    %v7933 = vand.u32 %v4486, 4294901760
    %v7934 = vsub.f32 %v4486, %v7933
    %v7935 = vand.u32 %v7934, 4294901760
    %7936 = vmatprep.mubr.f32.mxu0 %v7935
    %v7937 = vand.u32 %v4478, 4294901760
    %v7938 = vsub.f32 %v4478, %v7937
    %v7939 = vand.u32 %v7938, 4294901760
    %7940 = vmatmul.mubr.f32.gmra.mrb[0].mxu0 %v7939
    %v7941 = vpop.f32.mrb[0].mxu0
    %v7942 = vadd.f32 %v7801, %v7941
    %v7943 = vpop.f32.mrb[0].mxu0
    %v7944 = vadd.f32 %v7803, %v7943
    %7945 = vdwg.mxu0
    %v7946 = vand.u32 %v4324, 4294901760
    %v7947 = vsub.f32 %v4324, %v7946
    %v7948 = vand.u32 %v7947, 4294901760
    %7949 = vmatprep.subr.mxu0 %v7948
    %v7950 = vand.u32 %v4323, 4294901760
    %v7951 = vsub.f32 %v4323, %v7950
    %v7952 = vand.u32 %v7951, 4294901760
    %7953 = vmatpush1.msra.mxu0 %v7952
    %v7954 = vand.u32 %v4326, 4294901760
    %v7955 = vsub.f32 %v4326, %v7954
    %v7956 = vand.u32 %v7955, 4294901760
    %7957 = vmatprep.subr.mxu0 %v7956
    %v7958 = vand.u32 %v4325, 4294901760
    %v7959 = vsub.f32 %v4325, %v7958
    %v7960 = vand.u32 %v7959, 4294901760
    %7961 = vmatpush1.msra.mxu0 %v7960
    %v7962 = vand.u32 %v4328, 4294901760
    %v7963 = vsub.f32 %v4328, %v7962
    %v7964 = vand.u32 %v7963, 4294901760
    %7965 = vmatprep.subr.mxu0 %v7964
    %v7966 = vand.u32 %v4327, 4294901760
    %v7967 = vsub.f32 %v4327, %v7966
    %v7968 = vand.u32 %v7967, 4294901760
    %7969 = vmatpush1.msra.mxu0 %v7968
    %v7970 = vand.u32 %v4330, 4294901760
    %v7971 = vsub.f32 %v4330, %v7970
    %v7972 = vand.u32 %v7971, 4294901760
    %7973 = vmatprep.subr.mxu0 %v7972
    %v7974 = vand.u32 %v4329, 4294901760
    %v7975 = vsub.f32 %v4329, %v7974
    %v7976 = vand.u32 %v7975, 4294901760
    %7977 = vmatpush1.msra.mxu0 %v7976
    %v7978 = vand.u32 %v4332, 4294901760
    %v7979 = vsub.f32 %v4332, %v7978
    %v7980 = vand.u32 %v7979, 4294901760
    %7981 = vmatprep.subr.mxu0 %v7980
    %v7982 = vand.u32 %v4331, 4294901760
    %v7983 = vsub.f32 %v4331, %v7982
    %v7984 = vand.u32 %v7983, 4294901760
    %7985 = vmatpush1.msra.mxu0 %v7984
    %v7986 = vand.u32 %v4334, 4294901760
    %v7987 = vsub.f32 %v4334, %v7986
    %v7988 = vand.u32 %v7987, 4294901760
    %7989 = vmatprep.subr.mxu0 %v7988
    %v7990 = vand.u32 %v4333, 4294901760
    %v7991 = vsub.f32 %v4333, %v7990
    %v7992 = vand.u32 %v7991, 4294901760
    %7993 = vmatpush1.msra.mxu0 %v7992
    %v7994 = vand.u32 %v4336, 4294901760
    %v7995 = vsub.f32 %v4336, %v7994
    %v7996 = vand.u32 %v7995, 4294901760
    %7997 = vmatprep.subr.mxu0 %v7996
    %v7998 = vand.u32 %v4335, 4294901760
    %v7999 = vsub.f32 %v4335, %v7998
    %v8000 = vand.u32 %v7999, 4294901760
    %8001 = vmatpush1.msra.mxu0 %v8000
    %v8002 = vand.u32 %v4338, 4294901760
    %v8003 = vsub.f32 %v4338, %v8002
    %v8004 = vand.u32 %v8003, 4294901760
    %8005 = vmatprep.subr.mxu0 %v8004
    %v8006 = vand.u32 %v4337, 4294901760
    %v8007 = vsub.f32 %v4337, %v8006
    %v8008 = vand.u32 %v8007, 4294901760
    %8009 = vmatpush1.msra.mxu0 %v8008
    %v8010 = vand.u32 %v4340, 4294901760
    %v8011 = vsub.f32 %v4340, %v8010
    %v8012 = vand.u32 %v8011, 4294901760
    %8013 = vmatprep.subr.mxu0 %v8012
    %v8014 = vand.u32 %v4339, 4294901760
    %v8015 = vsub.f32 %v4339, %v8014
    %v8016 = vand.u32 %v8015, 4294901760
    %8017 = vmatpush1.msra.mxu0 %v8016
    %v8018 = vand.u32 %v4342, 4294901760
    %v8019 = vsub.f32 %v4342, %v8018
    %v8020 = vand.u32 %v8019, 4294901760
    %8021 = vmatprep.subr.mxu0 %v8020
    %v8022 = vand.u32 %v4341, 4294901760
    %v8023 = vsub.f32 %v4341, %v8022
    %v8024 = vand.u32 %v8023, 4294901760
    %8025 = vmatpush1.msra.mxu0 %v8024
    %v8026 = vand.u32 %v4344, 4294901760
    %v8027 = vsub.f32 %v4344, %v8026
    %v8028 = vand.u32 %v8027, 4294901760
    %8029 = vmatprep.subr.mxu0 %v8028
    %v8030 = vand.u32 %v4343, 4294901760
    %v8031 = vsub.f32 %v4343, %v8030
    %v8032 = vand.u32 %v8031, 4294901760
    %8033 = vmatpush1.msra.mxu0 %v8032
    %v8034 = vand.u32 %v4346, 4294901760
    %v8035 = vsub.f32 %v4346, %v8034
    %v8036 = vand.u32 %v8035, 4294901760
    %8037 = vmatprep.subr.mxu0 %v8036
    %v8038 = vand.u32 %v4345, 4294901760
    %v8039 = vsub.f32 %v4345, %v8038
    %v8040 = vand.u32 %v8039, 4294901760
    %8041 = vmatpush1.msra.mxu0 %v8040
    %v8042 = vand.u32 %v4348, 4294901760
    %v8043 = vsub.f32 %v4348, %v8042
    %v8044 = vand.u32 %v8043, 4294901760
    %8045 = vmatprep.subr.mxu0 %v8044
    %v8046 = vand.u32 %v4347, 4294901760
    %v8047 = vsub.f32 %v4347, %v8046
    %v8048 = vand.u32 %v8047, 4294901760
    %8049 = vmatpush1.msra.mxu0 %v8048
    %v8050 = vand.u32 %v4350, 4294901760
    %v8051 = vsub.f32 %v4350, %v8050
    %v8052 = vand.u32 %v8051, 4294901760
    %8053 = vmatprep.subr.mxu0 %v8052
    %v8054 = vand.u32 %v4349, 4294901760
    %v8055 = vsub.f32 %v4349, %v8054
    %v8056 = vand.u32 %v8055, 4294901760
    %8057 = vmatpush1.msra.mxu0 %v8056
    %v8058 = vand.u32 %v4352, 4294901760
    %v8059 = vsub.f32 %v4352, %v8058
    %v8060 = vand.u32 %v8059, 4294901760
    %8061 = vmatprep.subr.mxu0 %v8060
    %v8062 = vand.u32 %v4351, 4294901760
    %v8063 = vsub.f32 %v4351, %v8062
    %v8064 = vand.u32 %v8063, 4294901760
    %8065 = vmatpush1.msra.mxu0 %v8064
    %v8066 = vand.u32 %v4354, 4294901760
    %v8067 = vsub.f32 %v4354, %v8066
    %v8068 = vand.u32 %v8067, 4294901760
    %8069 = vmatprep.subr.mxu0 %v8068
    %v8070 = vand.u32 %v4353, 4294901760
    %v8071 = vsub.f32 %v4353, %v8070
    %v8072 = vand.u32 %v8071, 4294901760
    %8073 = vmatpush1.msra.mxu0 %v8072
    %v8074 = vand.u32 %v4356, 4294901760
    %v8075 = vsub.f32 %v4356, %v8074
    %v8076 = vand.u32 %v8075, 4294901760
    %8077 = vmatprep.subr.mxu0 %v8076
    %v8078 = vand.u32 %v4355, 4294901760
    %v8079 = vsub.f32 %v4355, %v8078
    %v8080 = vand.u32 %v8079, 4294901760
    %8081 = vmatpush1.msra.mxu0 %v8080
    %v8082 = vand.u32 %v4358, 4294901760
    %v8083 = vsub.f32 %v4358, %v8082
    %v8084 = vand.u32 %v8083, 4294901760
    %8085 = vmatprep.subr.mxu0 %v8084
    %v8086 = vand.u32 %v4357, 4294901760
    %v8087 = vsub.f32 %v4357, %v8086
    %v8088 = vand.u32 %v8087, 4294901760
    %8089 = vmatpush1.msra.mxu0 %v8088
    %v8090 = vand.u32 %v4360, 4294901760
    %v8091 = vsub.f32 %v4360, %v8090
    %v8092 = vand.u32 %v8091, 4294901760
    %8093 = vmatprep.subr.mxu0 %v8092
    %v8094 = vand.u32 %v4359, 4294901760
    %v8095 = vsub.f32 %v4359, %v8094
    %v8096 = vand.u32 %v8095, 4294901760
    %8097 = vmatpush1.msra.mxu0 %v8096
    %v8098 = vand.u32 %v4362, 4294901760
    %v8099 = vsub.f32 %v4362, %v8098
    %v8100 = vand.u32 %v8099, 4294901760
    %8101 = vmatprep.subr.mxu0 %v8100
    %v8102 = vand.u32 %v4361, 4294901760
    %v8103 = vsub.f32 %v4361, %v8102
    %v8104 = vand.u32 %v8103, 4294901760
    %8105 = vmatpush1.msra.mxu0 %v8104
    %v8106 = vand.u32 %v4364, 4294901760
    %v8107 = vsub.f32 %v4364, %v8106
    %v8108 = vand.u32 %v8107, 4294901760
    %8109 = vmatprep.subr.mxu0 %v8108
    %v8110 = vand.u32 %v4363, 4294901760
    %v8111 = vsub.f32 %v4363, %v8110
    %v8112 = vand.u32 %v8111, 4294901760
    %8113 = vmatpush1.msra.mxu0 %v8112
    %v8114 = vand.u32 %v4366, 4294901760
    %v8115 = vsub.f32 %v4366, %v8114
    %v8116 = vand.u32 %v8115, 4294901760
    %8117 = vmatprep.subr.mxu0 %v8116
    %v8118 = vand.u32 %v4365, 4294901760
    %v8119 = vsub.f32 %v4365, %v8118
    %v8120 = vand.u32 %v8119, 4294901760
    %8121 = vmatpush1.msra.mxu0 %v8120
    %v8122 = vand.u32 %v4368, 4294901760
    %v8123 = vsub.f32 %v4368, %v8122
    %v8124 = vand.u32 %v8123, 4294901760
    %8125 = vmatprep.subr.mxu0 %v8124
    %v8126 = vand.u32 %v4367, 4294901760
    %v8127 = vsub.f32 %v4367, %v8126
    %v8128 = vand.u32 %v8127, 4294901760
    %8129 = vmatpush1.msra.mxu0 %v8128
    %v8130 = vand.u32 %v4370, 4294901760
    %v8131 = vsub.f32 %v4370, %v8130
    %v8132 = vand.u32 %v8131, 4294901760
    %8133 = vmatprep.subr.mxu0 %v8132
    %v8134 = vand.u32 %v4369, 4294901760
    %v8135 = vsub.f32 %v4369, %v8134
    %v8136 = vand.u32 %v8135, 4294901760
    %8137 = vmatpush1.msra.mxu0 %v8136
    %v8138 = vand.u32 %v4372, 4294901760
    %v8139 = vsub.f32 %v4372, %v8138
    %v8140 = vand.u32 %v8139, 4294901760
    %8141 = vmatprep.subr.mxu0 %v8140
    %v8142 = vand.u32 %v4371, 4294901760
    %v8143 = vsub.f32 %v4371, %v8142
    %v8144 = vand.u32 %v8143, 4294901760
    %8145 = vmatpush1.msra.mxu0 %v8144
    %v8146 = vand.u32 %v4374, 4294901760
    %v8147 = vsub.f32 %v4374, %v8146
    %v8148 = vand.u32 %v8147, 4294901760
    %8149 = vmatprep.subr.mxu0 %v8148
    %v8150 = vand.u32 %v4373, 4294901760
    %v8151 = vsub.f32 %v4373, %v8150
    %v8152 = vand.u32 %v8151, 4294901760
    %8153 = vmatpush1.msra.mxu0 %v8152
    %v8154 = vand.u32 %v4376, 4294901760
    %v8155 = vsub.f32 %v4376, %v8154
    %v8156 = vand.u32 %v8155, 4294901760
    %8157 = vmatprep.subr.mxu0 %v8156
    %v8158 = vand.u32 %v4375, 4294901760
    %v8159 = vsub.f32 %v4375, %v8158
    %v8160 = vand.u32 %v8159, 4294901760
    %8161 = vmatpush1.msra.mxu0 %v8160
    %v8162 = vand.u32 %v4378, 4294901760
    %v8163 = vsub.f32 %v4378, %v8162
    %v8164 = vand.u32 %v8163, 4294901760
    %8165 = vmatprep.subr.mxu0 %v8164
    %v8166 = vand.u32 %v4377, 4294901760
    %v8167 = vsub.f32 %v4377, %v8166
    %v8168 = vand.u32 %v8167, 4294901760
    %8169 = vmatpush1.msra.mxu0 %v8168
    %v8170 = vand.u32 %v4380, 4294901760
    %v8171 = vsub.f32 %v4380, %v8170
    %v8172 = vand.u32 %v8171, 4294901760
    %8173 = vmatprep.subr.mxu0 %v8172
    %v8174 = vand.u32 %v4379, 4294901760
    %v8175 = vsub.f32 %v4379, %v8174
    %v8176 = vand.u32 %v8175, 4294901760
    %8177 = vmatpush1.msra.mxu0 %v8176
    %v8178 = vand.u32 %v4382, 4294901760
    %v8179 = vsub.f32 %v4382, %v8178
    %v8180 = vand.u32 %v8179, 4294901760
    %8181 = vmatprep.subr.mxu0 %v8180
    %v8182 = vand.u32 %v4381, 4294901760
    %v8183 = vsub.f32 %v4381, %v8182
    %v8184 = vand.u32 %v8183, 4294901760
    %8185 = vmatpush1.msra.mxu0 %v8184
    %v8186 = vand.u32 %v4384, 4294901760
    %v8187 = vsub.f32 %v4384, %v8186
    %v8188 = vand.u32 %v8187, 4294901760
    %8189 = vmatprep.subr.mxu0 %v8188
    %v8190 = vand.u32 %v4383, 4294901760
    %v8191 = vsub.f32 %v4383, %v8190
    %v8192 = vand.u32 %v8191, 4294901760
    %8193 = vmatpush1.msra.mxu0 %v8192
    %v8194 = vand.u32 %v4386, 4294901760
    %v8195 = vsub.f32 %v4386, %v8194
    %v8196 = vand.u32 %v8195, 4294901760
    %8197 = vmatprep.subr.mxu0 %v8196
    %v8198 = vand.u32 %v4385, 4294901760
    %v8199 = vsub.f32 %v4385, %v8198
    %v8200 = vand.u32 %v8199, 4294901760
    %8201 = vmatpush1.msra.mxu0 %v8200
    %v8202 = vand.u32 %v4486, 4294901760
    %8203 = vmatprep.mubr.f32.mxu0 %v8202
    %v8204 = vand.u32 %v4478, 4294901760
    %8205 = vmatmul.mubr.f32.gmra.mrb[0].mxu0 %v8204
    %v8206 = vpop.f32.mrb[0].mxu0
    %v8207 = vadd.f32 %v7942, %v8206
    %v8208 = vpop.f32.mrb[0].mxu0
    %v8209 = vadd.f32 %v7944, %v8208
    %8210 = vdwg.mxu0
    %v8211 = vand.u32 %v4324, 4294901760
    %8212 = vmatprep.subr.mxu0 %v8211
    %v8213 = vand.u32 %v4323, 4294901760
    %8214 = vmatpush1.msra.mxu0 %v8213
    %v8215 = vand.u32 %v4326, 4294901760
    %8216 = vmatprep.subr.mxu0 %v8215
    %v8217 = vand.u32 %v4325, 4294901760
    %8218 = vmatpush1.msra.mxu0 %v8217
    %v8219 = vand.u32 %v4328, 4294901760
    %8220 = vmatprep.subr.mxu0 %v8219
    %v8221 = vand.u32 %v4327, 4294901760
    %8222 = vmatpush1.msra.mxu0 %v8221
    %v8223 = vand.u32 %v4330, 4294901760
    %8224 = vmatprep.subr.mxu0 %v8223
    %v8225 = vand.u32 %v4329, 4294901760
    %8226 = vmatpush1.msra.mxu0 %v8225
    %v8227 = vand.u32 %v4332, 4294901760
    %8228 = vmatprep.subr.mxu0 %v8227
    %v8229 = vand.u32 %v4331, 4294901760
    %8230 = vmatpush1.msra.mxu0 %v8229
    %v8231 = vand.u32 %v4334, 4294901760
    %8232 = vmatprep.subr.mxu0 %v8231
    %v8233 = vand.u32 %v4333, 4294901760
    %8234 = vmatpush1.msra.mxu0 %v8233
    %v8235 = vand.u32 %v4336, 4294901760
    %8236 = vmatprep.subr.mxu0 %v8235
    %v8237 = vand.u32 %v4335, 4294901760
    %8238 = vmatpush1.msra.mxu0 %v8237
    %v8239 = vand.u32 %v4338, 4294901760
    %8240 = vmatprep.subr.mxu0 %v8239
    %v8241 = vand.u32 %v4337, 4294901760
    %8242 = vmatpush1.msra.mxu0 %v8241
    %v8243 = vand.u32 %v4340, 4294901760
    %8244 = vmatprep.subr.mxu0 %v8243
    %v8245 = vand.u32 %v4339, 4294901760
    %8246 = vmatpush1.msra.mxu0 %v8245
    %v8247 = vand.u32 %v4342, 4294901760
    %8248 = vmatprep.subr.mxu0 %v8247
    %v8249 = vand.u32 %v4341, 4294901760
    %8250 = vmatpush1.msra.mxu0 %v8249
    %v8251 = vand.u32 %v4344, 4294901760
    %8252 = vmatprep.subr.mxu0 %v8251
    %v8253 = vand.u32 %v4343, 4294901760
    %8254 = vmatpush1.msra.mxu0 %v8253
    %v8255 = vand.u32 %v4346, 4294901760
    %8256 = vmatprep.subr.mxu0 %v8255
    %v8257 = vand.u32 %v4345, 4294901760
    %8258 = vmatpush1.msra.mxu0 %v8257
    %v8259 = vand.u32 %v4348, 4294901760
    %8260 = vmatprep.subr.mxu0 %v8259
    %v8261 = vand.u32 %v4347, 4294901760
    %8262 = vmatpush1.msra.mxu0 %v8261
    %v8263 = vand.u32 %v4350, 4294901760
    %8264 = vmatprep.subr.mxu0 %v8263
    %v8265 = vand.u32 %v4349, 4294901760
    %8266 = vmatpush1.msra.mxu0 %v8265
    %v8267 = vand.u32 %v4352, 4294901760
    %8268 = vmatprep.subr.mxu0 %v8267
    %v8269 = vand.u32 %v4351, 4294901760
    %8270 = vmatpush1.msra.mxu0 %v8269
    %v8271 = vand.u32 %v4354, 4294901760
    %8272 = vmatprep.subr.mxu0 %v8271
    %v8273 = vand.u32 %v4353, 4294901760
    %8274 = vmatpush1.msra.mxu0 %v8273
    %v8275 = vand.u32 %v4356, 4294901760
    %8276 = vmatprep.subr.mxu0 %v8275
    %v8277 = vand.u32 %v4355, 4294901760
    %8278 = vmatpush1.msra.mxu0 %v8277
    %v8279 = vand.u32 %v4358, 4294901760
    %8280 = vmatprep.subr.mxu0 %v8279
    %v8281 = vand.u32 %v4357, 4294901760
    %8282 = vmatpush1.msra.mxu0 %v8281
    %v8283 = vand.u32 %v4360, 4294901760
    %8284 = vmatprep.subr.mxu0 %v8283
    %v8285 = vand.u32 %v4359, 4294901760
    %8286 = vmatpush1.msra.mxu0 %v8285
    %v8287 = vand.u32 %v4362, 4294901760
    %8288 = vmatprep.subr.mxu0 %v8287
    %v8289 = vand.u32 %v4361, 4294901760
    %8290 = vmatpush1.msra.mxu0 %v8289
    %v8291 = vand.u32 %v4364, 4294901760
    %8292 = vmatprep.subr.mxu0 %v8291
    %v8293 = vand.u32 %v4363, 4294901760
    %8294 = vmatpush1.msra.mxu0 %v8293
    %v8295 = vand.u32 %v4366, 4294901760
    %8296 = vmatprep.subr.mxu0 %v8295
    %v8297 = vand.u32 %v4365, 4294901760
    %8298 = vmatpush1.msra.mxu0 %v8297
    %v8299 = vand.u32 %v4368, 4294901760
    %8300 = vmatprep.subr.mxu0 %v8299
    %v8301 = vand.u32 %v4367, 4294901760
    %8302 = vmatpush1.msra.mxu0 %v8301
    %v8303 = vand.u32 %v4370, 4294901760
    %8304 = vmatprep.subr.mxu0 %v8303
    %v8305 = vand.u32 %v4369, 4294901760
    %8306 = vmatpush1.msra.mxu0 %v8305
    %v8307 = vand.u32 %v4372, 4294901760
    %8308 = vmatprep.subr.mxu0 %v8307
    %v8309 = vand.u32 %v4371, 4294901760
    %8310 = vmatpush1.msra.mxu0 %v8309
    %v8311 = vand.u32 %v4374, 4294901760
    %8312 = vmatprep.subr.mxu0 %v8311
    %v8313 = vand.u32 %v4373, 4294901760
    %8314 = vmatpush1.msra.mxu0 %v8313
    %v8315 = vand.u32 %v4376, 4294901760
    %8316 = vmatprep.subr.mxu0 %v8315
    %v8317 = vand.u32 %v4375, 4294901760
    %8318 = vmatpush1.msra.mxu0 %v8317
    %v8319 = vand.u32 %v4378, 4294901760
    %8320 = vmatprep.subr.mxu0 %v8319
    %v8321 = vand.u32 %v4377, 4294901760
    %8322 = vmatpush1.msra.mxu0 %v8321
    %v8323 = vand.u32 %v4380, 4294901760
    %8324 = vmatprep.subr.mxu0 %v8323
    %v8325 = vand.u32 %v4379, 4294901760
    %8326 = vmatpush1.msra.mxu0 %v8325
    %v8327 = vand.u32 %v4382, 4294901760
    %8328 = vmatprep.subr.mxu0 %v8327
    %v8329 = vand.u32 %v4381, 4294901760
    %8330 = vmatpush1.msra.mxu0 %v8329
    %v8331 = vand.u32 %v4384, 4294901760
    %8332 = vmatprep.subr.mxu0 %v8331
    %v8333 = vand.u32 %v4383, 4294901760
    %8334 = vmatpush1.msra.mxu0 %v8333
    %v8335 = vand.u32 %v4386, 4294901760
    %8336 = vmatprep.subr.mxu0 %v8335
    %v8337 = vand.u32 %v4385, 4294901760
    %8338 = vmatpush1.msra.mxu0 %v8337
    %v8339 = vand.u32 %v4486, 4294901760
    %8340 = vmatprep.mubr.f32.mxu0 %v8339
    %v8341 = vand.u32 %v4478, 4294901760
    %8342 = vmatmul.mubr.f32.gmra.mrb[0].mxu0 %v8341
    %v8343 = vpop.f32.mrb[0].mxu0
    %v8344 = vadd.f32 %v8207, %v8343
    %v8345 = vpop.f32.mrb[0].mxu0
    %v8346 = vadd.f32 %v8209, %v8345
    %8347 = vdwg.mxu0
    %v8348 = vand.u32 %v4388, 4294901760
    %8349 = vmatprep.subr.mxu0 %v8348
    %v8350 = vand.u32 %v4387, 4294901760
    %8351 = vmatpush1.msra.mxu0 %v8350
    %v8352 = vand.u32 %v4390, 4294901760
    %8353 = vmatprep.subr.mxu0 %v8352
    %v8354 = vand.u32 %v4389, 4294901760
    %8355 = vmatpush1.msra.mxu0 %v8354
    %v8356 = vand.u32 %v4392, 4294901760
    %8357 = vmatprep.subr.mxu0 %v8356
    %v8358 = vand.u32 %v4391, 4294901760
    %8359 = vmatpush1.msra.mxu0 %v8358
    %v8360 = vand.u32 %v4394, 4294901760
    %8361 = vmatprep.subr.mxu0 %v8360
    %v8362 = vand.u32 %v4393, 4294901760
    %8363 = vmatpush1.msra.mxu0 %v8362
    %v8364 = vand.u32 %v4396, 4294901760
    %8365 = vmatprep.subr.mxu0 %v8364
    %v8366 = vand.u32 %v4395, 4294901760
    %8367 = vmatpush1.msra.mxu0 %v8366
    %v8368 = vand.u32 %v4398, 4294901760
    %8369 = vmatprep.subr.mxu0 %v8368
    %v8370 = vand.u32 %v4397, 4294901760
    %8371 = vmatpush1.msra.mxu0 %v8370
    %v8372 = vand.u32 %v4400, 4294901760
    %8373 = vmatprep.subr.mxu0 %v8372
    %v8374 = vand.u32 %v4399, 4294901760
    %8375 = vmatpush1.msra.mxu0 %v8374
    %v8376 = vand.u32 %v4402, 4294901760
    %8377 = vmatprep.subr.mxu0 %v8376
    %v8378 = vand.u32 %v4401, 4294901760
    %8379 = vmatpush1.msra.mxu0 %v8378
    %v8380 = vand.u32 %v4404, 4294901760
    %8381 = vmatprep.subr.mxu0 %v8380
    %v8382 = vand.u32 %v4403, 4294901760
    %8383 = vmatpush1.msra.mxu0 %v8382
    %v8384 = vand.u32 %v4406, 4294901760
    %8385 = vmatprep.subr.mxu0 %v8384
    %v8386 = vand.u32 %v4405, 4294901760
    %8387 = vmatpush1.msra.mxu0 %v8386
    %v8388 = vand.u32 %v4408, 4294901760
    %8389 = vmatprep.subr.mxu0 %v8388
    %v8390 = vand.u32 %v4407, 4294901760
    %8391 = vmatpush1.msra.mxu0 %v8390
    %v8392 = vand.u32 %v4410, 4294901760
    %8393 = vmatprep.subr.mxu0 %v8392
    %v8394 = vand.u32 %v4409, 4294901760
    %8395 = vmatpush1.msra.mxu0 %v8394
    %v8396 = vand.u32 %v4412, 4294901760
    %8397 = vmatprep.subr.mxu0 %v8396
    %v8398 = vand.u32 %v4411, 4294901760
    %8399 = vmatpush1.msra.mxu0 %v8398
    %v8400 = vand.u32 %v4414, 4294901760
    %8401 = vmatprep.subr.mxu0 %v8400
    %v8402 = vand.u32 %v4413, 4294901760
    %8403 = vmatpush1.msra.mxu0 %v8402
    %v8404 = vand.u32 %v4416, 4294901760
    %8405 = vmatprep.subr.mxu0 %v8404
    %v8406 = vand.u32 %v4415, 4294901760
    %8407 = vmatpush1.msra.mxu0 %v8406
    %v8408 = vand.u32 %v4418, 4294901760
    %8409 = vmatprep.subr.mxu0 %v8408
    %v8410 = vand.u32 %v4417, 4294901760
    %8411 = vmatpush1.msra.mxu0 %v8410
    %v8412 = vand.u32 %v4420, 4294901760
    %8413 = vmatprep.subr.mxu0 %v8412
    %v8414 = vand.u32 %v4419, 4294901760
    %8415 = vmatpush1.msra.mxu0 %v8414
    %v8416 = vand.u32 %v4422, 4294901760
    %8417 = vmatprep.subr.mxu0 %v8416
    %v8418 = vand.u32 %v4421, 4294901760
    %8419 = vmatpush1.msra.mxu0 %v8418
    %v8420 = vand.u32 %v4424, 4294901760
    %8421 = vmatprep.subr.mxu0 %v8420
    %v8422 = vand.u32 %v4423, 4294901760
    %8423 = vmatpush1.msra.mxu0 %v8422
    %v8424 = vand.u32 %v4426, 4294901760
    %8425 = vmatprep.subr.mxu0 %v8424
    %v8426 = vand.u32 %v4425, 4294901760
    %8427 = vmatpush1.msra.mxu0 %v8426
    %v8428 = vand.u32 %v4428, 4294901760
    %8429 = vmatprep.subr.mxu0 %v8428
    %v8430 = vand.u32 %v4427, 4294901760
    %8431 = vmatpush1.msra.mxu0 %v8430
    %v8432 = vand.u32 %v4430, 4294901760
    %8433 = vmatprep.subr.mxu0 %v8432
    %v8434 = vand.u32 %v4429, 4294901760
    %8435 = vmatpush1.msra.mxu0 %v8434
    %v8436 = vand.u32 %v4432, 4294901760
    %8437 = vmatprep.subr.mxu0 %v8436
    %v8438 = vand.u32 %v4431, 4294901760
    %8439 = vmatpush1.msra.mxu0 %v8438
    %v8440 = vand.u32 %v4434, 4294901760
    %8441 = vmatprep.subr.mxu0 %v8440
    %v8442 = vand.u32 %v4433, 4294901760
    %8443 = vmatpush1.msra.mxu0 %v8442
    %v8444 = vand.u32 %v4436, 4294901760
    %8445 = vmatprep.subr.mxu0 %v8444
    %v8446 = vand.u32 %v4435, 4294901760
    %8447 = vmatpush1.msra.mxu0 %v8446
    %v8448 = vand.u32 %v4438, 4294901760
    %8449 = vmatprep.subr.mxu0 %v8448
    %v8450 = vand.u32 %v4437, 4294901760
    %8451 = vmatpush1.msra.mxu0 %v8450
    %v8452 = vand.u32 %v4440, 4294901760
    %8453 = vmatprep.subr.mxu0 %v8452
    %v8454 = vand.u32 %v4439, 4294901760
    %8455 = vmatpush1.msra.mxu0 %v8454
    %v8456 = vand.u32 %v4442, 4294901760
    %8457 = vmatprep.subr.mxu0 %v8456
    %v8458 = vand.u32 %v4441, 4294901760
    %8459 = vmatpush1.msra.mxu0 %v8458
    %v8460 = vand.u32 %v4444, 4294901760
    %8461 = vmatprep.subr.mxu0 %v8460
    %v8462 = vand.u32 %v4443, 4294901760
    %8463 = vmatpush1.msra.mxu0 %v8462
    %v8464 = vand.u32 %v4446, 4294901760
    %8465 = vmatprep.subr.mxu0 %v8464
    %v8466 = vand.u32 %v4445, 4294901760
    %8467 = vmatpush1.msra.mxu0 %v8466
    %v8468 = vand.u32 %v4448, 4294901760
    %8469 = vmatprep.subr.mxu0 %v8468
    %v8470 = vand.u32 %v4447, 4294901760
    %8471 = vmatpush1.msra.mxu0 %v8470
    %v8472 = vand.u32 %v4450, 4294901760
    %8473 = vmatprep.subr.mxu0 %v8472
    %v8474 = vand.u32 %v4449, 4294901760
    %8475 = vmatpush1.msra.mxu0 %v8474
    %v8476 = vand.u32 %v4487, 4294901760
    %v8477 = vsub.f32 %v4487, %v8476
    %v8478 = vand.u32 %v8477, 4294901760
    %v8479 = vsub.f32 %v8477, %v8478
    %v8480 = vand.u32 %v8479, 4294901760
    %8481 = vmatprep.mubr.f32.mxu0 %v8480
    %v8482 = vand.u32 %v4485, 4294901760
    %v8483 = vsub.f32 %v4485, %v8482
    %v8484 = vand.u32 %v8483, 4294901760
    %v8485 = vsub.f32 %v8483, %v8484
    %v8486 = vand.u32 %v8485, 4294901760
    %8487 = vmatmul.mubr.f32.gmra.mrb[0].mxu0 %v8486
    %v8488 = vpop.f32.mrb[0].mxu0
    %v8489 = vadd.f32 %v8344, %v8488
    %v8490 = vpop.f32.mrb[0].mxu0
    %v8491 = vadd.f32 %v8346, %v8490
    %8492 = vdwg.mxu0
    %v8493 = vand.u32 %v4388, 4294901760
    %v8494 = vsub.f32 %v4388, %v8493
    %v8495 = vand.u32 %v8494, 4294901760
    %v8496 = vsub.f32 %v8494, %v8495
    %v8497 = vand.u32 %v8496, 4294901760
    %8498 = vmatprep.subr.mxu0 %v8497
    %v8499 = vand.u32 %v4387, 4294901760
    %v8500 = vsub.f32 %v4387, %v8499
    %v8501 = vand.u32 %v8500, 4294901760
    %v8502 = vsub.f32 %v8500, %v8501
    %v8503 = vand.u32 %v8502, 4294901760
    %8504 = vmatpush1.msra.mxu0 %v8503
    %v8505 = vand.u32 %v4390, 4294901760
    %v8506 = vsub.f32 %v4390, %v8505
    %v8507 = vand.u32 %v8506, 4294901760
    %v8508 = vsub.f32 %v8506, %v8507
    %v8509 = vand.u32 %v8508, 4294901760
    %8510 = vmatprep.subr.mxu0 %v8509
    %v8511 = vand.u32 %v4389, 4294901760
    %v8512 = vsub.f32 %v4389, %v8511
    %v8513 = vand.u32 %v8512, 4294901760
    %v8514 = vsub.f32 %v8512, %v8513
    %v8515 = vand.u32 %v8514, 4294901760
    %8516 = vmatpush1.msra.mxu0 %v8515
    %v8517 = vand.u32 %v4392, 4294901760
    %v8518 = vsub.f32 %v4392, %v8517
    %v8519 = vand.u32 %v8518, 4294901760
    %v8520 = vsub.f32 %v8518, %v8519
    %v8521 = vand.u32 %v8520, 4294901760
    %8522 = vmatprep.subr.mxu0 %v8521
    %v8523 = vand.u32 %v4391, 4294901760
    %v8524 = vsub.f32 %v4391, %v8523
    %v8525 = vand.u32 %v8524, 4294901760
    %v8526 = vsub.f32 %v8524, %v8525
    %v8527 = vand.u32 %v8526, 4294901760
    %8528 = vmatpush1.msra.mxu0 %v8527
    %v8529 = vand.u32 %v4394, 4294901760
    %v8530 = vsub.f32 %v4394, %v8529
    %v8531 = vand.u32 %v8530, 4294901760
    %v8532 = vsub.f32 %v8530, %v8531
    %v8533 = vand.u32 %v8532, 4294901760
    %8534 = vmatprep.subr.mxu0 %v8533
    %v8535 = vand.u32 %v4393, 4294901760
    %v8536 = vsub.f32 %v4393, %v8535
    %v8537 = vand.u32 %v8536, 4294901760
    %v8538 = vsub.f32 %v8536, %v8537
    %v8539 = vand.u32 %v8538, 4294901760
    %8540 = vmatpush1.msra.mxu0 %v8539
    %v8541 = vand.u32 %v4396, 4294901760
    %v8542 = vsub.f32 %v4396, %v8541
    %v8543 = vand.u32 %v8542, 4294901760
    %v8544 = vsub.f32 %v8542, %v8543
    %v8545 = vand.u32 %v8544, 4294901760
    %8546 = vmatprep.subr.mxu0 %v8545
    %v8547 = vand.u32 %v4395, 4294901760
    %v8548 = vsub.f32 %v4395, %v8547
    %v8549 = vand.u32 %v8548, 4294901760
    %v8550 = vsub.f32 %v8548, %v8549
    %v8551 = vand.u32 %v8550, 4294901760
    %8552 = vmatpush1.msra.mxu0 %v8551
    %v8553 = vand.u32 %v4398, 4294901760
    %v8554 = vsub.f32 %v4398, %v8553
    %v8555 = vand.u32 %v8554, 4294901760
    %v8556 = vsub.f32 %v8554, %v8555
    %v8557 = vand.u32 %v8556, 4294901760
    %8558 = vmatprep.subr.mxu0 %v8557
    %v8559 = vand.u32 %v4397, 4294901760
    %v8560 = vsub.f32 %v4397, %v8559
    %v8561 = vand.u32 %v8560, 4294901760
    %v8562 = vsub.f32 %v8560, %v8561
    %v8563 = vand.u32 %v8562, 4294901760
    %8564 = vmatpush1.msra.mxu0 %v8563
    %v8565 = vand.u32 %v4400, 4294901760
    %v8566 = vsub.f32 %v4400, %v8565
    %v8567 = vand.u32 %v8566, 4294901760
    %v8568 = vsub.f32 %v8566, %v8567
    %v8569 = vand.u32 %v8568, 4294901760
    %8570 = vmatprep.subr.mxu0 %v8569
    %v8571 = vand.u32 %v4399, 4294901760
    %v8572 = vsub.f32 %v4399, %v8571
    %v8573 = vand.u32 %v8572, 4294901760
    %v8574 = vsub.f32 %v8572, %v8573
    %v8575 = vand.u32 %v8574, 4294901760
    %8576 = vmatpush1.msra.mxu0 %v8575
    %v8577 = vand.u32 %v4402, 4294901760
    %v8578 = vsub.f32 %v4402, %v8577
    %v8579 = vand.u32 %v8578, 4294901760
    %v8580 = vsub.f32 %v8578, %v8579
    %v8581 = vand.u32 %v8580, 4294901760
    %8582 = vmatprep.subr.mxu0 %v8581
    %v8583 = vand.u32 %v4401, 4294901760
    %v8584 = vsub.f32 %v4401, %v8583
    %v8585 = vand.u32 %v8584, 4294901760
    %v8586 = vsub.f32 %v8584, %v8585
    %v8587 = vand.u32 %v8586, 4294901760
    %8588 = vmatpush1.msra.mxu0 %v8587
    %v8589 = vand.u32 %v4404, 4294901760
    %v8590 = vsub.f32 %v4404, %v8589
    %v8591 = vand.u32 %v8590, 4294901760
    %v8592 = vsub.f32 %v8590, %v8591
    %v8593 = vand.u32 %v8592, 4294901760
    %8594 = vmatprep.subr.mxu0 %v8593
    %v8595 = vand.u32 %v4403, 4294901760
    %v8596 = vsub.f32 %v4403, %v8595
    %v8597 = vand.u32 %v8596, 4294901760
    %v8598 = vsub.f32 %v8596, %v8597
    %v8599 = vand.u32 %v8598, 4294901760
    %8600 = vmatpush1.msra.mxu0 %v8599
    %v8601 = vand.u32 %v4406, 4294901760
    %v8602 = vsub.f32 %v4406, %v8601
    %v8603 = vand.u32 %v8602, 4294901760
    %v8604 = vsub.f32 %v8602, %v8603
    %v8605 = vand.u32 %v8604, 4294901760
    %8606 = vmatprep.subr.mxu0 %v8605
    %v8607 = vand.u32 %v4405, 4294901760
    %v8608 = vsub.f32 %v4405, %v8607
    %v8609 = vand.u32 %v8608, 4294901760
    %v8610 = vsub.f32 %v8608, %v8609
    %v8611 = vand.u32 %v8610, 4294901760
    %8612 = vmatpush1.msra.mxu0 %v8611
    %v8613 = vand.u32 %v4408, 4294901760
    %v8614 = vsub.f32 %v4408, %v8613
    %v8615 = vand.u32 %v8614, 4294901760
    %v8616 = vsub.f32 %v8614, %v8615
    %v8617 = vand.u32 %v8616, 4294901760
    %8618 = vmatprep.subr.mxu0 %v8617
    %v8619 = vand.u32 %v4407, 4294901760
    %v8620 = vsub.f32 %v4407, %v8619
    %v8621 = vand.u32 %v8620, 4294901760
    %v8622 = vsub.f32 %v8620, %v8621
    %v8623 = vand.u32 %v8622, 4294901760
    %8624 = vmatpush1.msra.mxu0 %v8623
    %v8625 = vand.u32 %v4410, 4294901760
    %v8626 = vsub.f32 %v4410, %v8625
    %v8627 = vand.u32 %v8626, 4294901760
    %v8628 = vsub.f32 %v8626, %v8627
    %v8629 = vand.u32 %v8628, 4294901760
    %8630 = vmatprep.subr.mxu0 %v8629
    %v8631 = vand.u32 %v4409, 4294901760
    %v8632 = vsub.f32 %v4409, %v8631
    %v8633 = vand.u32 %v8632, 4294901760
    %v8634 = vsub.f32 %v8632, %v8633
    %v8635 = vand.u32 %v8634, 4294901760
    %8636 = vmatpush1.msra.mxu0 %v8635
    %v8637 = vand.u32 %v4412, 4294901760
    %v8638 = vsub.f32 %v4412, %v8637
    %v8639 = vand.u32 %v8638, 4294901760
    %v8640 = vsub.f32 %v8638, %v8639
    %v8641 = vand.u32 %v8640, 4294901760
    %8642 = vmatprep.subr.mxu0 %v8641
    %v8643 = vand.u32 %v4411, 4294901760
    %v8644 = vsub.f32 %v4411, %v8643
    %v8645 = vand.u32 %v8644, 4294901760
    %v8646 = vsub.f32 %v8644, %v8645
    %v8647 = vand.u32 %v8646, 4294901760
    %8648 = vmatpush1.msra.mxu0 %v8647
    %v8649 = vand.u32 %v4414, 4294901760
    %v8650 = vsub.f32 %v4414, %v8649
    %v8651 = vand.u32 %v8650, 4294901760
    %v8652 = vsub.f32 %v8650, %v8651
    %v8653 = vand.u32 %v8652, 4294901760
    %8654 = vmatprep.subr.mxu0 %v8653
    %v8655 = vand.u32 %v4413, 4294901760
    %v8656 = vsub.f32 %v4413, %v8655
    %v8657 = vand.u32 %v8656, 4294901760
    %v8658 = vsub.f32 %v8656, %v8657
    %v8659 = vand.u32 %v8658, 4294901760
    %8660 = vmatpush1.msra.mxu0 %v8659
    %v8661 = vand.u32 %v4416, 4294901760
    %v8662 = vsub.f32 %v4416, %v8661
    %v8663 = vand.u32 %v8662, 4294901760
    %v8664 = vsub.f32 %v8662, %v8663
    %v8665 = vand.u32 %v8664, 4294901760
    %8666 = vmatprep.subr.mxu0 %v8665
    %v8667 = vand.u32 %v4415, 4294901760
    %v8668 = vsub.f32 %v4415, %v8667
    %v8669 = vand.u32 %v8668, 4294901760
    %v8670 = vsub.f32 %v8668, %v8669
    %v8671 = vand.u32 %v8670, 4294901760
    %8672 = vmatpush1.msra.mxu0 %v8671
    %v8673 = vand.u32 %v4418, 4294901760
    %v8674 = vsub.f32 %v4418, %v8673
    %v8675 = vand.u32 %v8674, 4294901760
    %v8676 = vsub.f32 %v8674, %v8675
    %v8677 = vand.u32 %v8676, 4294901760
    %8678 = vmatprep.subr.mxu0 %v8677
    %v8679 = vand.u32 %v4417, 4294901760
    %v8680 = vsub.f32 %v4417, %v8679
    %v8681 = vand.u32 %v8680, 4294901760
    %v8682 = vsub.f32 %v8680, %v8681
    %v8683 = vand.u32 %v8682, 4294901760
    %8684 = vmatpush1.msra.mxu0 %v8683
    %v8685 = vand.u32 %v4420, 4294901760
    %v8686 = vsub.f32 %v4420, %v8685
    %v8687 = vand.u32 %v8686, 4294901760
    %v8688 = vsub.f32 %v8686, %v8687
    %v8689 = vand.u32 %v8688, 4294901760
    %8690 = vmatprep.subr.mxu0 %v8689
    %v8691 = vand.u32 %v4419, 4294901760
    %v8692 = vsub.f32 %v4419, %v8691
    %v8693 = vand.u32 %v8692, 4294901760
    %v8694 = vsub.f32 %v8692, %v8693
    %v8695 = vand.u32 %v8694, 4294901760
    %8696 = vmatpush1.msra.mxu0 %v8695
    %v8697 = vand.u32 %v4422, 4294901760
    %v8698 = vsub.f32 %v4422, %v8697
    %v8699 = vand.u32 %v8698, 4294901760
    %v8700 = vsub.f32 %v8698, %v8699
    %v8701 = vand.u32 %v8700, 4294901760
    %8702 = vmatprep.subr.mxu0 %v8701
    %v8703 = vand.u32 %v4421, 4294901760
    %v8704 = vsub.f32 %v4421, %v8703
    %v8705 = vand.u32 %v8704, 4294901760
    %v8706 = vsub.f32 %v8704, %v8705
    %v8707 = vand.u32 %v8706, 4294901760
    %8708 = vmatpush1.msra.mxu0 %v8707
    %v8709 = vand.u32 %v4424, 4294901760
    %v8710 = vsub.f32 %v4424, %v8709
    %v8711 = vand.u32 %v8710, 4294901760
    %v8712 = vsub.f32 %v8710, %v8711
    %v8713 = vand.u32 %v8712, 4294901760
    %8714 = vmatprep.subr.mxu0 %v8713
    %v8715 = vand.u32 %v4423, 4294901760
    %v8716 = vsub.f32 %v4423, %v8715
    %v8717 = vand.u32 %v8716, 4294901760
    %v8718 = vsub.f32 %v8716, %v8717
    %v8719 = vand.u32 %v8718, 4294901760
    %8720 = vmatpush1.msra.mxu0 %v8719
    %v8721 = vand.u32 %v4426, 4294901760
    %v8722 = vsub.f32 %v4426, %v8721
    %v8723 = vand.u32 %v8722, 4294901760
    %v8724 = vsub.f32 %v8722, %v8723
    %v8725 = vand.u32 %v8724, 4294901760
    %8726 = vmatprep.subr.mxu0 %v8725
    %v8727 = vand.u32 %v4425, 4294901760
    %v8728 = vsub.f32 %v4425, %v8727
    %v8729 = vand.u32 %v8728, 4294901760
    %v8730 = vsub.f32 %v8728, %v8729
    %v8731 = vand.u32 %v8730, 4294901760
    %8732 = vmatpush1.msra.mxu0 %v8731
    %v8733 = vand.u32 %v4428, 4294901760
    %v8734 = vsub.f32 %v4428, %v8733
    %v8735 = vand.u32 %v8734, 4294901760
    %v8736 = vsub.f32 %v8734, %v8735
    %v8737 = vand.u32 %v8736, 4294901760
    %8738 = vmatprep.subr.mxu0 %v8737
    %v8739 = vand.u32 %v4427, 4294901760
    %v8740 = vsub.f32 %v4427, %v8739
    %v8741 = vand.u32 %v8740, 4294901760
    %v8742 = vsub.f32 %v8740, %v8741
    %v8743 = vand.u32 %v8742, 4294901760
    %8744 = vmatpush1.msra.mxu0 %v8743
    %v8745 = vand.u32 %v4430, 4294901760
    %v8746 = vsub.f32 %v4430, %v8745
    %v8747 = vand.u32 %v8746, 4294901760
    %v8748 = vsub.f32 %v8746, %v8747
    %v8749 = vand.u32 %v8748, 4294901760
    %8750 = vmatprep.subr.mxu0 %v8749
    %v8751 = vand.u32 %v4429, 4294901760
    %v8752 = vsub.f32 %v4429, %v8751
    %v8753 = vand.u32 %v8752, 4294901760
    %v8754 = vsub.f32 %v8752, %v8753
    %v8755 = vand.u32 %v8754, 4294901760
    %8756 = vmatpush1.msra.mxu0 %v8755
    %v8757 = vand.u32 %v4432, 4294901760
    %v8758 = vsub.f32 %v4432, %v8757
    %v8759 = vand.u32 %v8758, 4294901760
    %v8760 = vsub.f32 %v8758, %v8759
    %v8761 = vand.u32 %v8760, 4294901760
    %8762 = vmatprep.subr.mxu0 %v8761
    %v8763 = vand.u32 %v4431, 4294901760
    %v8764 = vsub.f32 %v4431, %v8763
    %v8765 = vand.u32 %v8764, 4294901760
    %v8766 = vsub.f32 %v8764, %v8765
    %v8767 = vand.u32 %v8766, 4294901760
    %8768 = vmatpush1.msra.mxu0 %v8767
    %v8769 = vand.u32 %v4434, 4294901760
    %v8770 = vsub.f32 %v4434, %v8769
    %v8771 = vand.u32 %v8770, 4294901760
    %v8772 = vsub.f32 %v8770, %v8771
    %v8773 = vand.u32 %v8772, 4294901760
    %8774 = vmatprep.subr.mxu0 %v8773
    %v8775 = vand.u32 %v4433, 4294901760
    %v8776 = vsub.f32 %v4433, %v8775
    %v8777 = vand.u32 %v8776, 4294901760
    %v8778 = vsub.f32 %v8776, %v8777
    %v8779 = vand.u32 %v8778, 4294901760
    %8780 = vmatpush1.msra.mxu0 %v8779
    %v8781 = vand.u32 %v4436, 4294901760
    %v8782 = vsub.f32 %v4436, %v8781
    %v8783 = vand.u32 %v8782, 4294901760
    %v8784 = vsub.f32 %v8782, %v8783
    %v8785 = vand.u32 %v8784, 4294901760
    %8786 = vmatprep.subr.mxu0 %v8785
    %v8787 = vand.u32 %v4435, 4294901760
    %v8788 = vsub.f32 %v4435, %v8787
    %v8789 = vand.u32 %v8788, 4294901760
    %v8790 = vsub.f32 %v8788, %v8789
    %v8791 = vand.u32 %v8790, 4294901760
    %8792 = vmatpush1.msra.mxu0 %v8791
    %v8793 = vand.u32 %v4438, 4294901760
    %v8794 = vsub.f32 %v4438, %v8793
    %v8795 = vand.u32 %v8794, 4294901760
    %v8796 = vsub.f32 %v8794, %v8795
    %v8797 = vand.u32 %v8796, 4294901760
    %8798 = vmatprep.subr.mxu0 %v8797
    %v8799 = vand.u32 %v4437, 4294901760
    %v8800 = vsub.f32 %v4437, %v8799
    %v8801 = vand.u32 %v8800, 4294901760
    %v8802 = vsub.f32 %v8800, %v8801
    %v8803 = vand.u32 %v8802, 4294901760
    %8804 = vmatpush1.msra.mxu0 %v8803
    %v8805 = vand.u32 %v4440, 4294901760
    %v8806 = vsub.f32 %v4440, %v8805
    %v8807 = vand.u32 %v8806, 4294901760
    %v8808 = vsub.f32 %v8806, %v8807
    %v8809 = vand.u32 %v8808, 4294901760
    %8810 = vmatprep.subr.mxu0 %v8809
    %v8811 = vand.u32 %v4439, 4294901760
    %v8812 = vsub.f32 %v4439, %v8811
    %v8813 = vand.u32 %v8812, 4294901760
    %v8814 = vsub.f32 %v8812, %v8813
    %v8815 = vand.u32 %v8814, 4294901760
    %8816 = vmatpush1.msra.mxu0 %v8815
    %v8817 = vand.u32 %v4442, 4294901760
    %v8818 = vsub.f32 %v4442, %v8817
    %v8819 = vand.u32 %v8818, 4294901760
    %v8820 = vsub.f32 %v8818, %v8819
    %v8821 = vand.u32 %v8820, 4294901760
    %8822 = vmatprep.subr.mxu0 %v8821
    %v8823 = vand.u32 %v4441, 4294901760
    %v8824 = vsub.f32 %v4441, %v8823
    %v8825 = vand.u32 %v8824, 4294901760
    %v8826 = vsub.f32 %v8824, %v8825
    %v8827 = vand.u32 %v8826, 4294901760
    %8828 = vmatpush1.msra.mxu0 %v8827
    %v8829 = vand.u32 %v4444, 4294901760
    %v8830 = vsub.f32 %v4444, %v8829
    %v8831 = vand.u32 %v8830, 4294901760
    %v8832 = vsub.f32 %v8830, %v8831
    %v8833 = vand.u32 %v8832, 4294901760
    %8834 = vmatprep.subr.mxu0 %v8833
    %v8835 = vand.u32 %v4443, 4294901760
    %v8836 = vsub.f32 %v4443, %v8835
    %v8837 = vand.u32 %v8836, 4294901760
    %v8838 = vsub.f32 %v8836, %v8837
    %v8839 = vand.u32 %v8838, 4294901760
    %8840 = vmatpush1.msra.mxu0 %v8839
    %v8841 = vand.u32 %v4446, 4294901760
    %v8842 = vsub.f32 %v4446, %v8841
    %v8843 = vand.u32 %v8842, 4294901760
    %v8844 = vsub.f32 %v8842, %v8843
    %v8845 = vand.u32 %v8844, 4294901760
    %8846 = vmatprep.subr.mxu0 %v8845
    %v8847 = vand.u32 %v4445, 4294901760
    %v8848 = vsub.f32 %v4445, %v8847
    %v8849 = vand.u32 %v8848, 4294901760
    %v8850 = vsub.f32 %v8848, %v8849
    %v8851 = vand.u32 %v8850, 4294901760
    %8852 = vmatpush1.msra.mxu0 %v8851
    %v8853 = vand.u32 %v4448, 4294901760
    %v8854 = vsub.f32 %v4448, %v8853
    %v8855 = vand.u32 %v8854, 4294901760
    %v8856 = vsub.f32 %v8854, %v8855
    %v8857 = vand.u32 %v8856, 4294901760
    %8858 = vmatprep.subr.mxu0 %v8857
    %v8859 = vand.u32 %v4447, 4294901760
    %v8860 = vsub.f32 %v4447, %v8859
    %v8861 = vand.u32 %v8860, 4294901760
    %v8862 = vsub.f32 %v8860, %v8861
    %v8863 = vand.u32 %v8862, 4294901760
    %8864 = vmatpush1.msra.mxu0 %v8863
    %v8865 = vand.u32 %v4450, 4294901760
    %v8866 = vsub.f32 %v4450, %v8865
    %v8867 = vand.u32 %v8866, 4294901760
    %v8868 = vsub.f32 %v8866, %v8867
    %v8869 = vand.u32 %v8868, 4294901760
    %8870 = vmatprep.subr.mxu0 %v8869
    %v8871 = vand.u32 %v4449, 4294901760
    %v8872 = vsub.f32 %v4449, %v8871
    %v8873 = vand.u32 %v8872, 4294901760
    %v8874 = vsub.f32 %v8872, %v8873
    %v8875 = vand.u32 %v8874, 4294901760
    %8876 = vmatpush1.msra.mxu0 %v8875
    %v8877 = vand.u32 %v4487, 4294901760
    %8878 = vmatprep.mubr.f32.mxu0 %v8877
    %v8879 = vand.u32 %v4485, 4294901760
    %8880 = vmatmul.mubr.f32.gmra.mrb[0].mxu0 %v8879
    %v8881 = vpop.f32.mrb[0].mxu0
    %v8882 = vadd.f32 %v8489, %v8881
    %v8883 = vpop.f32.mrb[0].mxu0
    %v8884 = vadd.f32 %v8491, %v8883
    %8885 = vdwg.mxu0
    %v8886 = vand.u32 %v4388, 4294901760
    %v8887 = vsub.f32 %v4388, %v8886
    %8888 = vmatprep.subr.mxu0 %v8887
    %v8889 = vand.u32 %v4387, 4294901760
    %v8890 = vsub.f32 %v4387, %v8889
    %8891 = vmatpush1.msra.mxu0 %v8890
    %v8892 = vand.u32 %v4390, 4294901760
    %v8893 = vsub.f32 %v4390, %v8892
    %8894 = vmatprep.subr.mxu0 %v8893
    %v8895 = vand.u32 %v4389, 4294901760
    %v8896 = vsub.f32 %v4389, %v8895
    %8897 = vmatpush1.msra.mxu0 %v8896
    %v8898 = vand.u32 %v4392, 4294901760
    %v8899 = vsub.f32 %v4392, %v8898
    %8900 = vmatprep.subr.mxu0 %v8899
    %v8901 = vand.u32 %v4391, 4294901760
    %v8902 = vsub.f32 %v4391, %v8901
    %8903 = vmatpush1.msra.mxu0 %v8902
    %v8904 = vand.u32 %v4394, 4294901760
    %v8905 = vsub.f32 %v4394, %v8904
    %8906 = vmatprep.subr.mxu0 %v8905
    %v8907 = vand.u32 %v4393, 4294901760
    %v8908 = vsub.f32 %v4393, %v8907
    %8909 = vmatpush1.msra.mxu0 %v8908
    %v8910 = vand.u32 %v4396, 4294901760
    %v8911 = vsub.f32 %v4396, %v8910
    %8912 = vmatprep.subr.mxu0 %v8911
    %v8913 = vand.u32 %v4395, 4294901760
    %v8914 = vsub.f32 %v4395, %v8913
    %8915 = vmatpush1.msra.mxu0 %v8914
    %v8916 = vand.u32 %v4398, 4294901760
    %v8917 = vsub.f32 %v4398, %v8916
    %8918 = vmatprep.subr.mxu0 %v8917
    %v8919 = vand.u32 %v4397, 4294901760
    %v8920 = vsub.f32 %v4397, %v8919
    %8921 = vmatpush1.msra.mxu0 %v8920
    %v8922 = vand.u32 %v4400, 4294901760
    %v8923 = vsub.f32 %v4400, %v8922
    %8924 = vmatprep.subr.mxu0 %v8923
    %v8925 = vand.u32 %v4399, 4294901760
    %v8926 = vsub.f32 %v4399, %v8925
    %8927 = vmatpush1.msra.mxu0 %v8926
    %v8928 = vand.u32 %v4402, 4294901760
    %v8929 = vsub.f32 %v4402, %v8928
    %8930 = vmatprep.subr.mxu0 %v8929
    %v8931 = vand.u32 %v4401, 4294901760
    %v8932 = vsub.f32 %v4401, %v8931
    %8933 = vmatpush1.msra.mxu0 %v8932
    %v8934 = vand.u32 %v4404, 4294901760
    %v8935 = vsub.f32 %v4404, %v8934
    %8936 = vmatprep.subr.mxu0 %v8935
    %v8937 = vand.u32 %v4403, 4294901760
    %v8938 = vsub.f32 %v4403, %v8937
    %8939 = vmatpush1.msra.mxu0 %v8938
    %v8940 = vand.u32 %v4406, 4294901760
    %v8941 = vsub.f32 %v4406, %v8940
    %8942 = vmatprep.subr.mxu0 %v8941
    %v8943 = vand.u32 %v4405, 4294901760
    %v8944 = vsub.f32 %v4405, %v8943
    %8945 = vmatpush1.msra.mxu0 %v8944
    %v8946 = vand.u32 %v4408, 4294901760
    %v8947 = vsub.f32 %v4408, %v8946
    %8948 = vmatprep.subr.mxu0 %v8947
    %v8949 = vand.u32 %v4407, 4294901760
    %v8950 = vsub.f32 %v4407, %v8949
    %8951 = vmatpush1.msra.mxu0 %v8950
    %v8952 = vand.u32 %v4410, 4294901760
    %v8953 = vsub.f32 %v4410, %v8952
    %8954 = vmatprep.subr.mxu0 %v8953
    %v8955 = vand.u32 %v4409, 4294901760
    %v8956 = vsub.f32 %v4409, %v8955
    %8957 = vmatpush1.msra.mxu0 %v8956
    %v8958 = vand.u32 %v4412, 4294901760
    %v8959 = vsub.f32 %v4412, %v8958
    %8960 = vmatprep.subr.mxu0 %v8959
    %v8961 = vand.u32 %v4411, 4294901760
    %v8962 = vsub.f32 %v4411, %v8961
    %8963 = vmatpush1.msra.mxu0 %v8962
    %v8964 = vand.u32 %v4414, 4294901760
    %v8965 = vsub.f32 %v4414, %v8964
    %8966 = vmatprep.subr.mxu0 %v8965
    %v8967 = vand.u32 %v4413, 4294901760
    %v8968 = vsub.f32 %v4413, %v8967
    %8969 = vmatpush1.msra.mxu0 %v8968
    %v8970 = vand.u32 %v4416, 4294901760
    %v8971 = vsub.f32 %v4416, %v8970
    %8972 = vmatprep.subr.mxu0 %v8971
    %v8973 = vand.u32 %v4415, 4294901760
    %v8974 = vsub.f32 %v4415, %v8973
    %8975 = vmatpush1.msra.mxu0 %v8974
    %v8976 = vand.u32 %v4418, 4294901760
    %v8977 = vsub.f32 %v4418, %v8976
    %8978 = vmatprep.subr.mxu0 %v8977
    %v8979 = vand.u32 %v4417, 4294901760
    %v8980 = vsub.f32 %v4417, %v8979
    %8981 = vmatpush1.msra.mxu0 %v8980
    %v8982 = vand.u32 %v4420, 4294901760
    %v8983 = vsub.f32 %v4420, %v8982
    %8984 = vmatprep.subr.mxu0 %v8983
    %v8985 = vand.u32 %v4419, 4294901760
    %v8986 = vsub.f32 %v4419, %v8985
    %8987 = vmatpush1.msra.mxu0 %v8986
    %v8988 = vand.u32 %v4422, 4294901760
    %v8989 = vsub.f32 %v4422, %v8988
    %8990 = vmatprep.subr.mxu0 %v8989
    %v8991 = vand.u32 %v4421, 4294901760
    %v8992 = vsub.f32 %v4421, %v8991
    %8993 = vmatpush1.msra.mxu0 %v8992
    %v8994 = vand.u32 %v4424, 4294901760
    %v8995 = vsub.f32 %v4424, %v8994
    %8996 = vmatprep.subr.mxu0 %v8995
    %v8997 = vand.u32 %v4423, 4294901760
    %v8998 = vsub.f32 %v4423, %v8997
    %8999 = vmatpush1.msra.mxu0 %v8998
    %v9000 = vand.u32 %v4426, 4294901760
    %v9001 = vsub.f32 %v4426, %v9000
    %9002 = vmatprep.subr.mxu0 %v9001
    %v9003 = vand.u32 %v4425, 4294901760
    %v9004 = vsub.f32 %v4425, %v9003
    %9005 = vmatpush1.msra.mxu0 %v9004
    %v9006 = vand.u32 %v4428, 4294901760
    %v9007 = vsub.f32 %v4428, %v9006
    %9008 = vmatprep.subr.mxu0 %v9007
    %v9009 = vand.u32 %v4427, 4294901760
    %v9010 = vsub.f32 %v4427, %v9009
    %9011 = vmatpush1.msra.mxu0 %v9010
    %v9012 = vand.u32 %v4430, 4294901760
    %v9013 = vsub.f32 %v4430, %v9012
    %9014 = vmatprep.subr.mxu0 %v9013
    %v9015 = vand.u32 %v4429, 4294901760
    %v9016 = vsub.f32 %v4429, %v9015
    %9017 = vmatpush1.msra.mxu0 %v9016
    %v9018 = vand.u32 %v4432, 4294901760
    %v9019 = vsub.f32 %v4432, %v9018
    %9020 = vmatprep.subr.mxu0 %v9019
    %v9021 = vand.u32 %v4431, 4294901760
    %v9022 = vsub.f32 %v4431, %v9021
    %9023 = vmatpush1.msra.mxu0 %v9022
    %v9024 = vand.u32 %v4434, 4294901760
    %v9025 = vsub.f32 %v4434, %v9024
    %9026 = vmatprep.subr.mxu0 %v9025
    %v9027 = vand.u32 %v4433, 4294901760
    %v9028 = vsub.f32 %v4433, %v9027
    %9029 = vmatpush1.msra.mxu0 %v9028
    %v9030 = vand.u32 %v4436, 4294901760
    %v9031 = vsub.f32 %v4436, %v9030
    %9032 = vmatprep.subr.mxu0 %v9031
    %v9033 = vand.u32 %v4435, 4294901760
    %v9034 = vsub.f32 %v4435, %v9033
    %9035 = vmatpush1.msra.mxu0 %v9034
    %v9036 = vand.u32 %v4438, 4294901760
    %v9037 = vsub.f32 %v4438, %v9036
    %9038 = vmatprep.subr.mxu0 %v9037
    %v9039 = vand.u32 %v4437, 4294901760
    %v9040 = vsub.f32 %v4437, %v9039
    %9041 = vmatpush1.msra.mxu0 %v9040
    %v9042 = vand.u32 %v4440, 4294901760
    %v9043 = vsub.f32 %v4440, %v9042
    %9044 = vmatprep.subr.mxu0 %v9043
    %v9045 = vand.u32 %v4439, 4294901760
    %v9046 = vsub.f32 %v4439, %v9045
    %9047 = vmatpush1.msra.mxu0 %v9046
    %v9048 = vand.u32 %v4442, 4294901760
    %v9049 = vsub.f32 %v4442, %v9048
    %9050 = vmatprep.subr.mxu0 %v9049
    %v9051 = vand.u32 %v4441, 4294901760
    %v9052 = vsub.f32 %v4441, %v9051
    %9053 = vmatpush1.msra.mxu0 %v9052
    %v9054 = vand.u32 %v4444, 4294901760
    %v9055 = vsub.f32 %v4444, %v9054
    %9056 = vmatprep.subr.mxu0 %v9055
    %v9057 = vand.u32 %v4443, 4294901760
    %v9058 = vsub.f32 %v4443, %v9057
    %9059 = vmatpush1.msra.mxu0 %v9058
    %v9060 = vand.u32 %v4446, 4294901760
    %v9061 = vsub.f32 %v4446, %v9060
    %9062 = vmatprep.subr.mxu0 %v9061
    %v9063 = vand.u32 %v4445, 4294901760
    %v9064 = vsub.f32 %v4445, %v9063
    %9065 = vmatpush1.msra.mxu0 %v9064
    %v9066 = vand.u32 %v4448, 4294901760
    %v9067 = vsub.f32 %v4448, %v9066
    %9068 = vmatprep.subr.mxu0 %v9067
    %v9069 = vand.u32 %v4447, 4294901760
    %v9070 = vsub.f32 %v4447, %v9069
    %9071 = vmatpush1.msra.mxu0 %v9070
    %v9072 = vand.u32 %v4450, 4294901760
    %v9073 = vsub.f32 %v4450, %v9072
    %9074 = vmatprep.subr.mxu0 %v9073
    %v9075 = vand.u32 %v4449, 4294901760
    %v9076 = vsub.f32 %v4449, %v9075
    %9077 = vmatpush1.msra.mxu0 %v9076
    %v9078 = vand.u32 %v4487, 4294901760
    %v9079 = vsub.f32 %v4487, %v9078
    %9080 = vmatprep.mubr.f32.mxu0 %v9079
    %v9081 = vand.u32 %v4485, 4294901760
    %v9082 = vsub.f32 %v4485, %v9081
    %9083 = vmatmul.mubr.f32.gmra.mrb[0].mxu0 %v9082
    %v9084 = vpop.f32.mrb[0].mxu0
    %v9085 = vadd.f32 %v8882, %v9084
    %v9086 = vpop.f32.mrb[0].mxu0
    %v9087 = vadd.f32 %v8884, %v9086
    %9088 = vdwg.mxu0
    %v9089 = vand.u32 %v4388, 4294901760
    %9090 = vmatprep.subr.mxu0 %v9089
    %v9091 = vand.u32 %v4387, 4294901760
    %9092 = vmatpush1.msra.mxu0 %v9091
    %v9093 = vand.u32 %v4390, 4294901760
    %9094 = vmatprep.subr.mxu0 %v9093
    %v9095 = vand.u32 %v4389, 4294901760
    %9096 = vmatpush1.msra.mxu0 %v9095
    %v9097 = vand.u32 %v4392, 4294901760
    %9098 = vmatprep.subr.mxu0 %v9097
    %v9099 = vand.u32 %v4391, 4294901760
    %9100 = vmatpush1.msra.mxu0 %v9099
    %v9101 = vand.u32 %v4394, 4294901760
    %9102 = vmatprep.subr.mxu0 %v9101
    %v9103 = vand.u32 %v4393, 4294901760
    %9104 = vmatpush1.msra.mxu0 %v9103
    %v9105 = vand.u32 %v4396, 4294901760
    %9106 = vmatprep.subr.mxu0 %v9105
    %v9107 = vand.u32 %v4395, 4294901760
    %9108 = vmatpush1.msra.mxu0 %v9107
    %v9109 = vand.u32 %v4398, 4294901760
    %9110 = vmatprep.subr.mxu0 %v9109
    %v9111 = vand.u32 %v4397, 4294901760
    %9112 = vmatpush1.msra.mxu0 %v9111
    %v9113 = vand.u32 %v4400, 4294901760
    %9114 = vmatprep.subr.mxu0 %v9113
    %v9115 = vand.u32 %v4399, 4294901760
    %9116 = vmatpush1.msra.mxu0 %v9115
    %v9117 = vand.u32 %v4402, 4294901760
    %9118 = vmatprep.subr.mxu0 %v9117
    %v9119 = vand.u32 %v4401, 4294901760
    %9120 = vmatpush1.msra.mxu0 %v9119
    %v9121 = vand.u32 %v4404, 4294901760
    %9122 = vmatprep.subr.mxu0 %v9121
    %v9123 = vand.u32 %v4403, 4294901760
    %9124 = vmatpush1.msra.mxu0 %v9123
    %v9125 = vand.u32 %v4406, 4294901760
    %9126 = vmatprep.subr.mxu0 %v9125
    %v9127 = vand.u32 %v4405, 4294901760
    %9128 = vmatpush1.msra.mxu0 %v9127
    %v9129 = vand.u32 %v4408, 4294901760
    %9130 = vmatprep.subr.mxu0 %v9129
    %v9131 = vand.u32 %v4407, 4294901760
    %9132 = vmatpush1.msra.mxu0 %v9131
    %v9133 = vand.u32 %v4410, 4294901760
    %9134 = vmatprep.subr.mxu0 %v9133
    %v9135 = vand.u32 %v4409, 4294901760
    %9136 = vmatpush1.msra.mxu0 %v9135
    %v9137 = vand.u32 %v4412, 4294901760
    %9138 = vmatprep.subr.mxu0 %v9137
    %v9139 = vand.u32 %v4411, 4294901760
    %9140 = vmatpush1.msra.mxu0 %v9139
    %v9141 = vand.u32 %v4414, 4294901760
    %9142 = vmatprep.subr.mxu0 %v9141
    %v9143 = vand.u32 %v4413, 4294901760
    %9144 = vmatpush1.msra.mxu0 %v9143
    %v9145 = vand.u32 %v4416, 4294901760
    %9146 = vmatprep.subr.mxu0 %v9145
    %v9147 = vand.u32 %v4415, 4294901760
    %9148 = vmatpush1.msra.mxu0 %v9147
    %v9149 = vand.u32 %v4418, 4294901760
    %9150 = vmatprep.subr.mxu0 %v9149
    %v9151 = vand.u32 %v4417, 4294901760
    %9152 = vmatpush1.msra.mxu0 %v9151
    %v9153 = vand.u32 %v4420, 4294901760
    %9154 = vmatprep.subr.mxu0 %v9153
    %v9155 = vand.u32 %v4419, 4294901760
    %9156 = vmatpush1.msra.mxu0 %v9155
    %v9157 = vand.u32 %v4422, 4294901760
    %9158 = vmatprep.subr.mxu0 %v9157
    %v9159 = vand.u32 %v4421, 4294901760
    %9160 = vmatpush1.msra.mxu0 %v9159
    %v9161 = vand.u32 %v4424, 4294901760
    %9162 = vmatprep.subr.mxu0 %v9161
    %v9163 = vand.u32 %v4423, 4294901760
    %9164 = vmatpush1.msra.mxu0 %v9163
    %v9165 = vand.u32 %v4426, 4294901760
    %9166 = vmatprep.subr.mxu0 %v9165
    %v9167 = vand.u32 %v4425, 4294901760
    %9168 = vmatpush1.msra.mxu0 %v9167
    %v9169 = vand.u32 %v4428, 4294901760
    %9170 = vmatprep.subr.mxu0 %v9169
    %v9171 = vand.u32 %v4427, 4294901760
    %9172 = vmatpush1.msra.mxu0 %v9171
    %v9173 = vand.u32 %v4430, 4294901760
    %9174 = vmatprep.subr.mxu0 %v9173
    %v9175 = vand.u32 %v4429, 4294901760
    %9176 = vmatpush1.msra.mxu0 %v9175
    %v9177 = vand.u32 %v4432, 4294901760
    %9178 = vmatprep.subr.mxu0 %v9177
    %v9179 = vand.u32 %v4431, 4294901760
    %9180 = vmatpush1.msra.mxu0 %v9179
    %v9181 = vand.u32 %v4434, 4294901760
    %9182 = vmatprep.subr.mxu0 %v9181
    %v9183 = vand.u32 %v4433, 4294901760
    %9184 = vmatpush1.msra.mxu0 %v9183
    %v9185 = vand.u32 %v4436, 4294901760
    %9186 = vmatprep.subr.mxu0 %v9185
    %v9187 = vand.u32 %v4435, 4294901760
    %9188 = vmatpush1.msra.mxu0 %v9187
    %v9189 = vand.u32 %v4438, 4294901760
    %9190 = vmatprep.subr.mxu0 %v9189
    %v9191 = vand.u32 %v4437, 4294901760
    %9192 = vmatpush1.msra.mxu0 %v9191
    %v9193 = vand.u32 %v4440, 4294901760
    %9194 = vmatprep.subr.mxu0 %v9193
    %v9195 = vand.u32 %v4439, 4294901760
    %9196 = vmatpush1.msra.mxu0 %v9195
    %v9197 = vand.u32 %v4442, 4294901760
    %9198 = vmatprep.subr.mxu0 %v9197
    %v9199 = vand.u32 %v4441, 4294901760
    %9200 = vmatpush1.msra.mxu0 %v9199
    %v9201 = vand.u32 %v4444, 4294901760
    %9202 = vmatprep.subr.mxu0 %v9201
    %v9203 = vand.u32 %v4443, 4294901760
    %9204 = vmatpush1.msra.mxu0 %v9203
    %v9205 = vand.u32 %v4446, 4294901760
    %9206 = vmatprep.subr.mxu0 %v9205
    %v9207 = vand.u32 %v4445, 4294901760
    %9208 = vmatpush1.msra.mxu0 %v9207
    %v9209 = vand.u32 %v4448, 4294901760
    %9210 = vmatprep.subr.mxu0 %v9209
    %v9211 = vand.u32 %v4447, 4294901760
    %9212 = vmatpush1.msra.mxu0 %v9211
    %v9213 = vand.u32 %v4450, 4294901760
    %9214 = vmatprep.subr.mxu0 %v9213
    %v9215 = vand.u32 %v4449, 4294901760
    %9216 = vmatpush1.msra.mxu0 %v9215
    %v9217 = vand.u32 %v4487, 4294901760
    %v9218 = vsub.f32 %v4487, %v9217
    %v9219 = vand.u32 %v9218, 4294901760
    %9220 = vmatprep.mubr.f32.mxu0 %v9219
    %v9221 = vand.u32 %v4485, 4294901760
    %v9222 = vsub.f32 %v4485, %v9221
    %v9223 = vand.u32 %v9222, 4294901760
    %9224 = vmatmul.mubr.f32.gmra.mrb[0].mxu0 %v9223
    %v9225 = vpop.f32.mrb[0].mxu0
    %v9226 = vadd.f32 %v9085, %v9225
    %v9227 = vpop.f32.mrb[0].mxu0
    %v9228 = vadd.f32 %v9087, %v9227
    %9229 = vdwg.mxu0
    %v9230 = vand.u32 %v4388, 4294901760
    %v9231 = vsub.f32 %v4388, %v9230
    %v9232 = vand.u32 %v9231, 4294901760
    %9233 = vmatprep.subr.mxu0 %v9232
    %v9234 = vand.u32 %v4387, 4294901760
    %v9235 = vsub.f32 %v4387, %v9234
    %v9236 = vand.u32 %v9235, 4294901760
    %9237 = vmatpush1.msra.mxu0 %v9236
    %v9238 = vand.u32 %v4390, 4294901760
    %v9239 = vsub.f32 %v4390, %v9238
    %v9240 = vand.u32 %v9239, 4294901760
    %9241 = vmatprep.subr.mxu0 %v9240
    %v9242 = vand.u32 %v4389, 4294901760
    %v9243 = vsub.f32 %v4389, %v9242
    %v9244 = vand.u32 %v9243, 4294901760
    %9245 = vmatpush1.msra.mxu0 %v9244
    %v9246 = vand.u32 %v4392, 4294901760
    %v9247 = vsub.f32 %v4392, %v9246
    %v9248 = vand.u32 %v9247, 4294901760
    %9249 = vmatprep.subr.mxu0 %v9248
    %v9250 = vand.u32 %v4391, 4294901760
    %v9251 = vsub.f32 %v4391, %v9250
    %v9252 = vand.u32 %v9251, 4294901760
    %9253 = vmatpush1.msra.mxu0 %v9252
    %v9254 = vand.u32 %v4394, 4294901760
    %v9255 = vsub.f32 %v4394, %v9254
    %v9256 = vand.u32 %v9255, 4294901760
    %9257 = vmatprep.subr.mxu0 %v9256
    %v9258 = vand.u32 %v4393, 4294901760
    %v9259 = vsub.f32 %v4393, %v9258
    %v9260 = vand.u32 %v9259, 4294901760
    %9261 = vmatpush1.msra.mxu0 %v9260
    %v9262 = vand.u32 %v4396, 4294901760
    %v9263 = vsub.f32 %v4396, %v9262
    %v9264 = vand.u32 %v9263, 4294901760
    %9265 = vmatprep.subr.mxu0 %v9264
    %v9266 = vand.u32 %v4395, 4294901760
    %v9267 = vsub.f32 %v4395, %v9266
    %v9268 = vand.u32 %v9267, 4294901760
    %9269 = vmatpush1.msra.mxu0 %v9268
    %v9270 = vand.u32 %v4398, 4294901760
    %v9271 = vsub.f32 %v4398, %v9270
    %v9272 = vand.u32 %v9271, 4294901760
    %9273 = vmatprep.subr.mxu0 %v9272
    %v9274 = vand.u32 %v4397, 4294901760
    %v9275 = vsub.f32 %v4397, %v9274
    %v9276 = vand.u32 %v9275, 4294901760
    %9277 = vmatpush1.msra.mxu0 %v9276
    %v9278 = vand.u32 %v4400, 4294901760
    %v9279 = vsub.f32 %v4400, %v9278
    %v9280 = vand.u32 %v9279, 4294901760
    %9281 = vmatprep.subr.mxu0 %v9280
    %v9282 = vand.u32 %v4399, 4294901760
    %v9283 = vsub.f32 %v4399, %v9282
    %v9284 = vand.u32 %v9283, 4294901760
    %9285 = vmatpush1.msra.mxu0 %v9284
    %v9286 = vand.u32 %v4402, 4294901760
    %v9287 = vsub.f32 %v4402, %v9286
    %v9288 = vand.u32 %v9287, 4294901760
    %9289 = vmatprep.subr.mxu0 %v9288
    %v9290 = vand.u32 %v4401, 4294901760
    %v9291 = vsub.f32 %v4401, %v9290
    %v9292 = vand.u32 %v9291, 4294901760
    %9293 = vmatpush1.msra.mxu0 %v9292
    %v9294 = vand.u32 %v4404, 4294901760
    %v9295 = vsub.f32 %v4404, %v9294
    %v9296 = vand.u32 %v9295, 4294901760
    %9297 = vmatprep.subr.mxu0 %v9296
    %v9298 = vand.u32 %v4403, 4294901760
    %v9299 = vsub.f32 %v4403, %v9298
    %v9300 = vand.u32 %v9299, 4294901760
    %9301 = vmatpush1.msra.mxu0 %v9300
    %v9302 = vand.u32 %v4406, 4294901760
    %v9303 = vsub.f32 %v4406, %v9302
    %v9304 = vand.u32 %v9303, 4294901760
    %9305 = vmatprep.subr.mxu0 %v9304
    %v9306 = vand.u32 %v4405, 4294901760
    %v9307 = vsub.f32 %v4405, %v9306
    %v9308 = vand.u32 %v9307, 4294901760
    %9309 = vmatpush1.msra.mxu0 %v9308
    %v9310 = vand.u32 %v4408, 4294901760
    %v9311 = vsub.f32 %v4408, %v9310
    %v9312 = vand.u32 %v9311, 4294901760
    %9313 = vmatprep.subr.mxu0 %v9312
    %v9314 = vand.u32 %v4407, 4294901760
    %v9315 = vsub.f32 %v4407, %v9314
    %v9316 = vand.u32 %v9315, 4294901760
    %9317 = vmatpush1.msra.mxu0 %v9316
    %v9318 = vand.u32 %v4410, 4294901760
    %v9319 = vsub.f32 %v4410, %v9318
    %v9320 = vand.u32 %v9319, 4294901760
    %9321 = vmatprep.subr.mxu0 %v9320
    %v9322 = vand.u32 %v4409, 4294901760
    %v9323 = vsub.f32 %v4409, %v9322
    %v9324 = vand.u32 %v9323, 4294901760
    %9325 = vmatpush1.msra.mxu0 %v9324
    %v9326 = vand.u32 %v4412, 4294901760
    %v9327 = vsub.f32 %v4412, %v9326
    %v9328 = vand.u32 %v9327, 4294901760
    %9329 = vmatprep.subr.mxu0 %v9328
    %v9330 = vand.u32 %v4411, 4294901760
    %v9331 = vsub.f32 %v4411, %v9330
    %v9332 = vand.u32 %v9331, 4294901760
    %9333 = vmatpush1.msra.mxu0 %v9332
    %v9334 = vand.u32 %v4414, 4294901760
    %v9335 = vsub.f32 %v4414, %v9334
    %v9336 = vand.u32 %v9335, 4294901760
    %9337 = vmatprep.subr.mxu0 %v9336
    %v9338 = vand.u32 %v4413, 4294901760
    %v9339 = vsub.f32 %v4413, %v9338
    %v9340 = vand.u32 %v9339, 4294901760
    %9341 = vmatpush1.msra.mxu0 %v9340
    %v9342 = vand.u32 %v4416, 4294901760
    %v9343 = vsub.f32 %v4416, %v9342
    %v9344 = vand.u32 %v9343, 4294901760
    %9345 = vmatprep.subr.mxu0 %v9344
    %v9346 = vand.u32 %v4415, 4294901760
    %v9347 = vsub.f32 %v4415, %v9346
    %v9348 = vand.u32 %v9347, 4294901760
    %9349 = vmatpush1.msra.mxu0 %v9348
    %v9350 = vand.u32 %v4418, 4294901760
    %v9351 = vsub.f32 %v4418, %v9350
    %v9352 = vand.u32 %v9351, 4294901760
    %9353 = vmatprep.subr.mxu0 %v9352
    %v9354 = vand.u32 %v4417, 4294901760
    %v9355 = vsub.f32 %v4417, %v9354
    %v9356 = vand.u32 %v9355, 4294901760
    %9357 = vmatpush1.msra.mxu0 %v9356
    %v9358 = vand.u32 %v4420, 4294901760
    %v9359 = vsub.f32 %v4420, %v9358
    %v9360 = vand.u32 %v9359, 4294901760
    %9361 = vmatprep.subr.mxu0 %v9360
    %v9362 = vand.u32 %v4419, 4294901760
    %v9363 = vsub.f32 %v4419, %v9362
    %v9364 = vand.u32 %v9363, 4294901760
    %9365 = vmatpush1.msra.mxu0 %v9364
    %v9366 = vand.u32 %v4422, 4294901760
    %v9367 = vsub.f32 %v4422, %v9366
    %v9368 = vand.u32 %v9367, 4294901760
    %9369 = vmatprep.subr.mxu0 %v9368
    %v9370 = vand.u32 %v4421, 4294901760
    %v9371 = vsub.f32 %v4421, %v9370
    %v9372 = vand.u32 %v9371, 4294901760
    %9373 = vmatpush1.msra.mxu0 %v9372
    %v9374 = vand.u32 %v4424, 4294901760
    %v9375 = vsub.f32 %v4424, %v9374
    %v9376 = vand.u32 %v9375, 4294901760
    %9377 = vmatprep.subr.mxu0 %v9376
    %v9378 = vand.u32 %v4423, 4294901760
    %v9379 = vsub.f32 %v4423, %v9378
    %v9380 = vand.u32 %v9379, 4294901760
    %9381 = vmatpush1.msra.mxu0 %v9380
    %v9382 = vand.u32 %v4426, 4294901760
    %v9383 = vsub.f32 %v4426, %v9382
    %v9384 = vand.u32 %v9383, 4294901760
    %9385 = vmatprep.subr.mxu0 %v9384
    %v9386 = vand.u32 %v4425, 4294901760
    %v9387 = vsub.f32 %v4425, %v9386
    %v9388 = vand.u32 %v9387, 4294901760
    %9389 = vmatpush1.msra.mxu0 %v9388
    %v9390 = vand.u32 %v4428, 4294901760
    %v9391 = vsub.f32 %v4428, %v9390
    %v9392 = vand.u32 %v9391, 4294901760
    %9393 = vmatprep.subr.mxu0 %v9392
    %v9394 = vand.u32 %v4427, 4294901760
    %v9395 = vsub.f32 %v4427, %v9394
    %v9396 = vand.u32 %v9395, 4294901760
    %9397 = vmatpush1.msra.mxu0 %v9396
    %v9398 = vand.u32 %v4430, 4294901760
    %v9399 = vsub.f32 %v4430, %v9398
    %v9400 = vand.u32 %v9399, 4294901760
    %9401 = vmatprep.subr.mxu0 %v9400
    %v9402 = vand.u32 %v4429, 4294901760
    %v9403 = vsub.f32 %v4429, %v9402
    %v9404 = vand.u32 %v9403, 4294901760
    %9405 = vmatpush1.msra.mxu0 %v9404
    %v9406 = vand.u32 %v4432, 4294901760
    %v9407 = vsub.f32 %v4432, %v9406
    %v9408 = vand.u32 %v9407, 4294901760
    %9409 = vmatprep.subr.mxu0 %v9408
    %v9410 = vand.u32 %v4431, 4294901760
    %v9411 = vsub.f32 %v4431, %v9410
    %v9412 = vand.u32 %v9411, 4294901760
    %9413 = vmatpush1.msra.mxu0 %v9412
    %v9414 = vand.u32 %v4434, 4294901760
    %v9415 = vsub.f32 %v4434, %v9414
    %v9416 = vand.u32 %v9415, 4294901760
    %9417 = vmatprep.subr.mxu0 %v9416
    %v9418 = vand.u32 %v4433, 4294901760
    %v9419 = vsub.f32 %v4433, %v9418
    %v9420 = vand.u32 %v9419, 4294901760
    %9421 = vmatpush1.msra.mxu0 %v9420
    %v9422 = vand.u32 %v4436, 4294901760
    %v9423 = vsub.f32 %v4436, %v9422
    %v9424 = vand.u32 %v9423, 4294901760
    %9425 = vmatprep.subr.mxu0 %v9424
    %v9426 = vand.u32 %v4435, 4294901760
    %v9427 = vsub.f32 %v4435, %v9426
    %v9428 = vand.u32 %v9427, 4294901760
    %9429 = vmatpush1.msra.mxu0 %v9428
    %v9430 = vand.u32 %v4438, 4294901760
    %v9431 = vsub.f32 %v4438, %v9430
    %v9432 = vand.u32 %v9431, 4294901760
    %9433 = vmatprep.subr.mxu0 %v9432
    %v9434 = vand.u32 %v4437, 4294901760
    %v9435 = vsub.f32 %v4437, %v9434
    %v9436 = vand.u32 %v9435, 4294901760
    %9437 = vmatpush1.msra.mxu0 %v9436
    %v9438 = vand.u32 %v4440, 4294901760
    %v9439 = vsub.f32 %v4440, %v9438
    %v9440 = vand.u32 %v9439, 4294901760
    %9441 = vmatprep.subr.mxu0 %v9440
    %v9442 = vand.u32 %v4439, 4294901760
    %v9443 = vsub.f32 %v4439, %v9442
    %v9444 = vand.u32 %v9443, 4294901760
    %9445 = vmatpush1.msra.mxu0 %v9444
    %v9446 = vand.u32 %v4442, 4294901760
    %v9447 = vsub.f32 %v4442, %v9446
    %v9448 = vand.u32 %v9447, 4294901760
    %9449 = vmatprep.subr.mxu0 %v9448
    %v9450 = vand.u32 %v4441, 4294901760
    %v9451 = vsub.f32 %v4441, %v9450
    %v9452 = vand.u32 %v9451, 4294901760
    %9453 = vmatpush1.msra.mxu0 %v9452
    %v9454 = vand.u32 %v4444, 4294901760
    %v9455 = vsub.f32 %v4444, %v9454
    %v9456 = vand.u32 %v9455, 4294901760
    %9457 = vmatprep.subr.mxu0 %v9456
    %v9458 = vand.u32 %v4443, 4294901760
    %v9459 = vsub.f32 %v4443, %v9458
    %v9460 = vand.u32 %v9459, 4294901760
    %9461 = vmatpush1.msra.mxu0 %v9460
    %v9462 = vand.u32 %v4446, 4294901760
    %v9463 = vsub.f32 %v4446, %v9462
    %v9464 = vand.u32 %v9463, 4294901760
    %9465 = vmatprep.subr.mxu0 %v9464
    %v9466 = vand.u32 %v4445, 4294901760
    %v9467 = vsub.f32 %v4445, %v9466
    %v9468 = vand.u32 %v9467, 4294901760
    %9469 = vmatpush1.msra.mxu0 %v9468
    %v9470 = vand.u32 %v4448, 4294901760
    %v9471 = vsub.f32 %v4448, %v9470
    %v9472 = vand.u32 %v9471, 4294901760
    %9473 = vmatprep.subr.mxu0 %v9472
    %v9474 = vand.u32 %v4447, 4294901760
    %v9475 = vsub.f32 %v4447, %v9474
    %v9476 = vand.u32 %v9475, 4294901760
    %9477 = vmatpush1.msra.mxu0 %v9476
    %v9478 = vand.u32 %v4450, 4294901760
    %v9479 = vsub.f32 %v4450, %v9478
    %v9480 = vand.u32 %v9479, 4294901760
    %9481 = vmatprep.subr.mxu0 %v9480
    %v9482 = vand.u32 %v4449, 4294901760
    %v9483 = vsub.f32 %v4449, %v9482
    %v9484 = vand.u32 %v9483, 4294901760
    %9485 = vmatpush1.msra.mxu0 %v9484
    %v9486 = vand.u32 %v4487, 4294901760
    %9487 = vmatprep.mubr.f32.mxu0 %v9486
    %v9488 = vand.u32 %v4485, 4294901760
    %9489 = vmatmul.mubr.f32.gmra.mrb[0].mxu0 %v9488
    %v9490 = vpop.f32.mrb[0].mxu0
    %v9491 = vadd.f32 %v9226, %v9490
    %v9492 = vpop.f32.mrb[0].mxu0
    %v9493 = vadd.f32 %v9228, %v9492
    %9494 = vdwg.mxu0
    %v9495 = vand.u32 %v4388, 4294901760
    %9496 = vmatprep.subr.mxu0 %v9495
    %v9497 = vand.u32 %v4387, 4294901760
    %9498 = vmatpush1.msra.mxu0 %v9497
    %v9499 = vand.u32 %v4390, 4294901760
    %9500 = vmatprep.subr.mxu0 %v9499
    %v9501 = vand.u32 %v4389, 4294901760
    %9502 = vmatpush1.msra.mxu0 %v9501
    %v9503 = vand.u32 %v4392, 4294901760
    %9504 = vmatprep.subr.mxu0 %v9503
    %v9505 = vand.u32 %v4391, 4294901760
    %9506 = vmatpush1.msra.mxu0 %v9505
    %v9507 = vand.u32 %v4394, 4294901760
    %9508 = vmatprep.subr.mxu0 %v9507
    %v9509 = vand.u32 %v4393, 4294901760
    %9510 = vmatpush1.msra.mxu0 %v9509
    %v9511 = vand.u32 %v4396, 4294901760
    %9512 = vmatprep.subr.mxu0 %v9511
    %v9513 = vand.u32 %v4395, 4294901760
    %9514 = vmatpush1.msra.mxu0 %v9513
    %v9515 = vand.u32 %v4398, 4294901760
    %9516 = vmatprep.subr.mxu0 %v9515
    %v9517 = vand.u32 %v4397, 4294901760
    %9518 = vmatpush1.msra.mxu0 %v9517
    %v9519 = vand.u32 %v4400, 4294901760
    %9520 = vmatprep.subr.mxu0 %v9519
    %v9521 = vand.u32 %v4399, 4294901760
    %9522 = vmatpush1.msra.mxu0 %v9521
    %v9523 = vand.u32 %v4402, 4294901760
    %9524 = vmatprep.subr.mxu0 %v9523
    %v9525 = vand.u32 %v4401, 4294901760
    %9526 = vmatpush1.msra.mxu0 %v9525
    %v9527 = vand.u32 %v4404, 4294901760
    %9528 = vmatprep.subr.mxu0 %v9527
    %v9529 = vand.u32 %v4403, 4294901760
    %9530 = vmatpush1.msra.mxu0 %v9529
    %v9531 = vand.u32 %v4406, 4294901760
    %9532 = vmatprep.subr.mxu0 %v9531
    %v9533 = vand.u32 %v4405, 4294901760
    %9534 = vmatpush1.msra.mxu0 %v9533
    %v9535 = vand.u32 %v4408, 4294901760
    %9536 = vmatprep.subr.mxu0 %v9535
    %v9537 = vand.u32 %v4407, 4294901760
    %9538 = vmatpush1.msra.mxu0 %v9537
    %v9539 = vand.u32 %v4410, 4294901760
    %9540 = vmatprep.subr.mxu0 %v9539
    %v9541 = vand.u32 %v4409, 4294901760
    %9542 = vmatpush1.msra.mxu0 %v9541
    %v9543 = vand.u32 %v4412, 4294901760
    %9544 = vmatprep.subr.mxu0 %v9543
    %v9545 = vand.u32 %v4411, 4294901760
    %9546 = vmatpush1.msra.mxu0 %v9545
    %v9547 = vand.u32 %v4414, 4294901760
    %9548 = vmatprep.subr.mxu0 %v9547
    %v9549 = vand.u32 %v4413, 4294901760
    %9550 = vmatpush1.msra.mxu0 %v9549
    %v9551 = vand.u32 %v4416, 4294901760
    %9552 = vmatprep.subr.mxu0 %v9551
    %v9553 = vand.u32 %v4415, 4294901760
    %9554 = vmatpush1.msra.mxu0 %v9553
    %v9555 = vand.u32 %v4418, 4294901760
    %9556 = vmatprep.subr.mxu0 %v9555
    %v9557 = vand.u32 %v4417, 4294901760
    %9558 = vmatpush1.msra.mxu0 %v9557
    %v9559 = vand.u32 %v4420, 4294901760
    %9560 = vmatprep.subr.mxu0 %v9559
    %v9561 = vand.u32 %v4419, 4294901760
    %9562 = vmatpush1.msra.mxu0 %v9561
    %v9563 = vand.u32 %v4422, 4294901760
    %9564 = vmatprep.subr.mxu0 %v9563
    %v9565 = vand.u32 %v4421, 4294901760
    %9566 = vmatpush1.msra.mxu0 %v9565
    %v9567 = vand.u32 %v4424, 4294901760
    %9568 = vmatprep.subr.mxu0 %v9567
    %v9569 = vand.u32 %v4423, 4294901760
    %9570 = vmatpush1.msra.mxu0 %v9569
    %v9571 = vand.u32 %v4426, 4294901760
    %9572 = vmatprep.subr.mxu0 %v9571
    %v9573 = vand.u32 %v4425, 4294901760
    %9574 = vmatpush1.msra.mxu0 %v9573
    %v9575 = vand.u32 %v4428, 4294901760
    %9576 = vmatprep.subr.mxu0 %v9575
    %v9577 = vand.u32 %v4427, 4294901760
    %9578 = vmatpush1.msra.mxu0 %v9577
    %v9579 = vand.u32 %v4430, 4294901760
    %9580 = vmatprep.subr.mxu0 %v9579
    %v9581 = vand.u32 %v4429, 4294901760
    %9582 = vmatpush1.msra.mxu0 %v9581
    %v9583 = vand.u32 %v4432, 4294901760
    %9584 = vmatprep.subr.mxu0 %v9583
    %v9585 = vand.u32 %v4431, 4294901760
    %9586 = vmatpush1.msra.mxu0 %v9585
    %v9587 = vand.u32 %v4434, 4294901760
    %9588 = vmatprep.subr.mxu0 %v9587
    %v9589 = vand.u32 %v4433, 4294901760
    %9590 = vmatpush1.msra.mxu0 %v9589
    %v9591 = vand.u32 %v4436, 4294901760
    %9592 = vmatprep.subr.mxu0 %v9591
    %v9593 = vand.u32 %v4435, 4294901760
    %9594 = vmatpush1.msra.mxu0 %v9593
    %v9595 = vand.u32 %v4438, 4294901760
    %9596 = vmatprep.subr.mxu0 %v9595
    %v9597 = vand.u32 %v4437, 4294901760
    %9598 = vmatpush1.msra.mxu0 %v9597
    %v9599 = vand.u32 %v4440, 4294901760
    %9600 = vmatprep.subr.mxu0 %v9599
    %v9601 = vand.u32 %v4439, 4294901760
    %9602 = vmatpush1.msra.mxu0 %v9601
    %v9603 = vand.u32 %v4442, 4294901760
    %9604 = vmatprep.subr.mxu0 %v9603
    %v9605 = vand.u32 %v4441, 4294901760
    %9606 = vmatpush1.msra.mxu0 %v9605
    %v9607 = vand.u32 %v4444, 4294901760
    %9608 = vmatprep.subr.mxu0 %v9607
    %v9609 = vand.u32 %v4443, 4294901760
    %9610 = vmatpush1.msra.mxu0 %v9609
    %v9611 = vand.u32 %v4446, 4294901760
    %9612 = vmatprep.subr.mxu0 %v9611
    %v9613 = vand.u32 %v4445, 4294901760
    %9614 = vmatpush1.msra.mxu0 %v9613
    %v9615 = vand.u32 %v4448, 4294901760
    %9616 = vmatprep.subr.mxu0 %v9615
    %v9617 = vand.u32 %v4447, 4294901760
    %9618 = vmatpush1.msra.mxu0 %v9617
    %v9619 = vand.u32 %v4450, 4294901760
    %9620 = vmatprep.subr.mxu0 %v9619
    %v9621 = vand.u32 %v4449, 4294901760
    %9622 = vmatpush1.msra.mxu0 %v9621
    %v9623 = vand.u32 %v4487, 4294901760
    %9624 = vmatprep.mubr.f32.mxu0 %v9623
    %v9625 = vand.u32 %v4485, 4294901760
    %9626 = vmatmul.mubr.f32.gmra.mrb[0].mxu0 %v9625
    %v9627 = vpop.f32.mrb[0].mxu0
    %v9628 = vadd.f32 %v9491, %v9627
    %v9629 = vpop.f32.mrb[0].mxu0
    %v9630 = vadd.f32 %v9493, %v9629
    %9631 = vdwg.mxu0
    %v9632 = vadd.f32 %v4189, %v9628
    %v9633 = vadd.f32 %v4191, %v9630
    %v9634 = vsub.f32 0.0, %v9632
    %v9635 = vsub.f32 0.0, %v9633
    %v9636 = vmul.f32 %v9634, 1.442695
    %v9637 = vpow.pop %v9636
    %v9638 = vmul.f32 %v9635, 1.442695
    %v9639 = vpow.pop %v9638
    %v9640 = vadd.f32 %v9637, 1.0
    %v9641 = vadd.f32 %v9639, 1.0
    %v9642 = vrcp.pop %v9640
    %v9643 = vmul.f32 1.0, %v9642
    %v9644 = vrcp.pop %v9641
    %v9645 = vmul.f32 1.0, %v9644
    %v9648 = vcombine.low %v9632, %v9633
    %v9650 = vunpack.c.l.s4 1983009808
    %v9651 = vunpack.c.0.s8 %v9650
    %v9652 = vlaneseq
    %v9653 = vshrl.u32 %v9652, 7
    %v9654 = vsub.s32 %v9651, %v9653
    %v9655 = vrot.slane %v9648, %v9654
    %9657 = vst [vmem:[#allocation16] sm:$0xf] %v9655
    %v9658 = vld [vmem:[#allocation6] sm:$0xf]
    %v9661 = vcombine.low %v9643, %v9645
    %v9663 = vunpack.c.l.s4 1983009808
    %v9664 = vunpack.c.0.s8 %v9663
    %v9665 = vlaneseq
    %v9666 = vshrl.u32 %v9665, 7
    %v9667 = vsub.s32 %v9664, %v9666
    %v9668 = vrot.slane %v9661, %v9667
    %v9670 = vmul.f32 %v9658, %v9668
    %9671 = vst [vmem:[#allocation15] sm:$0xf] %v9670
    %v9672 = vld [vmem:[#allocation6 + $0x4] sm:$0xf]
    %v9673 = vmul.f32 %v9672, %v9668
    %9674 = vst [vmem:[#allocation15 + $0x4] sm:$0xf] %v9673
    %v9675 = vld [vmem:[#allocation6 + $0x8] sm:$0xf]
    %v9676 = vmul.f32 %v9675, %v9668
    %9677 = vst [vmem:[#allocation15 + $0x8] sm:$0xf] %v9676
    %v9678 = vld [vmem:[#allocation6 + $0xc] sm:$0xf]
    %v9679 = vmul.f32 %v9678, %v9668
    %9680 = vst [vmem:[#allocation15 + $0xc] sm:$0xf] %v9679
    // Predicated region
    $region58: #{tpu_custom_call.1} parent=1 // pred_check
      _
    $region59: #{tpu_custom_call.1} parent=1 // pred_check_branch
      %9682 = sbr.rel (0) target = $region61
    $region60: #{tpu_custom_call.1} parent=1 // pred_region
      %s9684 = ssub.s32 256, 256
      %9685 = vsyncadd [#allocation4], %s9684
      %s9687 = sshll.u32 [#allocation15], 4
      %s9688 = int_to_ptr.vmem [resolvable:$true] %s9687
      %9690 = dma.vmem_to_hbm [thread:$0]  %s9688, 256, %s7, [#allocation4]
    $region61: #{tpu_custom_call.1} parent=1 // pred_fallthru
      _
    // Predicated region
    $region62: #{tpu_custom_call.1} parent=1 // pred_check
      _
    $region63: #{tpu_custom_call.1} parent=1 // pred_check_branch
      %9692 = sbr.rel (0) target = $region65
    $region64: #{tpu_custom_call.1} parent=1 // pred_region
      %s9694 = ssub.s32 64, 64
      %9695 = vsyncadd [#allocation17], %s9694
      %s9697 = sshll.u32 [#allocation16], 4
      %s9698 = int_to_ptr.vmem [resolvable:$true] %s9697
      %9700 = dma.vmem_to_hbm [thread:$0]  %s9698, 64, %s8, [#allocation17]
    $region65: #{tpu_custom_call.1} parent=1 // pred_fallthru
      _
    // Predicated region
    $region66: #{tpu_custom_call.1} parent=1 // pred_check
      _
    $region67: #{tpu_custom_call.1} parent=1 // pred_check_branch
      %9702 = sbr.rel (0) target = $region69
    $region68: #{tpu_custom_call.1} parent=1 // pred_region
      %9703 = dma.done [#allocation4], 256
    $region69: #{tpu_custom_call.1} parent=1 // pred_fallthru
      _
    // Predicated region
    $region70: #{tpu_custom_call.1} parent=1 // pred_check
      _
    $region71: #{tpu_custom_call.1} parent=1 // pred_check_branch
      %9705 = sbr.rel (0) target = $region73
    $region72: #{tpu_custom_call.1} parent=1 // pred_region
      %9706 = dma.done [#allocation17], 64
    $region73: #{tpu_custom_call.1} parent=1 // pred_fallthru
      _
    %9707 = vsyncpa [#allocation3], 1
    %9708 = vsyncpa [#allocation8], 1
    %9709 = vsyncpa [#allocation11], 1
    %9710 = vsyncpa [#allocation14], 1
    %9711 = vsyncpa [#allocation4], 1
    %9712 = vsyncpa [#allocation17], 1
    %9713 = vsyncpa [#allocation5], 1

</llo_original>
